<compile_context>
chip_gen: v6e
topology: v6e:2x2x1
jax: 0.10.0
libtpu: 0.0.40
codegen_flags: <defaults>
</compile_context>

<pallas_src>
import functools

import jax
import jax.numpy as jnp
import numpy as np
from jax.experimental import pallas as pl
from jax.experimental.pallas import tpu as pltpu

LANES = 128

# ---------------------- geometry (shape == 64 branch) -----------------------
H_IN = W_IN = 64
C_IN = 3
C1, C2 = 6, 16
KH = KW = 5
H1C, W1C = H_IN - KH + 1, W_IN - KW + 1          # 60, 60  conv1 output
H1P, W1P = H1C // 2, W1C // 2                    # 30, 30  after pool1
H2C, W2C = H1P - KH + 1, W1P - KW + 1            # 26, 26  conv2 output
H2P, W2P = H2C // 2, W2C // 2                    # 13, 13  after pool2
H1P_HALF = H1P // 2                              # 15 parity-split pool1 rows
K1 = W_IN * C_IN                                 # 192 conv1 row width
K2 = W1P * C1                                    # 180 conv2 row width
K2P = 256                                        # conv2 row width, lane-padded
HALF1 = 256                                      # padded cols per pool-w half (>= W1P*C1)
HALF2 = 256                                      # padded cols per pool-w half (>= W2P*C2)
FC_IN = H2P * HALF2                              # 3328 padded fc1 input width

assert H_IN % 4 == 0
assert H1C % 2 == 0 and W1C % 2 == 0 and H2C % 2 == 0 and W2C % 2 == 0
assert W1P * C1 <= HALF1 and W2P * C2 <= HALF2
assert K2P == HALF1                              # stage-1 output feeds stage-2 dot


# ------------------------------ Pallas kernels -------------------------------

def _conv_kernel(x4_ref, t1_ref, b1_ref, t2_ref, b2_ref, o_ref):
    """Both conv stages (conv + bias + ReLU + 2x2 maxpool) for ONE image,
    entirely on-chip.

    x4_ref: (1, 4, H_IN//4, K1) bf16  image rows split by (row mod 4); row t of
                                      phase m is image row 4t+m, flattened (W,C).
    t1_ref: (KH, K1, 2*HALF1)  bf16   block-Toeplitz conv1 weight; column
                                      pw*HALF1 + wp*C1 + co.
    b1_ref: (1, HALF1)         f32    conv1 bias tiled over wp.
    t2_ref: (KH, K2P, 2*HALF2) bf16   block-Toeplitz conv2 weight (rows padded).
    b2_ref: (1, HALF2)         f32    conv2 bias tiled over wp2.
    o_ref : (1, H2P, HALF2)    bf16   pooled conv2 activation, row hp2,
                                      column wp2*C2 + co2 (zeros past W2P*C2).
    """
    # ---- stage 1: conv1 + bias + ReLU + 2x2 maxpool -------------------------
    # accs1[par][ph][hh] = conv1 output row (4*hh + 2*par + ph), columns
    # (pw, wp, co).  Loop order keeps the same Toeplitz RHS for 4 dots in a row.
    accs1 = [[None, None], [None, None]]
    for i in range(KH):
        rhs = t1_ref[i]                                        # (K1, 2*HALF1)
        for par in range(2):
            for ph in range(2):
                s = 2 * par + ph
                m, d = (s + i) % 4, (s + i) // 4
                lhs = x4_ref[0, m, pl.ds(d, H1P_HALF), :]      # (15, K1) bf16
                part = jnp.dot(lhs, rhs, preferred_element_type=jnp.float32)
                a = accs1[par][ph]
                accs1[par][ph] = part if a is None else a + part

    # p1[par][hh] = pooled1 row (2*hh + par), columns wp*C1 + co.
    p1 = []
    for par in range(2):
        a = jnp.maximum(accs1[par][0], accs1[par][1])          # pool over row offset
        a = jnp.maximum(a[:, :HALF1], a[:, HALF1:])            # pool over col offset
        p1.append(jnp.maximum(a + b1_ref[...], 0.0).astype(jnp.bfloat16))

    # ---- stage 2: conv2 + bias + ReLU + 2x2 maxpool -------------------------
    accs2 = [None, None]                                       # per pool-row offset
    for i in range(KH):
        rhs = t2_ref[i]                                        # (K2P, 2*HALF2)
        for ph2 in range(2):
            par, d = (ph2 + i) % 2, (ph2 + i) // 2
            lhs = p1[par][d:d + H2P, :]                        # (13, HALF1) bf16
            part = jnp.dot(lhs, rhs, preferred_element_type=jnp.float32)
            a = accs2[ph2]
            accs2[ph2] = part if a is None else a + part

    a = jnp.maximum(accs2[0], accs2[1])
    a = jnp.maximum(a[:, :HALF2], a[:, HALF2:])
    o_ref[0] = jnp.maximum(a + b2_ref[...], 0.0).astype(o_ref.dtype)


def _fc_kernel(x_ref, w1_ref, b1_ref, w2_ref, b2_ref, w3_ref, b3_ref, o_ref):
    """fc1 -> ReLU -> fc2 -> ReLU -> fc3; all intermediates stay on chip."""
    h = jnp.dot(x_ref[...], w1_ref[...],
                preferred_element_type=jnp.float32) + b1_ref[...]
    h = jnp.maximum(h, 0.0).astype(jnp.bfloat16)
    h = jnp.dot(h, w2_ref[...],
                preferred_element_type=jnp.float32) + b2_ref[...]
    h = jnp.maximum(h, 0.0).astype(jnp.bfloat16)
    h = jnp.dot(h, w3_ref[...],
                preferred_element_type=jnp.float32) + b3_ref[...]
    o_ref[...] = h.astype(o_ref.dtype)


# ------------------------------ Pallas wrappers ------------------------------

def conv_stages(x4, t1, b1, t2, b2):
    """x4: (N, 4, 16, K1) bf16 -> (N, H2P, HALF2) bf16 pooled conv2 features."""
    N = x4.shape[0]
    return pl.pallas_call(
        _conv_kernel,
        out_shape=jax.ShapeDtypeStruct((N, H2P, HALF2), jnp.bfloat16),
        grid_spec=pltpu.PrefetchScalarGridSpec(
            num_scalar_prefetch=0,
            grid=(N,),
            in_specs=[
                pl.BlockSpec((1, 4, H_IN // 4, K1), lambda n: (n, 0, 0, 0)),
                pl.BlockSpec((KH, K1, 2 * HALF1), lambda n: (0, 0, 0)),
                pl.BlockSpec((1, HALF1), lambda n: (0, 0)),
                pl.BlockSpec((KH, K2P, 2 * HALF2), lambda n: (0, 0, 0)),
                pl.BlockSpec((1, HALF2), lambda n: (0, 0)),
            ],
            out_specs=pl.BlockSpec((1, H2P, HALF2), lambda n: (n, 0, 0)),
        ),
        compiler_params=pltpu.CompilerParams(
            dimension_semantics=("parallel",)),
    )(x4, t1, b1, t2, b2)


def fc_fused(x, w1, b1, w2, b2, w3, b3):
    """x: (N, FC_IN) bf16; weights lane-padded to 128 -> (N, 128) f32."""
    N = x.shape[0]
    return pl.pallas_call(
        _fc_kernel,
        out_shape=jax.ShapeDtypeStruct((N, LANES), jnp.float32),
        grid_spec=pltpu.PrefetchScalarGridSpec(
            num_scalar_prefetch=0,
            grid=(1,),
            in_specs=[
                pl.BlockSpec((N, FC_IN), lambda i: (0, 0)),
                pl.BlockSpec((FC_IN, LANES), lambda i: (0, 0)),
                pl.BlockSpec((1, LANES), lambda i: (0, 0)),
                pl.BlockSpec((LANES, LANES), lambda i: (0, 0)),
                pl.BlockSpec((1, LANES), lambda i: (0, 0)),
                pl.BlockSpec((LANES, LANES), lambda i: (0, 0)),
                pl.BlockSpec((1, LANES), lambda i: (0, 0)),
            ],
            out_specs=pl.BlockSpec((N, LANES), lambda i: (0, 0)),
        ),
        compiler_params=pltpu.CompilerParams(
            dimension_semantics=("arbitrary",)),
    )(x, w1, b1, w2, b2, w3, b3)


# ------------------------ one-time parameter preparation ---------------------

def _toeplitz(conv_w, w_in, half):
    """PyTorch OIHW conv weight -> (KH, w_in*Cin, 2*half) block-Toeplitz
    matrices T_i with
        T_i[w*Cin + ci, pw*half + wp*Cout + co] = conv_w[co, ci, i, w-(2wp+pw)]
    (zero outside the 5-tap window), so that summing (image row (oh+i)) @ T_i
    over i gives conv output row oh laid out as (pool-col offset pw,
    pooled column wp, out channel co)."""
    conv_w = np.asarray(conv_w, np.float32)
    cout, cin, kh, kw = conv_w.shape
    wp_n = (w_in - kw + 1) // 2
    T = np.zeros((kh, w_in * cin, 2 * half), np.float32)
    for i in range(kh):
        for j in range(kw):
            wm = conv_w[:, :, i, j].T                          # (Cin, Cout)
            for pw in range(2):
                for wp in range(wp_n):
                    w = 2 * wp + pw + j
                    col = pw * half + wp * cout
                    T[i, w * cin:(w + 1) * cin, col:col + cout] = wm
    return T


def prepare_params(params, num_classes):
    """One-time (outside jit) rearrangement of the PyTorch-layout parameters
    into the padded bf16 Toeplitz / FC forms the kernels consume."""
    p = {k: np.asarray(v, np.float32) for k, v in params.items()}
    assert p["fc1_w"].shape == (120, C2 * H2P * W2P)

    t1 = _toeplitz(p["conv1_w"], W_IN, HALF1)                  # (5, 192, 512)
    t2 = _toeplitz(p["conv2_w"], W1P, HALF2)                   # (5, 180, 512)
    t2 = np.pad(t2, ((0, 0), (0, K2P - t2.shape[1]), (0, 0)))  # rows -> 256

    b1 = np.zeros((1, HALF1), np.float32)
    b1[0, :W1P * C1] = np.tile(p["conv1_b"], W1P)
    b2 = np.zeros((1, HALF2), np.float32)
    b2[0, :W2P * C2] = np.tile(p["conv2_b"], W2P)

    # fc1: PyTorch flatten order is (co2, hp2, wp2); kernel feature layout is
    # hp2*HALF2 + wp2*C2 + co2 (zeros past W2P*C2 within each row chunk).
    fc1 = p["fc1_w"].reshape(120, C2, H2P, W2P)
    blk = np.transpose(fc1, (2, 3, 1, 0))                      # (hp, wp, co, o)
    w1 = np.zeros((FC_IN, LANES), np.float32)
    for hp in range(H2P):
        w1[hp * HALF2: hp * HALF2 + W2P * C2, :120] = blk[hp].reshape(W2P * C2, 120)
    fb1 = np.zeros((1, LANES), np.float32); fb1[0, :120] = p["fc1_b"]

    w2 = np.zeros((LANES, LANES), np.float32); w2[:120, :2] = p["fc2_w"].T
    fb2 = np.zeros((1, LANES), np.float32); fb2[0, :2] = p["fc2_b"]
    w3 = np.zeros((LANES, LANES), np.float32)
    w3[:2, :num_classes] = p["fc3_w"].T
    fb3 = np.zeros((1, LANES), np.float32); fb3[0, :num_classes] = p["fc3_b"]

    bf = jnp.bfloat16
    return dict(
        t1=jnp.asarray(t1, bf), b1=jnp.asarray(b1),
        t2=jnp.asarray(t2, bf), b2=jnp.asarray(b2),
        w1=jnp.asarray(w1, bf), fb1=jnp.asarray(fb1),
        w2=jnp.asarray(w2, bf), fb2=jnp.asarray(fb2),
        w3=jnp.asarray(w3, bf), fb3=jnp.asarray(fb3),
    )


# -------------------------------- CNN forward --------------------------------

def cnn_forward(x, prepped, *, num_classes):
    """x: (N, 3, 64, 64) float32 NCHW -> (N, num_classes) float32."""
    N = x.shape[0]
    assert x.shape[1:] == (C_IN, H_IN, W_IN)

    # NCHW -> per-image row vectors (H, W*C), split by (row mod 4) so every
    # in-kernel patch slice is contiguous.  No im2col duplication in HBM.
    xh = jnp.transpose(x, (0, 2, 3, 1)).reshape(N, H_IN, K1)       # (N, 64, 192)
    x4 = xh.reshape(N, H_IN // 4, 4, K1).transpose(0, 2, 1, 3)     # (N, 4, 16, 192)
    x4 = x4.astype(jnp.bfloat16)

    feats = conv_stages(x4, prepped["t1"], prepped["b1"],
                        prepped["t2"], prepped["b2"])              # (N, 13, 256)
    feats = feats.reshape(N, FC_IN)

    out = fc_fused(feats, prepped["w1"], prepped["fb1"],
                   prepped["w2"], prepped["fb2"],
                   prepped["w3"], prepped["fb3"])                  # (N, 128) f32
    return out[:, :num_classes]


# ---------------------------- reference (pure JAX) ----------------------------

def cnn_forward_reference(x, params):
    def conv(x, w, b):
        y = jax.lax.conv_general_dilated(
            x, w, (1, 1), "VALID",
            dimension_numbers=("NCHW", "OIHW", "NCHW"))
        return y + b[None, :, None, None]

    def pool(x):
        N, C, H, W = x.shape
        return x.reshape(N, C, H // 2, 2, W // 2, 2).max(axis=(3, 5))

    y = pool(jax.nn.relu(conv(x, params["conv1_w"], params["conv1_b"])))
    y = pool(jax.nn.relu(conv(y, params["conv2_w"], params["conv2_b"])))
    y = y.reshape(y.shape[0], -1)
    y = jax.nn.relu(y @ params["fc1_w"].T + params["fc1_b"])
    y = jax.nn.relu(y @ params["fc2_w"].T + params["fc2_b"])
    y = y @ params["fc3_w"].T + params["fc3_b"]
    return y


# -------------------------------- param init ---------------------------------

def init_params(key, num_classes):
    def u(k, shape, fan_in):
        bound = 1.0 / np.sqrt(fan_in)
        return jax.random.uniform(k, shape, jnp.float32, -bound, bound)

    ks = jax.random.split(key, 10)
    return dict(
        conv1_w=u(ks[0], (6, 3, 5, 5), 3 * 25),
        conv1_b=u(ks[1], (6,), 3 * 25),
        conv2_w=u(ks[2], (16, 6, 5, 5), 6 * 25),
        conv2_b=u(ks[3], (16,), 6 * 25),
        fc1_w=u(ks[4], (120, 2704), 2704),
        fc1_b=u(ks[5], (120,), 2704),
        fc2_w=u(ks[6], (2, 120), 120),
        fc2_b=u(ks[7], (2,), 120),
        fc3_w=u(ks[8], (num_classes, 2), 2),
        fc3_b=u(ks[9], (2,), 2),
    ) | {"fc3_b": u(ks[9], (num_classes,), 2)}


# ----------------------------------- main -------------------------------------

if __name__ == "__main__":
    num_classes = 4
    key = jax.random.PRNGKey(0)
    k_params, k_x = jax.random.split(key)
    params = init_params(k_params, num_classes)
    prepped = prepare_params(params, num_classes)   # one-time, outside jit

    # shape=64 branch of the module => fc1 expects 16*13*13 = 2704.
    x = jax.random.normal(k_x, (2, 3, 64, 64), jnp.float32)

    fwd = jax.jit(functools.partial(cnn_forward, num_classes=num_classes))
    out = jax.block_until_ready(fwd(x, prepped))

    ref = cnn_forward_reference(x, params)
    np.testing.assert_allclose(np.asarray(out), np.asarray(ref),
                               rtol=2e-2, atol=2e-2)
    assert out.shape == (2, num_classes)
    print("KERNEL_OK")
</pallas_src>

<mosaic_0001>
module attributes {stable_mosaic.version = 11 : i64} {
  func.func @_fc_kernel(%arg0: i32, %arg1: memref<2x3328xbf16, #tpu.memory_space<vmem>>, %arg2: memref<3328x128xbf16, #tpu.memory_space<vmem>>, %arg3: memref<1x128xf32, #tpu.memory_space<vmem>>, %arg4: memref<128x128xbf16, #tpu.memory_space<vmem>>, %arg5: memref<1x128xf32, #tpu.memory_space<vmem>>, %arg6: memref<128x128xbf16, #tpu.memory_space<vmem>>, %arg7: memref<1x128xf32, #tpu.memory_space<vmem>>, %arg8: memref<2x128xf32, #tpu.memory_space<vmem>>) attributes {dimension_semantics = [#tpu.dimension_semantics<arbitrary>], iteration_bounds = array<i64: 1>, scalar_prefetch = 0 : i64, scratch_operands = 0 : i64, tpu.core_type = #tpu.core_type<tc>, window_params = [{pipeline_mode = #tpu.pipeline_mode<synchronous>, transform_indices = @transform_0, window_bounds = array<i64: 2, 3328>}, {pipeline_mode = #tpu.pipeline_mode<synchronous>, transform_indices = @transform_1, window_bounds = array<i64: 3328, 128>}, {pipeline_mode = #tpu.pipeline_mode<synchronous>, transform_indices = @transform_2, window_bounds = array<i64: 1, 128>}, {pipeline_mode = #tpu.pipeline_mode<synchronous>, transform_indices = @transform_3, window_bounds = array<i64: 128, 128>}, {pipeline_mode = #tpu.pipeline_mode<synchronous>, transform_indices = @transform_4, window_bounds = array<i64: 1, 128>}, {pipeline_mode = #tpu.pipeline_mode<synchronous>, transform_indices = @transform_5, window_bounds = array<i64: 128, 128>}, {pipeline_mode = #tpu.pipeline_mode<synchronous>, transform_indices = @transform_6, window_bounds = array<i64: 1, 128>}, {pipeline_mode = #tpu.pipeline_mode<synchronous>, transform_indices = @transform_7, window_bounds = array<i64: 2, 128>}]} {
    %c0 = arith.constant 0 : index
    %c0_0 = arith.constant 0 : index
    %0 = vector.load %arg1[%c0, %c0_0] : memref<2x3328xbf16, #tpu.memory_space<vmem>>, vector<2x3328xbf16>
    %c0_1 = arith.constant 0 : index
    %c0_2 = arith.constant 0 : index
    %1 = vector.load %arg2[%c0_1, %c0_2] : memref<3328x128xbf16, #tpu.memory_space<vmem>>, vector<3328x128xbf16>
    %cst = arith.constant dense<0.000000e+00> : vector<2x128xf32>
    %2 = tpu.matmul %0, %1, %cst {dimension_numbers = #tpu.dot_dimension_numbers<[1], [0], [0], [1], [0, 0, 1, 1], [], []>} : vector<2x3328xbf16>, vector<3328x128xbf16>, vector<2x128xf32> -> vector<2x128xf32>
    %c0_3 = arith.constant 0 : index
    %c0_4 = arith.constant 0 : index
    %3 = vector.load %arg3[%c0_3, %c0_4] : memref<1x128xf32, #tpu.memory_space<vmem>>, vector<1x128xf32>
    %4 = vector.broadcast %3 : vector<1x128xf32> to vector<2x128xf32>
    %5 = arith.addf %2, %4 : vector<2x128xf32>
    %cst_5 = arith.constant 0.000000e+00 : f32
    %6 = vector.broadcast %cst_5 : f32 to vector<2x128xf32>
    %7 = arith.maximumf %5, %6 : vector<2x128xf32>
    %8 = arith.truncf %7 : vector<2x128xf32> to vector<2x128xbf16>
    %c0_6 = arith.constant 0 : index
    %c0_7 = arith.constant 0 : index
    %9 = vector.load %arg4[%c0_6, %c0_7] : memref<128x128xbf16, #tpu.memory_space<vmem>>, vector<128x128xbf16>
    %cst_8 = arith.constant dense<0.000000e+00> : vector<2x128xf32>
    %10 = tpu.matmul %8, %9, %cst_8 {dimension_numbers = #tpu.dot_dimension_numbers<[1], [0], [0], [1], [0, 0, 1, 1], [], []>} : vector<2x128xbf16>, vector<128x128xbf16>, vector<2x128xf32> -> vector<2x128xf32>
    %c0_9 = arith.constant 0 : index
    %c0_10 = arith.constant 0 : index
    %11 = vector.load %arg5[%c0_9, %c0_10] : memref<1x128xf32, #tpu.memory_space<vmem>>, vector<1x128xf32>
    %12 = vector.broadcast %11 : vector<1x128xf32> to vector<2x128xf32>
    %13 = arith.addf %10, %12 : vector<2x128xf32>
    %cst_11 = arith.constant 0.000000e+00 : f32
    %14 = vector.broadcast %cst_11 : f32 to vector<2x128xf32>
    %15 = arith.maximumf %13, %14 : vector<2x128xf32>
    %16 = arith.truncf %15 : vector<2x128xf32> to vector<2x128xbf16>
    %c0_12 = arith.constant 0 : index
    %c0_13 = arith.constant 0 : index
    %17 = vector.load %arg6[%c0_12, %c0_13] : memref<128x128xbf16, #tpu.memory_space<vmem>>, vector<128x128xbf16>
    %cst_14 = arith.constant dense<0.000000e+00> : vector<2x128xf32>
    %18 = tpu.matmul %16, %17, %cst_14 {dimension_numbers = #tpu.dot_dimension_numbers<[1], [0], [0], [1], [0, 0, 1, 1], [], []>} : vector<2x128xbf16>, vector<128x128xbf16>, vector<2x128xf32> -> vector<2x128xf32>
    %c0_15 = arith.constant 0 : index
    %c0_16 = arith.constant 0 : index
    %19 = vector.load %arg7[%c0_15, %c0_16] : memref<1x128xf32, #tpu.memory_space<vmem>>, vector<1x128xf32>
    %20 = vector.broadcast %19 : vector<1x128xf32> to vector<2x128xf32>
    %21 = arith.addf %18, %20 : vector<2x128xf32>
    %c0_17 = arith.constant 0 : index
    %c0_18 = arith.constant 0 : index
    %22 = vector.load %arg8[%c0_17, %c0_18] : memref<2x128xf32, #tpu.memory_space<vmem>>, vector<2x128xf32>
    tpu.vector_store %arg8[%c0_17, %c0_18], %21 {strides = array<i32>} : memref<2x128xf32, #tpu.memory_space<vmem>>, vector<2x128xf32>,
    return
  }
  func.func @transform_0(%arg0: i32) -> (i32, i32) {
    %c0_i32 = arith.constant 0 : i32
    %c0_i32_0 = arith.constant 0 : i32
    %c0_i32_1 = arith.constant 0 : i32
    return %c0_i32, %c0_i32_0 : i32, i32
  }
  func.func @transform_1(%arg0: i32) -> (i32, i32) {
    %c0_i32 = arith.constant 0 : i32
    %c0_i32_0 = arith.constant 0 : i32
    %c0_i32_1 = arith.constant 0 : i32
    return %c0_i32, %c0_i32_0 : i32, i32
  }
  func.func @transform_2(%arg0: i32) -> (i32, i32) {
    %c0_i32 = arith.constant 0 : i32
    %c0_i32_0 = arith.constant 0 : i32
    %c0_i32_1 = arith.constant 0 : i32
    return %c0_i32, %c0_i32_0 : i32, i32
  }
  func.func @transform_3(%arg0: i32) -> (i32, i32) {
    %c0_i32 = arith.constant 0 : i32
    %c0_i32_0 = arith.constant 0 : i32
    %c0_i32_1 = arith.constant 0 : i32
    return %c0_i32, %c0_i32_0 : i32, i32
  }
  func.func @transform_4(%arg0: i32) -> (i32, i32) {
    %c0_i32 = arith.constant 0 : i32
    %c0_i32_0 = arith.constant 0 : i32
    %c0_i32_1 = arith.constant 0 : i32
    return %c0_i32, %c0_i32_0 : i32, i32
  }
  func.func @transform_5(%arg0: i32) -> (i32, i32) {
    %c0_i32 = arith.constant 0 : i32
    %c0_i32_0 = arith.constant 0 : i32
    %c0_i32_1 = arith.constant 0 : i32
    return %c0_i32, %c0_i32_0 : i32, i32
  }
  func.func @transform_6(%arg0: i32) -> (i32, i32) {
    %c0_i32 = arith.constant 0 : i32
    %c0_i32_0 = arith.constant 0 : i32
    %c0_i32_1 = arith.constant 0 : i32
    return %c0_i32, %c0_i32_0 : i32, i32
  }
  func.func @transform_7(%arg0: i32) -> (i32, i32) {
    %c0_i32 = arith.constant 0 : i32
    %c0_i32_0 = arith.constant 0 : i32
    %c0_i32_1 = arith.constant 0 : i32
    return %c0_i32, %c0_i32_0 : i32, i32
  }
}

module attributes {stable_mosaic.version = 11 : i64} {
  func.func @_conv_kernel(%arg0: i32, %arg1: memref<1x4x16x192xbf16, #tpu.memory_space<vmem>>, %arg2: memref<5x192x512xbf16, #tpu.memory_space<vmem>>, %arg3: memref<1x256xf32, #tpu.memory_space<vmem>>, %arg4: memref<5x256x512xbf16, #tpu.memory_space<vmem>>, %arg5: memref<1x256xf32, #tpu.memory_space<vmem>>, %arg6: memref<1x13x256xbf16, #tpu.memory_space<vmem>>) attributes {dimension_semantics = [#tpu.dimension_semantics<parallel>], iteration_bounds = array<i64: 2>, scalar_prefetch = 0 : i64, scratch_operands = 0 : i64, tpu.core_type = #tpu.core_type<tc>, window_params = [{transform_indices = @transform_0, window_bounds = array<i64: 1, 4, 16, 192>}, {pipeline_mode = #tpu.pipeline_mode<synchronous>, transform_indices = @transform_1, window_bounds = array<i64: 5, 192, 512>}, {pipeline_mode = #tpu.pipeline_mode<synchronous>, transform_indices = @transform_2, window_bounds = array<i64: 1, 256>}, {pipeline_mode = #tpu.pipeline_mode<synchronous>, transform_indices = @transform_3, window_bounds = array<i64: 5, 256, 512>}, {pipeline_mode = #tpu.pipeline_mode<synchronous>, transform_indices = @transform_4, window_bounds = array<i64: 1, 256>}, {transform_indices = @transform_5, window_bounds = array<i64: 1, 13, 256>}]} {
    %c0 = arith.constant 0 : index
    %c0_0 = arith.constant 0 : index
    %c0_1 = arith.constant 0 : index
    %0 = vector.load %arg2[%c0, %c0_0, %c0_1] : memref<5x192x512xbf16, #tpu.memory_space<vmem>>, vector<1x192x512xbf16>
    %1 = vector.shape_cast %0 : vector<1x192x512xbf16> to vector<192x512xbf16>
    %c0_2 = arith.constant 0 : index
    %c0_3 = arith.constant 0 : index
    %c0_4 = arith.constant 0 : index
    %c0_5 = arith.constant 0 : index
    %2 = vector.load %arg1[%c0_2, %c0_3, %c0_4, %c0_5] : memref<1x4x16x192xbf16, #tpu.memory_space<vmem>>, vector<1x1x15x192xbf16>
    %3 = vector.shape_cast %2 : vector<1x1x15x192xbf16> to vector<15x192xbf16>
    %cst = arith.constant dense<0.000000e+00> : vector<15x512xf32>
    %4 = tpu.matmul %3, %1, %cst {dimension_numbers = #tpu.dot_dimension_numbers<[1], [0], [0], [1], [0, 0, 1, 1], [], []>} : vector<15x192xbf16>, vector<192x512xbf16>, vector<15x512xf32> -> vector<15x512xf32>
    %c0_6 = arith.constant 0 : index
    %c1 = arith.constant 1 : index
    %c0_7 = arith.constant 0 : index
    %c0_8 = arith.constant 0 : index
    %5 = vector.load %arg1[%c0_6, %c1, %c0_7, %c0_8] : memref<1x4x16x192xbf16, #tpu.memory_space<vmem>>, vector<1x1x15x192xbf16>
    %6 = vector.shape_cast %5 : vector<1x1x15x192xbf16> to vector<15x192xbf16>
    %cst_9 = arith.constant dense<0.000000e+00> : vector<15x512xf32>
    %7 = tpu.matmul %6, %1, %cst_9 {dimension_numbers = #tpu.dot_dimension_numbers<[1], [0], [0], [1], [0, 0, 1, 1], [], []>} : vector<15x192xbf16>, vector<192x512xbf16>, vector<15x512xf32> -> vector<15x512xf32>
    %c0_10 = arith.constant 0 : index
    %c2 = arith.constant 2 : index
    %c0_11 = arith.constant 0 : index
    %c0_12 = arith.constant 0 : index
    %8 = vector.load %arg1[%c0_10, %c2, %c0_11, %c0_12] : memref<1x4x16x192xbf16, #tpu.memory_space<vmem>>, vector<1x1x15x192xbf16>
    %9 = vector.shape_cast %8 : vector<1x1x15x192xbf16> to vector<15x192xbf16>
    %cst_13 = arith.constant dense<0.000000e+00> : vector<15x512xf32>
    %10 = tpu.matmul %9, %1, %cst_13 {dimension_numbers = #tpu.dot_dimension_numbers<[1], [0], [0], [1], [0, 0, 1, 1], [], []>} : vector<15x192xbf16>, vector<192x512xbf16>, vector<15x512xf32> -> vector<15x512xf32>
    %c0_14 = arith.constant 0 : index
    %c3 = arith.constant 3 : index
    %c0_15 = arith.constant 0 : index
    %c0_16 = arith.constant 0 : index
    %11 = vector.load %arg1[%c0_14, %c3, %c0_15, %c0_16] : memref<1x4x16x192xbf16, #tpu.memory_space<vmem>>, vector<1x1x15x192xbf16>
    %12 = vector.shape_cast %11 : vector<1x1x15x192xbf16> to vector<15x192xbf16>
    %cst_17 = arith.constant dense<0.000000e+00> : vector<15x512xf32>
    %13 = tpu.matmul %12, %1, %cst_17 {dimension_numbers = #tpu.dot_dimension_numbers<[1], [0], [0], [1], [0, 0, 1, 1], [], []>} : vector<15x192xbf16>, vector<192x512xbf16>, vector<15x512xf32> -> vector<15x512xf32>
    %c1_18 = arith.constant 1 : index
    %c0_19 = arith.constant 0 : index
    %c0_20 = arith.constant 0 : index
    %14 = vector.load %arg2[%c1_18, %c0_19, %c0_20] : memref<5x192x512xbf16, #tpu.memory_space<vmem>>, vector<1x192x512xbf16>
    %15 = vector.shape_cast %14 : vector<1x192x512xbf16> to vector<192x512xbf16>
    %c0_21 = arith.constant 0 : index
    %c1_22 = arith.constant 1 : index
    %c0_23 = arith.constant 0 : index
    %c0_24 = arith.constant 0 : index
    %16 = vector.load %arg1[%c0_21, %c1_22, %c0_23, %c0_24] : memref<1x4x16x192xbf16, #tpu.memory_space<vmem>>, vector<1x1x15x192xbf16>
    %17 = vector.shape_cast %16 : vector<1x1x15x192xbf16> to vector<15x192xbf16>
    %cst_25 = arith.constant dense<0.000000e+00> : vector<15x512xf32>
    %18 = tpu.matmul %17, %15, %cst_25 {dimension_numbers = #tpu.dot_dimension_numbers<[1], [0], [0], [1], [0, 0, 1, 1], [], []>} : vector<15x192xbf16>, vector<192x512xbf16>, vector<15x512xf32> -> vector<15x512xf32>
    %19 = arith.addf %4, %18 : vector<15x512xf32>
    %c0_26 = arith.constant 0 : index
    %c2_27 = arith.constant 2 : index
    %c0_28 = arith.constant 0 : index
    %c0_29 = arith.constant 0 : index
    %20 = vector.load %arg1[%c0_26, %c2_27, %c0_28, %c0_29] : memref<1x4x16x192xbf16, #tpu.memory_space<vmem>>, vector<1x1x15x192xbf16>
    %21 = vector.shape_cast %20 : vector<1x1x15x192xbf16> to vector<15x192xbf16>
    %cst_30 = arith.constant dense<0.000000e+00> : vector<15x512xf32>
    %22 = tpu.matmul %21, %15, %cst_30 {dimension_numbers = #tpu.dot_dimension_numbers<[1], [0], [0], [1], [0, 0, 1, 1], [], []>} : vector<15x192xbf16>, vector<192x512xbf16>, vector<15x512xf32> -> vector<15x512xf32>
    %23 = arith.addf %7, %22 : vector<15x512xf32>
    %c0_31 = arith.constant 0 : index
    %c3_32 = arith.constant 3 : index
    %c0_33 = arith.constant 0 : index
    %c0_34 = arith.constant 0 : index
    %24 = vector.load %arg1[%c0_31, %c3_32, %c0_33, %c0_34] : memref<1x4x16x192xbf16, #tpu.memory_space<vmem>>, vector<1x1x15x192xbf16>
    %25 = vector.shape_cast %24 : vector<1x1x15x192xbf16> to vector<15x192xbf16>
    %cst_35 = arith.constant dense<0.000000e+00> : vector<15x512xf32>
    %26 = tpu.matmul %25, %15, %cst_35 {dimension_numbers = #tpu.dot_dimension_numbers<[1], [0], [0], [1], [0, 0, 1, 1], [], []>} : vector<15x192xbf16>, vector<192x512xbf16>, vector<15x512xf32> -> vector<15x512xf32>
    %27 = arith.addf %10, %26 : vector<15x512xf32>
    %c0_36 = arith.constant 0 : index
    %c0_37 = arith.constant 0 : index
    %c1_38 = arith.constant 1 : index
    %c0_39 = arith.constant 0 : index
    %28 = vector.load %arg1[%c0_36, %c0_37, %c1_38, %c0_39] : memref<1x4x16x192xbf16, #tpu.memory_space<vmem>>, vector<1x1x15x192xbf16>
    %29 = vector.shape_cast %28 : vector<1x1x15x192xbf16> to vector<15x192xbf16>
    %cst_40 = arith.constant dense<0.000000e+00> : vector<15x512xf32>
    %30 = tpu.matmul %29, %15, %cst_40 {dimension_numbers = #tpu.dot_dimension_numbers<[1], [0], [0], [1], [0, 0, 1, 1], [], []>} : vector<15x192xbf16>, vector<192x512xbf16>, vector<15x512xf32> -> vector<15x512xf32>
    %31 = arith.addf %13, %30 : vector<15x512xf32>
    %c2_41 = arith.constant 2 : index
    %c0_42 = arith.constant 0 : index
    %c0_43 = arith.constant 0 : index
    %32 = vector.load %arg2[%c2_41, %c0_42, %c0_43] : memref<5x192x512xbf16, #tpu.memory_space<vmem>>, vector<1x192x512xbf16>
    %33 = vector.shape_cast %32 : vector<1x192x512xbf16> to vector<192x512xbf16>
    %c0_44 = arith.constant 0 : index
    %c2_45 = arith.constant 2 : index
    %c0_46 = arith.constant 0 : index
    %c0_47 = arith.constant 0 : index
    %34 = vector.load %arg1[%c0_44, %c2_45, %c0_46, %c0_47] : memref<1x4x16x192xbf16, #tpu.memory_space<vmem>>, vector<1x1x15x192xbf16>
    %35 = vector.shape_cast %34 : vector<1x1x15x192xbf16> to vector<15x192xbf16>
    %cst_48 = arith.constant dense<0.000000e+00> : vector<15x512xf32>
    %36 = tpu.matmul %35, %33, %cst_48 {dimension_numbers = #tpu.dot_dimension_numbers<[1], [0], [0], [1], [0, 0, 1, 1], [], []>} : vector<15x192xbf16>, vector<192x512xbf16>, vector<15x512xf32> -> vector<15x512xf32>
    %37 = arith.addf %19, %36 : vector<15x512xf32>
    %c0_49 = arith.constant 0 : index
    %c3_50 = arith.constant 3 : index
    %c0_51 = arith.constant 0 : index
    %c0_52 = arith.constant 0 : index
    %38 = vector.load %arg1[%c0_49, %c3_50, %c0_51, %c0_52] : memref<1x4x16x192xbf16, #tpu.memory_space<vmem>>, vector<1x1x15x192xbf16>
    %39 = vector.shape_cast %38 : vector<1x1x15x192xbf16> to vector<15x192xbf16>
    %cst_53 = arith.constant dense<0.000000e+00> : vector<15x512xf32>
    %40 = tpu.matmul %39, %33, %cst_53 {dimension_numbers = #tpu.dot_dimension_numbers<[1], [0], [0], [1], [0, 0, 1, 1], [], []>} : vector<15x192xbf16>, vector<192x512xbf16>, vector<15x512xf32> -> vector<15x512xf32>
    %41 = arith.addf %23, %40 : vector<15x512xf32>
    %c0_54 = arith.constant 0 : index
    %c0_55 = arith.constant 0 : index
    %c1_56 = arith.constant 1 : index
    %c0_57 = arith.constant 0 : index
    %42 = vector.load %arg1[%c0_54, %c0_55, %c1_56, %c0_57] : memref<1x4x16x192xbf16, #tpu.memory_space<vmem>>, vector<1x1x15x192xbf16>
    %43 = vector.shape_cast %42 : vector<1x1x15x192xbf16> to vector<15x192xbf16>
    %cst_58 = arith.constant dense<0.000000e+00> : vector<15x512xf32>
    %44 = tpu.matmul %43, %33, %cst_58 {dimension_numbers = #tpu.dot_dimension_numbers<[1], [0], [0], [1], [0, 0, 1, 1], [], []>} : vector<15x192xbf16>, vector<192x512xbf16>, vector<15x512xf32> -> vector<15x512xf32>
    %45 = arith.addf %27, %44 : vector<15x512xf32>
    %c0_59 = arith.constant 0 : index
    %c1_60 = arith.constant 1 : index
    %c1_61 = arith.constant 1 : index
    %c0_62 = arith.constant 0 : index
    %46 = vector.load %arg1[%c0_59, %c1_60, %c1_61, %c0_62] : memref<1x4x16x192xbf16, #tpu.memory_space<vmem>>, vector<1x1x15x192xbf16>
    %47 = vector.shape_cast %46 : vector<1x1x15x192xbf16> to vector<15x192xbf16>
    %cst_63 = arith.constant dense<0.000000e+00> : vector<15x512xf32>
    %48 = tpu.matmul %47, %33, %cst_63 {dimension_numbers = #tpu.dot_dimension_numbers<[1], [0], [0], [1], [0, 0, 1, 1], [], []>} : vector<15x192xbf16>, vector<192x512xbf16>, vector<15x512xf32> -> vector<15x512xf32>
    %49 = arith.addf %31, %48 : vector<15x512xf32>
    %c3_64 = arith.constant 3 : index
    %c0_65 = arith.constant 0 : index
    %c0_66 = arith.constant 0 : index
    %50 = vector.load %arg2[%c3_64, %c0_65, %c0_66] : memref<5x192x512xbf16, #tpu.memory_space<vmem>>, vector<1x192x512xbf16>
    %51 = vector.shape_cast %50 : vector<1x192x512xbf16> to vector<192x512xbf16>
    %c0_67 = arith.constant 0 : index
    %c3_68 = arith.constant 3 : index
    %c0_69 = arith.constant 0 : index
    %c0_70 = arith.constant 0 : index
    %52 = vector.load %arg1[%c0_67, %c3_68, %c0_69, %c0_70] : memref<1x4x16x192xbf16, #tpu.memory_space<vmem>>, vector<1x1x15x192xbf16>
    %53 = vector.shape_cast %52 : vector<1x1x15x192xbf16> to vector<15x192xbf16>
    %cst_71 = arith.constant dense<0.000000e+00> : vector<15x512xf32>
    %54 = tpu.matmul %53, %51, %cst_71 {dimension_numbers = #tpu.dot_dimension_numbers<[1], [0], [0], [1], [0, 0, 1, 1], [], []>} : vector<15x192xbf16>, vector<192x512xbf16>, vector<15x512xf32> -> vector<15x512xf32>
    %55 = arith.addf %37, %54 : vector<15x512xf32>
    %c0_72 = arith.constant 0 : index
    %c0_73 = arith.constant 0 : index
    %c1_74 = arith.constant 1 : index
    %c0_75 = arith.constant 0 : index
    %56 = vector.load %arg1[%c0_72, %c0_73, %c1_74, %c0_75] : memref<1x4x16x192xbf16, #tpu.memory_space<vmem>>, vector<1x1x15x192xbf16>
    %57 = vector.shape_cast %56 : vector<1x1x15x192xbf16> to vector<15x192xbf16>
    %cst_76 = arith.constant dense<0.000000e+00> : vector<15x512xf32>
    %58 = tpu.matmul %57, %51, %cst_76 {dimension_numbers = #tpu.dot_dimension_numbers<[1], [0], [0], [1], [0, 0, 1, 1], [], []>} : vector<15x192xbf16>, vector<192x512xbf16>, vector<15x512xf32> -> vector<15x512xf32>
    %59 = arith.addf %41, %58 : vector<15x512xf32>
    %c0_77 = arith.constant 0 : index
    %c1_78 = arith.constant 1 : index
    %c1_79 = arith.constant 1 : index
    %c0_80 = arith.constant 0 : index
    %60 = vector.load %arg1[%c0_77, %c1_78, %c1_79, %c0_80] : memref<1x4x16x192xbf16, #tpu.memory_space<vmem>>, vector<1x1x15x192xbf16>
    %61 = vector.shape_cast %60 : vector<1x1x15x192xbf16> to vector<15x192xbf16>
    %cst_81 = arith.constant dense<0.000000e+00> : vector<15x512xf32>
    %62 = tpu.matmul %61, %51, %cst_81 {dimension_numbers = #tpu.dot_dimension_numbers<[1], [0], [0], [1], [0, 0, 1, 1], [], []>} : vector<15x192xbf16>, vector<192x512xbf16>, vector<15x512xf32> -> vector<15x512xf32>
    %63 = arith.addf %45, %62 : vector<15x512xf32>
    %c0_82 = arith.constant 0 : index
    %c2_83 = arith.constant 2 : index
    %c1_84 = arith.constant 1 : index
    %c0_85 = arith.constant 0 : index
    %64 = vector.load %arg1[%c0_82, %c2_83, %c1_84, %c0_85] : memref<1x4x16x192xbf16, #tpu.memory_space<vmem>>, vector<1x1x15x192xbf16>
    %65 = vector.shape_cast %64 : vector<1x1x15x192xbf16> to vector<15x192xbf16>
    %cst_86 = arith.constant dense<0.000000e+00> : vector<15x512xf32>
    %66 = tpu.matmul %65, %51, %cst_86 {dimension_numbers = #tpu.dot_dimension_numbers<[1], [0], [0], [1], [0, 0, 1, 1], [], []>} : vector<15x192xbf16>, vector<192x512xbf16>, vector<15x512xf32> -> vector<15x512xf32>
    %67 = arith.addf %49, %66 : vector<15x512xf32>
    %c4 = arith.constant 4 : index
    %c0_87 = arith.constant 0 : index
    %c0_88 = arith.constant 0 : index
    %68 = vector.load %arg2[%c4, %c0_87, %c0_88] : memref<5x192x512xbf16, #tpu.memory_space<vmem>>, vector<1x192x512xbf16>
    %69 = vector.shape_cast %68 : vector<1x192x512xbf16> to vector<192x512xbf16>
    %c0_89 = arith.constant 0 : index
    %c0_90 = arith.constant 0 : index
    %c1_91 = arith.constant 1 : index
    %c0_92 = arith.constant 0 : index
    %70 = vector.load %arg1[%c0_89, %c0_90, %c1_91, %c0_92] : memref<1x4x16x192xbf16, #tpu.memory_space<vmem>>, vector<1x1x15x192xbf16>
    %71 = vector.shape_cast %70 : vector<1x1x15x192xbf16> to vector<15x192xbf16>
    %cst_93 = arith.constant dense<0.000000e+00> : vector<15x512xf32>
    %72 = tpu.matmul %71, %69, %cst_93 {dimension_numbers = #tpu.dot_dimension_numbers<[1], [0], [0], [1], [0, 0, 1, 1], [], []>} : vector<15x192xbf16>, vector<192x512xbf16>, vector<15x512xf32> -> vector<15x512xf32>
    %73 = arith.addf %55, %72 : vector<15x512xf32>
    %c0_94 = arith.constant 0 : index
    %c1_95 = arith.constant 1 : index
    %c1_96 = arith.constant 1 : index
    %c0_97 = arith.constant 0 : index
    %74 = vector.load %arg1[%c0_94, %c1_95, %c1_96, %c0_97] : memref<1x4x16x192xbf16, #tpu.memory_space<vmem>>, vector<1x1x15x192xbf16>
    %75 = vector.shape_cast %74 : vector<1x1x15x192xbf16> to vector<15x192xbf16>
    %cst_98 = arith.constant dense<0.000000e+00> : vector<15x512xf32>
    %76 = tpu.matmul %75, %69, %cst_98 {dimension_numbers = #tpu.dot_dimension_numbers<[1], [0], [0], [1], [0, 0, 1, 1], [], []>} : vector<15x192xbf16>, vector<192x512xbf16>, vector<15x512xf32> -> vector<15x512xf32>
    %77 = arith.addf %59, %76 : vector<15x512xf32>
    %c0_99 = arith.constant 0 : index
    %c2_100 = arith.constant 2 : index
    %c1_101 = arith.constant 1 : index
    %c0_102 = arith.constant 0 : index
    %78 = vector.load %arg1[%c0_99, %c2_100, %c1_101, %c0_102] : memref<1x4x16x192xbf16, #tpu.memory_space<vmem>>, vector<1x1x15x192xbf16>
    %79 = vector.shape_cast %78 : vector<1x1x15x192xbf16> to vector<15x192xbf16>
    %cst_103 = arith.constant dense<0.000000e+00> : vector<15x512xf32>
    %80 = tpu.matmul %79, %69, %cst_103 {dimension_numbers = #tpu.dot_dimension_numbers<[1], [0], [0], [1], [0, 0, 1, 1], [], []>} : vector<15x192xbf16>, vector<192x512xbf16>, vector<15x512xf32> -> vector<15x512xf32>
    %81 = arith.addf %63, %80 : vector<15x512xf32>
    %c0_104 = arith.constant 0 : index
    %c3_105 = arith.constant 3 : index
    %c1_106 = arith.constant 1 : index
    %c0_107 = arith.constant 0 : index
    %82 = vector.load %arg1[%c0_104, %c3_105, %c1_106, %c0_107] : memref<1x4x16x192xbf16, #tpu.memory_space<vmem>>, vector<1x1x15x192xbf16>
    %83 = vector.shape_cast %82 : vector<1x1x15x192xbf16> to vector<15x192xbf16>
    %cst_108 = arith.constant dense<0.000000e+00> : vector<15x512xf32>
    %84 = tpu.matmul %83, %69, %cst_108 {dimension_numbers = #tpu.dot_dimension_numbers<[1], [0], [0], [1], [0, 0, 1, 1], [], []>} : vector<15x192xbf16>, vector<192x512xbf16>, vector<15x512xf32> -> vector<15x512xf32>
    %85 = arith.addf %67, %84 : vector<15x512xf32>
    %86 = arith.maximumf %73, %77 : vector<15x512xf32>
    %87 = vector.extract_strided_slice %86 {offsets = [0, 0], sizes = [15, 256], strides = [1, 1]} : vector<15x512xf32> to vector<15x256xf32>
    %88 = vector.extract_strided_slice %86 {offsets = [0, 256], sizes = [15, 256], strides = [1, 1]} : vector<15x512xf32> to vector<15x256xf32>
    %89 = arith.maximumf %87, %88 : vector<15x256xf32>
    %c0_109 = arith.constant 0 : index
    %c0_110 = arith.constant 0 : index
    %90 = vector.load %arg3[%c0_109, %c0_110] : memref<1x256xf32, #tpu.memory_space<vmem>>, vector<1x256xf32>
    %91 = vector.broadcast %90 : vector<1x256xf32> to vector<15x256xf32>
    %92 = arith.addf %89, %91 : vector<15x256xf32>
    %cst_111 = arith.constant 0.000000e+00 : f32
    %93 = vector.broadcast %cst_111 : f32 to vector<15x256xf32>
    %94 = arith.maximumf %92, %93 : vector<15x256xf32>
    %95 = arith.truncf %94 : vector<15x256xf32> to vector<15x256xbf16>
    %96 = arith.maximumf %81, %85 : vector<15x512xf32>
    %97 = vector.extract_strided_slice %96 {offsets = [0, 0], sizes = [15, 256], strides = [1, 1]} : vector<15x512xf32> to vector<15x256xf32>
    %98 = vector.extract_strided_slice %96 {offsets = [0, 256], sizes = [15, 256], strides = [1, 1]} : vector<15x512xf32> to vector<15x256xf32>
    %99 = arith.maximumf %97, %98 : vector<15x256xf32>
    %c0_112 = arith.constant 0 : index
    %c0_113 = arith.constant 0 : index
    %100 = vector.load %arg3[%c0_112, %c0_113] : memref<1x256xf32, #tpu.memory_space<vmem>>, vector<1x256xf32>
    %101 = vector.broadcast %100 : vector<1x256xf32> to vector<15x256xf32>
    %102 = arith.addf %99, %101 : vector<15x256xf32>
    %cst_114 = arith.constant 0.000000e+00 : f32
    %103 = vector.broadcast %cst_114 : f32 to vector<15x256xf32>
    %104 = arith.maximumf %102, %103 : vector<15x256xf32>
    %105 = arith.truncf %104 : vector<15x256xf32> to vector<15x256xbf16>
    %c0_115 = arith.constant 0 : index
    %c0_116 = arith.constant 0 : index
    %c0_117 = arith.constant 0 : index
    %106 = vector.load %arg4[%c0_115, %c0_116, %c0_117] : memref<5x256x512xbf16, #tpu.memory_space<vmem>>, vector<1x256x512xbf16>
    %107 = vector.shape_cast %106 : vector<1x256x512xbf16> to vector<256x512xbf16>
    %108 = vector.extract_strided_slice %95 {offsets = [0, 0], sizes = [13, 256], strides = [1, 1]} : vector<15x256xbf16> to vector<13x256xbf16>
    %cst_118 = arith.constant dense<0.000000e+00> : vector<13x512xf32>
    %109 = tpu.matmul %108, %107, %cst_118 {dimension_numbers = #tpu.dot_dimension_numbers<[1], [0], [0], [1], [0, 0, 1, 1], [], []>} : vector<13x256xbf16>, vector<256x512xbf16>, vector<13x512xf32> -> vector<13x512xf32>
    %110 = vector.extract_strided_slice %105 {offsets = [0, 0], sizes = [13, 256], strides = [1, 1]} : vector<15x256xbf16> to vector<13x256xbf16>
    %cst_119 = arith.constant dense<0.000000e+00> : vector<13x512xf32>
    %111 = tpu.matmul %110, %107, %cst_119 {dimension_numbers = #tpu.dot_dimension_numbers<[1], [0], [0], [1], [0, 0, 1, 1], [], []>} : vector<13x256xbf16>, vector<256x512xbf16>, vector<13x512xf32> -> vector<13x512xf32>
    %c1_120 = arith.constant 1 : index
    %c0_121 = arith.constant 0 : index
    %c0_122 = arith.constant 0 : index
    %112 = vector.load %arg4[%c1_120, %c0_121, %c0_122] : memref<5x256x512xbf16, #tpu.memory_space<vmem>>, vector<1x256x512xbf16>
    %113 = vector.shape_cast %112 : vector<1x256x512xbf16> to vector<256x512xbf16>
    %114 = vector.extract_strided_slice %105 {offsets = [0, 0], sizes = [13, 256], strides = [1, 1]} : vector<15x256xbf16> to vector<13x256xbf16>
    %cst_123 = arith.constant dense<0.000000e+00> : vector<13x512xf32>
    %115 = tpu.matmul %114, %113, %cst_123 {dimension_numbers = #tpu.dot_dimension_numbers<[1], [0], [0], [1], [0, 0, 1, 1], [], []>} : vector<13x256xbf16>, vector<256x512xbf16>, vector<13x512xf32> -> vector<13x512xf32>
    %116 = arith.addf %109, %115 : vector<13x512xf32>
    %117 = vector.extract_strided_slice %95 {offsets = [1, 0], sizes = [13, 256], strides = [1, 1]} : vector<15x256xbf16> to vector<13x256xbf16>
    %cst_124 = arith.constant dense<0.000000e+00> : vector<13x512xf32>
    %118 = tpu.matmul %117, %113, %cst_124 {dimension_numbers = #tpu.dot_dimension_numbers<[1], [0], [0], [1], [0, 0, 1, 1], [], []>} : vector<13x256xbf16>, vector<256x512xbf16>, vector<13x512xf32> -> vector<13x512xf32>
    %119 = arith.addf %111, %118 : vector<13x512xf32>
    %c2_125 = arith.constant 2 : index
    %c0_126 = arith.constant 0 : index
    %c0_127 = arith.constant 0 : index
    %120 = vector.load %arg4[%c2_125, %c0_126, %c0_127] : memref<5x256x512xbf16, #tpu.memory_space<vmem>>, vector<1x256x512xbf16>
    %121 = vector.shape_cast %120 : vector<1x256x512xbf16> to vector<256x512xbf16>
    %122 = vector.extract_strided_slice %95 {offsets = [1, 0], sizes = [13, 256], strides = [1, 1]} : vector<15x256xbf16> to vector<13x256xbf16>
    %cst_128 = arith.constant dense<0.000000e+00> : vector<13x512xf32>
    %123 = tpu.matmul %122, %121, %cst_128 {dimension_numbers = #tpu.dot_dimension_numbers<[1], [0], [0], [1], [0, 0, 1, 1], [], []>} : vector<13x256xbf16>, vector<256x512xbf16>, vector<13x512xf32> -> vector<13x512xf32>
    %124 = arith.addf %116, %123 : vector<13x512xf32>
    %125 = vector.extract_strided_slice %105 {offsets = [1, 0], sizes = [13, 256], strides = [1, 1]} : vector<15x256xbf16> to vector<13x256xbf16>
    %cst_129 = arith.constant dense<0.000000e+00> : vector<13x512xf32>
    %126 = tpu.matmul %125, %121, %cst_129 {dimension_numbers = #tpu.dot_dimension_numbers<[1], [0], [0], [1], [0, 0, 1, 1], [], []>} : vector<13x256xbf16>, vector<256x512xbf16>, vector<13x512xf32> -> vector<13x512xf32>
    %127 = arith.addf %119, %126 : vector<13x512xf32>
    %c3_130 = arith.constant 3 : index
    %c0_131 = arith.constant 0 : index
    %c0_132 = arith.constant 0 : index
    %128 = vector.load %arg4[%c3_130, %c0_131, %c0_132] : memref<5x256x512xbf16, #tpu.memory_space<vmem>>, vector<1x256x512xbf16>
    %129 = vector.shape_cast %128 : vector<1x256x512xbf16> to vector<256x512xbf16>
    %130 = vector.extract_strided_slice %105 {offsets = [1, 0], sizes = [13, 256], strides = [1, 1]} : vector<15x256xbf16> to vector<13x256xbf16>
    %cst_133 = arith.constant dense<0.000000e+00> : vector<13x512xf32>
    %131 = tpu.matmul %130, %129, %cst_133 {dimension_numbers = #tpu.dot_dimension_numbers<[1], [0], [0], [1], [0, 0, 1, 1], [], []>} : vector<13x256xbf16>, vector<256x512xbf16>, vector<13x512xf32> -> vector<13x512xf32>
    %132 = arith.addf %124, %131 : vector<13x512xf32>
    %133 = vector.extract_strided_slice %95 {offsets = [2, 0], sizes = [13, 256], strides = [1, 1]} : vector<15x256xbf16> to vector<13x256xbf16>
    %cst_134 = arith.constant dense<0.000000e+00> : vector<13x512xf32>
    %134 = tpu.matmul %133, %129, %cst_134 {dimension_numbers = #tpu.dot_dimension_numbers<[1], [0], [0], [1], [0, 0, 1, 1], [], []>} : vector<13x256xbf16>, vector<256x512xbf16>, vector<13x512xf32> -> vector<13x512xf32>
    %135 = arith.addf %127, %134 : vector<13x512xf32>
    %c4_135 = arith.constant 4 : index
    %c0_136 = arith.constant 0 : index
    %c0_137 = arith.constant 0 : index
    %136 = vector.load %arg4[%c4_135, %c0_136, %c0_137] : memref<5x256x512xbf16, #tpu.memory_space<vmem>>, vector<1x256x512xbf16>
    %137 = vector.shape_cast %136 : vector<1x256x512xbf16> to vector<256x512xbf16>
    %138 = vector.extract_strided_slice %95 {offsets = [2, 0], sizes = [13, 256], strides = [1, 1]} : vector<15x256xbf16> to vector<13x256xbf16>
    %cst_138 = arith.constant dense<0.000000e+00> : vector<13x512xf32>
    %139 = tpu.matmul %138, %137, %cst_138 {dimension_numbers = #tpu.dot_dimension_numbers<[1], [0], [0], [1], [0, 0, 1, 1], [], []>} : vector<13x256xbf16>, vector<256x512xbf16>, vector<13x512xf32> -> vector<13x512xf32>
    %140 = arith.addf %132, %139 : vector<13x512xf32>
    %141 = vector.extract_strided_slice %105 {offsets = [2, 0], sizes = [13, 256], strides = [1, 1]} : vector<15x256xbf16> to vector<13x256xbf16>
    %cst_139 = arith.constant dense<0.000000e+00> : vector<13x512xf32>
    %142 = tpu.matmul %141, %137, %cst_139 {dimension_numbers = #tpu.dot_dimension_numbers<[1], [0], [0], [1], [0, 0, 1, 1], [], []>} : vector<13x256xbf16>, vector<256x512xbf16>, vector<13x512xf32> -> vector<13x512xf32>
    %143 = arith.addf %135, %142 : vector<13x512xf32>
    %144 = arith.maximumf %140, %143 : vector<13x512xf32>
    %145 = vector.extract_strided_slice %144 {offsets = [0, 0], sizes = [13, 256], strides = [1, 1]} : vector<13x512xf32> to vector<13x256xf32>
    %146 = vector.extract_strided_slice %144 {offsets = [0, 256], sizes = [13, 256], strides = [1, 1]} : vector<13x512xf32> to vector<13x256xf32>
    %147 = arith.maximumf %145, %146 : vector<13x256xf32>
    %c0_140 = arith.constant 0 : index
    %c0_141 = arith.constant 0 : index
    %148 = vector.load %arg5[%c0_140, %c0_141] : memref<1x256xf32, #tpu.memory_space<vmem>>, vector<1x256xf32>
    %149 = vector.broadcast %148 : vector<1x256xf32> to vector<13x256xf32>
    %150 = arith.addf %147, %149 : vector<13x256xf32>
    %cst_142 = arith.constant 0.000000e+00 : f32
    %151 = vector.broadcast %cst_142 : f32 to vector<13x256xf32>
    %152 = arith.maximumf %150, %151 : vector<13x256xf32>
    %153 = arith.truncf %152 : vector<13x256xf32> to vector<13x256xbf16>
    %c0_143 = arith.constant 0 : index
    %c0_144 = arith.constant 0 : index
    %c0_145 = arith.constant 0 : index
    %154 = vector.load %arg6[%c0_143, %c0_144, %c0_145] : memref<1x13x256xbf16, #tpu.memory_space<vmem>>, vector<1x13x256xbf16>
    %155 = vector.shape_cast %154 : vector<1x13x256xbf16> to vector<13x256xbf16>
    %156 = vector.shape_cast %153 : vector<13x256xbf16> to vector<1x13x256xbf16>
    tpu.vector_store %arg6[%c0_143, %c0_144, %c0_145], %156 {strides = array<i32>} : memref<1x13x256xbf16, #tpu.memory_space<vmem>>, vector<1x13x256xbf16>,
    return
  }
  func.func @transform_0(%arg0: i32) -> (i32, i32, i32, i32) {
    %c0_i32 = arith.constant 0 : i32
    %c0_i32_0 = arith.constant 0 : i32
    %c0_i32_1 = arith.constant 0 : i32
    %c0_i32_2 = arith.constant 0 : i32
    return %arg0, %c0_i32, %c0_i32_0, %c0_i32_1 : i32, i32, i32, i32
  }
  func.func @transform_1(%arg0: i32) -> (i32, i32, i32) {
    %c0_i32 = arith.constant 0 : i32
    %c0_i32_0 = arith.constant 0 : i32
    %c0_i32_1 = arith.constant 0 : i32
    %c0_i32_2 = arith.constant 0 : i32
    return %c0_i32, %c0_i32_0, %c0_i32_1 : i32, i32, i32
  }
  func.func @transform_2(%arg0: i32) -> (i32, i32) {
    %c0_i32 = arith.constant 0 : i32
    %c0_i32_0 = arith.constant 0 : i32
    %c0_i32_1 = arith.constant 0 : i32
    return %c0_i32, %c0_i32_0 : i32, i32
  }
  func.func @transform_3(%arg0: i32) -> (i32, i32, i32) {
    %c0_i32 = arith.constant 0 : i32
    %c0_i32_0 = arith.constant 0 : i32
    %c0_i32_1 = arith.constant 0 : i32
    %c0_i32_2 = arith.constant 0 : i32
    return %c0_i32, %c0_i32_0, %c0_i32_1 : i32, i32, i32
  }
  func.func @transform_4(%arg0: i32) -> (i32, i32) {
    %c0_i32 = arith.constant 0 : i32
    %c0_i32_0 = arith.constant 0 : i32
    %c0_i32_1 = arith.constant 0 : i32
    return %c0_i32, %c0_i32_0 : i32, i32
  }
  func.func @transform_5(%arg0: i32) -> (i32, i32, i32) {
    %c0_i32 = arith.constant 0 : i32
    %c0_i32_0 = arith.constant 0 : i32
    %c0_i32_1 = arith.constant 0 : i32
    return %arg0, %c0_i32, %c0_i32_0 : i32, i32, i32
  }
}

</mosaic_0001>

<llo_original>
// kernel: cnn_forward.3
$region0: #{cnn_forward.3}
  #allocation0 [shape = 'u32[]', space=smem, size = 0x4, offset = 0x4, fixed_abs, tag = 'smem constant byte address 0x4 - core index']
  #allocation1 [shape = 'u32[144,128]{1,0:T(1,128)}', space=vmem, size = 0x12000, scoped, tag = 'internal scratch']
  %s0 = inlined_call_operand.vmem [shape: bf16[2,3328], index: 0, kind: input, shape index: {}]
  %s1 = inlined_call_operand.vmem [shape: bf16[3328,128], index: 1, kind: input, shape index: {}]
  %s2 = inlined_call_operand.vmem [shape: f32[1,128], index: 2, kind: input, shape index: {}]
  %s3 = inlined_call_operand.vmem [shape: bf16[128,128], index: 3, kind: input, shape index: {}]
  %s4 = inlined_call_operand.vmem [shape: f32[1,128], index: 4, kind: input, shape index: {}]
  %s5 = inlined_call_operand.vmem [shape: bf16[128,128], index: 5, kind: input, shape index: {}]
  %s6 = inlined_call_operand.vmem [shape: f32[1,128], index: 6, kind: input, shape index: {}]
  %s7 = inlined_call_operand.hbm [shape: f32[2,128], index: 7, kind: output, shape index: {}]
  %s8 = sld [smem:[#allocation0]]
  $region38: #{cnn_forward.3} parent=0
    _
  %s10 = ssub.s32 1, %s8
  %s11 = scalar_select 0, %s10, %s8
  $region1: #{cnn_forward.3} parent=0
    #allocation2 [shape = 'u8[1024]{0}', space=vmem, size = 0x400, scoped, tag = 'output window, operand 0, single buffered']
    #allocation3 [shape = 's32[1]{0}', space=sflag, size = 0x4, scoped, tag = 'scoped memory for cnn_forward.3']
    %12 = vsyncpa [#allocation3], 0
    // Predicated region
    $region2: #{cnn_forward.3} parent=1 // pred_check
      _
    $region3: #{cnn_forward.3} parent=1 // pred_check_branch
      %14 = sbr.rel (0) target = $region5
    $region4: #{cnn_forward.3} parent=1 // pred_region
      _
    $region5: #{cnn_forward.3} parent=1 // pred_fallthru
      _
    // Predicated region
    $region6: #{cnn_forward.3} parent=1 // pred_check
      _
    $region7: #{cnn_forward.3} parent=1 // pred_check_branch
      %16 = sbr.rel (0) target = $region9
    $region8: #{cnn_forward.3} parent=1 // pred_region
      _
    $region9: #{cnn_forward.3} parent=1 // pred_fallthru
      _
    // Predicated region
    $region10: #{cnn_forward.3} parent=1 // pred_check
      _
    $region11: #{cnn_forward.3} parent=1 // pred_check_branch
      %18 = sbr.rel (0) target = $region13
    $region12: #{cnn_forward.3} parent=1 // pred_region
      _
    $region13: #{cnn_forward.3} parent=1 // pred_fallthru
      _
    // Predicated region
    $region14: #{cnn_forward.3} parent=1 // pred_check
      _
    $region15: #{cnn_forward.3} parent=1 // pred_check_branch
      %20 = sbr.rel (0) target = $region17
    $region16: #{cnn_forward.3} parent=1 // pred_region
      _
    $region17: #{cnn_forward.3} parent=1 // pred_fallthru
      _
    // Predicated region
    $region18: #{cnn_forward.3} parent=1 // pred_check
      _
    $region19: #{cnn_forward.3} parent=1 // pred_check_branch
      %22 = sbr.rel (0) target = $region21
    $region20: #{cnn_forward.3} parent=1 // pred_region
      _
    $region21: #{cnn_forward.3} parent=1 // pred_fallthru
      _
    // Predicated region
    $region22: #{cnn_forward.3} parent=1 // pred_check
      _
    $region23: #{cnn_forward.3} parent=1 // pred_check_branch
      %24 = sbr.rel (0) target = $region25
    $region24: #{cnn_forward.3} parent=1 // pred_region
      _
    $region25: #{cnn_forward.3} parent=1 // pred_fallthru
      _
    // Predicated region
    $region26: #{cnn_forward.3} parent=1 // pred_check
      _
    $region27: #{cnn_forward.3} parent=1 // pred_check_branch
      %26 = sbr.rel (0) target = $region29
    $region28: #{cnn_forward.3} parent=1 // pred_region
      _
    $region29: #{cnn_forward.3} parent=1 // pred_fallthru
      _
    %v28 = vld [vmem:[%s0] sm:$0xff]
    %v29 = vld [vmem:[%s0 + $0x8] sm:$0xff]
    %v30 = vld [vmem:[%s0 + $0x10] sm:$0xff]
    %v31 = vld [vmem:[%s0 + $0x18] sm:$0x3]
    %v32 = vld [vmem:[%s1] sm:$0xf]
    %v33 = vld [vmem:[%s1 + $0x4] sm:$0xf]
    %v34 = vld [vmem:[%s1 + $0x8] sm:$0xf]
    %v35 = vld [vmem:[%s1 + $0xc] sm:$0xf]
    %v36 = vld [vmem:[%s1 + $0x10] sm:$0xf]
    %v37 = vld [vmem:[%s1 + $0x14] sm:$0xf]
    %v38 = vld [vmem:[%s1 + $0x18] sm:$0xf]
    %v39 = vld [vmem:[%s1 + $0x1c] sm:$0xf]
    %v40 = vld [vmem:[%s1 + $0x20] sm:$0xf]
    %v41 = vld [vmem:[%s1 + $0x24] sm:$0xf]
    %v42 = vld [vmem:[%s1 + $0x28] sm:$0xf]
    %v43 = vld [vmem:[%s1 + $0x2c] sm:$0xf]
    %v44 = vld [vmem:[%s1 + $0x30] sm:$0xf]
    %v45 = vld [vmem:[%s1 + $0x34] sm:$0xf]
    %v46 = vld [vmem:[%s1 + $0x38] sm:$0xf]
    %v47 = vld [vmem:[%s1 + $0x3c] sm:$0xf]
    %v48 = vld [vmem:[%s1 + $0x40] sm:$0xf]
    %v49 = vld [vmem:[%s1 + $0x44] sm:$0xf]
    %v50 = vld [vmem:[%s1 + $0x48] sm:$0xf]
    %v51 = vld [vmem:[%s1 + $0x4c] sm:$0xf]
    %v52 = vld [vmem:[%s1 + $0x50] sm:$0xf]
    %v53 = vld [vmem:[%s1 + $0x54] sm:$0xf]
    %v54 = vld [vmem:[%s1 + $0x58] sm:$0xf]
    %v55 = vld [vmem:[%s1 + $0x5c] sm:$0xf]
    %v56 = vld [vmem:[%s1 + $0x60] sm:$0xf]
    %v57 = vld [vmem:[%s1 + $0x64] sm:$0xf]
    %v58 = vld [vmem:[%s1 + $0x68] sm:$0xf]
    %v59 = vld [vmem:[%s1 + $0x6c] sm:$0xf]
    %v60 = vld [vmem:[%s1 + $0x70] sm:$0xf]
    %v61 = vld [vmem:[%s1 + $0x74] sm:$0xf]
    %v62 = vld [vmem:[%s1 + $0x78] sm:$0xf]
    %v63 = vld [vmem:[%s1 + $0x7c] sm:$0xf]
    %v64 = vld [vmem:[%s1 + $0x80] sm:$0xf]
    %v65 = vld [vmem:[%s1 + $0x84] sm:$0xf]
    %v66 = vld [vmem:[%s1 + $0x88] sm:$0xf]
    %v67 = vld [vmem:[%s1 + $0x8c] sm:$0xf]
    %v68 = vld [vmem:[%s1 + $0x90] sm:$0xf]
    %v69 = vld [vmem:[%s1 + $0x94] sm:$0xf]
    %v70 = vld [vmem:[%s1 + $0x98] sm:$0xf]
    %v71 = vld [vmem:[%s1 + $0x9c] sm:$0xf]
    %v72 = vld [vmem:[%s1 + $0xa0] sm:$0xf]
    %v73 = vld [vmem:[%s1 + $0xa4] sm:$0xf]
    %v74 = vld [vmem:[%s1 + $0xa8] sm:$0xf]
    %v75 = vld [vmem:[%s1 + $0xac] sm:$0xf]
    %v76 = vld [vmem:[%s1 + $0xb0] sm:$0xf]
    %v77 = vld [vmem:[%s1 + $0xb4] sm:$0xf]
    %v78 = vld [vmem:[%s1 + $0xb8] sm:$0xf]
    %v79 = vld [vmem:[%s1 + $0xbc] sm:$0xf]
    %v80 = vld [vmem:[%s1 + $0xc0] sm:$0xf]
    %v81 = vld [vmem:[%s1 + $0xc4] sm:$0xf]
    %v82 = vld [vmem:[%s1 + $0xc8] sm:$0xf]
    %v83 = vld [vmem:[%s1 + $0xcc] sm:$0xf]
    %v84 = vld [vmem:[%s1 + $0xd0] sm:$0xf]
    %v85 = vld [vmem:[%s1 + $0xd4] sm:$0xf]
    %v86 = vld [vmem:[%s1 + $0xd8] sm:$0xf]
    %v87 = vld [vmem:[%s1 + $0xdc] sm:$0xf]
    %v88 = vld [vmem:[%s1 + $0xe0] sm:$0xf]
    %v89 = vld [vmem:[%s1 + $0xe4] sm:$0xf]
    %v90 = vld [vmem:[%s1 + $0xe8] sm:$0xf]
    %v91 = vld [vmem:[%s1 + $0xec] sm:$0xf]
    %v92 = vld [vmem:[%s1 + $0xf0] sm:$0xf]
    %v93 = vld [vmem:[%s1 + $0xf4] sm:$0xf]
    %v94 = vld [vmem:[%s1 + $0xf8] sm:$0xf]
    %v95 = vld [vmem:[%s1 + $0xfc] sm:$0xf]
    %v96 = vld [vmem:[%s1 + $0x100] sm:$0xf]
    %v97 = vld [vmem:[%s1 + $0x104] sm:$0xf]
    %v98 = vld [vmem:[%s1 + $0x108] sm:$0xf]
    %v99 = vld [vmem:[%s1 + $0x10c] sm:$0xf]
    %v100 = vld [vmem:[%s1 + $0x110] sm:$0xf]
    %v101 = vld [vmem:[%s1 + $0x114] sm:$0xf]
    %v102 = vld [vmem:[%s1 + $0x118] sm:$0xf]
    %v103 = vld [vmem:[%s1 + $0x11c] sm:$0xf]
    %v104 = vld [vmem:[%s1 + $0x120] sm:$0xf]
    %v105 = vld [vmem:[%s1 + $0x124] sm:$0xf]
    %v106 = vld [vmem:[%s1 + $0x128] sm:$0xf]
    %v107 = vld [vmem:[%s1 + $0x12c] sm:$0xf]
    %v108 = vld [vmem:[%s1 + $0x130] sm:$0xf]
    %v109 = vld [vmem:[%s1 + $0x134] sm:$0xf]
    %v110 = vld [vmem:[%s1 + $0x138] sm:$0xf]
    %v111 = vld [vmem:[%s1 + $0x13c] sm:$0xf]
    %v112 = vld [vmem:[%s1 + $0x140] sm:$0xf]
    %v113 = vld [vmem:[%s1 + $0x144] sm:$0xf]
    %v114 = vld [vmem:[%s1 + $0x148] sm:$0xf]
    %v115 = vld [vmem:[%s1 + $0x14c] sm:$0xf]
    %v116 = vld [vmem:[%s1 + $0x150] sm:$0xf]
    %v117 = vld [vmem:[%s1 + $0x154] sm:$0xf]
    %v118 = vld [vmem:[%s1 + $0x158] sm:$0xf]
    %v119 = vld [vmem:[%s1 + $0x15c] sm:$0xf]
    %v120 = vld [vmem:[%s1 + $0x160] sm:$0xf]
    %v121 = vld [vmem:[%s1 + $0x164] sm:$0xf]
    %v122 = vld [vmem:[%s1 + $0x168] sm:$0xf]
    %v123 = vld [vmem:[%s1 + $0x16c] sm:$0xf]
    %v124 = vld [vmem:[%s1 + $0x170] sm:$0xf]
    %v125 = vld [vmem:[%s1 + $0x174] sm:$0xf]
    %v126 = vld [vmem:[%s1 + $0x178] sm:$0xf]
    %v127 = vld [vmem:[%s1 + $0x17c] sm:$0xf]
    %v128 = vld [vmem:[%s1 + $0x180] sm:$0xf]
    %v129 = vld [vmem:[%s1 + $0x184] sm:$0xf]
    %v130 = vld [vmem:[%s1 + $0x188] sm:$0xf]
    %v131 = vld [vmem:[%s1 + $0x18c] sm:$0xf]
    %v132 = vld [vmem:[%s1 + $0x190] sm:$0xf]
    %v133 = vld [vmem:[%s1 + $0x194] sm:$0xf]
    %v134 = vld [vmem:[%s1 + $0x198] sm:$0xf]
    %v135 = vld [vmem:[%s1 + $0x19c] sm:$0xf]
    %v136 = vld [vmem:[%s1 + $0x1a0] sm:$0xf]
    %v137 = vld [vmem:[%s1 + $0x1a4] sm:$0xf]
    %v138 = vld [vmem:[%s1 + $0x1a8] sm:$0xf]
    %v139 = vld [vmem:[%s1 + $0x1ac] sm:$0xf]
    %v140 = vld [vmem:[%s1 + $0x1b0] sm:$0xf]
    %v141 = vld [vmem:[%s1 + $0x1b4] sm:$0xf]
    %v142 = vld [vmem:[%s1 + $0x1b8] sm:$0xf]
    %v143 = vld [vmem:[%s1 + $0x1bc] sm:$0xf]
    %v144 = vld [vmem:[%s1 + $0x1c0] sm:$0xf]
    %v145 = vld [vmem:[%s1 + $0x1c4] sm:$0xf]
    %v146 = vld [vmem:[%s1 + $0x1c8] sm:$0xf]
    %v147 = vld [vmem:[%s1 + $0x1cc] sm:$0xf]
    %v148 = vld [vmem:[%s1 + $0x1d0] sm:$0xf]
    %v149 = vld [vmem:[%s1 + $0x1d4] sm:$0xf]
    %v150 = vld [vmem:[%s1 + $0x1d8] sm:$0xf]
    %v151 = vld [vmem:[%s1 + $0x1dc] sm:$0xf]
    %v152 = vld [vmem:[%s1 + $0x1e0] sm:$0xf]
    %v153 = vld [vmem:[%s1 + $0x1e4] sm:$0xf]
    %v154 = vld [vmem:[%s1 + $0x1e8] sm:$0xf]
    %v155 = vld [vmem:[%s1 + $0x1ec] sm:$0xf]
    %v156 = vld [vmem:[%s1 + $0x1f0] sm:$0xf]
    %v157 = vld [vmem:[%s1 + $0x1f4] sm:$0xf]
    %v158 = vld [vmem:[%s1 + $0x1f8] sm:$0xf]
    %v159 = vld [vmem:[%s1 + $0x1fc] sm:$0xf]
    %v160 = vld [vmem:[%s1 + $0x200] sm:$0xf]
    %v161 = vld [vmem:[%s1 + $0x204] sm:$0xf]
    %v162 = vld [vmem:[%s1 + $0x208] sm:$0xf]
    %v163 = vld [vmem:[%s1 + $0x20c] sm:$0xf]
    %v164 = vld [vmem:[%s1 + $0x210] sm:$0xf]
    %v165 = vld [vmem:[%s1 + $0x214] sm:$0xf]
    %v166 = vld [vmem:[%s1 + $0x218] sm:$0xf]
    %v167 = vld [vmem:[%s1 + $0x21c] sm:$0xf]
    %v168 = vld [vmem:[%s1 + $0x220] sm:$0xf]
    %v169 = vld [vmem:[%s1 + $0x224] sm:$0xf]
    %v170 = vld [vmem:[%s1 + $0x228] sm:$0xf]
    %v171 = vld [vmem:[%s1 + $0x22c] sm:$0xf]
    %v172 = vld [vmem:[%s1 + $0x230] sm:$0xf]
    %v173 = vld [vmem:[%s1 + $0x234] sm:$0xf]
    %v174 = vld [vmem:[%s1 + $0x238] sm:$0xf]
    %v175 = vld [vmem:[%s1 + $0x23c] sm:$0xf]
    %v176 = vld [vmem:[%s1 + $0x240] sm:$0xf]
    %v177 = vld [vmem:[%s1 + $0x244] sm:$0xf]
    %v178 = vld [vmem:[%s1 + $0x248] sm:$0xf]
    %v179 = vld [vmem:[%s1 + $0x24c] sm:$0xf]
    %v180 = vld [vmem:[%s1 + $0x250] sm:$0xf]
    %v181 = vld [vmem:[%s1 + $0x254] sm:$0xf]
    %v182 = vld [vmem:[%s1 + $0x258] sm:$0xf]
    %v183 = vld [vmem:[%s1 + $0x25c] sm:$0xf]
    %v184 = vld [vmem:[%s1 + $0x260] sm:$0xf]
    %v185 = vld [vmem:[%s1 + $0x264] sm:$0xf]
    %v186 = vld [vmem:[%s1 + $0x268] sm:$0xf]
    %v187 = vld [vmem:[%s1 + $0x26c] sm:$0xf]
    %v188 = vld [vmem:[%s1 + $0x270] sm:$0xf]
    %v189 = vld [vmem:[%s1 + $0x274] sm:$0xf]
    %v190 = vld [vmem:[%s1 + $0x278] sm:$0xf]
    %v191 = vld [vmem:[%s1 + $0x27c] sm:$0xf]
    %v192 = vld [vmem:[%s1 + $0x280] sm:$0xf]
    %v193 = vld [vmem:[%s1 + $0x284] sm:$0xf]
    %v194 = vld [vmem:[%s1 + $0x288] sm:$0xf]
    %v195 = vld [vmem:[%s1 + $0x28c] sm:$0xf]
    %v196 = vld [vmem:[%s1 + $0x290] sm:$0xf]
    %v197 = vld [vmem:[%s1 + $0x294] sm:$0xf]
    %v198 = vld [vmem:[%s1 + $0x298] sm:$0xf]
    %v199 = vld [vmem:[%s1 + $0x29c] sm:$0xf]
    %v200 = vld [vmem:[%s1 + $0x2a0] sm:$0xf]
    %v201 = vld [vmem:[%s1 + $0x2a4] sm:$0xf]
    %v202 = vld [vmem:[%s1 + $0x2a8] sm:$0xf]
    %v203 = vld [vmem:[%s1 + $0x2ac] sm:$0xf]
    %v204 = vld [vmem:[%s1 + $0x2b0] sm:$0xf]
    %v205 = vld [vmem:[%s1 + $0x2b4] sm:$0xf]
    %v206 = vld [vmem:[%s1 + $0x2b8] sm:$0xf]
    %v207 = vld [vmem:[%s1 + $0x2bc] sm:$0xf]
    %v208 = vld [vmem:[%s1 + $0x2c0] sm:$0xf]
    %v209 = vld [vmem:[%s1 + $0x2c4] sm:$0xf]
    %v210 = vld [vmem:[%s1 + $0x2c8] sm:$0xf]
    %v211 = vld [vmem:[%s1 + $0x2cc] sm:$0xf]
    %v212 = vld [vmem:[%s1 + $0x2d0] sm:$0xf]
    %v213 = vld [vmem:[%s1 + $0x2d4] sm:$0xf]
    %v214 = vld [vmem:[%s1 + $0x2d8] sm:$0xf]
    %v215 = vld [vmem:[%s1 + $0x2dc] sm:$0xf]
    %v216 = vld [vmem:[%s1 + $0x2e0] sm:$0xf]
    %v217 = vld [vmem:[%s1 + $0x2e4] sm:$0xf]
    %v218 = vld [vmem:[%s1 + $0x2e8] sm:$0xf]
    %v219 = vld [vmem:[%s1 + $0x2ec] sm:$0xf]
    %v220 = vld [vmem:[%s1 + $0x2f0] sm:$0xf]
    %v221 = vld [vmem:[%s1 + $0x2f4] sm:$0xf]
    %v222 = vld [vmem:[%s1 + $0x2f8] sm:$0xf]
    %v223 = vld [vmem:[%s1 + $0x2fc] sm:$0xf]
    %v224 = vld [vmem:[%s1 + $0x300] sm:$0xf]
    %v225 = vld [vmem:[%s1 + $0x304] sm:$0xf]
    %v226 = vld [vmem:[%s1 + $0x308] sm:$0xf]
    %v227 = vld [vmem:[%s1 + $0x30c] sm:$0xf]
    %v228 = vld [vmem:[%s1 + $0x310] sm:$0xf]
    %v229 = vld [vmem:[%s1 + $0x314] sm:$0xf]
    %v230 = vld [vmem:[%s1 + $0x318] sm:$0xf]
    %v231 = vld [vmem:[%s1 + $0x31c] sm:$0xf]
    %v232 = vld [vmem:[%s1 + $0x320] sm:$0xf]
    %v233 = vld [vmem:[%s1 + $0x324] sm:$0xf]
    %v234 = vld [vmem:[%s1 + $0x328] sm:$0xf]
    %v235 = vld [vmem:[%s1 + $0x32c] sm:$0xf]
    %v236 = vld [vmem:[%s1 + $0x330] sm:$0xf]
    %v237 = vld [vmem:[%s1 + $0x334] sm:$0xf]
    %v238 = vld [vmem:[%s1 + $0x338] sm:$0xf]
    %v239 = vld [vmem:[%s1 + $0x33c] sm:$0xf]
    %v240 = vld [vmem:[%s1 + $0x340] sm:$0xf]
    %v241 = vld [vmem:[%s1 + $0x344] sm:$0xf]
    %v242 = vld [vmem:[%s1 + $0x348] sm:$0xf]
    %v243 = vld [vmem:[%s1 + $0x34c] sm:$0xf]
    %v244 = vld [vmem:[%s1 + $0x350] sm:$0xf]
    %v245 = vld [vmem:[%s1 + $0x354] sm:$0xf]
    %v246 = vld [vmem:[%s1 + $0x358] sm:$0xf]
    %v247 = vld [vmem:[%s1 + $0x35c] sm:$0xf]
    %v248 = vld [vmem:[%s1 + $0x360] sm:$0xf]
    %v249 = vld [vmem:[%s1 + $0x364] sm:$0xf]
    %v250 = vld [vmem:[%s1 + $0x368] sm:$0xf]
    %v251 = vld [vmem:[%s1 + $0x36c] sm:$0xf]
    %v252 = vld [vmem:[%s1 + $0x370] sm:$0xf]
    %v253 = vld [vmem:[%s1 + $0x374] sm:$0xf]
    %v254 = vld [vmem:[%s1 + $0x378] sm:$0xf]
    %v255 = vld [vmem:[%s1 + $0x37c] sm:$0xf]
    %v256 = vld [vmem:[%s1 + $0x380] sm:$0xf]
    %v257 = vld [vmem:[%s1 + $0x384] sm:$0xf]
    %v258 = vld [vmem:[%s1 + $0x388] sm:$0xf]
    %v259 = vld [vmem:[%s1 + $0x38c] sm:$0xf]
    %v260 = vld [vmem:[%s1 + $0x390] sm:$0xf]
    %v261 = vld [vmem:[%s1 + $0x394] sm:$0xf]
    %v262 = vld [vmem:[%s1 + $0x398] sm:$0xf]
    %v263 = vld [vmem:[%s1 + $0x39c] sm:$0xf]
    %v264 = vld [vmem:[%s1 + $0x3a0] sm:$0xf]
    %v265 = vld [vmem:[%s1 + $0x3a4] sm:$0xf]
    %v266 = vld [vmem:[%s1 + $0x3a8] sm:$0xf]
    %v267 = vld [vmem:[%s1 + $0x3ac] sm:$0xf]
    %v268 = vld [vmem:[%s1 + $0x3b0] sm:$0xf]
    %v269 = vld [vmem:[%s1 + $0x3b4] sm:$0xf]
    %v270 = vld [vmem:[%s1 + $0x3b8] sm:$0xf]
    %v271 = vld [vmem:[%s1 + $0x3bc] sm:$0xf]
    %v272 = vld [vmem:[%s1 + $0x3c0] sm:$0xf]
    %v273 = vld [vmem:[%s1 + $0x3c4] sm:$0xf]
    %v274 = vld [vmem:[%s1 + $0x3c8] sm:$0xf]
    %v275 = vld [vmem:[%s1 + $0x3cc] sm:$0xf]
    %v276 = vld [vmem:[%s1 + $0x3d0] sm:$0xf]
    %v277 = vld [vmem:[%s1 + $0x3d4] sm:$0xf]
    %v278 = vld [vmem:[%s1 + $0x3d8] sm:$0xf]
    %v279 = vld [vmem:[%s1 + $0x3dc] sm:$0xf]
    %v280 = vld [vmem:[%s1 + $0x3e0] sm:$0xf]
    %v281 = vld [vmem:[%s1 + $0x3e4] sm:$0xf]
    %v282 = vld [vmem:[%s1 + $0x3e8] sm:$0xf]
    %v283 = vld [vmem:[%s1 + $0x3ec] sm:$0xf]
    %v284 = vld [vmem:[%s1 + $0x3f0] sm:$0xf]
    %v285 = vld [vmem:[%s1 + $0x3f4] sm:$0xf]
    %v286 = vld [vmem:[%s1 + $0x3f8] sm:$0xf]
    %v287 = vld [vmem:[%s1 + $0x3fc] sm:$0xf]
    %v288 = vld [vmem:[%s1 + $0x400] sm:$0xf]
    %v289 = vld [vmem:[%s1 + $0x404] sm:$0xf]
    %v290 = vld [vmem:[%s1 + $0x408] sm:$0xf]
    %v291 = vld [vmem:[%s1 + $0x40c] sm:$0xf]
    %v292 = vld [vmem:[%s1 + $0x410] sm:$0xf]
    %v293 = vld [vmem:[%s1 + $0x414] sm:$0xf]
    %v294 = vld [vmem:[%s1 + $0x418] sm:$0xf]
    %v295 = vld [vmem:[%s1 + $0x41c] sm:$0xf]
    %v296 = vld [vmem:[%s1 + $0x420] sm:$0xf]
    %v297 = vld [vmem:[%s1 + $0x424] sm:$0xf]
    %v298 = vld [vmem:[%s1 + $0x428] sm:$0xf]
    %v299 = vld [vmem:[%s1 + $0x42c] sm:$0xf]
    %v300 = vld [vmem:[%s1 + $0x430] sm:$0xf]
    %v301 = vld [vmem:[%s1 + $0x434] sm:$0xf]
    %v302 = vld [vmem:[%s1 + $0x438] sm:$0xf]
    %v303 = vld [vmem:[%s1 + $0x43c] sm:$0xf]
    %v304 = vld [vmem:[%s1 + $0x440] sm:$0xf]
    %v305 = vld [vmem:[%s1 + $0x444] sm:$0xf]
    %v306 = vld [vmem:[%s1 + $0x448] sm:$0xf]
    %v307 = vld [vmem:[%s1 + $0x44c] sm:$0xf]
    %v308 = vld [vmem:[%s1 + $0x450] sm:$0xf]
    %v309 = vld [vmem:[%s1 + $0x454] sm:$0xf]
    %v310 = vld [vmem:[%s1 + $0x458] sm:$0xf]
    %v311 = vld [vmem:[%s1 + $0x45c] sm:$0xf]
    %v312 = vld [vmem:[%s1 + $0x460] sm:$0xf]
    %v313 = vld [vmem:[%s1 + $0x464] sm:$0xf]
    %v314 = vld [vmem:[%s1 + $0x468] sm:$0xf]
    %v315 = vld [vmem:[%s1 + $0x46c] sm:$0xf]
    %v316 = vld [vmem:[%s1 + $0x470] sm:$0xf]
    %v317 = vld [vmem:[%s1 + $0x474] sm:$0xf]
    %v318 = vld [vmem:[%s1 + $0x478] sm:$0xf]
    %v319 = vld [vmem:[%s1 + $0x47c] sm:$0xf]
    %v320 = vld [vmem:[%s1 + $0x480] sm:$0xf]
    %v321 = vld [vmem:[%s1 + $0x484] sm:$0xf]
    %v322 = vld [vmem:[%s1 + $0x488] sm:$0xf]
    %v323 = vld [vmem:[%s1 + $0x48c] sm:$0xf]
    %v324 = vld [vmem:[%s1 + $0x490] sm:$0xf]
    %v325 = vld [vmem:[%s1 + $0x494] sm:$0xf]
    %v326 = vld [vmem:[%s1 + $0x498] sm:$0xf]
    %v327 = vld [vmem:[%s1 + $0x49c] sm:$0xf]
    %v328 = vld [vmem:[%s1 + $0x4a0] sm:$0xf]
    %v329 = vld [vmem:[%s1 + $0x4a4] sm:$0xf]
    %v330 = vld [vmem:[%s1 + $0x4a8] sm:$0xf]
    %v331 = vld [vmem:[%s1 + $0x4ac] sm:$0xf]
    %v332 = vld [vmem:[%s1 + $0x4b0] sm:$0xf]
    %v333 = vld [vmem:[%s1 + $0x4b4] sm:$0xf]
    %v334 = vld [vmem:[%s1 + $0x4b8] sm:$0xf]
    %v335 = vld [vmem:[%s1 + $0x4bc] sm:$0xf]
    %v336 = vld [vmem:[%s1 + $0x4c0] sm:$0xf]
    %v337 = vld [vmem:[%s1 + $0x4c4] sm:$0xf]
    %v338 = vld [vmem:[%s1 + $0x4c8] sm:$0xf]
    %v339 = vld [vmem:[%s1 + $0x4cc] sm:$0xf]
    %v340 = vld [vmem:[%s1 + $0x4d0] sm:$0xf]
    %v341 = vld [vmem:[%s1 + $0x4d4] sm:$0xf]
    %v342 = vld [vmem:[%s1 + $0x4d8] sm:$0xf]
    %v343 = vld [vmem:[%s1 + $0x4dc] sm:$0xf]
    %v344 = vld [vmem:[%s1 + $0x4e0] sm:$0xf]
    %v345 = vld [vmem:[%s1 + $0x4e4] sm:$0xf]
    %v346 = vld [vmem:[%s1 + $0x4e8] sm:$0xf]
    %v347 = vld [vmem:[%s1 + $0x4ec] sm:$0xf]
    %v348 = vld [vmem:[%s1 + $0x4f0] sm:$0xf]
    %v349 = vld [vmem:[%s1 + $0x4f4] sm:$0xf]
    %v350 = vld [vmem:[%s1 + $0x4f8] sm:$0xf]
    %v351 = vld [vmem:[%s1 + $0x4fc] sm:$0xf]
    %v352 = vld [vmem:[%s1 + $0x500] sm:$0xf]
    %v353 = vld [vmem:[%s1 + $0x504] sm:$0xf]
    %v354 = vld [vmem:[%s1 + $0x508] sm:$0xf]
    %v355 = vld [vmem:[%s1 + $0x50c] sm:$0xf]
    %v356 = vld [vmem:[%s1 + $0x510] sm:$0xf]
    %v357 = vld [vmem:[%s1 + $0x514] sm:$0xf]
    %v358 = vld [vmem:[%s1 + $0x518] sm:$0xf]
    %v359 = vld [vmem:[%s1 + $0x51c] sm:$0xf]
    %v360 = vld [vmem:[%s1 + $0x520] sm:$0xf]
    %v361 = vld [vmem:[%s1 + $0x524] sm:$0xf]
    %v362 = vld [vmem:[%s1 + $0x528] sm:$0xf]
    %v363 = vld [vmem:[%s1 + $0x52c] sm:$0xf]
    %v364 = vld [vmem:[%s1 + $0x530] sm:$0xf]
    %v365 = vld [vmem:[%s1 + $0x534] sm:$0xf]
    %v366 = vld [vmem:[%s1 + $0x538] sm:$0xf]
    %v367 = vld [vmem:[%s1 + $0x53c] sm:$0xf]
    %v368 = vld [vmem:[%s1 + $0x540] sm:$0xf]
    %v369 = vld [vmem:[%s1 + $0x544] sm:$0xf]
    %v370 = vld [vmem:[%s1 + $0x548] sm:$0xf]
    %v371 = vld [vmem:[%s1 + $0x54c] sm:$0xf]
    %v372 = vld [vmem:[%s1 + $0x550] sm:$0xf]
    %v373 = vld [vmem:[%s1 + $0x554] sm:$0xf]
    %v374 = vld [vmem:[%s1 + $0x558] sm:$0xf]
    %v375 = vld [vmem:[%s1 + $0x55c] sm:$0xf]
    %v376 = vld [vmem:[%s1 + $0x560] sm:$0xf]
    %v377 = vld [vmem:[%s1 + $0x564] sm:$0xf]
    %v378 = vld [vmem:[%s1 + $0x568] sm:$0xf]
    %v379 = vld [vmem:[%s1 + $0x56c] sm:$0xf]
    %v380 = vld [vmem:[%s1 + $0x570] sm:$0xf]
    %v381 = vld [vmem:[%s1 + $0x574] sm:$0xf]
    %v382 = vld [vmem:[%s1 + $0x578] sm:$0xf]
    %v383 = vld [vmem:[%s1 + $0x57c] sm:$0xf]
    %v384 = vld [vmem:[%s1 + $0x580] sm:$0xf]
    %v385 = vld [vmem:[%s1 + $0x584] sm:$0xf]
    %v386 = vld [vmem:[%s1 + $0x588] sm:$0xf]
    %v387 = vld [vmem:[%s1 + $0x58c] sm:$0xf]
    %v388 = vld [vmem:[%s1 + $0x590] sm:$0xf]
    %v389 = vld [vmem:[%s1 + $0x594] sm:$0xf]
    %v390 = vld [vmem:[%s1 + $0x598] sm:$0xf]
    %v391 = vld [vmem:[%s1 + $0x59c] sm:$0xf]
    %v392 = vld [vmem:[%s1 + $0x5a0] sm:$0xf]
    %v393 = vld [vmem:[%s1 + $0x5a4] sm:$0xf]
    %v394 = vld [vmem:[%s1 + $0x5a8] sm:$0xf]
    %v395 = vld [vmem:[%s1 + $0x5ac] sm:$0xf]
    %v396 = vld [vmem:[%s1 + $0x5b0] sm:$0xf]
    %v397 = vld [vmem:[%s1 + $0x5b4] sm:$0xf]
    %v398 = vld [vmem:[%s1 + $0x5b8] sm:$0xf]
    %v399 = vld [vmem:[%s1 + $0x5bc] sm:$0xf]
    %v400 = vld [vmem:[%s1 + $0x5c0] sm:$0xf]
    %v401 = vld [vmem:[%s1 + $0x5c4] sm:$0xf]
    %v402 = vld [vmem:[%s1 + $0x5c8] sm:$0xf]
    %v403 = vld [vmem:[%s1 + $0x5cc] sm:$0xf]
    %v404 = vld [vmem:[%s1 + $0x5d0] sm:$0xf]
    %v405 = vld [vmem:[%s1 + $0x5d4] sm:$0xf]
    %v406 = vld [vmem:[%s1 + $0x5d8] sm:$0xf]
    %v407 = vld [vmem:[%s1 + $0x5dc] sm:$0xf]
    %v408 = vld [vmem:[%s1 + $0x5e0] sm:$0xf]
    %v409 = vld [vmem:[%s1 + $0x5e4] sm:$0xf]
    %v410 = vld [vmem:[%s1 + $0x5e8] sm:$0xf]
    %v411 = vld [vmem:[%s1 + $0x5ec] sm:$0xf]
    %v412 = vld [vmem:[%s1 + $0x5f0] sm:$0xf]
    %v413 = vld [vmem:[%s1 + $0x5f4] sm:$0xf]
    %v414 = vld [vmem:[%s1 + $0x5f8] sm:$0xf]
    %v415 = vld [vmem:[%s1 + $0x5fc] sm:$0xf]
    %v416 = vld [vmem:[%s1 + $0x600] sm:$0xf]
    %v417 = vld [vmem:[%s1 + $0x604] sm:$0xf]
    %v418 = vld [vmem:[%s1 + $0x608] sm:$0xf]
    %v419 = vld [vmem:[%s1 + $0x60c] sm:$0xf]
    %v420 = vld [vmem:[%s1 + $0x610] sm:$0xf]
    %v421 = vld [vmem:[%s1 + $0x614] sm:$0xf]
    %v422 = vld [vmem:[%s1 + $0x618] sm:$0xf]
    %v423 = vld [vmem:[%s1 + $0x61c] sm:$0xf]
    %v424 = vld [vmem:[%s1 + $0x620] sm:$0xf]
    %v425 = vld [vmem:[%s1 + $0x624] sm:$0xf]
    %v426 = vld [vmem:[%s1 + $0x628] sm:$0xf]
    %v427 = vld [vmem:[%s1 + $0x62c] sm:$0xf]
    %v428 = vld [vmem:[%s1 + $0x630] sm:$0xf]
    %v429 = vld [vmem:[%s1 + $0x634] sm:$0xf]
    %v430 = vld [vmem:[%s1 + $0x638] sm:$0xf]
    %v431 = vld [vmem:[%s1 + $0x63c] sm:$0xf]
    %v432 = vld [vmem:[%s1 + $0x640] sm:$0xf]
    %v433 = vld [vmem:[%s1 + $0x644] sm:$0xf]
    %v434 = vld [vmem:[%s1 + $0x648] sm:$0xf]
    %v435 = vld [vmem:[%s1 + $0x64c] sm:$0xf]
    %v436 = vld [vmem:[%s1 + $0x650] sm:$0xf]
    %v437 = vld [vmem:[%s1 + $0x654] sm:$0xf]
    %v438 = vld [vmem:[%s1 + $0x658] sm:$0xf]
    %v439 = vld [vmem:[%s1 + $0x65c] sm:$0xf]
    %v440 = vld [vmem:[%s1 + $0x660] sm:$0xf]
    %v441 = vld [vmem:[%s1 + $0x664] sm:$0xf]
    %v442 = vld [vmem:[%s1 + $0x668] sm:$0xf]
    %v443 = vld [vmem:[%s1 + $0x66c] sm:$0xf]
    %v444 = vld [vmem:[%s1 + $0x670] sm:$0xf]
    %v445 = vld [vmem:[%s1 + $0x674] sm:$0xf]
    %v446 = vld [vmem:[%s1 + $0x678] sm:$0xf]
    %v447 = vld [vmem:[%s1 + $0x67c] sm:$0xf]
    %v448 = vld [vmem:[%s2] sm:$0x1]
    %v450 = vlaneseq
    %v451 = vshrl.u32 %v450, 7
    %v452 = vsub.s32 0, %v451
    %v453 = vrot.slane %v448, %v452
    %v459 = vcombine.high %v28, %v28
    %v461 = vunpack.c.l.s4 1966171168
    %v462 = vunpack.c.0.s8 %v461
    %v463 = vlaneseq
    %v464 = vshrl.u32 %v463, 7
    %v465 = vsub.s32 %v462, %v464
    %v466 = vrot.slane %v28, %v465
    %v468 = vunpack.c.l.s4 1966171168
    %v469 = vunpack.c.0.s8 %v468
    %v470 = vlaneseq
    %v471 = vshrl.u32 %v470, 7
    %v472 = vsub.s32 %v469, %v471
    %v473 = vrot.slane %v459, %v472
    %v474 = vcombine.high %v466, %v466
    %v475 = vcombine.high %v473, %v473
    %v477 = vunpack.c.l.s4 1966171168
    %v478 = vunpack.c.0.s8 %v477
    %v479 = vlaneseq
    %v480 = vshrl.u32 %v479, 7
    %v481 = vsub.s32 %v478, %v480
    %v482 = vrot.slane %v466, %v481
    %v484 = vunpack.c.l.s4 1966171168
    %v485 = vunpack.c.0.s8 %v484
    %v486 = vlaneseq
    %v487 = vshrl.u32 %v486, 7
    %v488 = vsub.s32 %v485, %v487
    %v489 = vrot.slane %v473, %v488
    %v491 = vunpack.c.l.s4 1966171168
    %v492 = vunpack.c.0.s8 %v491
    %v493 = vlaneseq
    %v494 = vshrl.u32 %v493, 7
    %v495 = vsub.s32 %v492, %v494
    %v496 = vrot.slane %v474, %v495
    %v498 = vunpack.c.l.s4 1966171168
    %v499 = vunpack.c.0.s8 %v498
    %v500 = vlaneseq
    %v501 = vshrl.u32 %v500, 7
    %v502 = vsub.s32 %v499, %v501
    %v503 = vrot.slane %v475, %v502
    %v504 = vcombine.high %v482, %v482
    %v505 = vcombine.high %v489, %v489
    %v506 = vcombine.high %v496, %v496
    %v507 = vcombine.high %v503, %v503
    %v508 = vcombine.high %v29, %v29
    %v510 = vunpack.c.l.s4 1966171168
    %v511 = vunpack.c.0.s8 %v510
    %v512 = vlaneseq
    %v513 = vshrl.u32 %v512, 7
    %v514 = vsub.s32 %v511, %v513
    %v515 = vrot.slane %v29, %v514
    %v517 = vunpack.c.l.s4 1966171168
    %v518 = vunpack.c.0.s8 %v517
    %v519 = vlaneseq
    %v520 = vshrl.u32 %v519, 7
    %v521 = vsub.s32 %v518, %v520
    %v522 = vrot.slane %v508, %v521
    %v523 = vcombine.high %v515, %v515
    %v524 = vcombine.high %v522, %v522
    %v526 = vunpack.c.l.s4 1966171168
    %v527 = vunpack.c.0.s8 %v526
    %v528 = vlaneseq
    %v529 = vshrl.u32 %v528, 7
    %v530 = vsub.s32 %v527, %v529
    %v531 = vrot.slane %v515, %v530
    %v533 = vunpack.c.l.s4 1966171168
    %v534 = vunpack.c.0.s8 %v533
    %v535 = vlaneseq
    %v536 = vshrl.u32 %v535, 7
    %v537 = vsub.s32 %v534, %v536
    %v538 = vrot.slane %v522, %v537
    %v540 = vunpack.c.l.s4 1966171168
    %v541 = vunpack.c.0.s8 %v540
    %v542 = vlaneseq
    %v543 = vshrl.u32 %v542, 7
    %v544 = vsub.s32 %v541, %v543
    %v545 = vrot.slane %v523, %v544
    %v547 = vunpack.c.l.s4 1966171168
    %v548 = vunpack.c.0.s8 %v547
    %v549 = vlaneseq
    %v550 = vshrl.u32 %v549, 7
    %v551 = vsub.s32 %v548, %v550
    %v552 = vrot.slane %v524, %v551
    %v553 = vcombine.high %v531, %v531
    %v554 = vcombine.high %v538, %v538
    %v555 = vcombine.high %v545, %v545
    %v556 = vcombine.high %v552, %v552
    %v557 = vcombine.high %v30, %v30
    %v559 = vunpack.c.l.s4 1966171168
    %v560 = vunpack.c.0.s8 %v559
    %v561 = vlaneseq
    %v562 = vshrl.u32 %v561, 7
    %v563 = vsub.s32 %v560, %v562
    %v564 = vrot.slane %v30, %v563
    %v566 = vunpack.c.l.s4 1966171168
    %v567 = vunpack.c.0.s8 %v566
    %v568 = vlaneseq
    %v569 = vshrl.u32 %v568, 7
    %v570 = vsub.s32 %v567, %v569
    %v571 = vrot.slane %v557, %v570
    %v572 = vcombine.high %v564, %v564
    %v573 = vcombine.high %v571, %v571
    %v575 = vunpack.c.l.s4 1966171168
    %v576 = vunpack.c.0.s8 %v575
    %v577 = vlaneseq
    %v578 = vshrl.u32 %v577, 7
    %v579 = vsub.s32 %v576, %v578
    %v580 = vrot.slane %v564, %v579
    %v582 = vunpack.c.l.s4 1966171168
    %v583 = vunpack.c.0.s8 %v582
    %v584 = vlaneseq
    %v585 = vshrl.u32 %v584, 7
    %v586 = vsub.s32 %v583, %v585
    %v587 = vrot.slane %v571, %v586
    %v589 = vunpack.c.l.s4 1966171168
    %v590 = vunpack.c.0.s8 %v589
    %v591 = vlaneseq
    %v592 = vshrl.u32 %v591, 7
    %v593 = vsub.s32 %v590, %v592
    %v594 = vrot.slane %v572, %v593
    %v596 = vunpack.c.l.s4 1966171168
    %v597 = vunpack.c.0.s8 %v596
    %v598 = vlaneseq
    %v599 = vshrl.u32 %v598, 7
    %v600 = vsub.s32 %v597, %v599
    %v601 = vrot.slane %v573, %v600
    %v602 = vcombine.high %v580, %v580
    %v603 = vcombine.high %v587, %v587
    %v604 = vcombine.high %v594, %v594
    %v605 = vcombine.high %v601, %v601
    %v607 = vunpack.c.l.s4 1966171168
    %v608 = vunpack.c.0.s8 %v607
    %v609 = vlaneseq
    %v610 = vshrl.u32 %v609, 7
    %v611 = vsub.s32 %v608, %v610
    %v612 = vrot.slane %v31, %v611
    %v613 = vcombine.high %v612, %v612
    %v615 = vunpack.c.l.s4 1966171168
    %v616 = vunpack.c.0.s8 %v615
    %v617 = vlaneseq
    %v618 = vshrl.u32 %v617, 7
    %v619 = vsub.s32 %v616, %v618
    %v620 = vrot.slane %v612, %v619
    %v622 = vunpack.c.l.s4 1966171168
    %v623 = vunpack.c.0.s8 %v622
    %v624 = vlaneseq
    %v625 = vshrl.u32 %v624, 7
    %v626 = vsub.s32 %v623, %v625
    %v627 = vrot.slane %v613, %v626
    %v1070 = vunpack.c.l.b16 %v32
    %v1071 = vunpack.c.l.b16 %v33
    %v1072 = vunpack.c.l.b16 %v34
    %v1073 = vunpack.c.l.b16 %v35
    %v1074 = vunpack.c.l.b16 %v36
    %v1075 = vunpack.c.l.b16 %v37
    %v1076 = vunpack.c.l.b16 %v38
    %v1077 = vunpack.c.l.b16 %v39
    %v1078 = vunpack.c.l.b16 %v40
    %v1079 = vunpack.c.l.b16 %v41
    %v1080 = vunpack.c.l.b16 %v42
    %v1081 = vunpack.c.l.b16 %v43
    %v1082 = vunpack.c.l.b16 %v44
    %v1083 = vunpack.c.l.b16 %v45
    %v1084 = vunpack.c.l.b16 %v46
    %v1085 = vunpack.c.l.b16 %v47
    %v1086 = vunpack.c.l.b16 %v48
    %v1087 = vunpack.c.l.b16 %v49
    %v1088 = vunpack.c.l.b16 %v50
    %v1089 = vunpack.c.l.b16 %v51
    %v1090 = vunpack.c.l.b16 %v52
    %v1091 = vunpack.c.l.b16 %v53
    %v1092 = vunpack.c.l.b16 %v54
    %v1093 = vunpack.c.l.b16 %v55
    %v1094 = vunpack.c.l.b16 %v56
    %v1095 = vunpack.c.l.b16 %v57
    %v1096 = vunpack.c.l.b16 %v58
    %v1097 = vunpack.c.l.b16 %v59
    %v1098 = vunpack.c.l.b16 %v60
    %v1099 = vunpack.c.l.b16 %v61
    %v1100 = vunpack.c.l.b16 %v62
    %v1101 = vunpack.c.l.b16 %v63
    %v1102 = vunpack.c.l.b16 %v64
    %v1103 = vunpack.c.l.b16 %v65
    %v1104 = vunpack.c.l.b16 %v66
    %v1105 = vunpack.c.l.b16 %v67
    %v1106 = vunpack.c.l.b16 %v68
    %v1107 = vunpack.c.l.b16 %v69
    %v1108 = vunpack.c.l.b16 %v70
    %v1109 = vunpack.c.l.b16 %v71
    %v1110 = vunpack.c.l.b16 %v72
    %v1111 = vunpack.c.l.b16 %v73
    %v1112 = vunpack.c.l.b16 %v74
    %v1113 = vunpack.c.l.b16 %v75
    %v1114 = vunpack.c.l.b16 %v76
    %v1115 = vunpack.c.l.b16 %v77
    %v1116 = vunpack.c.l.b16 %v78
    %v1117 = vunpack.c.l.b16 %v79
    %v1118 = vunpack.c.l.b16 %v80
    %v1119 = vunpack.c.l.b16 %v81
    %v1120 = vunpack.c.l.b16 %v82
    %v1121 = vunpack.c.l.b16 %v83
    %v1122 = vunpack.c.l.b16 %v84
    %v1123 = vunpack.c.l.b16 %v85
    %v1124 = vunpack.c.l.b16 %v86
    %v1125 = vunpack.c.l.b16 %v87
    %v1126 = vunpack.c.l.b16 %v88
    %v1127 = vunpack.c.l.b16 %v89
    %v1128 = vunpack.c.l.b16 %v90
    %v1129 = vunpack.c.l.b16 %v91
    %v1130 = vunpack.c.l.b16 %v92
    %v1131 = vunpack.c.l.b16 %v93
    %v1132 = vunpack.c.l.b16 %v94
    %v1133 = vunpack.c.l.b16 %v95
    %v1134 = vunpack.c.l.b16 %v96
    %v1135 = vunpack.c.l.b16 %v97
    %v1136 = vunpack.c.l.b16 %v98
    %v1137 = vunpack.c.l.b16 %v99
    %v1138 = vunpack.c.l.b16 %v100
    %v1139 = vunpack.c.l.b16 %v101
    %v1140 = vunpack.c.l.b16 %v102
    %v1141 = vunpack.c.l.b16 %v103
    %v1142 = vunpack.c.l.b16 %v104
    %v1143 = vunpack.c.l.b16 %v105
    %v1144 = vunpack.c.l.b16 %v106
    %v1145 = vunpack.c.l.b16 %v107
    %v1146 = vunpack.c.l.b16 %v108
    %v1147 = vunpack.c.l.b16 %v109
    %v1148 = vunpack.c.l.b16 %v110
    %v1149 = vunpack.c.l.b16 %v111
    %v1150 = vunpack.c.l.b16 %v112
    %v1151 = vunpack.c.l.b16 %v113
    %v1152 = vunpack.c.l.b16 %v114
    %v1153 = vunpack.c.l.b16 %v115
    %v1154 = vunpack.c.l.b16 %v116
    %v1155 = vunpack.c.l.b16 %v117
    %v1156 = vunpack.c.l.b16 %v118
    %v1157 = vunpack.c.l.b16 %v119
    %v1158 = vunpack.c.l.b16 %v120
    %v1159 = vunpack.c.l.b16 %v121
    %v1160 = vunpack.c.l.b16 %v122
    %v1161 = vunpack.c.l.b16 %v123
    %v1162 = vunpack.c.l.b16 %v124
    %v1163 = vunpack.c.l.b16 %v125
    %v1164 = vunpack.c.l.b16 %v126
    %v1165 = vunpack.c.l.b16 %v127
    %v1166 = vunpack.c.l.b16 %v128
    %v1167 = vunpack.c.l.b16 %v129
    %v1168 = vunpack.c.l.b16 %v130
    %v1169 = vunpack.c.l.b16 %v131
    %v1170 = vunpack.c.l.b16 %v132
    %v1171 = vunpack.c.l.b16 %v133
    %v1172 = vunpack.c.l.b16 %v134
    %v1173 = vunpack.c.l.b16 %v135
    %v1174 = vunpack.c.l.b16 %v136
    %v1175 = vunpack.c.l.b16 %v137
    %v1176 = vunpack.c.l.b16 %v138
    %v1177 = vunpack.c.l.b16 %v139
    %v1178 = vunpack.c.l.b16 %v140
    %v1179 = vunpack.c.l.b16 %v141
    %v1180 = vunpack.c.l.b16 %v142
    %v1181 = vunpack.c.l.b16 %v143
    %v1182 = vunpack.c.l.b16 %v144
    %v1183 = vunpack.c.l.b16 %v145
    %v1184 = vunpack.c.l.b16 %v146
    %v1185 = vunpack.c.l.b16 %v147
    %v1186 = vunpack.c.l.b16 %v148
    %v1187 = vunpack.c.l.b16 %v149
    %v1188 = vunpack.c.l.b16 %v150
    %v1189 = vunpack.c.l.b16 %v151
    %v1190 = vunpack.c.l.b16 %v152
    %v1191 = vunpack.c.l.b16 %v153
    %v1192 = vunpack.c.l.b16 %v154
    %v1193 = vunpack.c.l.b16 %v155
    %v1194 = vunpack.c.l.b16 %v156
    %v1195 = vunpack.c.l.b16 %v157
    %v1196 = vunpack.c.l.b16 %v158
    %v1197 = vunpack.c.l.b16 %v159
    %v1198 = vunpack.c.l.b16 %v160
    %v1199 = vunpack.c.l.b16 %v161
    %v1200 = vunpack.c.l.b16 %v162
    %v1201 = vunpack.c.l.b16 %v163
    %v1202 = vunpack.c.l.b16 %v164
    %v1203 = vunpack.c.l.b16 %v165
    %v1204 = vunpack.c.l.b16 %v166
    %v1205 = vunpack.c.l.b16 %v167
    %v1206 = vunpack.c.l.b16 %v168
    %v1207 = vunpack.c.l.b16 %v169
    %v1208 = vunpack.c.l.b16 %v170
    %v1209 = vunpack.c.l.b16 %v171
    %v1210 = vunpack.c.l.b16 %v172
    %v1211 = vunpack.c.l.b16 %v173
    %v1212 = vunpack.c.l.b16 %v174
    %v1213 = vunpack.c.l.b16 %v175
    %v1214 = vunpack.c.l.b16 %v176
    %v1215 = vunpack.c.l.b16 %v177
    %v1216 = vunpack.c.l.b16 %v178
    %v1217 = vunpack.c.l.b16 %v179
    %v1218 = vunpack.c.l.b16 %v180
    %v1219 = vunpack.c.l.b16 %v181
    %v1220 = vunpack.c.l.b16 %v182
    %v1221 = vunpack.c.l.b16 %v183
    %v1222 = vunpack.c.l.b16 %v184
    %v1223 = vunpack.c.l.b16 %v185
    %v1224 = vunpack.c.l.b16 %v186
    %v1225 = vunpack.c.l.b16 %v187
    %v1226 = vunpack.c.l.b16 %v188
    %v1227 = vunpack.c.l.b16 %v189
    %v1228 = vunpack.c.l.b16 %v190
    %v1229 = vunpack.c.l.b16 %v191
    %v1230 = vunpack.c.l.b16 %v192
    %v1231 = vunpack.c.l.b16 %v193
    %v1232 = vunpack.c.l.b16 %v194
    %v1233 = vunpack.c.l.b16 %v195
    %v1234 = vunpack.c.l.b16 %v196
    %v1235 = vunpack.c.l.b16 %v197
    %v1236 = vunpack.c.l.b16 %v198
    %v1237 = vunpack.c.l.b16 %v199
    %v1238 = vunpack.c.l.b16 %v200
    %v1239 = vunpack.c.l.b16 %v201
    %v1240 = vunpack.c.l.b16 %v202
    %v1241 = vunpack.c.l.b16 %v203
    %v1242 = vunpack.c.l.b16 %v204
    %v1243 = vunpack.c.l.b16 %v205
    %v1244 = vunpack.c.l.b16 %v206
    %v1245 = vunpack.c.l.b16 %v207
    %v1246 = vunpack.c.l.b16 %v208
    %v1247 = vunpack.c.l.b16 %v209
    %v1248 = vunpack.c.l.b16 %v210
    %v1249 = vunpack.c.l.b16 %v211
    %v1250 = vunpack.c.l.b16 %v212
    %v1251 = vunpack.c.l.b16 %v213
    %v1252 = vunpack.c.l.b16 %v214
    %v1253 = vunpack.c.l.b16 %v215
    %v1254 = vunpack.c.l.b16 %v216
    %v1255 = vunpack.c.l.b16 %v217
    %v1256 = vunpack.c.l.b16 %v218
    %v1257 = vunpack.c.l.b16 %v219
    %v1258 = vunpack.c.l.b16 %v220
    %v1259 = vunpack.c.l.b16 %v221
    %v1260 = vunpack.c.l.b16 %v222
    %v1261 = vunpack.c.l.b16 %v223
    %v1262 = vunpack.c.l.b16 %v224
    %v1263 = vunpack.c.l.b16 %v225
    %v1264 = vunpack.c.l.b16 %v226
    %v1265 = vunpack.c.l.b16 %v227
    %v1266 = vunpack.c.l.b16 %v228
    %v1267 = vunpack.c.l.b16 %v229
    %v1268 = vunpack.c.l.b16 %v230
    %v1269 = vunpack.c.l.b16 %v231
    %v1270 = vunpack.c.l.b16 %v232
    %v1271 = vunpack.c.l.b16 %v233
    %v1272 = vunpack.c.l.b16 %v234
    %v1273 = vunpack.c.l.b16 %v235
    %v1274 = vunpack.c.l.b16 %v236
    %v1275 = vunpack.c.l.b16 %v237
    %v1276 = vunpack.c.l.b16 %v238
    %v1277 = vunpack.c.l.b16 %v239
    %v1278 = vunpack.c.l.b16 %v240
    %v1279 = vunpack.c.l.b16 %v241
    %v1280 = vunpack.c.l.b16 %v242
    %v1281 = vunpack.c.l.b16 %v243
    %v1282 = vunpack.c.l.b16 %v244
    %v1283 = vunpack.c.l.b16 %v245
    %v1284 = vunpack.c.l.b16 %v246
    %v1285 = vunpack.c.l.b16 %v247
    %v1286 = vunpack.c.l.b16 %v248
    %v1287 = vunpack.c.l.b16 %v249
    %v1288 = vunpack.c.l.b16 %v250
    %v1289 = vunpack.c.l.b16 %v251
    %v1290 = vunpack.c.l.b16 %v252
    %v1291 = vunpack.c.l.b16 %v253
    %v1292 = vunpack.c.l.b16 %v254
    %v1293 = vunpack.c.l.b16 %v255
    %v1294 = vunpack.c.l.b16 %v256
    %v1295 = vunpack.c.l.b16 %v257
    %v1296 = vunpack.c.l.b16 %v258
    %v1297 = vunpack.c.l.b16 %v259
    %v1298 = vunpack.c.l.b16 %v260
    %v1299 = vunpack.c.l.b16 %v261
    %v1300 = vunpack.c.l.b16 %v262
    %v1301 = vunpack.c.l.b16 %v263
    %v1302 = vunpack.c.l.b16 %v264
    %v1303 = vunpack.c.l.b16 %v265
    %v1304 = vunpack.c.l.b16 %v266
    %v1305 = vunpack.c.l.b16 %v267
    %v1306 = vunpack.c.l.b16 %v268
    %v1307 = vunpack.c.l.b16 %v269
    %v1308 = vunpack.c.l.b16 %v270
    %v1309 = vunpack.c.l.b16 %v271
    %v1310 = vunpack.c.l.b16 %v272
    %v1311 = vunpack.c.l.b16 %v273
    %v1312 = vunpack.c.l.b16 %v274
    %v1313 = vunpack.c.l.b16 %v275
    %v1314 = vunpack.c.l.b16 %v276
    %v1315 = vunpack.c.l.b16 %v277
    %v1316 = vunpack.c.l.b16 %v278
    %v1317 = vunpack.c.l.b16 %v279
    %v1318 = vunpack.c.l.b16 %v280
    %v1319 = vunpack.c.l.b16 %v281
    %v1320 = vunpack.c.l.b16 %v282
    %v1321 = vunpack.c.l.b16 %v283
    %v1322 = vunpack.c.l.b16 %v284
    %v1323 = vunpack.c.l.b16 %v285
    %v1324 = vunpack.c.l.b16 %v286
    %v1325 = vunpack.c.l.b16 %v287
    %v1326 = vunpack.c.l.b16 %v288
    %v1327 = vunpack.c.l.b16 %v289
    %v1328 = vunpack.c.l.b16 %v290
    %v1329 = vunpack.c.l.b16 %v291
    %v1330 = vunpack.c.l.b16 %v292
    %v1331 = vunpack.c.l.b16 %v293
    %v1332 = vunpack.c.l.b16 %v294
    %v1333 = vunpack.c.l.b16 %v295
    %v1334 = vunpack.c.l.b16 %v296
    %v1335 = vunpack.c.l.b16 %v297
    %v1336 = vunpack.c.l.b16 %v298
    %v1337 = vunpack.c.l.b16 %v299
    %v1338 = vunpack.c.l.b16 %v300
    %v1339 = vunpack.c.l.b16 %v301
    %v1340 = vunpack.c.l.b16 %v302
    %v1341 = vunpack.c.l.b16 %v303
    %v1342 = vunpack.c.l.b16 %v304
    %v1343 = vunpack.c.l.b16 %v305
    %v1344 = vunpack.c.l.b16 %v306
    %v1345 = vunpack.c.l.b16 %v307
    %v1346 = vunpack.c.l.b16 %v308
    %v1347 = vunpack.c.l.b16 %v309
    %v1348 = vunpack.c.l.b16 %v310
    %v1349 = vunpack.c.l.b16 %v311
    %v1350 = vunpack.c.l.b16 %v312
    %v1351 = vunpack.c.l.b16 %v313
    %v1352 = vunpack.c.l.b16 %v314
    %v1353 = vunpack.c.l.b16 %v315
    %v1354 = vunpack.c.l.b16 %v316
    %v1355 = vunpack.c.l.b16 %v317
    %v1356 = vunpack.c.l.b16 %v318
    %v1357 = vunpack.c.l.b16 %v319
    %v1358 = vunpack.c.l.b16 %v320
    %v1359 = vunpack.c.l.b16 %v321
    %v1360 = vunpack.c.l.b16 %v322
    %v1361 = vunpack.c.l.b16 %v323
    %v1362 = vunpack.c.l.b16 %v324
    %v1363 = vunpack.c.l.b16 %v325
    %v1364 = vunpack.c.l.b16 %v326
    %v1365 = vunpack.c.l.b16 %v327
    %v1366 = vunpack.c.l.b16 %v328
    %v1367 = vunpack.c.l.b16 %v329
    %v1368 = vunpack.c.l.b16 %v330
    %v1369 = vunpack.c.l.b16 %v331
    %v1370 = vunpack.c.l.b16 %v332
    %v1371 = vunpack.c.l.b16 %v333
    %v1372 = vunpack.c.l.b16 %v334
    %v1373 = vunpack.c.l.b16 %v335
    %v1374 = vunpack.c.l.b16 %v336
    %v1375 = vunpack.c.l.b16 %v337
    %v1376 = vunpack.c.l.b16 %v338
    %v1377 = vunpack.c.l.b16 %v339
    %v1378 = vunpack.c.l.b16 %v340
    %v1379 = vunpack.c.l.b16 %v341
    %v1380 = vunpack.c.l.b16 %v342
    %v1381 = vunpack.c.l.b16 %v343
    %v1382 = vunpack.c.l.b16 %v344
    %v1383 = vunpack.c.l.b16 %v345
    %v1384 = vunpack.c.l.b16 %v346
    %v1385 = vunpack.c.l.b16 %v347
    %v1386 = vunpack.c.l.b16 %v348
    %v1387 = vunpack.c.l.b16 %v349
    %v1388 = vunpack.c.l.b16 %v350
    %v1389 = vunpack.c.l.b16 %v351
    %v1390 = vunpack.c.l.b16 %v352
    %v1391 = vunpack.c.l.b16 %v353
    %v1392 = vunpack.c.l.b16 %v354
    %v1393 = vunpack.c.l.b16 %v355
    %v1394 = vunpack.c.l.b16 %v356
    %v1395 = vunpack.c.l.b16 %v357
    %v1396 = vunpack.c.l.b16 %v358
    %v1397 = vunpack.c.l.b16 %v359
    %v1398 = vunpack.c.l.b16 %v360
    %v1399 = vunpack.c.l.b16 %v361
    %v1400 = vunpack.c.l.b16 %v362
    %v1401 = vunpack.c.l.b16 %v363
    %v1402 = vunpack.c.l.b16 %v364
    %v1403 = vunpack.c.l.b16 %v365
    %v1404 = vunpack.c.l.b16 %v366
    %v1405 = vunpack.c.l.b16 %v367
    %v1406 = vunpack.c.l.b16 %v368
    %v1407 = vunpack.c.l.b16 %v369
    %v1408 = vunpack.c.l.b16 %v370
    %v1409 = vunpack.c.l.b16 %v371
    %v1410 = vunpack.c.l.b16 %v372
    %v1411 = vunpack.c.l.b16 %v373
    %v1412 = vunpack.c.l.b16 %v374
    %v1413 = vunpack.c.l.b16 %v375
    %v1414 = vunpack.c.l.b16 %v376
    %v1415 = vunpack.c.l.b16 %v377
    %v1416 = vunpack.c.l.b16 %v378
    %v1417 = vunpack.c.l.b16 %v379
    %v1418 = vunpack.c.l.b16 %v380
    %v1419 = vunpack.c.l.b16 %v381
    %v1420 = vunpack.c.l.b16 %v382
    %v1421 = vunpack.c.l.b16 %v383
    %v1422 = vunpack.c.l.b16 %v384
    %v1423 = vunpack.c.l.b16 %v385
    %v1424 = vunpack.c.l.b16 %v386
    %v1425 = vunpack.c.l.b16 %v387
    %v1426 = vunpack.c.l.b16 %v388
    %v1427 = vunpack.c.l.b16 %v389
    %v1428 = vunpack.c.l.b16 %v390
    %v1429 = vunpack.c.l.b16 %v391
    %v1430 = vunpack.c.l.b16 %v392
    %v1431 = vunpack.c.l.b16 %v393
    %v1432 = vunpack.c.l.b16 %v394
    %v1433 = vunpack.c.l.b16 %v395
    %v1434 = vunpack.c.l.b16 %v396
    %v1435 = vunpack.c.l.b16 %v397
    %v1436 = vunpack.c.l.b16 %v398
    %v1437 = vunpack.c.l.b16 %v399
    %v1438 = vunpack.c.l.b16 %v400
    %v1439 = vunpack.c.l.b16 %v401
    %v1440 = vunpack.c.l.b16 %v402
    %v1441 = vunpack.c.l.b16 %v403
    %v1442 = vunpack.c.l.b16 %v404
    %v1443 = vunpack.c.l.b16 %v405
    %v1444 = vunpack.c.l.b16 %v406
    %v1445 = vunpack.c.l.b16 %v407
    %v1446 = vunpack.c.l.b16 %v408
    %v1447 = vunpack.c.l.b16 %v409
    %v1448 = vunpack.c.l.b16 %v410
    %v1449 = vunpack.c.l.b16 %v411
    %v1450 = vunpack.c.l.b16 %v412
    %v1451 = vunpack.c.l.b16 %v413
    %v1452 = vunpack.c.l.b16 %v414
    %v1453 = vunpack.c.l.b16 %v415
    %v1454 = vunpack.c.l.b16 %v416
    %v1455 = vunpack.c.l.b16 %v417
    %v1456 = vunpack.c.l.b16 %v418
    %v1457 = vunpack.c.l.b16 %v419
    %v1458 = vunpack.c.l.b16 %v420
    %v1459 = vunpack.c.l.b16 %v421
    %v1460 = vunpack.c.l.b16 %v422
    %v1461 = vunpack.c.l.b16 %v423
    %v1462 = vunpack.c.l.b16 %v424
    %v1463 = vunpack.c.l.b16 %v425
    %v1464 = vunpack.c.l.b16 %v426
    %v1465 = vunpack.c.l.b16 %v427
    %v1466 = vunpack.c.l.b16 %v428
    %v1467 = vunpack.c.l.b16 %v429
    %v1468 = vunpack.c.l.b16 %v430
    %v1469 = vunpack.c.l.b16 %v431
    %v1470 = vunpack.c.l.b16 %v432
    %v1471 = vunpack.c.l.b16 %v433
    %v1472 = vunpack.c.l.b16 %v434
    %v1473 = vunpack.c.l.b16 %v435
    %v1474 = vunpack.c.l.b16 %v436
    %v1475 = vunpack.c.l.b16 %v437
    %v1476 = vunpack.c.l.b16 %v438
    %v1477 = vunpack.c.l.b16 %v439
    %v1478 = vunpack.c.l.b16 %v440
    %v1479 = vunpack.c.l.b16 %v441
    %v1480 = vunpack.c.l.b16 %v442
    %v1481 = vunpack.c.l.b16 %v443
    %v1482 = vunpack.c.l.b16 %v444
    %v1483 = vunpack.c.l.b16 %v445
    %v1484 = vunpack.c.l.b16 %v446
    %v1485 = vunpack.c.l.b16 %v447
    %v1486 = vpack.c.b16 %v1071, %v1070
    %v1487 = vpack.c.b16 %v1073, %v1072
    %v1488 = vpack.c.b16 %v1075, %v1074
    %v1489 = vpack.c.b16 %v1077, %v1076
    %v1490 = vpack.c.b16 %v1079, %v1078
    %v1491 = vpack.c.b16 %v1081, %v1080
    %v1492 = vpack.c.b16 %v1083, %v1082
    %v1493 = vpack.c.b16 %v1085, %v1084
    %v1494 = vpack.c.b16 %v1087, %v1086
    %v1495 = vpack.c.b16 %v1089, %v1088
    %v1496 = vpack.c.b16 %v1091, %v1090
    %v1497 = vpack.c.b16 %v1093, %v1092
    %v1498 = vpack.c.b16 %v1095, %v1094
    %v1499 = vpack.c.b16 %v1097, %v1096
    %v1500 = vpack.c.b16 %v1099, %v1098
    %v1501 = vpack.c.b16 %v1101, %v1100
    %v1502 = vpack.c.b16 %v1103, %v1102
    %v1503 = vpack.c.b16 %v1105, %v1104
    %v1504 = vpack.c.b16 %v1107, %v1106
    %v1505 = vpack.c.b16 %v1109, %v1108
    %v1506 = vpack.c.b16 %v1111, %v1110
    %v1507 = vpack.c.b16 %v1113, %v1112
    %v1508 = vpack.c.b16 %v1115, %v1114
    %v1509 = vpack.c.b16 %v1117, %v1116
    %v1510 = vpack.c.b16 %v1119, %v1118
    %v1511 = vpack.c.b16 %v1121, %v1120
    %v1512 = vpack.c.b16 %v1123, %v1122
    %v1513 = vpack.c.b16 %v1125, %v1124
    %v1514 = vpack.c.b16 %v1127, %v1126
    %v1515 = vpack.c.b16 %v1129, %v1128
    %v1516 = vpack.c.b16 %v1131, %v1130
    %v1517 = vpack.c.b16 %v1133, %v1132
    %v1518 = vpack.c.b16 %v1135, %v1134
    %v1519 = vpack.c.b16 %v1137, %v1136
    %v1520 = vpack.c.b16 %v1139, %v1138
    %v1521 = vpack.c.b16 %v1141, %v1140
    %v1522 = vpack.c.b16 %v1143, %v1142
    %v1523 = vpack.c.b16 %v1145, %v1144
    %v1524 = vpack.c.b16 %v1147, %v1146
    %v1525 = vpack.c.b16 %v1149, %v1148
    %v1526 = vpack.c.b16 %v1151, %v1150
    %v1527 = vpack.c.b16 %v1153, %v1152
    %v1528 = vpack.c.b16 %v1155, %v1154
    %v1529 = vpack.c.b16 %v1157, %v1156
    %v1530 = vpack.c.b16 %v1159, %v1158
    %v1531 = vpack.c.b16 %v1161, %v1160
    %v1532 = vpack.c.b16 %v1163, %v1162
    %v1533 = vpack.c.b16 %v1165, %v1164
    %v1534 = vpack.c.b16 %v1167, %v1166
    %v1535 = vpack.c.b16 %v1169, %v1168
    %v1536 = vpack.c.b16 %v1171, %v1170
    %v1537 = vpack.c.b16 %v1173, %v1172
    %v1538 = vpack.c.b16 %v1175, %v1174
    %v1539 = vpack.c.b16 %v1177, %v1176
    %v1540 = vpack.c.b16 %v1179, %v1178
    %v1541 = vpack.c.b16 %v1181, %v1180
    %v1542 = vpack.c.b16 %v1183, %v1182
    %v1543 = vpack.c.b16 %v1185, %v1184
    %v1544 = vpack.c.b16 %v1187, %v1186
    %v1545 = vpack.c.b16 %v1189, %v1188
    %v1546 = vpack.c.b16 %v1191, %v1190
    %v1547 = vpack.c.b16 %v1193, %v1192
    %v1548 = vpack.c.b16 %v1195, %v1194
    %v1549 = vpack.c.b16 %v1197, %v1196
    %v1550 = vpack.c.b16 %v1199, %v1198
    %v1551 = vpack.c.b16 %v1201, %v1200
    %v1552 = vpack.c.b16 %v1203, %v1202
    %v1553 = vpack.c.b16 %v1205, %v1204
    %v1554 = vpack.c.b16 %v1207, %v1206
    %v1555 = vpack.c.b16 %v1209, %v1208
    %v1556 = vpack.c.b16 %v1211, %v1210
    %v1557 = vpack.c.b16 %v1213, %v1212
    %v1558 = vpack.c.b16 %v1215, %v1214
    %v1559 = vpack.c.b16 %v1217, %v1216
    %v1560 = vpack.c.b16 %v1219, %v1218
    %v1561 = vpack.c.b16 %v1221, %v1220
    %v1562 = vpack.c.b16 %v1223, %v1222
    %v1563 = vpack.c.b16 %v1225, %v1224
    %v1564 = vpack.c.b16 %v1227, %v1226
    %v1565 = vpack.c.b16 %v1229, %v1228
    %v1566 = vpack.c.b16 %v1231, %v1230
    %v1567 = vpack.c.b16 %v1233, %v1232
    %v1568 = vpack.c.b16 %v1235, %v1234
    %v1569 = vpack.c.b16 %v1237, %v1236
    %v1570 = vpack.c.b16 %v1239, %v1238
    %v1571 = vpack.c.b16 %v1241, %v1240
    %v1572 = vpack.c.b16 %v1243, %v1242
    %v1573 = vpack.c.b16 %v1245, %v1244
    %v1574 = vpack.c.b16 %v1247, %v1246
    %v1575 = vpack.c.b16 %v1249, %v1248
    %v1576 = vpack.c.b16 %v1251, %v1250
    %v1577 = vpack.c.b16 %v1253, %v1252
    %v1578 = vpack.c.b16 %v1255, %v1254
    %v1579 = vpack.c.b16 %v1257, %v1256
    %v1580 = vpack.c.b16 %v1259, %v1258
    %v1581 = vpack.c.b16 %v1261, %v1260
    %v1582 = vpack.c.b16 %v1263, %v1262
    %v1583 = vpack.c.b16 %v1265, %v1264
    %v1584 = vpack.c.b16 %v1267, %v1266
    %v1585 = vpack.c.b16 %v1269, %v1268
    %v1586 = vpack.c.b16 %v1271, %v1270
    %v1587 = vpack.c.b16 %v1273, %v1272
    %v1588 = vpack.c.b16 %v1275, %v1274
    %v1589 = vpack.c.b16 %v1277, %v1276
    %v1590 = vpack.c.b16 %v1279, %v1278
    %v1591 = vpack.c.b16 %v1281, %v1280
    %v1592 = vpack.c.b16 %v1283, %v1282
    %v1593 = vpack.c.b16 %v1285, %v1284
    %v1594 = vpack.c.b16 %v1287, %v1286
    %v1595 = vpack.c.b16 %v1289, %v1288
    %v1596 = vpack.c.b16 %v1291, %v1290
    %v1597 = vpack.c.b16 %v1293, %v1292
    %v1598 = vpack.c.b16 %v1295, %v1294
    %v1599 = vpack.c.b16 %v1297, %v1296
    %v1600 = vpack.c.b16 %v1299, %v1298
    %v1601 = vpack.c.b16 %v1301, %v1300
    %v1602 = vpack.c.b16 %v1303, %v1302
    %v1603 = vpack.c.b16 %v1305, %v1304
    %v1604 = vpack.c.b16 %v1307, %v1306
    %v1605 = vpack.c.b16 %v1309, %v1308
    %v1606 = vpack.c.b16 %v1311, %v1310
    %v1607 = vpack.c.b16 %v1313, %v1312
    %v1608 = vpack.c.b16 %v1315, %v1314
    %v1609 = vpack.c.b16 %v1317, %v1316
    %v1610 = vpack.c.b16 %v1319, %v1318
    %v1611 = vpack.c.b16 %v1321, %v1320
    %v1612 = vpack.c.b16 %v1323, %v1322
    %v1613 = vpack.c.b16 %v1325, %v1324
    %v1614 = vpack.c.b16 %v1327, %v1326
    %v1615 = vpack.c.b16 %v1329, %v1328
    %v1616 = vpack.c.b16 %v1331, %v1330
    %v1617 = vpack.c.b16 %v1333, %v1332
    %v1618 = vpack.c.b16 %v1335, %v1334
    %v1619 = vpack.c.b16 %v1337, %v1336
    %v1620 = vpack.c.b16 %v1339, %v1338
    %v1621 = vpack.c.b16 %v1341, %v1340
    %v1622 = vpack.c.b16 %v1343, %v1342
    %v1623 = vpack.c.b16 %v1345, %v1344
    %v1624 = vpack.c.b16 %v1347, %v1346
    %v1625 = vpack.c.b16 %v1349, %v1348
    %v1626 = vpack.c.b16 %v1351, %v1350
    %v1627 = vpack.c.b16 %v1353, %v1352
    %v1628 = vpack.c.b16 %v1355, %v1354
    %v1629 = vpack.c.b16 %v1357, %v1356
    %v1630 = vpack.c.b16 %v1359, %v1358
    %v1631 = vpack.c.b16 %v1361, %v1360
    %v1632 = vpack.c.b16 %v1363, %v1362
    %v1633 = vpack.c.b16 %v1365, %v1364
    %v1634 = vpack.c.b16 %v1367, %v1366
    %v1635 = vpack.c.b16 %v1369, %v1368
    %v1636 = vpack.c.b16 %v1371, %v1370
    %v1637 = vpack.c.b16 %v1373, %v1372
    %v1638 = vpack.c.b16 %v1375, %v1374
    %v1639 = vpack.c.b16 %v1377, %v1376
    %v1640 = vpack.c.b16 %v1379, %v1378
    %v1641 = vpack.c.b16 %v1381, %v1380
    %v1642 = vpack.c.b16 %v1383, %v1382
    %v1643 = vpack.c.b16 %v1385, %v1384
    %v1644 = vpack.c.b16 %v1387, %v1386
    %v1645 = vpack.c.b16 %v1389, %v1388
    %v1646 = vpack.c.b16 %v1391, %v1390
    %v1647 = vpack.c.b16 %v1393, %v1392
    %v1648 = vpack.c.b16 %v1395, %v1394
    %v1649 = vpack.c.b16 %v1397, %v1396
    %v1650 = vpack.c.b16 %v1399, %v1398
    %v1651 = vpack.c.b16 %v1401, %v1400
    %v1652 = vpack.c.b16 %v1403, %v1402
    %v1653 = vpack.c.b16 %v1405, %v1404
    %v1654 = vpack.c.b16 %v1407, %v1406
    %v1655 = vpack.c.b16 %v1409, %v1408
    %v1656 = vpack.c.b16 %v1411, %v1410
    %v1657 = vpack.c.b16 %v1413, %v1412
    %v1658 = vpack.c.b16 %v1415, %v1414
    %v1659 = vpack.c.b16 %v1417, %v1416
    %v1660 = vpack.c.b16 %v1419, %v1418
    %v1661 = vpack.c.b16 %v1421, %v1420
    %v1662 = vpack.c.b16 %v1423, %v1422
    %v1663 = vpack.c.b16 %v1425, %v1424
    %v1664 = vpack.c.b16 %v1427, %v1426
    %v1665 = vpack.c.b16 %v1429, %v1428
    %v1666 = vpack.c.b16 %v1431, %v1430
    %v1667 = vpack.c.b16 %v1433, %v1432
    %v1668 = vpack.c.b16 %v1435, %v1434
    %v1669 = vpack.c.b16 %v1437, %v1436
    %v1670 = vpack.c.b16 %v1439, %v1438
    %v1671 = vpack.c.b16 %v1441, %v1440
    %v1672 = vpack.c.b16 %v1443, %v1442
    %v1673 = vpack.c.b16 %v1445, %v1444
    %v1674 = vpack.c.b16 %v1447, %v1446
    %v1675 = vpack.c.b16 %v1449, %v1448
    %v1676 = vpack.c.b16 %v1451, %v1450
    %v1677 = vpack.c.b16 %v1453, %v1452
    %v1678 = vpack.c.b16 %v1455, %v1454
    %v1679 = vpack.c.b16 %v1457, %v1456
    %v1680 = vpack.c.b16 %v1459, %v1458
    %v1681 = vpack.c.b16 %v1461, %v1460
    %v1682 = vpack.c.b16 %v1463, %v1462
    %v1683 = vpack.c.b16 %v1465, %v1464
    %v1684 = vpack.c.b16 %v1467, %v1466
    %v1685 = vpack.c.b16 %v1469, %v1468
    %v1686 = vpack.c.b16 %v1471, %v1470
    %v1687 = vpack.c.b16 %v1473, %v1472
    %v1688 = vpack.c.b16 %v1475, %v1474
    %v1689 = vpack.c.b16 %v1477, %v1476
    %v1690 = vpack.c.b16 %v1479, %v1478
    %v1691 = vpack.c.b16 %v1481, %v1480
    %v1692 = vpack.c.b16 %v1483, %v1482
    %v1693 = vpack.c.b16 %v1485, %v1484
    %1902 = vmatprep.subr.bf16.mxu0 0
    %1903 = vmatpush1.bf16.msra.mxu0 %v1493
    %1904 = vmatprep.subr.bf16.mxu0 0
    %1905 = vmatpush1.bf16.msra.mxu0 %v1492
    %1906 = vmatprep.subr.bf16.mxu0 0
    %1907 = vmatpush1.bf16.msra.mxu0 %v1491
    %1908 = vmatprep.subr.bf16.mxu0 0
    %1909 = vmatpush1.bf16.msra.mxu0 %v1490
    %1910 = vmatprep.subr.bf16.mxu0 0
    %1911 = vmatpush1.bf16.msra.mxu0 %v1489
    %1912 = vmatprep.subr.bf16.mxu0 0
    %1913 = vmatpush1.bf16.msra.mxu0 %v1488
    %1914 = vmatprep.subr.bf16.mxu0 0
    %1915 = vmatpush1.bf16.msra.mxu0 %v1487
    %1916 = vmatprep.subr.bf16.mxu0 0
    %1917 = vmatpush1.bf16.msra.mxu0 %v1486
    %1918 = vmatprep.subr.bf16.mxu0 0
    %1919 = vmatpush2.bf16.msra.mxu0 %v1501
    %1920 = vmatprep.subr.bf16.mxu0 0
    %1921 = vmatpush2.bf16.msra.mxu0 %v1500
    %1922 = vmatprep.subr.bf16.mxu0 0
    %1923 = vmatpush2.bf16.msra.mxu0 %v1499
    %1924 = vmatprep.subr.bf16.mxu0 0
    %1925 = vmatpush2.bf16.msra.mxu0 %v1498
    %1926 = vmatprep.subr.bf16.mxu0 0
    %1927 = vmatpush2.bf16.msra.mxu0 %v1497
    %1928 = vmatprep.subr.bf16.mxu0 0
    %1929 = vmatpush2.bf16.msra.mxu0 %v1496
    %1930 = vmatprep.subr.bf16.mxu0 0
    %1931 = vmatpush2.bf16.msra.mxu0 %v1495
    %1932 = vmatprep.subr.bf16.mxu0 0
    %1933 = vmatpush2.bf16.msra.mxu0 %v1494
    %1934 = vmatprep.mubr.bf16.mxu0 %v496
    %1935 = vmatmul.mubr.bf16.gmra.mxu0 %v482
    %v1936 = vpop.f32.mrf.mxu0
    %v1937 = vadd.f32 %v453, %v1936
    %v1938 = vpop.f32.mrf.mxu0
    %v1939 = vpop.f32.mrf.mxu0
    %v1940 = vpop.f32.mrf.mxu0
    %1941 = vdwg.mxu0
    %1942 = vmatprep.subr.bf16.mxu0 0
    %1943 = vmatpush1.bf16.msra.mxu0 %v1509
    %1944 = vmatprep.subr.bf16.mxu0 0
    %1945 = vmatpush1.bf16.msra.mxu0 %v1508
    %1946 = vmatprep.subr.bf16.mxu0 0
    %1947 = vmatpush1.bf16.msra.mxu0 %v1507
    %1948 = vmatprep.subr.bf16.mxu0 0
    %1949 = vmatpush1.bf16.msra.mxu0 %v1506
    %1950 = vmatprep.subr.bf16.mxu0 0
    %1951 = vmatpush1.bf16.msra.mxu0 %v1505
    %1952 = vmatprep.subr.bf16.mxu0 0
    %1953 = vmatpush1.bf16.msra.mxu0 %v1504
    %1954 = vmatprep.subr.bf16.mxu0 0
    %1955 = vmatpush1.bf16.msra.mxu0 %v1503
    %1956 = vmatprep.subr.bf16.mxu0 0
    %1957 = vmatpush1.bf16.msra.mxu0 %v1502
    %1958 = vmatprep.subr.bf16.mxu0 0
    %1959 = vmatpush2.bf16.msra.mxu0 %v1517
    %1960 = vmatprep.subr.bf16.mxu0 0
    %1961 = vmatpush2.bf16.msra.mxu0 %v1516
    %1962 = vmatprep.subr.bf16.mxu0 0
    %1963 = vmatpush2.bf16.msra.mxu0 %v1515
    %1964 = vmatprep.subr.bf16.mxu0 0
    %1965 = vmatpush2.bf16.msra.mxu0 %v1514
    %1966 = vmatprep.subr.bf16.mxu0 0
    %1967 = vmatpush2.bf16.msra.mxu0 %v1513
    %1968 = vmatprep.subr.bf16.mxu0 0
    %1969 = vmatpush2.bf16.msra.mxu0 %v1512
    %1970 = vmatprep.subr.bf16.mxu0 0
    %1971 = vmatpush2.bf16.msra.mxu0 %v1511
    %1972 = vmatprep.subr.bf16.mxu0 0
    %1973 = vmatpush2.bf16.msra.mxu0 %v1510
    %1974 = vmatprep.mubr.bf16.mxu0 %v506
    %1975 = vmatmul.mubr.bf16.gmra.mxu0 %v504
    %v1976 = vpop.f32.mrf.mxu0
    %v1977 = vadd.f32 %v1937, %v1976
    %v1978 = vpop.f32.mrf.mxu0
    %v1979 = vpop.f32.mrf.mxu0
    %v1980 = vpop.f32.mrf.mxu0
    %1981 = vdwg.mxu0
    %1982 = vmatprep.subr.bf16.mxu0 0
    %1983 = vmatpush1.bf16.msra.mxu0 %v1525
    %1984 = vmatprep.subr.bf16.mxu0 0
    %1985 = vmatpush1.bf16.msra.mxu0 %v1524
    %1986 = vmatprep.subr.bf16.mxu0 0
    %1987 = vmatpush1.bf16.msra.mxu0 %v1523
    %1988 = vmatprep.subr.bf16.mxu0 0
    %1989 = vmatpush1.bf16.msra.mxu0 %v1522
    %1990 = vmatprep.subr.bf16.mxu0 0
    %1991 = vmatpush1.bf16.msra.mxu0 %v1521
    %1992 = vmatprep.subr.bf16.mxu0 0
    %1993 = vmatpush1.bf16.msra.mxu0 %v1520
    %1994 = vmatprep.subr.bf16.mxu0 0
    %1995 = vmatpush1.bf16.msra.mxu0 %v1519
    %1996 = vmatprep.subr.bf16.mxu0 0
    %1997 = vmatpush1.bf16.msra.mxu0 %v1518
    %1998 = vmatprep.subr.bf16.mxu0 0
    %1999 = vmatpush2.bf16.msra.mxu0 %v1533
    %2000 = vmatprep.subr.bf16.mxu0 0
    %2001 = vmatpush2.bf16.msra.mxu0 %v1532
    %2002 = vmatprep.subr.bf16.mxu0 0
    %2003 = vmatpush2.bf16.msra.mxu0 %v1531
    %2004 = vmatprep.subr.bf16.mxu0 0
    %2005 = vmatpush2.bf16.msra.mxu0 %v1530
    %2006 = vmatprep.subr.bf16.mxu0 0
    %2007 = vmatpush2.bf16.msra.mxu0 %v1529
    %2008 = vmatprep.subr.bf16.mxu0 0
    %2009 = vmatpush2.bf16.msra.mxu0 %v1528
    %2010 = vmatprep.subr.bf16.mxu0 0
    %2011 = vmatpush2.bf16.msra.mxu0 %v1527
    %2012 = vmatprep.subr.bf16.mxu0 0
    %2013 = vmatpush2.bf16.msra.mxu0 %v1526
    %2014 = vmatprep.mubr.bf16.mxu0 %v503
    %2015 = vmatmul.mubr.bf16.gmra.mxu0 %v489
    %v2016 = vpop.f32.mrf.mxu0
    %v2017 = vadd.f32 %v1977, %v2016
    %v2018 = vpop.f32.mrf.mxu0
    %v2019 = vpop.f32.mrf.mxu0
    %v2020 = vpop.f32.mrf.mxu0
    %2021 = vdwg.mxu0
    %2022 = vmatprep.subr.bf16.mxu0 0
    %2023 = vmatpush1.bf16.msra.mxu0 %v1541
    %2024 = vmatprep.subr.bf16.mxu0 0
    %2025 = vmatpush1.bf16.msra.mxu0 %v1540
    %2026 = vmatprep.subr.bf16.mxu0 0
    %2027 = vmatpush1.bf16.msra.mxu0 %v1539
    %2028 = vmatprep.subr.bf16.mxu0 0
    %2029 = vmatpush1.bf16.msra.mxu0 %v1538
    %2030 = vmatprep.subr.bf16.mxu0 0
    %2031 = vmatpush1.bf16.msra.mxu0 %v1537
    %2032 = vmatprep.subr.bf16.mxu0 0
    %2033 = vmatpush1.bf16.msra.mxu0 %v1536
    %2034 = vmatprep.subr.bf16.mxu0 0
    %2035 = vmatpush1.bf16.msra.mxu0 %v1535
    %2036 = vmatprep.subr.bf16.mxu0 0
    %2037 = vmatpush1.bf16.msra.mxu0 %v1534
    %2038 = vmatprep.subr.bf16.mxu0 0
    %2039 = vmatpush2.bf16.msra.mxu0 %v1549
    %2040 = vmatprep.subr.bf16.mxu0 0
    %2041 = vmatpush2.bf16.msra.mxu0 %v1548
    %2042 = vmatprep.subr.bf16.mxu0 0
    %2043 = vmatpush2.bf16.msra.mxu0 %v1547
    %2044 = vmatprep.subr.bf16.mxu0 0
    %2045 = vmatpush2.bf16.msra.mxu0 %v1546
    %2046 = vmatprep.subr.bf16.mxu0 0
    %2047 = vmatpush2.bf16.msra.mxu0 %v1545
    %2048 = vmatprep.subr.bf16.mxu0 0
    %2049 = vmatpush2.bf16.msra.mxu0 %v1544
    %2050 = vmatprep.subr.bf16.mxu0 0
    %2051 = vmatpush2.bf16.msra.mxu0 %v1543
    %2052 = vmatprep.subr.bf16.mxu0 0
    %2053 = vmatpush2.bf16.msra.mxu0 %v1542
    %2054 = vmatprep.mubr.bf16.mxu0 %v507
    %2055 = vmatmul.mubr.bf16.gmra.mxu0 %v505
    %v2056 = vpop.f32.mrf.mxu0
    %v2057 = vadd.f32 %v2017, %v2056
    %v2058 = vpop.f32.mrf.mxu0
    %v2059 = vpop.f32.mrf.mxu0
    %v2060 = vpop.f32.mrf.mxu0
    %2061 = vdwg.mxu0
    %2062 = vmatprep.subr.bf16.mxu0 0
    %2063 = vmatpush1.bf16.msra.mxu0 %v1557
    %2064 = vmatprep.subr.bf16.mxu0 0
    %2065 = vmatpush1.bf16.msra.mxu0 %v1556
    %2066 = vmatprep.subr.bf16.mxu0 0
    %2067 = vmatpush1.bf16.msra.mxu0 %v1555
    %2068 = vmatprep.subr.bf16.mxu0 0
    %2069 = vmatpush1.bf16.msra.mxu0 %v1554
    %2070 = vmatprep.subr.bf16.mxu0 0
    %2071 = vmatpush1.bf16.msra.mxu0 %v1553
    %2072 = vmatprep.subr.bf16.mxu0 0
    %2073 = vmatpush1.bf16.msra.mxu0 %v1552
    %2074 = vmatprep.subr.bf16.mxu0 0
    %2075 = vmatpush1.bf16.msra.mxu0 %v1551
    %2076 = vmatprep.subr.bf16.mxu0 0
    %2077 = vmatpush1.bf16.msra.mxu0 %v1550
    %2078 = vmatprep.subr.bf16.mxu0 0
    %2079 = vmatpush2.bf16.msra.mxu0 %v1565
    %2080 = vmatprep.subr.bf16.mxu0 0
    %2081 = vmatpush2.bf16.msra.mxu0 %v1564
    %2082 = vmatprep.subr.bf16.mxu0 0
    %2083 = vmatpush2.bf16.msra.mxu0 %v1563
    %2084 = vmatprep.subr.bf16.mxu0 0
    %2085 = vmatpush2.bf16.msra.mxu0 %v1562
    %2086 = vmatprep.subr.bf16.mxu0 0
    %2087 = vmatpush2.bf16.msra.mxu0 %v1561
    %2088 = vmatprep.subr.bf16.mxu0 0
    %2089 = vmatpush2.bf16.msra.mxu0 %v1560
    %2090 = vmatprep.subr.bf16.mxu0 0
    %2091 = vmatpush2.bf16.msra.mxu0 %v1559
    %2092 = vmatprep.subr.bf16.mxu0 0
    %2093 = vmatpush2.bf16.msra.mxu0 %v1558
    %2094 = vmatprep.mubr.bf16.mxu0 %v545
    %2095 = vmatmul.mubr.bf16.gmra.mxu0 %v531
    %v2096 = vpop.f32.mrf.mxu0
    %v2097 = vadd.f32 %v2057, %v2096
    %v2098 = vpop.f32.mrf.mxu0
    %v2099 = vpop.f32.mrf.mxu0
    %v2100 = vpop.f32.mrf.mxu0
    %2101 = vdwg.mxu0
    %2102 = vmatprep.subr.bf16.mxu0 0
    %2103 = vmatpush1.bf16.msra.mxu0 %v1573
    %2104 = vmatprep.subr.bf16.mxu0 0
    %2105 = vmatpush1.bf16.msra.mxu0 %v1572
    %2106 = vmatprep.subr.bf16.mxu0 0
    %2107 = vmatpush1.bf16.msra.mxu0 %v1571
    %2108 = vmatprep.subr.bf16.mxu0 0
    %2109 = vmatpush1.bf16.msra.mxu0 %v1570
    %2110 = vmatprep.subr.bf16.mxu0 0
    %2111 = vmatpush1.bf16.msra.mxu0 %v1569
    %2112 = vmatprep.subr.bf16.mxu0 0
    %2113 = vmatpush1.bf16.msra.mxu0 %v1568
    %2114 = vmatprep.subr.bf16.mxu0 0
    %2115 = vmatpush1.bf16.msra.mxu0 %v1567
    %2116 = vmatprep.subr.bf16.mxu0 0
    %2117 = vmatpush1.bf16.msra.mxu0 %v1566
    %2118 = vmatprep.subr.bf16.mxu0 0
    %2119 = vmatpush2.bf16.msra.mxu0 %v1581
    %2120 = vmatprep.subr.bf16.mxu0 0
    %2121 = vmatpush2.bf16.msra.mxu0 %v1580
    %2122 = vmatprep.subr.bf16.mxu0 0
    %2123 = vmatpush2.bf16.msra.mxu0 %v1579
    %2124 = vmatprep.subr.bf16.mxu0 0
    %2125 = vmatpush2.bf16.msra.mxu0 %v1578
    %2126 = vmatprep.subr.bf16.mxu0 0
    %2127 = vmatpush2.bf16.msra.mxu0 %v1577
    %2128 = vmatprep.subr.bf16.mxu0 0
    %2129 = vmatpush2.bf16.msra.mxu0 %v1576
    %2130 = vmatprep.subr.bf16.mxu0 0
    %2131 = vmatpush2.bf16.msra.mxu0 %v1575
    %2132 = vmatprep.subr.bf16.mxu0 0
    %2133 = vmatpush2.bf16.msra.mxu0 %v1574
    %2134 = vmatprep.mubr.bf16.mxu0 %v555
    %2135 = vmatmul.mubr.bf16.gmra.mxu0 %v553
    %v2136 = vpop.f32.mrf.mxu0
    %v2137 = vadd.f32 %v2097, %v2136
    %v2138 = vpop.f32.mrf.mxu0
    %v2139 = vpop.f32.mrf.mxu0
    %v2140 = vpop.f32.mrf.mxu0
    %2141 = vdwg.mxu0
    %2142 = vmatprep.subr.bf16.mxu0 0
    %2143 = vmatpush1.bf16.msra.mxu0 %v1589
    %2144 = vmatprep.subr.bf16.mxu0 0
    %2145 = vmatpush1.bf16.msra.mxu0 %v1588
    %2146 = vmatprep.subr.bf16.mxu0 0
    %2147 = vmatpush1.bf16.msra.mxu0 %v1587
    %2148 = vmatprep.subr.bf16.mxu0 0
    %2149 = vmatpush1.bf16.msra.mxu0 %v1586
    %2150 = vmatprep.subr.bf16.mxu0 0
    %2151 = vmatpush1.bf16.msra.mxu0 %v1585
    %2152 = vmatprep.subr.bf16.mxu0 0
    %2153 = vmatpush1.bf16.msra.mxu0 %v1584
    %2154 = vmatprep.subr.bf16.mxu0 0
    %2155 = vmatpush1.bf16.msra.mxu0 %v1583
    %2156 = vmatprep.subr.bf16.mxu0 0
    %2157 = vmatpush1.bf16.msra.mxu0 %v1582
    %2158 = vmatprep.subr.bf16.mxu0 0
    %2159 = vmatpush2.bf16.msra.mxu0 %v1597
    %2160 = vmatprep.subr.bf16.mxu0 0
    %2161 = vmatpush2.bf16.msra.mxu0 %v1596
    %2162 = vmatprep.subr.bf16.mxu0 0
    %2163 = vmatpush2.bf16.msra.mxu0 %v1595
    %2164 = vmatprep.subr.bf16.mxu0 0
    %2165 = vmatpush2.bf16.msra.mxu0 %v1594
    %2166 = vmatprep.subr.bf16.mxu0 0
    %2167 = vmatpush2.bf16.msra.mxu0 %v1593
    %2168 = vmatprep.subr.bf16.mxu0 0
    %2169 = vmatpush2.bf16.msra.mxu0 %v1592
    %2170 = vmatprep.subr.bf16.mxu0 0
    %2171 = vmatpush2.bf16.msra.mxu0 %v1591
    %2172 = vmatprep.subr.bf16.mxu0 0
    %2173 = vmatpush2.bf16.msra.mxu0 %v1590
    %2174 = vmatprep.mubr.bf16.mxu0 %v552
    %2175 = vmatmul.mubr.bf16.gmra.mxu0 %v538
    %v2176 = vpop.f32.mrf.mxu0
    %v2177 = vadd.f32 %v2137, %v2176
    %v2178 = vpop.f32.mrf.mxu0
    %v2179 = vpop.f32.mrf.mxu0
    %v2180 = vpop.f32.mrf.mxu0
    %2181 = vdwg.mxu0
    %2182 = vmatprep.subr.bf16.mxu0 0
    %2183 = vmatpush1.bf16.msra.mxu0 %v1605
    %2184 = vmatprep.subr.bf16.mxu0 0
    %2185 = vmatpush1.bf16.msra.mxu0 %v1604
    %2186 = vmatprep.subr.bf16.mxu0 0
    %2187 = vmatpush1.bf16.msra.mxu0 %v1603
    %2188 = vmatprep.subr.bf16.mxu0 0
    %2189 = vmatpush1.bf16.msra.mxu0 %v1602
    %2190 = vmatprep.subr.bf16.mxu0 0
    %2191 = vmatpush1.bf16.msra.mxu0 %v1601
    %2192 = vmatprep.subr.bf16.mxu0 0
    %2193 = vmatpush1.bf16.msra.mxu0 %v1600
    %2194 = vmatprep.subr.bf16.mxu0 0
    %2195 = vmatpush1.bf16.msra.mxu0 %v1599
    %2196 = vmatprep.subr.bf16.mxu0 0
    %2197 = vmatpush1.bf16.msra.mxu0 %v1598
    %2198 = vmatprep.subr.bf16.mxu0 0
    %2199 = vmatpush2.bf16.msra.mxu0 %v1613
    %2200 = vmatprep.subr.bf16.mxu0 0
    %2201 = vmatpush2.bf16.msra.mxu0 %v1612
    %2202 = vmatprep.subr.bf16.mxu0 0
    %2203 = vmatpush2.bf16.msra.mxu0 %v1611
    %2204 = vmatprep.subr.bf16.mxu0 0
    %2205 = vmatpush2.bf16.msra.mxu0 %v1610
    %2206 = vmatprep.subr.bf16.mxu0 0
    %2207 = vmatpush2.bf16.msra.mxu0 %v1609
    %2208 = vmatprep.subr.bf16.mxu0 0
    %2209 = vmatpush2.bf16.msra.mxu0 %v1608
    %2210 = vmatprep.subr.bf16.mxu0 0
    %2211 = vmatpush2.bf16.msra.mxu0 %v1607
    %2212 = vmatprep.subr.bf16.mxu0 0
    %2213 = vmatpush2.bf16.msra.mxu0 %v1606
    %2214 = vmatprep.mubr.bf16.mxu0 %v556
    %2215 = vmatmul.mubr.bf16.gmra.mxu0 %v554
    %v2216 = vpop.f32.mrf.mxu0
    %v2217 = vadd.f32 %v2177, %v2216
    %v2218 = vpop.f32.mrf.mxu0
    %v2219 = vpop.f32.mrf.mxu0
    %v2220 = vpop.f32.mrf.mxu0
    %2221 = vdwg.mxu0
    %2222 = vmatprep.subr.bf16.mxu0 0
    %2223 = vmatpush1.bf16.msra.mxu0 %v1621
    %2224 = vmatprep.subr.bf16.mxu0 0
    %2225 = vmatpush1.bf16.msra.mxu0 %v1620
    %2226 = vmatprep.subr.bf16.mxu0 0
    %2227 = vmatpush1.bf16.msra.mxu0 %v1619
    %2228 = vmatprep.subr.bf16.mxu0 0
    %2229 = vmatpush1.bf16.msra.mxu0 %v1618
    %2230 = vmatprep.subr.bf16.mxu0 0
    %2231 = vmatpush1.bf16.msra.mxu0 %v1617
    %2232 = vmatprep.subr.bf16.mxu0 0
    %2233 = vmatpush1.bf16.msra.mxu0 %v1616
    %2234 = vmatprep.subr.bf16.mxu0 0
    %2235 = vmatpush1.bf16.msra.mxu0 %v1615
    %2236 = vmatprep.subr.bf16.mxu0 0
    %2237 = vmatpush1.bf16.msra.mxu0 %v1614
    %2238 = vmatprep.subr.bf16.mxu0 0
    %2239 = vmatpush2.bf16.msra.mxu0 %v1629
    %2240 = vmatprep.subr.bf16.mxu0 0
    %2241 = vmatpush2.bf16.msra.mxu0 %v1628
    %2242 = vmatprep.subr.bf16.mxu0 0
    %2243 = vmatpush2.bf16.msra.mxu0 %v1627
    %2244 = vmatprep.subr.bf16.mxu0 0
    %2245 = vmatpush2.bf16.msra.mxu0 %v1626
    %2246 = vmatprep.subr.bf16.mxu0 0
    %2247 = vmatpush2.bf16.msra.mxu0 %v1625
    %2248 = vmatprep.subr.bf16.mxu0 0
    %2249 = vmatpush2.bf16.msra.mxu0 %v1624
    %2250 = vmatprep.subr.bf16.mxu0 0
    %2251 = vmatpush2.bf16.msra.mxu0 %v1623
    %2252 = vmatprep.subr.bf16.mxu0 0
    %2253 = vmatpush2.bf16.msra.mxu0 %v1622
    %2254 = vmatprep.mubr.bf16.mxu0 %v594
    %2255 = vmatmul.mubr.bf16.gmra.mxu0 %v580
    %v2256 = vpop.f32.mrf.mxu0
    %v2257 = vadd.f32 %v2217, %v2256
    %v2258 = vpop.f32.mrf.mxu0
    %v2259 = vpop.f32.mrf.mxu0
    %v2260 = vpop.f32.mrf.mxu0
    %2261 = vdwg.mxu0
    %2262 = vmatprep.subr.bf16.mxu0 0
    %2263 = vmatpush1.bf16.msra.mxu0 %v1637
    %2264 = vmatprep.subr.bf16.mxu0 0
    %2265 = vmatpush1.bf16.msra.mxu0 %v1636
    %2266 = vmatprep.subr.bf16.mxu0 0
    %2267 = vmatpush1.bf16.msra.mxu0 %v1635
    %2268 = vmatprep.subr.bf16.mxu0 0
    %2269 = vmatpush1.bf16.msra.mxu0 %v1634
    %2270 = vmatprep.subr.bf16.mxu0 0
    %2271 = vmatpush1.bf16.msra.mxu0 %v1633
    %2272 = vmatprep.subr.bf16.mxu0 0
    %2273 = vmatpush1.bf16.msra.mxu0 %v1632
    %2274 = vmatprep.subr.bf16.mxu0 0
    %2275 = vmatpush1.bf16.msra.mxu0 %v1631
    %2276 = vmatprep.subr.bf16.mxu0 0
    %2277 = vmatpush1.bf16.msra.mxu0 %v1630
    %2278 = vmatprep.subr.bf16.mxu0 0
    %2279 = vmatpush2.bf16.msra.mxu0 %v1645
    %2280 = vmatprep.subr.bf16.mxu0 0
    %2281 = vmatpush2.bf16.msra.mxu0 %v1644
    %2282 = vmatprep.subr.bf16.mxu0 0
    %2283 = vmatpush2.bf16.msra.mxu0 %v1643
    %2284 = vmatprep.subr.bf16.mxu0 0
    %2285 = vmatpush2.bf16.msra.mxu0 %v1642
    %2286 = vmatprep.subr.bf16.mxu0 0
    %2287 = vmatpush2.bf16.msra.mxu0 %v1641
    %2288 = vmatprep.subr.bf16.mxu0 0
    %2289 = vmatpush2.bf16.msra.mxu0 %v1640
    %2290 = vmatprep.subr.bf16.mxu0 0
    %2291 = vmatpush2.bf16.msra.mxu0 %v1639
    %2292 = vmatprep.subr.bf16.mxu0 0
    %2293 = vmatpush2.bf16.msra.mxu0 %v1638
    %2294 = vmatprep.mubr.bf16.mxu0 %v604
    %2295 = vmatmul.mubr.bf16.gmra.mxu0 %v602
    %v2296 = vpop.f32.mrf.mxu0
    %v2297 = vadd.f32 %v2257, %v2296
    %v2298 = vpop.f32.mrf.mxu0
    %v2299 = vpop.f32.mrf.mxu0
    %v2300 = vpop.f32.mrf.mxu0
    %2301 = vdwg.mxu0
    %2302 = vmatprep.subr.bf16.mxu0 0
    %2303 = vmatpush1.bf16.msra.mxu0 %v1653
    %2304 = vmatprep.subr.bf16.mxu0 0
    %2305 = vmatpush1.bf16.msra.mxu0 %v1652
    %2306 = vmatprep.subr.bf16.mxu0 0
    %2307 = vmatpush1.bf16.msra.mxu0 %v1651
    %2308 = vmatprep.subr.bf16.mxu0 0
    %2309 = vmatpush1.bf16.msra.mxu0 %v1650
    %2310 = vmatprep.subr.bf16.mxu0 0
    %2311 = vmatpush1.bf16.msra.mxu0 %v1649
    %2312 = vmatprep.subr.bf16.mxu0 0
    %2313 = vmatpush1.bf16.msra.mxu0 %v1648
    %2314 = vmatprep.subr.bf16.mxu0 0
    %2315 = vmatpush1.bf16.msra.mxu0 %v1647
    %2316 = vmatprep.subr.bf16.mxu0 0
    %2317 = vmatpush1.bf16.msra.mxu0 %v1646
    %2318 = vmatprep.subr.bf16.mxu0 0
    %2319 = vmatpush2.bf16.msra.mxu0 %v1661
    %2320 = vmatprep.subr.bf16.mxu0 0
    %2321 = vmatpush2.bf16.msra.mxu0 %v1660
    %2322 = vmatprep.subr.bf16.mxu0 0
    %2323 = vmatpush2.bf16.msra.mxu0 %v1659
    %2324 = vmatprep.subr.bf16.mxu0 0
    %2325 = vmatpush2.bf16.msra.mxu0 %v1658
    %2326 = vmatprep.subr.bf16.mxu0 0
    %2327 = vmatpush2.bf16.msra.mxu0 %v1657
    %2328 = vmatprep.subr.bf16.mxu0 0
    %2329 = vmatpush2.bf16.msra.mxu0 %v1656
    %2330 = vmatprep.subr.bf16.mxu0 0
    %2331 = vmatpush2.bf16.msra.mxu0 %v1655
    %2332 = vmatprep.subr.bf16.mxu0 0
    %2333 = vmatpush2.bf16.msra.mxu0 %v1654
    %2334 = vmatprep.mubr.bf16.mxu0 %v601
    %2335 = vmatmul.mubr.bf16.gmra.mxu0 %v587
    %v2336 = vpop.f32.mrf.mxu0
    %v2337 = vadd.f32 %v2297, %v2336
    %v2338 = vpop.f32.mrf.mxu0
    %v2339 = vpop.f32.mrf.mxu0
    %v2340 = vpop.f32.mrf.mxu0
    %2341 = vdwg.mxu0
    %2342 = vmatprep.subr.bf16.mxu0 0
    %2343 = vmatpush1.bf16.msra.mxu0 %v1669
    %2344 = vmatprep.subr.bf16.mxu0 0
    %2345 = vmatpush1.bf16.msra.mxu0 %v1668
    %2346 = vmatprep.subr.bf16.mxu0 0
    %2347 = vmatpush1.bf16.msra.mxu0 %v1667
    %2348 = vmatprep.subr.bf16.mxu0 0
    %2349 = vmatpush1.bf16.msra.mxu0 %v1666
    %2350 = vmatprep.subr.bf16.mxu0 0
    %2351 = vmatpush1.bf16.msra.mxu0 %v1665
    %2352 = vmatprep.subr.bf16.mxu0 0
    %2353 = vmatpush1.bf16.msra.mxu0 %v1664
    %2354 = vmatprep.subr.bf16.mxu0 0
    %2355 = vmatpush1.bf16.msra.mxu0 %v1663
    %2356 = vmatprep.subr.bf16.mxu0 0
    %2357 = vmatpush1.bf16.msra.mxu0 %v1662
    %2358 = vmatprep.subr.bf16.mxu0 0
    %2359 = vmatpush2.bf16.msra.mxu0 %v1677
    %2360 = vmatprep.subr.bf16.mxu0 0
    %2361 = vmatpush2.bf16.msra.mxu0 %v1676
    %2362 = vmatprep.subr.bf16.mxu0 0
    %2363 = vmatpush2.bf16.msra.mxu0 %v1675
    %2364 = vmatprep.subr.bf16.mxu0 0
    %2365 = vmatpush2.bf16.msra.mxu0 %v1674
    %2366 = vmatprep.subr.bf16.mxu0 0
    %2367 = vmatpush2.bf16.msra.mxu0 %v1673
    %2368 = vmatprep.subr.bf16.mxu0 0
    %2369 = vmatpush2.bf16.msra.mxu0 %v1672
    %2370 = vmatprep.subr.bf16.mxu0 0
    %2371 = vmatpush2.bf16.msra.mxu0 %v1671
    %2372 = vmatprep.subr.bf16.mxu0 0
    %2373 = vmatpush2.bf16.msra.mxu0 %v1670
    %2374 = vmatprep.mubr.bf16.mxu0 %v605
    %2375 = vmatmul.mubr.bf16.gmra.mxu0 %v603
    %v2376 = vpop.f32.mrf.mxu0
    %v2377 = vadd.f32 %v2337, %v2376
    %v2378 = vpop.f32.mrf.mxu0
    %v2379 = vpop.f32.mrf.mxu0
    %v2380 = vpop.f32.mrf.mxu0
    %2381 = vdwg.mxu0
    %2382 = vmatprep.subr.bf16.mxu0 0
    %2383 = vmatpush1.bf16.msra.mxu0 %v1685
    %2384 = vmatprep.subr.bf16.mxu0 0
    %2385 = vmatpush1.bf16.msra.mxu0 %v1684
    %2386 = vmatprep.subr.bf16.mxu0 0
    %2387 = vmatpush1.bf16.msra.mxu0 %v1683
    %2388 = vmatprep.subr.bf16.mxu0 0
    %2389 = vmatpush1.bf16.msra.mxu0 %v1682
    %2390 = vmatprep.subr.bf16.mxu0 0
    %2391 = vmatpush1.bf16.msra.mxu0 %v1681
    %2392 = vmatprep.subr.bf16.mxu0 0
    %2393 = vmatpush1.bf16.msra.mxu0 %v1680
    %2394 = vmatprep.subr.bf16.mxu0 0
    %2395 = vmatpush1.bf16.msra.mxu0 %v1679
    %2396 = vmatprep.subr.bf16.mxu0 0
    %2397 = vmatpush1.bf16.msra.mxu0 %v1678
    %2398 = vmatprep.subr.bf16.mxu0 0
    %2399 = vmatpush2.bf16.msra.mxu0 %v1693
    %2400 = vmatprep.subr.bf16.mxu0 0
    %2401 = vmatpush2.bf16.msra.mxu0 %v1692
    %2402 = vmatprep.subr.bf16.mxu0 0
    %2403 = vmatpush2.bf16.msra.mxu0 %v1691
    %2404 = vmatprep.subr.bf16.mxu0 0
    %2405 = vmatpush2.bf16.msra.mxu0 %v1690
    %2406 = vmatprep.subr.bf16.mxu0 0
    %2407 = vmatpush2.bf16.msra.mxu0 %v1689
    %2408 = vmatprep.subr.bf16.mxu0 0
    %2409 = vmatpush2.bf16.msra.mxu0 %v1688
    %2410 = vmatprep.subr.bf16.mxu0 0
    %2411 = vmatpush2.bf16.msra.mxu0 %v1687
    %2412 = vmatprep.subr.bf16.mxu0 0
    %2413 = vmatpush2.bf16.msra.mxu0 %v1686
    %2414 = vmatprep.mubr.bf16.mxu0 %v627
    %2415 = vmatmul.mubr.bf16.gmra.mxu0 %v620
    %v2416 = vpop.f32.mrf.mxu0
    %v2417 = vadd.f32 %v2377, %v2416
    %v2418 = vpop.f32.mrf.mxu0
    %v2419 = vpop.f32.mrf.mxu0
    %v2420 = vpop.f32.mrf.mxu0
    %2421 = vdwg.mxu0
    %v2422 = vmax.f32 %v2417, 0.0
    %v2423 = vpack.c.bf16 %v2422, %v2422
    %v2424 = vld [vmem:[%s3] sm:$0xf]
    %v2425 = vld [vmem:[%s3 + $0x4] sm:$0xf]
    %v2426 = vld [vmem:[%s3 + $0x8] sm:$0xf]
    %v2427 = vld [vmem:[%s3 + $0xc] sm:$0xf]
    %v2428 = vld [vmem:[%s3 + $0x10] sm:$0xf]
    %v2429 = vld [vmem:[%s3 + $0x14] sm:$0xf]
    %v2430 = vld [vmem:[%s3 + $0x18] sm:$0xf]
    %v2431 = vld [vmem:[%s3 + $0x1c] sm:$0xf]
    %v2432 = vld [vmem:[%s3 + $0x20] sm:$0xf]
    %v2433 = vld [vmem:[%s3 + $0x24] sm:$0xf]
    %v2434 = vld [vmem:[%s3 + $0x28] sm:$0xf]
    %v2435 = vld [vmem:[%s3 + $0x2c] sm:$0xf]
    %v2436 = vld [vmem:[%s3 + $0x30] sm:$0xf]
    %v2437 = vld [vmem:[%s3 + $0x34] sm:$0xf]
    %v2438 = vld [vmem:[%s3 + $0x38] sm:$0xf]
    %v2439 = vld [vmem:[%s3 + $0x3c] sm:$0xf]
    %v2440 = vld [vmem:[%s4] sm:$0x1]
    %v2442 = vlaneseq
    %v2443 = vshrl.u32 %v2442, 7
    %v2444 = vsub.s32 0, %v2443
    %v2445 = vrot.slane %v2440, %v2444
    %v2463 = vunpack.c.l.b16 %v2424
    %v2464 = vunpack.c.l.b16 %v2425
    %v2465 = vunpack.c.l.b16 %v2426
    %v2466 = vunpack.c.l.b16 %v2427
    %v2467 = vunpack.c.l.b16 %v2428
    %v2468 = vunpack.c.l.b16 %v2429
    %v2469 = vunpack.c.l.b16 %v2430
    %v2470 = vunpack.c.l.b16 %v2431
    %v2471 = vunpack.c.l.b16 %v2432
    %v2472 = vunpack.c.l.b16 %v2433
    %v2473 = vunpack.c.l.b16 %v2434
    %v2474 = vunpack.c.l.b16 %v2435
    %v2475 = vunpack.c.l.b16 %v2436
    %v2476 = vunpack.c.l.b16 %v2437
    %v2477 = vunpack.c.l.b16 %v2438
    %v2478 = vunpack.c.l.b16 %v2439
    %v2479 = vpack.c.b16 %v2464, %v2463
    %v2480 = vpack.c.b16 %v2466, %v2465
    %v2481 = vpack.c.b16 %v2468, %v2467
    %v2482 = vpack.c.b16 %v2470, %v2469
    %v2483 = vpack.c.b16 %v2472, %v2471
    %v2484 = vpack.c.b16 %v2474, %v2473
    %v2485 = vpack.c.b16 %v2476, %v2475
    %v2486 = vpack.c.b16 %v2478, %v2477
    %2495 = vmatprep.subr.bf16.mxu0 0
    %2496 = vmatpush1.bf16.msra.mxu0 %v2486
    %2497 = vmatprep.subr.bf16.mxu0 0
    %2498 = vmatpush1.bf16.msra.mxu0 %v2485
    %2499 = vmatprep.subr.bf16.mxu0 0
    %2500 = vmatpush1.bf16.msra.mxu0 %v2484
    %2501 = vmatprep.subr.bf16.mxu0 0
    %2502 = vmatpush1.bf16.msra.mxu0 %v2483
    %2503 = vmatprep.subr.bf16.mxu0 0
    %2504 = vmatpush1.bf16.msra.mxu0 %v2482
    %2505 = vmatprep.subr.bf16.mxu0 0
    %2506 = vmatpush1.bf16.msra.mxu0 %v2481
    %2507 = vmatprep.subr.bf16.mxu0 0
    %2508 = vmatpush1.bf16.msra.mxu0 %v2480
    %2509 = vmatprep.subr.bf16.mxu0 0
    %2510 = vmatpush1.bf16.msra.mxu0 %v2479
    %2511 = vmatprep.subr.bf16.mxu0 0
    %2512 = vmatpush2.bf16.msra.mxu0 0
    %2513 = vmatprep.subr.bf16.mxu0 0
    %2514 = vmatpush2.bf16.msra.mxu0 0
    %2515 = vmatprep.subr.bf16.mxu0 0
    %2516 = vmatpush2.bf16.msra.mxu0 0
    %2517 = vmatprep.subr.bf16.mxu0 0
    %2518 = vmatpush2.bf16.msra.mxu0 0
    %2519 = vmatprep.subr.bf16.mxu0 0
    %2520 = vmatpush2.bf16.msra.mxu0 0
    %2521 = vmatprep.subr.bf16.mxu0 0
    %2522 = vmatpush2.bf16.msra.mxu0 0
    %2523 = vmatprep.subr.bf16.mxu0 0
    %2524 = vmatpush2.bf16.msra.mxu0 0
    %2525 = vmatprep.subr.bf16.mxu0 0
    %2526 = vmatpush2.bf16.msra.mxu0 0
    %2527 = vmatprep.mubr.bf16.mxu0 0
    %2528 = vmatmul.mubr.bf16.gmra.mxu0 %v2423
    %v2529 = vpop.f32.mrf.mxu0
    %v2530 = vadd.f32 %v2445, %v2529
    %v2531 = vpop.f32.mrf.mxu0
    %v2532 = vpop.f32.mrf.mxu0
    %v2533 = vpop.f32.mrf.mxu0
    %2534 = vdwg.mxu0
    %v2535 = vmax.f32 %v2530, 0.0
    %v2536 = vpack.c.bf16 %v2535, %v2535
    %v2537 = vld [vmem:[%s5] sm:$0xf]
    %v2538 = vld [vmem:[%s5 + $0x4] sm:$0xf]
    %v2539 = vld [vmem:[%s5 + $0x8] sm:$0xf]
    %v2540 = vld [vmem:[%s5 + $0xc] sm:$0xf]
    %v2541 = vld [vmem:[%s5 + $0x10] sm:$0xf]
    %v2542 = vld [vmem:[%s5 + $0x14] sm:$0xf]
    %v2543 = vld [vmem:[%s5 + $0x18] sm:$0xf]
    %v2544 = vld [vmem:[%s5 + $0x1c] sm:$0xf]
    %v2545 = vld [vmem:[%s5 + $0x20] sm:$0xf]
    %v2546 = vld [vmem:[%s5 + $0x24] sm:$0xf]
    %v2547 = vld [vmem:[%s5 + $0x28] sm:$0xf]
    %v2548 = vld [vmem:[%s5 + $0x2c] sm:$0xf]
    %v2549 = vld [vmem:[%s5 + $0x30] sm:$0xf]
    %v2550 = vld [vmem:[%s5 + $0x34] sm:$0xf]
    %v2551 = vld [vmem:[%s5 + $0x38] sm:$0xf]
    %v2552 = vld [vmem:[%s5 + $0x3c] sm:$0xf]
    %v2553 = vld [vmem:[%s6] sm:$0x1]
    %v2555 = vlaneseq
    %v2556 = vshrl.u32 %v2555, 7
    %v2557 = vsub.s32 0, %v2556
    %v2558 = vrot.slane %v2553, %v2557
    %v2576 = vunpack.c.l.b16 %v2537
    %v2577 = vunpack.c.l.b16 %v2538
    %v2578 = vunpack.c.l.b16 %v2539
    %v2579 = vunpack.c.l.b16 %v2540
    %v2580 = vunpack.c.l.b16 %v2541
    %v2581 = vunpack.c.l.b16 %v2542
    %v2582 = vunpack.c.l.b16 %v2543
    %v2583 = vunpack.c.l.b16 %v2544
    %v2584 = vunpack.c.l.b16 %v2545
    %v2585 = vunpack.c.l.b16 %v2546
    %v2586 = vunpack.c.l.b16 %v2547
    %v2587 = vunpack.c.l.b16 %v2548
    %v2588 = vunpack.c.l.b16 %v2549
    %v2589 = vunpack.c.l.b16 %v2550
    %v2590 = vunpack.c.l.b16 %v2551
    %v2591 = vunpack.c.l.b16 %v2552
    %v2592 = vpack.c.b16 %v2577, %v2576
    %v2593 = vpack.c.b16 %v2579, %v2578
    %v2594 = vpack.c.b16 %v2581, %v2580
    %v2595 = vpack.c.b16 %v2583, %v2582
    %v2596 = vpack.c.b16 %v2585, %v2584
    %v2597 = vpack.c.b16 %v2587, %v2586
    %v2598 = vpack.c.b16 %v2589, %v2588
    %v2599 = vpack.c.b16 %v2591, %v2590
    %2608 = vmatprep.subr.bf16.mxu0 0
    %2609 = vmatpush1.bf16.msra.mxu0 %v2599
    %2610 = vmatprep.subr.bf16.mxu0 0
    %2611 = vmatpush1.bf16.msra.mxu0 %v2598
    %2612 = vmatprep.subr.bf16.mxu0 0
    %2613 = vmatpush1.bf16.msra.mxu0 %v2597
    %2614 = vmatprep.subr.bf16.mxu0 0
    %2615 = vmatpush1.bf16.msra.mxu0 %v2596
    %2616 = vmatprep.subr.bf16.mxu0 0
    %2617 = vmatpush1.bf16.msra.mxu0 %v2595
    %2618 = vmatprep.subr.bf16.mxu0 0
    %2619 = vmatpush1.bf16.msra.mxu0 %v2594
    %2620 = vmatprep.subr.bf16.mxu0 0
    %2621 = vmatpush1.bf16.msra.mxu0 %v2593
    %2622 = vmatprep.subr.bf16.mxu0 0
    %2623 = vmatpush1.bf16.msra.mxu0 %v2592
    %2624 = vmatprep.subr.bf16.mxu0 0
    %2625 = vmatpush2.bf16.msra.mxu0 0
    %2626 = vmatprep.subr.bf16.mxu0 0
    %2627 = vmatpush2.bf16.msra.mxu0 0
    %2628 = vmatprep.subr.bf16.mxu0 0
    %2629 = vmatpush2.bf16.msra.mxu0 0
    %2630 = vmatprep.subr.bf16.mxu0 0
    %2631 = vmatpush2.bf16.msra.mxu0 0
    %2632 = vmatprep.subr.bf16.mxu0 0
    %2633 = vmatpush2.bf16.msra.mxu0 0
    %2634 = vmatprep.subr.bf16.mxu0 0
    %2635 = vmatpush2.bf16.msra.mxu0 0
    %2636 = vmatprep.subr.bf16.mxu0 0
    %2637 = vmatpush2.bf16.msra.mxu0 0
    %2638 = vmatprep.subr.bf16.mxu0 0
    %2639 = vmatpush2.bf16.msra.mxu0 0
    %2640 = vmatprep.mubr.bf16.mxu0 0
    %2641 = vmatmul.mubr.bf16.gmra.mxu0 %v2536
    %v2642 = vpop.f32.mrf.mxu0
    %v2643 = vadd.f32 %v2558, %v2642
    %v2644 = vpop.f32.mrf.mxu0
    %v2645 = vpop.f32.mrf.mxu0
    %v2646 = vpop.f32.mrf.mxu0
    %2647 = vdwg.mxu0
    %2648 = vst [vmem:[#allocation2] sm:$0x3] %v2643
    // Predicated region
    $region30: #{cnn_forward.3} parent=1 // pred_check
      _
    $region31: #{cnn_forward.3} parent=1 // pred_check_branch
      %2650 = sbr.rel (0) target = $region33
    $region32: #{cnn_forward.3} parent=1 // pred_region
      %s2652 = ssub.s32 32, 32
      %2653 = vsyncadd [#allocation3], %s2652
      %s2655 = sshll.u32 [#allocation2], 4
      %s2656 = int_to_ptr.vmem [resolvable:$true] %s2655
      %2658 = dma.vmem_to_hbm [thread:$0]  %s2656, 32, %s7, [#allocation3]
    $region33: #{cnn_forward.3} parent=1 // pred_fallthru
      _
    // Predicated region
    $region34: #{cnn_forward.3} parent=1 // pred_check
      _
    $region35: #{cnn_forward.3} parent=1 // pred_check_branch
      %2660 = sbr.rel (0) target = $region37
    $region36: #{cnn_forward.3} parent=1 // pred_region
      %2661 = dma.done [#allocation3], 32
    $region37: #{cnn_forward.3} parent=1 // pred_fallthru
      _
    %2662 = vsyncpa [#allocation3], 1

// kernel: cnn_forward.2
$region0: #{cnn_forward.2}
  #allocation0 [shape = 'u32[]', space=smem, size = 0x4, offset = 0x4, fixed_abs, tag = 'smem constant byte address 0x4 - core index']
  #allocation1 [shape = 'u32[144,128]{1,0:T(1,128)}', space=vmem, size = 0x12000, scoped, tag = 'internal scratch']
  %s0 = inlined_call_operand.vmem [shape: bf16[2,4,16,192], index: 0, kind: input, shape index: {}]
  %s1 = inlined_call_operand.vmem [shape: bf16[5,192,512], index: 1, kind: input, shape index: {}]
  %s2 = inlined_call_operand.vmem [shape: f32[1,256], index: 2, kind: input, shape index: {}]
  %s3 = inlined_call_operand.vmem [shape: bf16[5,256,512], index: 3, kind: input, shape index: {}]
  %s4 = inlined_call_operand.vmem [shape: f32[1,256], index: 4, kind: input, shape index: {}]
  %s5 = inlined_call_operand.vmem [shape: bf16[2,13,256], index: 5, kind: output, shape index: {}]
  %s6 = sld [smem:[#allocation0]]
  $region53: #{cnn_forward.2} parent=0
    _
  %s8 = ssub.s32 1, %s6
  %s9 = scalar_select 0, %s8, %s6
  loop: start=0, step=1, limit=4
  $region2: #{cnn_forward.2} parent=0 // loop_pre_header
    _
  $region3: #{cnn_forward.2} parent=0 // loop_header
    %s11 = sphi 0, %s15
    %p12 = scmp.ge.s32.totalorder %s11, 4
    %s21 = sphi 0, %s23
    %s24 = sphi 0, %s21
    %s25 = sphi 0, %s24
    %s41 = sphi 0, %s25
    %s45 = sphi 0, %s45
    %s47 = sphi 0, %s45
    %s48 = sphi 0, %s47
    %s62 = sphi 0, %s48
    %s66 = sphi 0, %s66
    %s68 = sphi 0, %s66
    %s69 = sphi 0, %s68
    %s83 = sphi 0, %s69
    %s87 = sphi 0, %s87
    %s89 = sphi 0, %s87
    %s90 = sphi 0, %s89
    %s104 = sphi 0, %s90
    %s108 = sphi 0, %s108
    %s110 = sphi 0, %s108
    %s111 = sphi 0, %s110
    %s125 = sphi 0, %s111
    %s131 = sphi 0, %s133
    %s134 = sphi 0, %s131
    %s135 = sphi 0, %s134
    %s151 = sphi 0, %s135
  $region4: #{cnn_forward.2} parent=0 // loop_header_branch
    %14 = sbr.rel (%p12) target = $region8
  $region5: #{cnn_forward.2} parent=0 // loop_body
    %s16 = ssub.s32 %s11, 1
    %s17 = ssub.s32 %s11, 2
    %s18 = sadd.s32 %s11, 1
    %s19 = ssub.s32 %s11, %s18
    %p20 = scmp.eq.s32.totalorder %s19, 0
    %s22 = sadd.s32 %s21, 1
    %s23 = scalar_select %p20, %s21, %s22
    %p26 = pneg %p20
    %p27 = scmp.eq.s32.totalorder %s11, 1
    %p28 = por %p26, %p27
    %p29 = scmp.ne.s32.totalorder %s21, %s24
    %p30 = scmp.eq.s32.totalorder %s11, 0
    %p31 = por %p29, %p30
    %p32 = scmp.ne.s32.totalorder %s21, %s24
    %p33 = scmp.eq.s32.totalorder %s16, 1
    %p34 = por %p32, %p33
    %p35 = scmp.ne.s32.totalorder %s24, %s25
    %p36 = scmp.eq.s32.totalorder %s16, 0
    %p37 = por %p35, %p36
    %p38 = scmp.ne.s32.totalorder %s24, %s25
    %p39 = scmp.eq.s32.totalorder %s17, 1
    %p40 = por %p38, %p39
    %p42 = scmp.ne.s32.totalorder %s25, %s41
    %p43 = scmp.eq.s32.totalorder %s17, 0
    %p44 = por %p42, %p43
    %s46 = sadd.s32 %s45, 1
    %p49 = scmp.eq.s32.totalorder %s11, 1
    %p50 = scmp.ne.s32.totalorder %s45, %s47
    %p51 = scmp.eq.s32.totalorder %s11, 0
    %p52 = por %p50, %p51
    %p53 = scmp.ne.s32.totalorder %s45, %s47
    %p54 = scmp.eq.s32.totalorder %s16, 1
    %p55 = por %p53, %p54
    %p56 = scmp.ne.s32.totalorder %s47, %s48
    %p57 = scmp.eq.s32.totalorder %s16, 0
    %p58 = por %p56, %p57
    %p59 = scmp.ne.s32.totalorder %s47, %s48
    %p60 = scmp.eq.s32.totalorder %s17, 1
    %p61 = por %p59, %p60
    %p63 = scmp.ne.s32.totalorder %s48, %s62
    %p64 = scmp.eq.s32.totalorder %s17, 0
    %p65 = por %p63, %p64
    %s67 = sadd.s32 %s66, 1
    %p70 = scmp.eq.s32.totalorder %s11, 1
    %p71 = scmp.ne.s32.totalorder %s66, %s68
    %p72 = scmp.eq.s32.totalorder %s11, 0
    %p73 = por %p71, %p72
    %p74 = scmp.ne.s32.totalorder %s66, %s68
    %p75 = scmp.eq.s32.totalorder %s16, 1
    %p76 = por %p74, %p75
    %p77 = scmp.ne.s32.totalorder %s68, %s69
    %p78 = scmp.eq.s32.totalorder %s16, 0
    %p79 = por %p77, %p78
    %p80 = scmp.ne.s32.totalorder %s68, %s69
    %p81 = scmp.eq.s32.totalorder %s17, 1
    %p82 = por %p80, %p81
    %p84 = scmp.ne.s32.totalorder %s69, %s83
    %p85 = scmp.eq.s32.totalorder %s17, 0
    %p86 = por %p84, %p85
    %s88 = sadd.s32 %s87, 1
    %p91 = scmp.eq.s32.totalorder %s11, 1
    %p92 = scmp.ne.s32.totalorder %s87, %s89
    %p93 = scmp.eq.s32.totalorder %s11, 0
    %p94 = por %p92, %p93
    %p95 = scmp.ne.s32.totalorder %s87, %s89
    %p96 = scmp.eq.s32.totalorder %s16, 1
    %p97 = por %p95, %p96
    %p98 = scmp.ne.s32.totalorder %s89, %s90
    %p99 = scmp.eq.s32.totalorder %s16, 0
    %p100 = por %p98, %p99
    %p101 = scmp.ne.s32.totalorder %s89, %s90
    %p102 = scmp.eq.s32.totalorder %s17, 1
    %p103 = por %p101, %p102
    %p105 = scmp.ne.s32.totalorder %s90, %s104
    %p106 = scmp.eq.s32.totalorder %s17, 0
    %p107 = por %p105, %p106
    %s109 = sadd.s32 %s108, 1
    %p112 = scmp.eq.s32.totalorder %s11, 1
    %p113 = scmp.ne.s32.totalorder %s108, %s110
    %p114 = scmp.eq.s32.totalorder %s11, 0
    %p115 = por %p113, %p114
    %p116 = scmp.ne.s32.totalorder %s108, %s110
    %p117 = scmp.eq.s32.totalorder %s16, 1
    %p118 = por %p116, %p117
    %p119 = scmp.ne.s32.totalorder %s110, %s111
    %p120 = scmp.eq.s32.totalorder %s16, 0
    %p121 = por %p119, %p120
    %p122 = scmp.ne.s32.totalorder %s110, %s111
    %p123 = scmp.eq.s32.totalorder %s17, 1
    %p124 = por %p122, %p123
    %p126 = scmp.ne.s32.totalorder %s111, %s125
    %p127 = scmp.eq.s32.totalorder %s17, 0
    %p128 = por %p126, %p127
    %s129 = ssub.s32 %s11, %s18
    %p130 = scmp.eq.s32.totalorder %s129, 0
    %s132 = sadd.s32 %s131, 1
    %s133 = scalar_select %p130, %s131, %s132
    %p136 = pneg %p130
    %p137 = scmp.eq.s32.totalorder %s11, 1
    %p138 = por %p136, %p137
    %p139 = scmp.ne.s32.totalorder %s131, %s134
    %p140 = scmp.eq.s32.totalorder %s11, 0
    %p141 = por %p139, %p140
    %p142 = scmp.ne.s32.totalorder %s131, %s134
    %p143 = scmp.eq.s32.totalorder %s16, 1
    %p144 = por %p142, %p143
    %p145 = scmp.ne.s32.totalorder %s134, %s135
    %p146 = scmp.eq.s32.totalorder %s16, 0
    %p147 = por %p145, %p146
    %p148 = scmp.ne.s32.totalorder %s134, %s135
    %p149 = scmp.eq.s32.totalorder %s17, 1
    %p150 = por %p148, %p149
    %p152 = scmp.ne.s32.totalorder %s135, %s151
    %p153 = scmp.eq.s32.totalorder %s17, 0
    %p154 = por %p152, %p153
    %p155 = scmp.le.s32.totalorder 1, %s11
    %p156 = scmp.lt.s32.totalorder %s11, 3
    %p157 = pnand %p155, %p156
    %p158 = pneg %p157
    // Predicated region
    $region9: #{cnn_forward.2} parent=5 // pred_check
      _
    $region10: #{cnn_forward.2} parent=5 // pred_check_branch
      %160 = sbr.rel (%p157) target = $region12
    $region11: #{cnn_forward.2} parent=5 // pred_region
      %s161 = ssub.s32 %s11, 1
      // Predicated region
      $region13: #{cnn_forward.2} parent=11 // pred_check
        %p162 = pneg %p58
      $region14: #{cnn_forward.2} parent=11 // pred_check_branch
        %164 = sbr.rel (%p162) target = $region16
      $region15: #{cnn_forward.2} parent=11 // pred_region
        _
      $region16: #{cnn_forward.2} parent=11 // pred_fallthru
        _
      // Predicated region
      $region17: #{cnn_forward.2} parent=11 // pred_check
        %p165 = pneg %p79
      $region18: #{cnn_forward.2} parent=11 // pred_check_branch
        %167 = sbr.rel (%p165) target = $region20
      $region19: #{cnn_forward.2} parent=11 // pred_region
        _
      $region20: #{cnn_forward.2} parent=11 // pred_fallthru
        _
      // Predicated region
      $region21: #{cnn_forward.2} parent=11 // pred_check
        %p168 = pneg %p100
      $region22: #{cnn_forward.2} parent=11 // pred_check_branch
        %170 = sbr.rel (%p168) target = $region24
      $region23: #{cnn_forward.2} parent=11 // pred_region
        _
      $region24: #{cnn_forward.2} parent=11 // pred_fallthru
        _
      // Predicated region
      $region25: #{cnn_forward.2} parent=11 // pred_check
        %p171 = pneg %p121
      $region26: #{cnn_forward.2} parent=11 // pred_check_branch
        %173 = sbr.rel (%p171) target = $region28
      $region27: #{cnn_forward.2} parent=11 // pred_region
        _
      $region28: #{cnn_forward.2} parent=11 // pred_fallthru
        _
    $region12: #{cnn_forward.2} parent=5 // pred_fallthru
      _
    %p174 = scmp.lt.s32.totalorder %s11, 2
    // Predicated region
    $region29: #{cnn_forward.2} parent=5 // pred_check
      %p175 = pneg %p174
    $region30: #{cnn_forward.2} parent=5 // pred_check_branch
      %177 = sbr.rel (%p175) target = $region32
    $region31: #{cnn_forward.2} parent=5 // pred_region
      // Predicated region
      $region33: #{cnn_forward.2} parent=31 // pred_check
        %p178 = pneg %p31
      $region34: #{cnn_forward.2} parent=31 // pred_check_branch
        %180 = sbr.rel (%p178) target = $region36
      $region35: #{cnn_forward.2} parent=31 // pred_region
        %p181 = scmp.lt.s32.totalorder %s11, 1
        %s182 = scalar_select %p181, %s11, 1
        %s183 = smul.addr %s182, 16
        %s184 = smul.addr %s183, 4
        %s185 = scalar_lea.vmem %s0, %s184
      $region36: #{cnn_forward.2} parent=31 // pred_fallthru
        _
    $region32: #{cnn_forward.2} parent=5 // pred_fallthru
      _
    %p186 = scmp.le.s32.totalorder 1, %s11
    %p187 = scmp.lt.s32.totalorder %s11, 3
    %p188 = pnand %p186, %p187
    %p189 = pneg %p188
    // Predicated region
    $region37: #{cnn_forward.2} parent=5 // pred_check
      _
    $region38: #{cnn_forward.2} parent=5 // pred_check_branch
      %191 = sbr.rel (%p188) target = $region40
    $region39: #{cnn_forward.2} parent=5 // pred_region
      %s192 = ssub.s32 %s11, 1
      %p193 = scmp.lt.s32.totalorder %s16, 1
      %s194 = scalar_select %p193, %s16, 1
      %s195 = smul.addr %s194, 16
      %s196 = smul.addr %s195, 4
      %s197 = scalar_lea.vmem %s0, %s196
      %p198 = pneg %p37
      %p199 = pneg %p34
      %p200 = pneg %p58
      %p201 = pneg %p55
      %p202 = pneg %p79
      %p203 = pneg %p76
      %p204 = pneg %p100
      %p205 = pneg %p97
      %p206 = pneg %p121
      %p207 = pneg %p118
      %p208 = pneg %p147
      %p209 = pneg %p144
      %p210 = scmp.lt.s32.totalorder %s16, 1
      %s211 = scalar_select %p210, %s16, 1
      %s212 = smul.addr %s211, 4
      %s213 = smul.addr %s212, 4
      %s214 = scalar_lea.vmem %s5, %s213
      %p215 = scmp.lt.s32.totalorder %s16, 1
      %s216 = scalar_select %p215, %s16, 1
      %s217 = smul.addr %s216, 16
      %s218 = smul.addr %s217, 4
      %s219 = scalar_lea.vmem %s0, %s218
      %p220 = scmp.lt.s32.totalorder %s16, 1
      %s221 = scalar_select %p220, %s16, 1
      %s222 = smul.addr %s221, 4
      %s223 = smul.addr %s222, 4
      %s224 = scalar_lea.vmem %s5, %s223
      %v226 = vld [vmem:[%s1] sm:$0xff]
      %v227 = vld [vmem:[%s1 + $0x8] sm:$0xff]
      %v228 = vld [vmem:[%s1 + $0x10] sm:$0xff]
      %v229 = vld [vmem:[%s1 + $0x18] sm:$0xff]
      %v230 = vld [vmem:[%s1 + $0x20] sm:$0xff]
      %v231 = vld [vmem:[%s1 + $0x28] sm:$0xff]
      %v232 = vld [vmem:[%s1 + $0x30] sm:$0xff]
      %v233 = vld [vmem:[%s1 + $0x38] sm:$0xff]
      %v234 = vld [vmem:[%s1 + $0x40] sm:$0xff]
      %v235 = vld [vmem:[%s1 + $0x48] sm:$0xff]
      %v236 = vld [vmem:[%s1 + $0x50] sm:$0xff]
      %v237 = vld [vmem:[%s1 + $0x58] sm:$0xff]
      %v238 = vld [vmem:[%s1 + $0x60] sm:$0xff]
      %v239 = vld [vmem:[%s1 + $0x68] sm:$0xff]
      %v240 = vld [vmem:[%s1 + $0x70] sm:$0xff]
      %v241 = vld [vmem:[%s1 + $0x78] sm:$0xff]
      %v242 = vld [vmem:[%s1 + $0x80] sm:$0xff]
      %v243 = vld [vmem:[%s1 + $0x88] sm:$0xff]
      %v244 = vld [vmem:[%s1 + $0x90] sm:$0xff]
      %v245 = vld [vmem:[%s1 + $0x98] sm:$0xff]
      %v246 = vld [vmem:[%s1 + $0xa0] sm:$0xff]
      %v247 = vld [vmem:[%s1 + $0xa8] sm:$0xff]
      %v248 = vld [vmem:[%s1 + $0xb0] sm:$0xff]
      %v249 = vld [vmem:[%s1 + $0xb8] sm:$0xff]
      %v250 = vld [vmem:[%s1 + $0xc0] sm:$0xff]
      %v251 = vld [vmem:[%s1 + $0xc8] sm:$0xff]
      %v252 = vld [vmem:[%s1 + $0xd0] sm:$0xff]
      %v253 = vld [vmem:[%s1 + $0xd8] sm:$0xff]
      %v254 = vld [vmem:[%s1 + $0xe0] sm:$0xff]
      %v255 = vld [vmem:[%s1 + $0xe8] sm:$0xff]
      %v256 = vld [vmem:[%s1 + $0xf0] sm:$0xff]
      %v257 = vld [vmem:[%s1 + $0xf8] sm:$0xff]
      %v258 = vld [vmem:[%s1 + $0x100] sm:$0xff]
      %v259 = vld [vmem:[%s1 + $0x108] sm:$0xff]
      %v260 = vld [vmem:[%s1 + $0x110] sm:$0xff]
      %v261 = vld [vmem:[%s1 + $0x118] sm:$0xff]
      %v262 = vld [vmem:[%s1 + $0x120] sm:$0xff]
      %v263 = vld [vmem:[%s1 + $0x128] sm:$0xff]
      %v264 = vld [vmem:[%s1 + $0x130] sm:$0xff]
      %v265 = vld [vmem:[%s1 + $0x138] sm:$0xff]
      %v266 = vld [vmem:[%s1 + $0x140] sm:$0xff]
      %v267 = vld [vmem:[%s1 + $0x148] sm:$0xff]
      %v268 = vld [vmem:[%s1 + $0x150] sm:$0xff]
      %v269 = vld [vmem:[%s1 + $0x158] sm:$0xff]
      %v270 = vld [vmem:[%s1 + $0x160] sm:$0xff]
      %v271 = vld [vmem:[%s1 + $0x168] sm:$0xff]
      %v272 = vld [vmem:[%s1 + $0x170] sm:$0xff]
      %v273 = vld [vmem:[%s1 + $0x178] sm:$0xff]
      %v274 = vld [vmem:[%s219] sm:$0xff]
      %v275 = vld [vmem:[%s219 + $0x8] sm:$0xff]
      %s276 = scalar_lea.vmem %s219, 16
      %v277 = vld [vmem:[%s276] sm:$0xff]
      %v278 = vld [vmem:[%s276 + $0x8] sm:$0xff]
      %s279 = scalar_lea.vmem %s219, 32
      %v280 = vld [vmem:[%s279] sm:$0xff]
      %v281 = vld [vmem:[%s279 + $0x8] sm:$0xff]
      %s282 = scalar_lea.vmem %s219, 48
      %v283 = vld [vmem:[%s282] sm:$0xff]
      %v284 = vld [vmem:[%s282 + $0x8] sm:$0xff]
      %s285 = scalar_lea.vmem %s1, 384
      %v286 = vld [vmem:[%s285] sm:$0xff]
      %v287 = vld [vmem:[%s285 + $0x8] sm:$0xff]
      %v288 = vld [vmem:[%s285 + $0x10] sm:$0xff]
      %v289 = vld [vmem:[%s285 + $0x18] sm:$0xff]
      %v290 = vld [vmem:[%s285 + $0x20] sm:$0xff]
      %v291 = vld [vmem:[%s285 + $0x28] sm:$0xff]
      %v292 = vld [vmem:[%s285 + $0x30] sm:$0xff]
      %v293 = vld [vmem:[%s285 + $0x38] sm:$0xff]
      %v294 = vld [vmem:[%s285 + $0x40] sm:$0xff]
      %v295 = vld [vmem:[%s285 + $0x48] sm:$0xff]
      %v296 = vld [vmem:[%s285 + $0x50] sm:$0xff]
      %v297 = vld [vmem:[%s285 + $0x58] sm:$0xff]
      %v298 = vld [vmem:[%s285 + $0x60] sm:$0xff]
      %v299 = vld [vmem:[%s285 + $0x68] sm:$0xff]
      %v300 = vld [vmem:[%s285 + $0x70] sm:$0xff]
      %v301 = vld [vmem:[%s285 + $0x78] sm:$0xff]
      %v302 = vld [vmem:[%s285 + $0x80] sm:$0xff]
      %v303 = vld [vmem:[%s285 + $0x88] sm:$0xff]
      %v304 = vld [vmem:[%s285 + $0x90] sm:$0xff]
      %v305 = vld [vmem:[%s285 + $0x98] sm:$0xff]
      %v306 = vld [vmem:[%s285 + $0xa0] sm:$0xff]
      %v307 = vld [vmem:[%s285 + $0xa8] sm:$0xff]
      %v308 = vld [vmem:[%s285 + $0xb0] sm:$0xff]
      %v309 = vld [vmem:[%s285 + $0xb8] sm:$0xff]
      %v310 = vld [vmem:[%s285 + $0xc0] sm:$0xff]
      %v311 = vld [vmem:[%s285 + $0xc8] sm:$0xff]
      %v312 = vld [vmem:[%s285 + $0xd0] sm:$0xff]
      %v313 = vld [vmem:[%s285 + $0xd8] sm:$0xff]
      %v314 = vld [vmem:[%s285 + $0xe0] sm:$0xff]
      %v315 = vld [vmem:[%s285 + $0xe8] sm:$0xff]
      %v316 = vld [vmem:[%s285 + $0xf0] sm:$0xff]
      %v317 = vld [vmem:[%s285 + $0xf8] sm:$0xff]
      %v318 = vld [vmem:[%s285 + $0x100] sm:$0xff]
      %v319 = vld [vmem:[%s285 + $0x108] sm:$0xff]
      %v320 = vld [vmem:[%s285 + $0x110] sm:$0xff]
      %v321 = vld [vmem:[%s285 + $0x118] sm:$0xff]
      %v322 = vld [vmem:[%s285 + $0x120] sm:$0xff]
      %v323 = vld [vmem:[%s285 + $0x128] sm:$0xff]
      %v324 = vld [vmem:[%s285 + $0x130] sm:$0xff]
      %v325 = vld [vmem:[%s285 + $0x138] sm:$0xff]
      %v326 = vld [vmem:[%s285 + $0x140] sm:$0xff]
      %v327 = vld [vmem:[%s285 + $0x148] sm:$0xff]
      %v328 = vld [vmem:[%s285 + $0x150] sm:$0xff]
      %v329 = vld [vmem:[%s285 + $0x158] sm:$0xff]
      %v330 = vld [vmem:[%s285 + $0x160] sm:$0xff]
      %v331 = vld [vmem:[%s285 + $0x168] sm:$0xff]
      %v332 = vld [vmem:[%s285 + $0x170] sm:$0xff]
      %v333 = vld [vmem:[%s285 + $0x178] sm:$0xff]
      %v336 = vunpack.c.l.b16 %v277
      %v337 = vunpack.c.h.b16 %v277
      %v338 = vunpack.c.l.b16 %v278
      %v339 = vunpack.c.h.b16 %v278
      %v340 = vpack.c.b16 %v338, %v336
      %v341 = vpack.c.b16 %v339, %v337
      %v391 = vunpack.c.l.b16 %v286
      %v392 = vunpack.c.h.b16 %v286
      %v393 = vunpack.c.l.b16 %v287
      %v394 = vunpack.c.h.b16 %v287
      %v395 = vunpack.c.l.b16 %v288
      %v396 = vunpack.c.h.b16 %v288
      %v397 = vunpack.c.l.b16 %v289
      %v398 = vunpack.c.h.b16 %v289
      %v399 = vunpack.c.l.b16 %v290
      %v400 = vunpack.c.h.b16 %v290
      %v401 = vunpack.c.l.b16 %v291
      %v402 = vunpack.c.h.b16 %v291
      %v403 = vunpack.c.l.b16 %v292
      %v404 = vunpack.c.h.b16 %v292
      %v405 = vunpack.c.l.b16 %v293
      %v406 = vunpack.c.h.b16 %v293
      %v407 = vunpack.c.l.b16 %v294
      %v408 = vunpack.c.h.b16 %v294
      %v409 = vunpack.c.l.b16 %v295
      %v410 = vunpack.c.h.b16 %v295
      %v411 = vunpack.c.l.b16 %v296
      %v412 = vunpack.c.h.b16 %v296
      %v413 = vunpack.c.l.b16 %v297
      %v414 = vunpack.c.h.b16 %v297
      %v415 = vunpack.c.l.b16 %v298
      %v416 = vunpack.c.h.b16 %v298
      %v417 = vunpack.c.l.b16 %v299
      %v418 = vunpack.c.h.b16 %v299
      %v419 = vunpack.c.l.b16 %v300
      %v420 = vunpack.c.h.b16 %v300
      %v421 = vunpack.c.l.b16 %v301
      %v422 = vunpack.c.h.b16 %v301
      %v423 = vunpack.c.l.b16 %v302
      %v424 = vunpack.c.h.b16 %v302
      %v425 = vunpack.c.l.b16 %v303
      %v426 = vunpack.c.h.b16 %v303
      %v427 = vunpack.c.l.b16 %v304
      %v428 = vunpack.c.h.b16 %v304
      %v429 = vunpack.c.l.b16 %v305
      %v430 = vunpack.c.h.b16 %v305
      %v431 = vunpack.c.l.b16 %v306
      %v432 = vunpack.c.h.b16 %v306
      %v433 = vunpack.c.l.b16 %v307
      %v434 = vunpack.c.h.b16 %v307
      %v435 = vunpack.c.l.b16 %v308
      %v436 = vunpack.c.h.b16 %v308
      %v437 = vunpack.c.l.b16 %v309
      %v438 = vunpack.c.h.b16 %v309
      %v439 = vunpack.c.l.b16 %v310
      %v440 = vunpack.c.h.b16 %v310
      %v441 = vunpack.c.l.b16 %v311
      %v442 = vunpack.c.h.b16 %v311
      %v443 = vunpack.c.l.b16 %v312
      %v444 = vunpack.c.h.b16 %v312
      %v445 = vunpack.c.l.b16 %v313
      %v446 = vunpack.c.h.b16 %v313
      %v447 = vunpack.c.l.b16 %v314
      %v448 = vunpack.c.h.b16 %v314
      %v449 = vunpack.c.l.b16 %v315
      %v450 = vunpack.c.h.b16 %v315
      %v451 = vunpack.c.l.b16 %v316
      %v452 = vunpack.c.h.b16 %v316
      %v453 = vunpack.c.l.b16 %v317
      %v454 = vunpack.c.h.b16 %v317
      %v455 = vunpack.c.l.b16 %v318
      %v456 = vunpack.c.h.b16 %v318
      %v457 = vunpack.c.l.b16 %v319
      %v458 = vunpack.c.h.b16 %v319
      %v459 = vunpack.c.l.b16 %v320
      %v460 = vunpack.c.h.b16 %v320
      %v461 = vunpack.c.l.b16 %v321
      %v462 = vunpack.c.h.b16 %v321
      %v463 = vunpack.c.l.b16 %v322
      %v464 = vunpack.c.h.b16 %v322
      %v465 = vunpack.c.l.b16 %v323
      %v466 = vunpack.c.h.b16 %v323
      %v467 = vunpack.c.l.b16 %v324
      %v468 = vunpack.c.h.b16 %v324
      %v469 = vunpack.c.l.b16 %v325
      %v470 = vunpack.c.h.b16 %v325
      %v471 = vunpack.c.l.b16 %v326
      %v472 = vunpack.c.h.b16 %v326
      %v473 = vunpack.c.l.b16 %v327
      %v474 = vunpack.c.h.b16 %v327
      %v475 = vunpack.c.l.b16 %v328
      %v476 = vunpack.c.h.b16 %v328
      %v477 = vunpack.c.l.b16 %v329
      %v478 = vunpack.c.h.b16 %v329
      %v479 = vunpack.c.l.b16 %v330
      %v480 = vunpack.c.h.b16 %v330
      %v481 = vunpack.c.l.b16 %v331
      %v482 = vunpack.c.h.b16 %v331
      %v483 = vunpack.c.l.b16 %v332
      %v484 = vunpack.c.h.b16 %v332
      %v485 = vunpack.c.l.b16 %v333
      %v486 = vunpack.c.h.b16 %v333
      %v487 = vpack.c.b16 %v395, %v391
      %v488 = vpack.c.b16 %v396, %v392
      %v489 = vpack.c.b16 %v397, %v393
      %v490 = vpack.c.b16 %v398, %v394
      %v491 = vpack.c.b16 %v403, %v399
      %v492 = vpack.c.b16 %v404, %v400
      %v493 = vpack.c.b16 %v405, %v401
      %v494 = vpack.c.b16 %v406, %v402
      %v495 = vpack.c.b16 %v411, %v407
      %v496 = vpack.c.b16 %v412, %v408
      %v497 = vpack.c.b16 %v413, %v409
      %v498 = vpack.c.b16 %v414, %v410
      %v499 = vpack.c.b16 %v419, %v415
      %v500 = vpack.c.b16 %v420, %v416
      %v501 = vpack.c.b16 %v421, %v417
      %v502 = vpack.c.b16 %v422, %v418
      %v503 = vpack.c.b16 %v427, %v423
      %v504 = vpack.c.b16 %v428, %v424
      %v505 = vpack.c.b16 %v429, %v425
      %v506 = vpack.c.b16 %v430, %v426
      %v507 = vpack.c.b16 %v435, %v431
      %v508 = vpack.c.b16 %v436, %v432
      %v509 = vpack.c.b16 %v437, %v433
      %v510 = vpack.c.b16 %v438, %v434
      %v511 = vpack.c.b16 %v443, %v439
      %v512 = vpack.c.b16 %v444, %v440
      %v513 = vpack.c.b16 %v445, %v441
      %v514 = vpack.c.b16 %v446, %v442
      %v515 = vpack.c.b16 %v451, %v447
      %v516 = vpack.c.b16 %v452, %v448
      %v517 = vpack.c.b16 %v453, %v449
      %v518 = vpack.c.b16 %v454, %v450
      %v519 = vpack.c.b16 %v459, %v455
      %v520 = vpack.c.b16 %v460, %v456
      %v521 = vpack.c.b16 %v461, %v457
      %v522 = vpack.c.b16 %v462, %v458
      %v523 = vpack.c.b16 %v467, %v463
      %v524 = vpack.c.b16 %v468, %v464
      %v525 = vpack.c.b16 %v469, %v465
      %v526 = vpack.c.b16 %v470, %v466
      %v527 = vpack.c.b16 %v475, %v471
      %v528 = vpack.c.b16 %v476, %v472
      %v529 = vpack.c.b16 %v477, %v473
      %v530 = vpack.c.b16 %v478, %v474
      %v531 = vpack.c.b16 %v483, %v479
      %v532 = vpack.c.b16 %v484, %v480
      %v533 = vpack.c.b16 %v485, %v481
      %v534 = vpack.c.b16 %v486, %v482
      %vm583 = vcmask 523264
      %v585 = vsel %vm583, %v341, 0
      %587 = vmatprep.subr.bf16.mxu0 %v516
      %588 = vmatpush1.bf16.msra.mxu0 %v515
      %589 = vmatprep.subr.bf16.mxu0 %v512
      %590 = vmatpush1.bf16.msra.mxu0 %v511
      %591 = vmatprep.subr.bf16.mxu0 %v508
      %592 = vmatpush1.bf16.msra.mxu0 %v507
      %593 = vmatprep.subr.bf16.mxu0 %v504
      %594 = vmatpush1.bf16.msra.mxu0 %v503
      %595 = vmatprep.subr.bf16.mxu0 %v500
      %596 = vmatpush1.bf16.msra.mxu0 %v499
      %597 = vmatprep.subr.bf16.mxu0 %v496
      %598 = vmatpush1.bf16.msra.mxu0 %v495
      %599 = vmatprep.subr.bf16.mxu0 %v492
      %600 = vmatpush1.bf16.msra.mxu0 %v491
      %601 = vmatprep.subr.bf16.mxu0 %v488
      %602 = vmatpush1.bf16.msra.mxu0 %v487
      %603 = vmatprep.subr.bf16.mxu0 0
      %604 = vmatpush2.bf16.msra.mxu0 0
      %605 = vmatprep.subr.bf16.mxu0 0
      %606 = vmatpush2.bf16.msra.mxu0 0
      %607 = vmatprep.subr.bf16.mxu0 0
      %608 = vmatpush2.bf16.msra.mxu0 0
      %609 = vmatprep.subr.bf16.mxu0 0
      %610 = vmatpush2.bf16.msra.mxu0 0
      %611 = vmatprep.subr.bf16.mxu0 %v532
      %612 = vmatpush2.bf16.msra.mxu0 %v531
      %613 = vmatprep.subr.bf16.mxu0 %v528
      %614 = vmatpush2.bf16.msra.mxu0 %v527
      %615 = vmatprep.subr.bf16.mxu0 %v524
      %616 = vmatpush2.bf16.msra.mxu0 %v523
      %617 = vmatprep.subr.bf16.mxu0 %v520
      %618 = vmatpush2.bf16.msra.mxu0 %v519
      %619 = vmatprep.mubr.bf16.mxu0 %v585
      %620 = vmatmul.mubr.bf16.gmra.mxu0 %v340
      %v621 = vpop.f32.mrf.mxu0
      %v622 = vadd.f32 0.0, %v621
      %v623 = vpop.f32.mrf.mxu0
      %v624 = vadd.f32 0.0, %v623
      %v625 = vpop.f32.mrf.mxu0
      %v626 = vadd.f32 0.0, %v625
      %v627 = vpop.f32.mrf.mxu0
      %v628 = vadd.f32 0.0, %v627
      %629 = vdwg.mxu0
      %630 = vmatprep.subr.bf16.mxu0 %v518
      %631 = vmatpush1.bf16.msra.mxu0 %v517
      %632 = vmatprep.subr.bf16.mxu0 %v514
      %633 = vmatpush1.bf16.msra.mxu0 %v513
      %634 = vmatprep.subr.bf16.mxu0 %v510
      %635 = vmatpush1.bf16.msra.mxu0 %v509
      %636 = vmatprep.subr.bf16.mxu0 %v506
      %637 = vmatpush1.bf16.msra.mxu0 %v505
      %638 = vmatprep.subr.bf16.mxu0 %v502
      %639 = vmatpush1.bf16.msra.mxu0 %v501
      %640 = vmatprep.subr.bf16.mxu0 %v498
      %641 = vmatpush1.bf16.msra.mxu0 %v497
      %642 = vmatprep.subr.bf16.mxu0 %v494
      %643 = vmatpush1.bf16.msra.mxu0 %v493
      %644 = vmatprep.subr.bf16.mxu0 %v490
      %645 = vmatpush1.bf16.msra.mxu0 %v489
      %646 = vmatprep.subr.bf16.mxu0 0
      %647 = vmatpush2.bf16.msra.mxu0 0
      %648 = vmatprep.subr.bf16.mxu0 0
      %649 = vmatpush2.bf16.msra.mxu0 0
      %650 = vmatprep.subr.bf16.mxu0 0
      %651 = vmatpush2.bf16.msra.mxu0 0
      %652 = vmatprep.subr.bf16.mxu0 0
      %653 = vmatpush2.bf16.msra.mxu0 0
      %654 = vmatprep.subr.bf16.mxu0 %v534
      %655 = vmatpush2.bf16.msra.mxu0 %v533
      %656 = vmatprep.subr.bf16.mxu0 %v530
      %657 = vmatpush2.bf16.msra.mxu0 %v529
      %658 = vmatprep.subr.bf16.mxu0 %v526
      %659 = vmatpush2.bf16.msra.mxu0 %v525
      %660 = vmatprep.subr.bf16.mxu0 %v522
      %661 = vmatpush2.bf16.msra.mxu0 %v521
      %662 = vmatprep.mubr.bf16.mxu0 %v585
      %663 = vmatmul.mubr.bf16.gmra.mxu0 %v340
      %v664 = vpop.f32.mrf.mxu0
      %v665 = vadd.f32 0.0, %v664
      %v666 = vpop.f32.mrf.mxu0
      %v667 = vadd.f32 0.0, %v666
      %v668 = vpop.f32.mrf.mxu0
      %v669 = vadd.f32 0.0, %v668
      %v670 = vpop.f32.mrf.mxu0
      %v671 = vadd.f32 0.0, %v670
      %672 = vdwg.mxu0
      %v675 = vunpack.c.l.b16 %v274
      %v676 = vunpack.c.h.b16 %v274
      %v677 = vunpack.c.l.b16 %v275
      %v678 = vunpack.c.h.b16 %v275
      %v679 = vpack.c.b16 %v677, %v675
      %v680 = vpack.c.b16 %v678, %v676
      %v730 = vunpack.c.l.b16 %v226
      %v731 = vunpack.c.h.b16 %v226
      %v732 = vunpack.c.l.b16 %v227
      %v733 = vunpack.c.h.b16 %v227
      %v734 = vunpack.c.l.b16 %v228
      %v735 = vunpack.c.h.b16 %v228
      %v736 = vunpack.c.l.b16 %v229
      %v737 = vunpack.c.h.b16 %v229
      %v738 = vunpack.c.l.b16 %v230
      %v739 = vunpack.c.h.b16 %v230
      %v740 = vunpack.c.l.b16 %v231
      %v741 = vunpack.c.h.b16 %v231
      %v742 = vunpack.c.l.b16 %v232
      %v743 = vunpack.c.h.b16 %v232
      %v744 = vunpack.c.l.b16 %v233
      %v745 = vunpack.c.h.b16 %v233
      %v746 = vunpack.c.l.b16 %v234
      %v747 = vunpack.c.h.b16 %v234
      %v748 = vunpack.c.l.b16 %v235
      %v749 = vunpack.c.h.b16 %v235
      %v750 = vunpack.c.l.b16 %v236
      %v751 = vunpack.c.h.b16 %v236
      %v752 = vunpack.c.l.b16 %v237
      %v753 = vunpack.c.h.b16 %v237
      %v754 = vunpack.c.l.b16 %v238
      %v755 = vunpack.c.h.b16 %v238
      %v756 = vunpack.c.l.b16 %v239
      %v757 = vunpack.c.h.b16 %v239
      %v758 = vunpack.c.l.b16 %v240
      %v759 = vunpack.c.h.b16 %v240
      %v760 = vunpack.c.l.b16 %v241
      %v761 = vunpack.c.h.b16 %v241
      %v762 = vunpack.c.l.b16 %v242
      %v763 = vunpack.c.h.b16 %v242
      %v764 = vunpack.c.l.b16 %v243
      %v765 = vunpack.c.h.b16 %v243
      %v766 = vunpack.c.l.b16 %v244
      %v767 = vunpack.c.h.b16 %v244
      %v768 = vunpack.c.l.b16 %v245
      %v769 = vunpack.c.h.b16 %v245
      %v770 = vunpack.c.l.b16 %v246
      %v771 = vunpack.c.h.b16 %v246
      %v772 = vunpack.c.l.b16 %v247
      %v773 = vunpack.c.h.b16 %v247
      %v774 = vunpack.c.l.b16 %v248
      %v775 = vunpack.c.h.b16 %v248
      %v776 = vunpack.c.l.b16 %v249
      %v777 = vunpack.c.h.b16 %v249
      %v778 = vunpack.c.l.b16 %v250
      %v779 = vunpack.c.h.b16 %v250
      %v780 = vunpack.c.l.b16 %v251
      %v781 = vunpack.c.h.b16 %v251
      %v782 = vunpack.c.l.b16 %v252
      %v783 = vunpack.c.h.b16 %v252
      %v784 = vunpack.c.l.b16 %v253
      %v785 = vunpack.c.h.b16 %v253
      %v786 = vunpack.c.l.b16 %v254
      %v787 = vunpack.c.h.b16 %v254
      %v788 = vunpack.c.l.b16 %v255
      %v789 = vunpack.c.h.b16 %v255
      %v790 = vunpack.c.l.b16 %v256
      %v791 = vunpack.c.h.b16 %v256
      %v792 = vunpack.c.l.b16 %v257
      %v793 = vunpack.c.h.b16 %v257
      %v794 = vunpack.c.l.b16 %v258
      %v795 = vunpack.c.h.b16 %v258
      %v796 = vunpack.c.l.b16 %v259
      %v797 = vunpack.c.h.b16 %v259
      %v798 = vunpack.c.l.b16 %v260
      %v799 = vunpack.c.h.b16 %v260
      %v800 = vunpack.c.l.b16 %v261
      %v801 = vunpack.c.h.b16 %v261
      %v802 = vunpack.c.l.b16 %v262
      %v803 = vunpack.c.h.b16 %v262
      %v804 = vunpack.c.l.b16 %v263
      %v805 = vunpack.c.h.b16 %v263
      %v806 = vunpack.c.l.b16 %v264
      %v807 = vunpack.c.h.b16 %v264
      %v808 = vunpack.c.l.b16 %v265
      %v809 = vunpack.c.h.b16 %v265
      %v810 = vunpack.c.l.b16 %v266
      %v811 = vunpack.c.h.b16 %v266
      %v812 = vunpack.c.l.b16 %v267
      %v813 = vunpack.c.h.b16 %v267
      %v814 = vunpack.c.l.b16 %v268
      %v815 = vunpack.c.h.b16 %v268
      %v816 = vunpack.c.l.b16 %v269
      %v817 = vunpack.c.h.b16 %v269
      %v818 = vunpack.c.l.b16 %v270
      %v819 = vunpack.c.h.b16 %v270
      %v820 = vunpack.c.l.b16 %v271
      %v821 = vunpack.c.h.b16 %v271
      %v822 = vunpack.c.l.b16 %v272
      %v823 = vunpack.c.h.b16 %v272
      %v824 = vunpack.c.l.b16 %v273
      %v825 = vunpack.c.h.b16 %v273
      %v826 = vpack.c.b16 %v734, %v730
      %v827 = vpack.c.b16 %v735, %v731
      %v828 = vpack.c.b16 %v736, %v732
      %v829 = vpack.c.b16 %v737, %v733
      %v830 = vpack.c.b16 %v742, %v738
      %v831 = vpack.c.b16 %v743, %v739
      %v832 = vpack.c.b16 %v744, %v740
      %v833 = vpack.c.b16 %v745, %v741
      %v834 = vpack.c.b16 %v750, %v746
      %v835 = vpack.c.b16 %v751, %v747
      %v836 = vpack.c.b16 %v752, %v748
      %v837 = vpack.c.b16 %v753, %v749
      %v838 = vpack.c.b16 %v758, %v754
      %v839 = vpack.c.b16 %v759, %v755
      %v840 = vpack.c.b16 %v760, %v756
      %v841 = vpack.c.b16 %v761, %v757
      %v842 = vpack.c.b16 %v766, %v762
      %v843 = vpack.c.b16 %v767, %v763
      %v844 = vpack.c.b16 %v768, %v764
      %v845 = vpack.c.b16 %v769, %v765
      %v846 = vpack.c.b16 %v774, %v770
      %v847 = vpack.c.b16 %v775, %v771
      %v848 = vpack.c.b16 %v776, %v772
      %v849 = vpack.c.b16 %v777, %v773
      %v850 = vpack.c.b16 %v782, %v778
      %v851 = vpack.c.b16 %v783, %v779
      %v852 = vpack.c.b16 %v784, %v780
      %v853 = vpack.c.b16 %v785, %v781
      %v854 = vpack.c.b16 %v790, %v786
      %v855 = vpack.c.b16 %v791, %v787
      %v856 = vpack.c.b16 %v792, %v788
      %v857 = vpack.c.b16 %v793, %v789
      %v858 = vpack.c.b16 %v798, %v794
      %v859 = vpack.c.b16 %v799, %v795
      %v860 = vpack.c.b16 %v800, %v796
      %v861 = vpack.c.b16 %v801, %v797
      %v862 = vpack.c.b16 %v806, %v802
      %v863 = vpack.c.b16 %v807, %v803
      %v864 = vpack.c.b16 %v808, %v804
      %v865 = vpack.c.b16 %v809, %v805
      %v866 = vpack.c.b16 %v814, %v810
      %v867 = vpack.c.b16 %v815, %v811
      %v868 = vpack.c.b16 %v816, %v812
      %v869 = vpack.c.b16 %v817, %v813
      %v870 = vpack.c.b16 %v822, %v818
      %v871 = vpack.c.b16 %v823, %v819
      %v872 = vpack.c.b16 %v824, %v820
      %v873 = vpack.c.b16 %v825, %v821
      %v923 = vsel %vm583, %v680, 0
      %925 = vmatprep.subr.bf16.mxu0 %v855
      %926 = vmatpush1.bf16.msra.mxu0 %v854
      %927 = vmatprep.subr.bf16.mxu0 %v851
      %928 = vmatpush1.bf16.msra.mxu0 %v850
      %929 = vmatprep.subr.bf16.mxu0 %v847
      %930 = vmatpush1.bf16.msra.mxu0 %v846
      %931 = vmatprep.subr.bf16.mxu0 %v843
      %932 = vmatpush1.bf16.msra.mxu0 %v842
      %933 = vmatprep.subr.bf16.mxu0 %v839
      %934 = vmatpush1.bf16.msra.mxu0 %v838
      %935 = vmatprep.subr.bf16.mxu0 %v835
      %936 = vmatpush1.bf16.msra.mxu0 %v834
      %937 = vmatprep.subr.bf16.mxu0 %v831
      %938 = vmatpush1.bf16.msra.mxu0 %v830
      %939 = vmatprep.subr.bf16.mxu0 %v827
      %940 = vmatpush1.bf16.msra.mxu0 %v826
      %941 = vmatprep.subr.bf16.mxu0 0
      %942 = vmatpush2.bf16.msra.mxu0 0
      %943 = vmatprep.subr.bf16.mxu0 0
      %944 = vmatpush2.bf16.msra.mxu0 0
      %945 = vmatprep.subr.bf16.mxu0 0
      %946 = vmatpush2.bf16.msra.mxu0 0
      %947 = vmatprep.subr.bf16.mxu0 0
      %948 = vmatpush2.bf16.msra.mxu0 0
      %949 = vmatprep.subr.bf16.mxu0 %v871
      %950 = vmatpush2.bf16.msra.mxu0 %v870
      %951 = vmatprep.subr.bf16.mxu0 %v867
      %952 = vmatpush2.bf16.msra.mxu0 %v866
      %953 = vmatprep.subr.bf16.mxu0 %v863
      %954 = vmatpush2.bf16.msra.mxu0 %v862
      %955 = vmatprep.subr.bf16.mxu0 %v859
      %956 = vmatpush2.bf16.msra.mxu0 %v858
      %957 = vmatprep.mubr.bf16.mxu0 %v923
      %958 = vmatmul.mubr.bf16.gmra.mxu0 %v679
      %v959 = vpop.f32.mrf.mxu0
      %v960 = vadd.f32 %v622, %v959
      %v961 = vpop.f32.mrf.mxu0
      %v962 = vadd.f32 %v624, %v961
      %v963 = vpop.f32.mrf.mxu0
      %v964 = vadd.f32 %v626, %v963
      %v965 = vpop.f32.mrf.mxu0
      %v966 = vadd.f32 %v628, %v965
      %967 = vdwg.mxu0
      %968 = vmatprep.subr.bf16.mxu0 %v857
      %969 = vmatpush1.bf16.msra.mxu0 %v856
      %970 = vmatprep.subr.bf16.mxu0 %v853
      %971 = vmatpush1.bf16.msra.mxu0 %v852
      %972 = vmatprep.subr.bf16.mxu0 %v849
      %973 = vmatpush1.bf16.msra.mxu0 %v848
      %974 = vmatprep.subr.bf16.mxu0 %v845
      %975 = vmatpush1.bf16.msra.mxu0 %v844
      %976 = vmatprep.subr.bf16.mxu0 %v841
      %977 = vmatpush1.bf16.msra.mxu0 %v840
      %978 = vmatprep.subr.bf16.mxu0 %v837
      %979 = vmatpush1.bf16.msra.mxu0 %v836
      %980 = vmatprep.subr.bf16.mxu0 %v833
      %981 = vmatpush1.bf16.msra.mxu0 %v832
      %982 = vmatprep.subr.bf16.mxu0 %v829
      %983 = vmatpush1.bf16.msra.mxu0 %v828
      %984 = vmatprep.subr.bf16.mxu0 0
      %985 = vmatpush2.bf16.msra.mxu0 0
      %986 = vmatprep.subr.bf16.mxu0 0
      %987 = vmatpush2.bf16.msra.mxu0 0
      %988 = vmatprep.subr.bf16.mxu0 0
      %989 = vmatpush2.bf16.msra.mxu0 0
      %990 = vmatprep.subr.bf16.mxu0 0
      %991 = vmatpush2.bf16.msra.mxu0 0
      %992 = vmatprep.subr.bf16.mxu0 %v873
      %993 = vmatpush2.bf16.msra.mxu0 %v872
      %994 = vmatprep.subr.bf16.mxu0 %v869
      %995 = vmatpush2.bf16.msra.mxu0 %v868
      %996 = vmatprep.subr.bf16.mxu0 %v865
      %997 = vmatpush2.bf16.msra.mxu0 %v864
      %998 = vmatprep.subr.bf16.mxu0 %v861
      %999 = vmatpush2.bf16.msra.mxu0 %v860
      %1000 = vmatprep.mubr.bf16.mxu0 %v923
      %1001 = vmatmul.mubr.bf16.gmra.mxu0 %v679
      %v1002 = vpop.f32.mrf.mxu0
      %v1003 = vadd.f32 %v665, %v1002
      %v1004 = vpop.f32.mrf.mxu0
      %v1005 = vadd.f32 %v667, %v1004
      %v1006 = vpop.f32.mrf.mxu0
      %v1007 = vadd.f32 %v669, %v1006
      %v1008 = vpop.f32.mrf.mxu0
      %v1009 = vadd.f32 %v671, %v1008
      %1010 = vdwg.mxu0
      %v1013 = vunpack.c.l.b16 %v280
      %v1014 = vunpack.c.h.b16 %v280
      %v1015 = vunpack.c.l.b16 %v281
      %v1016 = vunpack.c.h.b16 %v281
      %v1017 = vpack.c.b16 %v1015, %v1013
      %v1018 = vpack.c.b16 %v1016, %v1014
      %v1021 = vsel %vm583, %v1018, 0
      %1023 = vmatprep.subr.bf16.mxu0 %v516
      %1024 = vmatpush1.bf16.msra.mxu0 %v515
      %1025 = vmatprep.subr.bf16.mxu0 %v512
      %1026 = vmatpush1.bf16.msra.mxu0 %v511
      %1027 = vmatprep.subr.bf16.mxu0 %v508
      %1028 = vmatpush1.bf16.msra.mxu0 %v507
      %1029 = vmatprep.subr.bf16.mxu0 %v504
      %1030 = vmatpush1.bf16.msra.mxu0 %v503
      %1031 = vmatprep.subr.bf16.mxu0 %v500
      %1032 = vmatpush1.bf16.msra.mxu0 %v499
      %1033 = vmatprep.subr.bf16.mxu0 %v496
      %1034 = vmatpush1.bf16.msra.mxu0 %v495
      %1035 = vmatprep.subr.bf16.mxu0 %v492
      %1036 = vmatpush1.bf16.msra.mxu0 %v491
      %1037 = vmatprep.subr.bf16.mxu0 %v488
      %1038 = vmatpush1.bf16.msra.mxu0 %v487
      %1039 = vmatprep.subr.bf16.mxu0 0
      %1040 = vmatpush2.bf16.msra.mxu0 0
      %1041 = vmatprep.subr.bf16.mxu0 0
      %1042 = vmatpush2.bf16.msra.mxu0 0
      %1043 = vmatprep.subr.bf16.mxu0 0
      %1044 = vmatpush2.bf16.msra.mxu0 0
      %1045 = vmatprep.subr.bf16.mxu0 0
      %1046 = vmatpush2.bf16.msra.mxu0 0
      %1047 = vmatprep.subr.bf16.mxu0 %v532
      %1048 = vmatpush2.bf16.msra.mxu0 %v531
      %1049 = vmatprep.subr.bf16.mxu0 %v528
      %1050 = vmatpush2.bf16.msra.mxu0 %v527
      %1051 = vmatprep.subr.bf16.mxu0 %v524
      %1052 = vmatpush2.bf16.msra.mxu0 %v523
      %1053 = vmatprep.subr.bf16.mxu0 %v520
      %1054 = vmatpush2.bf16.msra.mxu0 %v519
      %1055 = vmatprep.mubr.bf16.mxu0 %v1021
      %1056 = vmatmul.mubr.bf16.gmra.mxu0 %v1017
      %v1057 = vpop.f32.mrf.mxu0
      %v1058 = vadd.f32 0.0, %v1057
      %v1059 = vpop.f32.mrf.mxu0
      %v1060 = vadd.f32 0.0, %v1059
      %v1061 = vpop.f32.mrf.mxu0
      %v1062 = vadd.f32 0.0, %v1061
      %v1063 = vpop.f32.mrf.mxu0
      %v1064 = vadd.f32 0.0, %v1063
      %1065 = vdwg.mxu0
      %1066 = vmatprep.subr.bf16.mxu0 %v518
      %1067 = vmatpush1.bf16.msra.mxu0 %v517
      %1068 = vmatprep.subr.bf16.mxu0 %v514
      %1069 = vmatpush1.bf16.msra.mxu0 %v513
      %1070 = vmatprep.subr.bf16.mxu0 %v510
      %1071 = vmatpush1.bf16.msra.mxu0 %v509
      %1072 = vmatprep.subr.bf16.mxu0 %v506
      %1073 = vmatpush1.bf16.msra.mxu0 %v505
      %1074 = vmatprep.subr.bf16.mxu0 %v502
      %1075 = vmatpush1.bf16.msra.mxu0 %v501
      %1076 = vmatprep.subr.bf16.mxu0 %v498
      %1077 = vmatpush1.bf16.msra.mxu0 %v497
      %1078 = vmatprep.subr.bf16.mxu0 %v494
      %1079 = vmatpush1.bf16.msra.mxu0 %v493
      %1080 = vmatprep.subr.bf16.mxu0 %v490
      %1081 = vmatpush1.bf16.msra.mxu0 %v489
      %1082 = vmatprep.subr.bf16.mxu0 0
      %1083 = vmatpush2.bf16.msra.mxu0 0
      %1084 = vmatprep.subr.bf16.mxu0 0
      %1085 = vmatpush2.bf16.msra.mxu0 0
      %1086 = vmatprep.subr.bf16.mxu0 0
      %1087 = vmatpush2.bf16.msra.mxu0 0
      %1088 = vmatprep.subr.bf16.mxu0 0
      %1089 = vmatpush2.bf16.msra.mxu0 0
      %1090 = vmatprep.subr.bf16.mxu0 %v534
      %1091 = vmatpush2.bf16.msra.mxu0 %v533
      %1092 = vmatprep.subr.bf16.mxu0 %v530
      %1093 = vmatpush2.bf16.msra.mxu0 %v529
      %1094 = vmatprep.subr.bf16.mxu0 %v526
      %1095 = vmatpush2.bf16.msra.mxu0 %v525
      %1096 = vmatprep.subr.bf16.mxu0 %v522
      %1097 = vmatpush2.bf16.msra.mxu0 %v521
      %1098 = vmatprep.mubr.bf16.mxu0 %v1021
      %1099 = vmatmul.mubr.bf16.gmra.mxu0 %v1017
      %v1100 = vpop.f32.mrf.mxu0
      %v1101 = vadd.f32 0.0, %v1100
      %v1102 = vpop.f32.mrf.mxu0
      %v1103 = vadd.f32 0.0, %v1102
      %v1104 = vpop.f32.mrf.mxu0
      %v1105 = vadd.f32 0.0, %v1104
      %v1106 = vpop.f32.mrf.mxu0
      %v1107 = vadd.f32 0.0, %v1106
      %1108 = vdwg.mxu0
      %1109 = vmatprep.subr.bf16.mxu0 %v855
      %1110 = vmatpush1.bf16.msra.mxu0 %v854
      %1111 = vmatprep.subr.bf16.mxu0 %v851
      %1112 = vmatpush1.bf16.msra.mxu0 %v850
      %1113 = vmatprep.subr.bf16.mxu0 %v847
      %1114 = vmatpush1.bf16.msra.mxu0 %v846
      %1115 = vmatprep.subr.bf16.mxu0 %v843
      %1116 = vmatpush1.bf16.msra.mxu0 %v842
      %1117 = vmatprep.subr.bf16.mxu0 %v839
      %1118 = vmatpush1.bf16.msra.mxu0 %v838
      %1119 = vmatprep.subr.bf16.mxu0 %v835
      %1120 = vmatpush1.bf16.msra.mxu0 %v834
      %1121 = vmatprep.subr.bf16.mxu0 %v831
      %1122 = vmatpush1.bf16.msra.mxu0 %v830
      %1123 = vmatprep.subr.bf16.mxu0 %v827
      %1124 = vmatpush1.bf16.msra.mxu0 %v826
      %1125 = vmatprep.subr.bf16.mxu0 0
      %1126 = vmatpush2.bf16.msra.mxu0 0
      %1127 = vmatprep.subr.bf16.mxu0 0
      %1128 = vmatpush2.bf16.msra.mxu0 0
      %1129 = vmatprep.subr.bf16.mxu0 0
      %1130 = vmatpush2.bf16.msra.mxu0 0
      %1131 = vmatprep.subr.bf16.mxu0 0
      %1132 = vmatpush2.bf16.msra.mxu0 0
      %1133 = vmatprep.subr.bf16.mxu0 %v871
      %1134 = vmatpush2.bf16.msra.mxu0 %v870
      %1135 = vmatprep.subr.bf16.mxu0 %v867
      %1136 = vmatpush2.bf16.msra.mxu0 %v866
      %1137 = vmatprep.subr.bf16.mxu0 %v863
      %1138 = vmatpush2.bf16.msra.mxu0 %v862
      %1139 = vmatprep.subr.bf16.mxu0 %v859
      %1140 = vmatpush2.bf16.msra.mxu0 %v858
      %1141 = vmatprep.mubr.bf16.mxu0 %v585
      %1142 = vmatmul.mubr.bf16.gmra.mxu0 %v340
      %v1143 = vpop.f32.mrf.mxu0
      %v1144 = vadd.f32 %v1058, %v1143
      %v1145 = vpop.f32.mrf.mxu0
      %v1146 = vadd.f32 %v1060, %v1145
      %v1147 = vpop.f32.mrf.mxu0
      %v1148 = vadd.f32 %v1062, %v1147
      %v1149 = vpop.f32.mrf.mxu0
      %v1150 = vadd.f32 %v1064, %v1149
      %1151 = vdwg.mxu0
      %1152 = vmatprep.subr.bf16.mxu0 %v857
      %1153 = vmatpush1.bf16.msra.mxu0 %v856
      %1154 = vmatprep.subr.bf16.mxu0 %v853
      %1155 = vmatpush1.bf16.msra.mxu0 %v852
      %1156 = vmatprep.subr.bf16.mxu0 %v849
      %1157 = vmatpush1.bf16.msra.mxu0 %v848
      %1158 = vmatprep.subr.bf16.mxu0 %v845
      %1159 = vmatpush1.bf16.msra.mxu0 %v844
      %1160 = vmatprep.subr.bf16.mxu0 %v841
      %1161 = vmatpush1.bf16.msra.mxu0 %v840
      %1162 = vmatprep.subr.bf16.mxu0 %v837
      %1163 = vmatpush1.bf16.msra.mxu0 %v836
      %1164 = vmatprep.subr.bf16.mxu0 %v833
      %1165 = vmatpush1.bf16.msra.mxu0 %v832
      %1166 = vmatprep.subr.bf16.mxu0 %v829
      %1167 = vmatpush1.bf16.msra.mxu0 %v828
      %1168 = vmatprep.subr.bf16.mxu0 0
      %1169 = vmatpush2.bf16.msra.mxu0 0
      %1170 = vmatprep.subr.bf16.mxu0 0
      %1171 = vmatpush2.bf16.msra.mxu0 0
      %1172 = vmatprep.subr.bf16.mxu0 0
      %1173 = vmatpush2.bf16.msra.mxu0 0
      %1174 = vmatprep.subr.bf16.mxu0 0
      %1175 = vmatpush2.bf16.msra.mxu0 0
      %1176 = vmatprep.subr.bf16.mxu0 %v873
      %1177 = vmatpush2.bf16.msra.mxu0 %v872
      %1178 = vmatprep.subr.bf16.mxu0 %v869
      %1179 = vmatpush2.bf16.msra.mxu0 %v868
      %1180 = vmatprep.subr.bf16.mxu0 %v865
      %1181 = vmatpush2.bf16.msra.mxu0 %v864
      %1182 = vmatprep.subr.bf16.mxu0 %v861
      %1183 = vmatpush2.bf16.msra.mxu0 %v860
      %1184 = vmatprep.mubr.bf16.mxu0 %v585
      %1185 = vmatmul.mubr.bf16.gmra.mxu0 %v340
      %v1186 = vpop.f32.mrf.mxu0
      %v1187 = vadd.f32 %v1101, %v1186
      %v1188 = vpop.f32.mrf.mxu0
      %v1189 = vadd.f32 %v1103, %v1188
      %v1190 = vpop.f32.mrf.mxu0
      %v1191 = vadd.f32 %v1105, %v1190
      %v1192 = vpop.f32.mrf.mxu0
      %v1193 = vadd.f32 %v1107, %v1192
      %1194 = vdwg.mxu0
      %v1197 = vunpack.c.l.b16 %v283
      %v1198 = vunpack.c.h.b16 %v283
      %v1199 = vunpack.c.l.b16 %v284
      %v1200 = vunpack.c.h.b16 %v284
      %v1201 = vpack.c.b16 %v1199, %v1197
      %v1202 = vpack.c.b16 %v1200, %v1198
      %v1205 = vsel %vm583, %v1202, 0
      %1207 = vmatprep.subr.bf16.mxu0 %v516
      %1208 = vmatpush1.bf16.msra.mxu0 %v515
      %1209 = vmatprep.subr.bf16.mxu0 %v512
      %1210 = vmatpush1.bf16.msra.mxu0 %v511
      %1211 = vmatprep.subr.bf16.mxu0 %v508
      %1212 = vmatpush1.bf16.msra.mxu0 %v507
      %1213 = vmatprep.subr.bf16.mxu0 %v504
      %1214 = vmatpush1.bf16.msra.mxu0 %v503
      %1215 = vmatprep.subr.bf16.mxu0 %v500
      %1216 = vmatpush1.bf16.msra.mxu0 %v499
      %1217 = vmatprep.subr.bf16.mxu0 %v496
      %1218 = vmatpush1.bf16.msra.mxu0 %v495
      %1219 = vmatprep.subr.bf16.mxu0 %v492
      %1220 = vmatpush1.bf16.msra.mxu0 %v491
      %1221 = vmatprep.subr.bf16.mxu0 %v488
      %1222 = vmatpush1.bf16.msra.mxu0 %v487
      %1223 = vmatprep.subr.bf16.mxu0 0
      %1224 = vmatpush2.bf16.msra.mxu0 0
      %1225 = vmatprep.subr.bf16.mxu0 0
      %1226 = vmatpush2.bf16.msra.mxu0 0
      %1227 = vmatprep.subr.bf16.mxu0 0
      %1228 = vmatpush2.bf16.msra.mxu0 0
      %1229 = vmatprep.subr.bf16.mxu0 0
      %1230 = vmatpush2.bf16.msra.mxu0 0
      %1231 = vmatprep.subr.bf16.mxu0 %v532
      %1232 = vmatpush2.bf16.msra.mxu0 %v531
      %1233 = vmatprep.subr.bf16.mxu0 %v528
      %1234 = vmatpush2.bf16.msra.mxu0 %v527
      %1235 = vmatprep.subr.bf16.mxu0 %v524
      %1236 = vmatpush2.bf16.msra.mxu0 %v523
      %1237 = vmatprep.subr.bf16.mxu0 %v520
      %1238 = vmatpush2.bf16.msra.mxu0 %v519
      %1239 = vmatprep.mubr.bf16.mxu0 %v1205
      %1240 = vmatmul.mubr.bf16.gmra.mxu0 %v1201
      %v1241 = vpop.f32.mrf.mxu0
      %v1242 = vadd.f32 0.0, %v1241
      %v1243 = vpop.f32.mrf.mxu0
      %v1244 = vadd.f32 0.0, %v1243
      %v1245 = vpop.f32.mrf.mxu0
      %v1246 = vadd.f32 0.0, %v1245
      %v1247 = vpop.f32.mrf.mxu0
      %v1248 = vadd.f32 0.0, %v1247
      %1249 = vdwg.mxu0
      %1250 = vmatprep.subr.bf16.mxu0 %v518
      %1251 = vmatpush1.bf16.msra.mxu0 %v517
      %1252 = vmatprep.subr.bf16.mxu0 %v514
      %1253 = vmatpush1.bf16.msra.mxu0 %v513
      %1254 = vmatprep.subr.bf16.mxu0 %v510
      %1255 = vmatpush1.bf16.msra.mxu0 %v509
      %1256 = vmatprep.subr.bf16.mxu0 %v506
      %1257 = vmatpush1.bf16.msra.mxu0 %v505
      %1258 = vmatprep.subr.bf16.mxu0 %v502
      %1259 = vmatpush1.bf16.msra.mxu0 %v501
      %1260 = vmatprep.subr.bf16.mxu0 %v498
      %1261 = vmatpush1.bf16.msra.mxu0 %v497
      %1262 = vmatprep.subr.bf16.mxu0 %v494
      %1263 = vmatpush1.bf16.msra.mxu0 %v493
      %1264 = vmatprep.subr.bf16.mxu0 %v490
      %1265 = vmatpush1.bf16.msra.mxu0 %v489
      %1266 = vmatprep.subr.bf16.mxu0 0
      %1267 = vmatpush2.bf16.msra.mxu0 0
      %1268 = vmatprep.subr.bf16.mxu0 0
      %1269 = vmatpush2.bf16.msra.mxu0 0
      %1270 = vmatprep.subr.bf16.mxu0 0
      %1271 = vmatpush2.bf16.msra.mxu0 0
      %1272 = vmatprep.subr.bf16.mxu0 0
      %1273 = vmatpush2.bf16.msra.mxu0 0
      %1274 = vmatprep.subr.bf16.mxu0 %v534
      %1275 = vmatpush2.bf16.msra.mxu0 %v533
      %1276 = vmatprep.subr.bf16.mxu0 %v530
      %1277 = vmatpush2.bf16.msra.mxu0 %v529
      %1278 = vmatprep.subr.bf16.mxu0 %v526
      %1279 = vmatpush2.bf16.msra.mxu0 %v525
      %1280 = vmatprep.subr.bf16.mxu0 %v522
      %1281 = vmatpush2.bf16.msra.mxu0 %v521
      %1282 = vmatprep.mubr.bf16.mxu0 %v1205
      %1283 = vmatmul.mubr.bf16.gmra.mxu0 %v1201
      %v1284 = vpop.f32.mrf.mxu0
      %v1285 = vadd.f32 0.0, %v1284
      %v1286 = vpop.f32.mrf.mxu0
      %v1287 = vadd.f32 0.0, %v1286
      %v1288 = vpop.f32.mrf.mxu0
      %v1289 = vadd.f32 0.0, %v1288
      %v1290 = vpop.f32.mrf.mxu0
      %v1291 = vadd.f32 0.0, %v1290
      %1292 = vdwg.mxu0
      %1293 = vmatprep.subr.bf16.mxu0 %v855
      %1294 = vmatpush1.bf16.msra.mxu0 %v854
      %1295 = vmatprep.subr.bf16.mxu0 %v851
      %1296 = vmatpush1.bf16.msra.mxu0 %v850
      %1297 = vmatprep.subr.bf16.mxu0 %v847
      %1298 = vmatpush1.bf16.msra.mxu0 %v846
      %1299 = vmatprep.subr.bf16.mxu0 %v843
      %1300 = vmatpush1.bf16.msra.mxu0 %v842
      %1301 = vmatprep.subr.bf16.mxu0 %v839
      %1302 = vmatpush1.bf16.msra.mxu0 %v838
      %1303 = vmatprep.subr.bf16.mxu0 %v835
      %1304 = vmatpush1.bf16.msra.mxu0 %v834
      %1305 = vmatprep.subr.bf16.mxu0 %v831
      %1306 = vmatpush1.bf16.msra.mxu0 %v830
      %1307 = vmatprep.subr.bf16.mxu0 %v827
      %1308 = vmatpush1.bf16.msra.mxu0 %v826
      %1309 = vmatprep.subr.bf16.mxu0 0
      %1310 = vmatpush2.bf16.msra.mxu0 0
      %1311 = vmatprep.subr.bf16.mxu0 0
      %1312 = vmatpush2.bf16.msra.mxu0 0
      %1313 = vmatprep.subr.bf16.mxu0 0
      %1314 = vmatpush2.bf16.msra.mxu0 0
      %1315 = vmatprep.subr.bf16.mxu0 0
      %1316 = vmatpush2.bf16.msra.mxu0 0
      %1317 = vmatprep.subr.bf16.mxu0 %v871
      %1318 = vmatpush2.bf16.msra.mxu0 %v870
      %1319 = vmatprep.subr.bf16.mxu0 %v867
      %1320 = vmatpush2.bf16.msra.mxu0 %v866
      %1321 = vmatprep.subr.bf16.mxu0 %v863
      %1322 = vmatpush2.bf16.msra.mxu0 %v862
      %1323 = vmatprep.subr.bf16.mxu0 %v859
      %1324 = vmatpush2.bf16.msra.mxu0 %v858
      %1325 = vmatprep.mubr.bf16.mxu0 %v1021
      %1326 = vmatmul.mubr.bf16.gmra.mxu0 %v1017
      %v1327 = vpop.f32.mrf.mxu0
      %v1328 = vadd.f32 %v1242, %v1327
      %v1329 = vpop.f32.mrf.mxu0
      %v1330 = vadd.f32 %v1244, %v1329
      %v1331 = vpop.f32.mrf.mxu0
      %v1332 = vadd.f32 %v1246, %v1331
      %v1333 = vpop.f32.mrf.mxu0
      %v1334 = vadd.f32 %v1248, %v1333
      %1335 = vdwg.mxu0
      %1336 = vmatprep.subr.bf16.mxu0 %v857
      %1337 = vmatpush1.bf16.msra.mxu0 %v856
      %1338 = vmatprep.subr.bf16.mxu0 %v853
      %1339 = vmatpush1.bf16.msra.mxu0 %v852
      %1340 = vmatprep.subr.bf16.mxu0 %v849
      %1341 = vmatpush1.bf16.msra.mxu0 %v848
      %1342 = vmatprep.subr.bf16.mxu0 %v845
      %1343 = vmatpush1.bf16.msra.mxu0 %v844
      %1344 = vmatprep.subr.bf16.mxu0 %v841
      %1345 = vmatpush1.bf16.msra.mxu0 %v840
      %1346 = vmatprep.subr.bf16.mxu0 %v837
      %1347 = vmatpush1.bf16.msra.mxu0 %v836
      %1348 = vmatprep.subr.bf16.mxu0 %v833
      %1349 = vmatpush1.bf16.msra.mxu0 %v832
      %1350 = vmatprep.subr.bf16.mxu0 %v829
      %1351 = vmatpush1.bf16.msra.mxu0 %v828
      %1352 = vmatprep.subr.bf16.mxu0 0
      %1353 = vmatpush2.bf16.msra.mxu0 0
      %1354 = vmatprep.subr.bf16.mxu0 0
      %1355 = vmatpush2.bf16.msra.mxu0 0
      %1356 = vmatprep.subr.bf16.mxu0 0
      %1357 = vmatpush2.bf16.msra.mxu0 0
      %1358 = vmatprep.subr.bf16.mxu0 0
      %1359 = vmatpush2.bf16.msra.mxu0 0
      %1360 = vmatprep.subr.bf16.mxu0 %v873
      %1361 = vmatpush2.bf16.msra.mxu0 %v872
      %1362 = vmatprep.subr.bf16.mxu0 %v869
      %1363 = vmatpush2.bf16.msra.mxu0 %v868
      %1364 = vmatprep.subr.bf16.mxu0 %v865
      %1365 = vmatpush2.bf16.msra.mxu0 %v864
      %1366 = vmatprep.subr.bf16.mxu0 %v861
      %1367 = vmatpush2.bf16.msra.mxu0 %v860
      %1368 = vmatprep.mubr.bf16.mxu0 %v1021
      %1369 = vmatmul.mubr.bf16.gmra.mxu0 %v1017
      %v1370 = vpop.f32.mrf.mxu0
      %v1371 = vadd.f32 %v1285, %v1370
      %v1372 = vpop.f32.mrf.mxu0
      %v1373 = vadd.f32 %v1287, %v1372
      %v1374 = vpop.f32.mrf.mxu0
      %v1375 = vadd.f32 %v1289, %v1374
      %v1376 = vpop.f32.mrf.mxu0
      %v1377 = vadd.f32 %v1291, %v1376
      %1378 = vdwg.mxu0
      %v1380 = vshrl.u32 %v679, 16
      %v1382 = vshll.u32 %v679, 16
      %v1384 = vrot.slane %v1382, 1
      %v1385 = vor.u32 %v1380, %v1384
      %v1386 = vshrl.u32 %v680, 16
      %v1388 = vshll.u32 %v680, 16
      %v1390 = vrot.slane %v1388, 1
      %v1391 = vor.u32 %v1386, %v1390
      %v1394 = vsel %vm583, %v1391, 0
      %1396 = vmatprep.subr.bf16.mxu0 %v516
      %1397 = vmatpush1.bf16.msra.mxu0 %v515
      %1398 = vmatprep.subr.bf16.mxu0 %v512
      %1399 = vmatpush1.bf16.msra.mxu0 %v511
      %1400 = vmatprep.subr.bf16.mxu0 %v508
      %1401 = vmatpush1.bf16.msra.mxu0 %v507
      %1402 = vmatprep.subr.bf16.mxu0 %v504
      %1403 = vmatpush1.bf16.msra.mxu0 %v503
      %1404 = vmatprep.subr.bf16.mxu0 %v500
      %1405 = vmatpush1.bf16.msra.mxu0 %v499
      %1406 = vmatprep.subr.bf16.mxu0 %v496
      %1407 = vmatpush1.bf16.msra.mxu0 %v495
      %1408 = vmatprep.subr.bf16.mxu0 %v492
      %1409 = vmatpush1.bf16.msra.mxu0 %v491
      %1410 = vmatprep.subr.bf16.mxu0 %v488
      %1411 = vmatpush1.bf16.msra.mxu0 %v487
      %1412 = vmatprep.subr.bf16.mxu0 0
      %1413 = vmatpush2.bf16.msra.mxu0 0
      %1414 = vmatprep.subr.bf16.mxu0 0
      %1415 = vmatpush2.bf16.msra.mxu0 0
      %1416 = vmatprep.subr.bf16.mxu0 0
      %1417 = vmatpush2.bf16.msra.mxu0 0
      %1418 = vmatprep.subr.bf16.mxu0 0
      %1419 = vmatpush2.bf16.msra.mxu0 0
      %1420 = vmatprep.subr.bf16.mxu0 %v532
      %1421 = vmatpush2.bf16.msra.mxu0 %v531
      %1422 = vmatprep.subr.bf16.mxu0 %v528
      %1423 = vmatpush2.bf16.msra.mxu0 %v527
      %1424 = vmatprep.subr.bf16.mxu0 %v524
      %1425 = vmatpush2.bf16.msra.mxu0 %v523
      %1426 = vmatprep.subr.bf16.mxu0 %v520
      %1427 = vmatpush2.bf16.msra.mxu0 %v519
      %1428 = vmatprep.mubr.bf16.mxu0 %v1394
      %1429 = vmatmul.mubr.bf16.gmra.mxu0 %v1385
      %v1430 = vpop.f32.mrf.mxu0
      %v1431 = vadd.f32 0.0, %v1430
      %v1432 = vpop.f32.mrf.mxu0
      %v1433 = vadd.f32 0.0, %v1432
      %v1434 = vpop.f32.mrf.mxu0
      %v1435 = vadd.f32 0.0, %v1434
      %v1436 = vpop.f32.mrf.mxu0
      %v1437 = vadd.f32 0.0, %v1436
      %1438 = vdwg.mxu0
      %1439 = vmatprep.subr.bf16.mxu0 %v518
      %1440 = vmatpush1.bf16.msra.mxu0 %v517
      %1441 = vmatprep.subr.bf16.mxu0 %v514
      %1442 = vmatpush1.bf16.msra.mxu0 %v513
      %1443 = vmatprep.subr.bf16.mxu0 %v510
      %1444 = vmatpush1.bf16.msra.mxu0 %v509
      %1445 = vmatprep.subr.bf16.mxu0 %v506
      %1446 = vmatpush1.bf16.msra.mxu0 %v505
      %1447 = vmatprep.subr.bf16.mxu0 %v502
      %1448 = vmatpush1.bf16.msra.mxu0 %v501
      %1449 = vmatprep.subr.bf16.mxu0 %v498
      %1450 = vmatpush1.bf16.msra.mxu0 %v497
      %1451 = vmatprep.subr.bf16.mxu0 %v494
      %1452 = vmatpush1.bf16.msra.mxu0 %v493
      %1453 = vmatprep.subr.bf16.mxu0 %v490
      %1454 = vmatpush1.bf16.msra.mxu0 %v489
      %1455 = vmatprep.subr.bf16.mxu0 0
      %1456 = vmatpush2.bf16.msra.mxu0 0
      %1457 = vmatprep.subr.bf16.mxu0 0
      %1458 = vmatpush2.bf16.msra.mxu0 0
      %1459 = vmatprep.subr.bf16.mxu0 0
      %1460 = vmatpush2.bf16.msra.mxu0 0
      %1461 = vmatprep.subr.bf16.mxu0 0
      %1462 = vmatpush2.bf16.msra.mxu0 0
      %1463 = vmatprep.subr.bf16.mxu0 %v534
      %1464 = vmatpush2.bf16.msra.mxu0 %v533
      %1465 = vmatprep.subr.bf16.mxu0 %v530
      %1466 = vmatpush2.bf16.msra.mxu0 %v529
      %1467 = vmatprep.subr.bf16.mxu0 %v526
      %1468 = vmatpush2.bf16.msra.mxu0 %v525
      %1469 = vmatprep.subr.bf16.mxu0 %v522
      %1470 = vmatpush2.bf16.msra.mxu0 %v521
      %1471 = vmatprep.mubr.bf16.mxu0 %v1394
      %1472 = vmatmul.mubr.bf16.gmra.mxu0 %v1385
      %v1473 = vpop.f32.mrf.mxu0
      %v1474 = vadd.f32 0.0, %v1473
      %v1475 = vpop.f32.mrf.mxu0
      %v1476 = vadd.f32 0.0, %v1475
      %v1477 = vpop.f32.mrf.mxu0
      %v1478 = vadd.f32 0.0, %v1477
      %v1479 = vpop.f32.mrf.mxu0
      %v1480 = vadd.f32 0.0, %v1479
      %1481 = vdwg.mxu0
      %1482 = vmatprep.subr.bf16.mxu0 %v855
      %1483 = vmatpush1.bf16.msra.mxu0 %v854
      %1484 = vmatprep.subr.bf16.mxu0 %v851
      %1485 = vmatpush1.bf16.msra.mxu0 %v850
      %1486 = vmatprep.subr.bf16.mxu0 %v847
      %1487 = vmatpush1.bf16.msra.mxu0 %v846
      %1488 = vmatprep.subr.bf16.mxu0 %v843
      %1489 = vmatpush1.bf16.msra.mxu0 %v842
      %1490 = vmatprep.subr.bf16.mxu0 %v839
      %1491 = vmatpush1.bf16.msra.mxu0 %v838
      %1492 = vmatprep.subr.bf16.mxu0 %v835
      %1493 = vmatpush1.bf16.msra.mxu0 %v834
      %1494 = vmatprep.subr.bf16.mxu0 %v831
      %1495 = vmatpush1.bf16.msra.mxu0 %v830
      %1496 = vmatprep.subr.bf16.mxu0 %v827
      %1497 = vmatpush1.bf16.msra.mxu0 %v826
      %1498 = vmatprep.subr.bf16.mxu0 0
      %1499 = vmatpush2.bf16.msra.mxu0 0
      %1500 = vmatprep.subr.bf16.mxu0 0
      %1501 = vmatpush2.bf16.msra.mxu0 0
      %1502 = vmatprep.subr.bf16.mxu0 0
      %1503 = vmatpush2.bf16.msra.mxu0 0
      %1504 = vmatprep.subr.bf16.mxu0 0
      %1505 = vmatpush2.bf16.msra.mxu0 0
      %1506 = vmatprep.subr.bf16.mxu0 %v871
      %1507 = vmatpush2.bf16.msra.mxu0 %v870
      %1508 = vmatprep.subr.bf16.mxu0 %v867
      %1509 = vmatpush2.bf16.msra.mxu0 %v866
      %1510 = vmatprep.subr.bf16.mxu0 %v863
      %1511 = vmatpush2.bf16.msra.mxu0 %v862
      %1512 = vmatprep.subr.bf16.mxu0 %v859
      %1513 = vmatpush2.bf16.msra.mxu0 %v858
      %1514 = vmatprep.mubr.bf16.mxu0 %v1205
      %1515 = vmatmul.mubr.bf16.gmra.mxu0 %v1201
      %v1516 = vpop.f32.mrf.mxu0
      %v1517 = vadd.f32 %v1431, %v1516
      %v1518 = vpop.f32.mrf.mxu0
      %v1519 = vadd.f32 %v1433, %v1518
      %v1520 = vpop.f32.mrf.mxu0
      %v1521 = vadd.f32 %v1435, %v1520
      %v1522 = vpop.f32.mrf.mxu0
      %v1523 = vadd.f32 %v1437, %v1522
      %1524 = vdwg.mxu0
      %1525 = vmatprep.subr.bf16.mxu0 %v857
      %1526 = vmatpush1.bf16.msra.mxu0 %v856
      %1527 = vmatprep.subr.bf16.mxu0 %v853
      %1528 = vmatpush1.bf16.msra.mxu0 %v852
      %1529 = vmatprep.subr.bf16.mxu0 %v849
      %1530 = vmatpush1.bf16.msra.mxu0 %v848
      %1531 = vmatprep.subr.bf16.mxu0 %v845
      %1532 = vmatpush1.bf16.msra.mxu0 %v844
      %1533 = vmatprep.subr.bf16.mxu0 %v841
      %1534 = vmatpush1.bf16.msra.mxu0 %v840
      %1535 = vmatprep.subr.bf16.mxu0 %v837
      %1536 = vmatpush1.bf16.msra.mxu0 %v836
      %1537 = vmatprep.subr.bf16.mxu0 %v833
      %1538 = vmatpush1.bf16.msra.mxu0 %v832
      %1539 = vmatprep.subr.bf16.mxu0 %v829
      %1540 = vmatpush1.bf16.msra.mxu0 %v828
      %1541 = vmatprep.subr.bf16.mxu0 0
      %1542 = vmatpush2.bf16.msra.mxu0 0
      %1543 = vmatprep.subr.bf16.mxu0 0
      %1544 = vmatpush2.bf16.msra.mxu0 0
      %1545 = vmatprep.subr.bf16.mxu0 0
      %1546 = vmatpush2.bf16.msra.mxu0 0
      %1547 = vmatprep.subr.bf16.mxu0 0
      %1548 = vmatpush2.bf16.msra.mxu0 0
      %1549 = vmatprep.subr.bf16.mxu0 %v873
      %1550 = vmatpush2.bf16.msra.mxu0 %v872
      %1551 = vmatprep.subr.bf16.mxu0 %v869
      %1552 = vmatpush2.bf16.msra.mxu0 %v868
      %1553 = vmatprep.subr.bf16.mxu0 %v865
      %1554 = vmatpush2.bf16.msra.mxu0 %v864
      %1555 = vmatprep.subr.bf16.mxu0 %v861
      %1556 = vmatpush2.bf16.msra.mxu0 %v860
      %1557 = vmatprep.mubr.bf16.mxu0 %v1205
      %1558 = vmatmul.mubr.bf16.gmra.mxu0 %v1201
      %v1559 = vpop.f32.mrf.mxu0
      %v1560 = vadd.f32 %v1474, %v1559
      %v1561 = vpop.f32.mrf.mxu0
      %v1562 = vadd.f32 %v1476, %v1561
      %v1563 = vpop.f32.mrf.mxu0
      %v1564 = vadd.f32 %v1478, %v1563
      %v1565 = vpop.f32.mrf.mxu0
      %v1566 = vadd.f32 %v1480, %v1565
      %1567 = vdwg.mxu0
      %s1568 = scalar_lea.vmem %s1, 768
      %v1569 = vld [vmem:[%s1568] sm:$0xff]
      %v1570 = vld [vmem:[%s1568 + $0x8] sm:$0xff]
      %v1571 = vld [vmem:[%s1568 + $0x10] sm:$0xff]
      %v1572 = vld [vmem:[%s1568 + $0x18] sm:$0xff]
      %v1573 = vld [vmem:[%s1568 + $0x20] sm:$0xff]
      %v1574 = vld [vmem:[%s1568 + $0x28] sm:$0xff]
      %v1575 = vld [vmem:[%s1568 + $0x30] sm:$0xff]
      %v1576 = vld [vmem:[%s1568 + $0x38] sm:$0xff]
      %v1577 = vld [vmem:[%s1568 + $0x40] sm:$0xff]
      %v1578 = vld [vmem:[%s1568 + $0x48] sm:$0xff]
      %v1579 = vld [vmem:[%s1568 + $0x50] sm:$0xff]
      %v1580 = vld [vmem:[%s1568 + $0x58] sm:$0xff]
      %v1581 = vld [vmem:[%s1568 + $0x60] sm:$0xff]
      %v1582 = vld [vmem:[%s1568 + $0x68] sm:$0xff]
      %v1583 = vld [vmem:[%s1568 + $0x70] sm:$0xff]
      %v1584 = vld [vmem:[%s1568 + $0x78] sm:$0xff]
      %v1585 = vld [vmem:[%s1568 + $0x80] sm:$0xff]
      %v1586 = vld [vmem:[%s1568 + $0x88] sm:$0xff]
      %v1587 = vld [vmem:[%s1568 + $0x90] sm:$0xff]
      %v1588 = vld [vmem:[%s1568 + $0x98] sm:$0xff]
      %v1589 = vld [vmem:[%s1568 + $0xa0] sm:$0xff]
      %v1590 = vld [vmem:[%s1568 + $0xa8] sm:$0xff]
      %v1591 = vld [vmem:[%s1568 + $0xb0] sm:$0xff]
      %v1592 = vld [vmem:[%s1568 + $0xb8] sm:$0xff]
      %v1593 = vld [vmem:[%s1568 + $0xc0] sm:$0xff]
      %v1594 = vld [vmem:[%s1568 + $0xc8] sm:$0xff]
      %v1595 = vld [vmem:[%s1568 + $0xd0] sm:$0xff]
      %v1596 = vld [vmem:[%s1568 + $0xd8] sm:$0xff]
      %v1597 = vld [vmem:[%s1568 + $0xe0] sm:$0xff]
      %v1598 = vld [vmem:[%s1568 + $0xe8] sm:$0xff]
      %v1599 = vld [vmem:[%s1568 + $0xf0] sm:$0xff]
      %v1600 = vld [vmem:[%s1568 + $0xf8] sm:$0xff]
      %v1601 = vld [vmem:[%s1568 + $0x100] sm:$0xff]
      %v1602 = vld [vmem:[%s1568 + $0x108] sm:$0xff]
      %v1603 = vld [vmem:[%s1568 + $0x110] sm:$0xff]
      %v1604 = vld [vmem:[%s1568 + $0x118] sm:$0xff]
      %v1605 = vld [vmem:[%s1568 + $0x120] sm:$0xff]
      %v1606 = vld [vmem:[%s1568 + $0x128] sm:$0xff]
      %v1607 = vld [vmem:[%s1568 + $0x130] sm:$0xff]
      %v1608 = vld [vmem:[%s1568 + $0x138] sm:$0xff]
      %v1609 = vld [vmem:[%s1568 + $0x140] sm:$0xff]
      %v1610 = vld [vmem:[%s1568 + $0x148] sm:$0xff]
      %v1611 = vld [vmem:[%s1568 + $0x150] sm:$0xff]
      %v1612 = vld [vmem:[%s1568 + $0x158] sm:$0xff]
      %v1613 = vld [vmem:[%s1568 + $0x160] sm:$0xff]
      %v1614 = vld [vmem:[%s1568 + $0x168] sm:$0xff]
      %v1615 = vld [vmem:[%s1568 + $0x170] sm:$0xff]
      %v1616 = vld [vmem:[%s1568 + $0x178] sm:$0xff]
      %v1665 = vunpack.c.l.b16 %v1569
      %v1666 = vunpack.c.h.b16 %v1569
      %v1667 = vunpack.c.l.b16 %v1570
      %v1668 = vunpack.c.h.b16 %v1570
      %v1669 = vunpack.c.l.b16 %v1571
      %v1670 = vunpack.c.h.b16 %v1571
      %v1671 = vunpack.c.l.b16 %v1572
      %v1672 = vunpack.c.h.b16 %v1572
      %v1673 = vunpack.c.l.b16 %v1573
      %v1674 = vunpack.c.h.b16 %v1573
      %v1675 = vunpack.c.l.b16 %v1574
      %v1676 = vunpack.c.h.b16 %v1574
      %v1677 = vunpack.c.l.b16 %v1575
      %v1678 = vunpack.c.h.b16 %v1575
      %v1679 = vunpack.c.l.b16 %v1576
      %v1680 = vunpack.c.h.b16 %v1576
      %v1681 = vunpack.c.l.b16 %v1577
      %v1682 = vunpack.c.h.b16 %v1577
      %v1683 = vunpack.c.l.b16 %v1578
      %v1684 = vunpack.c.h.b16 %v1578
      %v1685 = vunpack.c.l.b16 %v1579
      %v1686 = vunpack.c.h.b16 %v1579
      %v1687 = vunpack.c.l.b16 %v1580
      %v1688 = vunpack.c.h.b16 %v1580
      %v1689 = vunpack.c.l.b16 %v1581
      %v1690 = vunpack.c.h.b16 %v1581
      %v1691 = vunpack.c.l.b16 %v1582
      %v1692 = vunpack.c.h.b16 %v1582
      %v1693 = vunpack.c.l.b16 %v1583
      %v1694 = vunpack.c.h.b16 %v1583
      %v1695 = vunpack.c.l.b16 %v1584
      %v1696 = vunpack.c.h.b16 %v1584
      %v1697 = vunpack.c.l.b16 %v1585
      %v1698 = vunpack.c.h.b16 %v1585
      %v1699 = vunpack.c.l.b16 %v1586
      %v1700 = vunpack.c.h.b16 %v1586
      %v1701 = vunpack.c.l.b16 %v1587
      %v1702 = vunpack.c.h.b16 %v1587
      %v1703 = vunpack.c.l.b16 %v1588
      %v1704 = vunpack.c.h.b16 %v1588
      %v1705 = vunpack.c.l.b16 %v1589
      %v1706 = vunpack.c.h.b16 %v1589
      %v1707 = vunpack.c.l.b16 %v1590
      %v1708 = vunpack.c.h.b16 %v1590
      %v1709 = vunpack.c.l.b16 %v1591
      %v1710 = vunpack.c.h.b16 %v1591
      %v1711 = vunpack.c.l.b16 %v1592
      %v1712 = vunpack.c.h.b16 %v1592
      %v1713 = vunpack.c.l.b16 %v1593
      %v1714 = vunpack.c.h.b16 %v1593
      %v1715 = vunpack.c.l.b16 %v1594
      %v1716 = vunpack.c.h.b16 %v1594
      %v1717 = vunpack.c.l.b16 %v1595
      %v1718 = vunpack.c.h.b16 %v1595
      %v1719 = vunpack.c.l.b16 %v1596
      %v1720 = vunpack.c.h.b16 %v1596
      %v1721 = vunpack.c.l.b16 %v1597
      %v1722 = vunpack.c.h.b16 %v1597
      %v1723 = vunpack.c.l.b16 %v1598
      %v1724 = vunpack.c.h.b16 %v1598
      %v1725 = vunpack.c.l.b16 %v1599
      %v1726 = vunpack.c.h.b16 %v1599
      %v1727 = vunpack.c.l.b16 %v1600
      %v1728 = vunpack.c.h.b16 %v1600
      %v1729 = vunpack.c.l.b16 %v1601
      %v1730 = vunpack.c.h.b16 %v1601
      %v1731 = vunpack.c.l.b16 %v1602
      %v1732 = vunpack.c.h.b16 %v1602
      %v1733 = vunpack.c.l.b16 %v1603
      %v1734 = vunpack.c.h.b16 %v1603
      %v1735 = vunpack.c.l.b16 %v1604
      %v1736 = vunpack.c.h.b16 %v1604
      %v1737 = vunpack.c.l.b16 %v1605
      %v1738 = vunpack.c.h.b16 %v1605
      %v1739 = vunpack.c.l.b16 %v1606
      %v1740 = vunpack.c.h.b16 %v1606
      %v1741 = vunpack.c.l.b16 %v1607
      %v1742 = vunpack.c.h.b16 %v1607
      %v1743 = vunpack.c.l.b16 %v1608
      %v1744 = vunpack.c.h.b16 %v1608
      %v1745 = vunpack.c.l.b16 %v1609
      %v1746 = vunpack.c.h.b16 %v1609
      %v1747 = vunpack.c.l.b16 %v1610
      %v1748 = vunpack.c.h.b16 %v1610
      %v1749 = vunpack.c.l.b16 %v1611
      %v1750 = vunpack.c.h.b16 %v1611
      %v1751 = vunpack.c.l.b16 %v1612
      %v1752 = vunpack.c.h.b16 %v1612
      %v1753 = vunpack.c.l.b16 %v1613
      %v1754 = vunpack.c.h.b16 %v1613
      %v1755 = vunpack.c.l.b16 %v1614
      %v1756 = vunpack.c.h.b16 %v1614
      %v1757 = vunpack.c.l.b16 %v1615
      %v1758 = vunpack.c.h.b16 %v1615
      %v1759 = vunpack.c.l.b16 %v1616
      %v1760 = vunpack.c.h.b16 %v1616
      %v1761 = vpack.c.b16 %v1669, %v1665
      %v1762 = vpack.c.b16 %v1670, %v1666
      %v1763 = vpack.c.b16 %v1671, %v1667
      %v1764 = vpack.c.b16 %v1672, %v1668
      %v1765 = vpack.c.b16 %v1677, %v1673
      %v1766 = vpack.c.b16 %v1678, %v1674
      %v1767 = vpack.c.b16 %v1679, %v1675
      %v1768 = vpack.c.b16 %v1680, %v1676
      %v1769 = vpack.c.b16 %v1685, %v1681
      %v1770 = vpack.c.b16 %v1686, %v1682
      %v1771 = vpack.c.b16 %v1687, %v1683
      %v1772 = vpack.c.b16 %v1688, %v1684
      %v1773 = vpack.c.b16 %v1693, %v1689
      %v1774 = vpack.c.b16 %v1694, %v1690
      %v1775 = vpack.c.b16 %v1695, %v1691
      %v1776 = vpack.c.b16 %v1696, %v1692
      %v1777 = vpack.c.b16 %v1701, %v1697
      %v1778 = vpack.c.b16 %v1702, %v1698
      %v1779 = vpack.c.b16 %v1703, %v1699
      %v1780 = vpack.c.b16 %v1704, %v1700
      %v1781 = vpack.c.b16 %v1709, %v1705
      %v1782 = vpack.c.b16 %v1710, %v1706
      %v1783 = vpack.c.b16 %v1711, %v1707
      %v1784 = vpack.c.b16 %v1712, %v1708
      %v1785 = vpack.c.b16 %v1717, %v1713
      %v1786 = vpack.c.b16 %v1718, %v1714
      %v1787 = vpack.c.b16 %v1719, %v1715
      %v1788 = vpack.c.b16 %v1720, %v1716
      %v1789 = vpack.c.b16 %v1725, %v1721
      %v1790 = vpack.c.b16 %v1726, %v1722
      %v1791 = vpack.c.b16 %v1727, %v1723
      %v1792 = vpack.c.b16 %v1728, %v1724
      %v1793 = vpack.c.b16 %v1733, %v1729
      %v1794 = vpack.c.b16 %v1734, %v1730
      %v1795 = vpack.c.b16 %v1735, %v1731
      %v1796 = vpack.c.b16 %v1736, %v1732
      %v1797 = vpack.c.b16 %v1741, %v1737
      %v1798 = vpack.c.b16 %v1742, %v1738
      %v1799 = vpack.c.b16 %v1743, %v1739
      %v1800 = vpack.c.b16 %v1744, %v1740
      %v1801 = vpack.c.b16 %v1749, %v1745
      %v1802 = vpack.c.b16 %v1750, %v1746
      %v1803 = vpack.c.b16 %v1751, %v1747
      %v1804 = vpack.c.b16 %v1752, %v1748
      %v1805 = vpack.c.b16 %v1757, %v1753
      %v1806 = vpack.c.b16 %v1758, %v1754
      %v1807 = vpack.c.b16 %v1759, %v1755
      %v1808 = vpack.c.b16 %v1760, %v1756
      %1857 = vmatprep.subr.bf16.mxu0 %v1790
      %1858 = vmatpush1.bf16.msra.mxu0 %v1789
      %1859 = vmatprep.subr.bf16.mxu0 %v1786
      %1860 = vmatpush1.bf16.msra.mxu0 %v1785
      %1861 = vmatprep.subr.bf16.mxu0 %v1782
      %1862 = vmatpush1.bf16.msra.mxu0 %v1781
      %1863 = vmatprep.subr.bf16.mxu0 %v1778
      %1864 = vmatpush1.bf16.msra.mxu0 %v1777
      %1865 = vmatprep.subr.bf16.mxu0 %v1774
      %1866 = vmatpush1.bf16.msra.mxu0 %v1773
      %1867 = vmatprep.subr.bf16.mxu0 %v1770
      %1868 = vmatpush1.bf16.msra.mxu0 %v1769
      %1869 = vmatprep.subr.bf16.mxu0 %v1766
      %1870 = vmatpush1.bf16.msra.mxu0 %v1765
      %1871 = vmatprep.subr.bf16.mxu0 %v1762
      %1872 = vmatpush1.bf16.msra.mxu0 %v1761
      %1873 = vmatprep.subr.bf16.mxu0 0
      %1874 = vmatpush2.bf16.msra.mxu0 0
      %1875 = vmatprep.subr.bf16.mxu0 0
      %1876 = vmatpush2.bf16.msra.mxu0 0
      %1877 = vmatprep.subr.bf16.mxu0 0
      %1878 = vmatpush2.bf16.msra.mxu0 0
      %1879 = vmatprep.subr.bf16.mxu0 0
      %1880 = vmatpush2.bf16.msra.mxu0 0
      %1881 = vmatprep.subr.bf16.mxu0 %v1806
      %1882 = vmatpush2.bf16.msra.mxu0 %v1805
      %1883 = vmatprep.subr.bf16.mxu0 %v1802
      %1884 = vmatpush2.bf16.msra.mxu0 %v1801
      %1885 = vmatprep.subr.bf16.mxu0 %v1798
      %1886 = vmatpush2.bf16.msra.mxu0 %v1797
      %1887 = vmatprep.subr.bf16.mxu0 %v1794
      %1888 = vmatpush2.bf16.msra.mxu0 %v1793
      %1889 = vmatprep.mubr.bf16.mxu0 %v1021
      %1890 = vmatmul.mubr.bf16.gmra.mxu0 %v1017
      %v1891 = vpop.f32.mrf.mxu0
      %v1892 = vadd.f32 0.0, %v1891
      %v1893 = vpop.f32.mrf.mxu0
      %v1894 = vadd.f32 0.0, %v1893
      %v1895 = vpop.f32.mrf.mxu0
      %v1896 = vadd.f32 0.0, %v1895
      %v1897 = vpop.f32.mrf.mxu0
      %v1898 = vadd.f32 0.0, %v1897
      %1899 = vdwg.mxu0
      %1900 = vmatprep.subr.bf16.mxu0 %v1792
      %1901 = vmatpush1.bf16.msra.mxu0 %v1791
      %1902 = vmatprep.subr.bf16.mxu0 %v1788
      %1903 = vmatpush1.bf16.msra.mxu0 %v1787
      %1904 = vmatprep.subr.bf16.mxu0 %v1784
      %1905 = vmatpush1.bf16.msra.mxu0 %v1783
      %1906 = vmatprep.subr.bf16.mxu0 %v1780
      %1907 = vmatpush1.bf16.msra.mxu0 %v1779
      %1908 = vmatprep.subr.bf16.mxu0 %v1776
      %1909 = vmatpush1.bf16.msra.mxu0 %v1775
      %1910 = vmatprep.subr.bf16.mxu0 %v1772
      %1911 = vmatpush1.bf16.msra.mxu0 %v1771
      %1912 = vmatprep.subr.bf16.mxu0 %v1768
      %1913 = vmatpush1.bf16.msra.mxu0 %v1767
      %1914 = vmatprep.subr.bf16.mxu0 %v1764
      %1915 = vmatpush1.bf16.msra.mxu0 %v1763
      %1916 = vmatprep.subr.bf16.mxu0 0
      %1917 = vmatpush2.bf16.msra.mxu0 0
      %1918 = vmatprep.subr.bf16.mxu0 0
      %1919 = vmatpush2.bf16.msra.mxu0 0
      %1920 = vmatprep.subr.bf16.mxu0 0
      %1921 = vmatpush2.bf16.msra.mxu0 0
      %1922 = vmatprep.subr.bf16.mxu0 0
      %1923 = vmatpush2.bf16.msra.mxu0 0
      %1924 = vmatprep.subr.bf16.mxu0 %v1808
      %1925 = vmatpush2.bf16.msra.mxu0 %v1807
      %1926 = vmatprep.subr.bf16.mxu0 %v1804
      %1927 = vmatpush2.bf16.msra.mxu0 %v1803
      %1928 = vmatprep.subr.bf16.mxu0 %v1800
      %1929 = vmatpush2.bf16.msra.mxu0 %v1799
      %1930 = vmatprep.subr.bf16.mxu0 %v1796
      %1931 = vmatpush2.bf16.msra.mxu0 %v1795
      %1932 = vmatprep.mubr.bf16.mxu0 %v1021
      %1933 = vmatmul.mubr.bf16.gmra.mxu0 %v1017
      %v1934 = vpop.f32.mrf.mxu0
      %v1935 = vadd.f32 0.0, %v1934
      %v1936 = vpop.f32.mrf.mxu0
      %v1937 = vadd.f32 0.0, %v1936
      %v1938 = vpop.f32.mrf.mxu0
      %v1939 = vadd.f32 0.0, %v1938
      %v1940 = vpop.f32.mrf.mxu0
      %v1941 = vadd.f32 0.0, %v1940
      %1942 = vdwg.mxu0
      %v1943 = vadd.f32 %v960, %v1892
      %v1944 = vadd.f32 %v962, %v1894
      %v1945 = vadd.f32 %v1003, %v1935
      %v1946 = vadd.f32 %v1005, %v1937
      %v1947 = vadd.f32 %v964, %v1896
      %v1948 = vadd.f32 %v966, %v1898
      %v1949 = vadd.f32 %v1007, %v1939
      %v1950 = vadd.f32 %v1009, %v1941
      %1951 = vmatprep.subr.bf16.mxu0 %v1790
      %1952 = vmatpush1.bf16.msra.mxu0 %v1789
      %1953 = vmatprep.subr.bf16.mxu0 %v1786
      %1954 = vmatpush1.bf16.msra.mxu0 %v1785
      %1955 = vmatprep.subr.bf16.mxu0 %v1782
      %1956 = vmatpush1.bf16.msra.mxu0 %v1781
      %1957 = vmatprep.subr.bf16.mxu0 %v1778
      %1958 = vmatpush1.bf16.msra.mxu0 %v1777
      %1959 = vmatprep.subr.bf16.mxu0 %v1774
      %1960 = vmatpush1.bf16.msra.mxu0 %v1773
      %1961 = vmatprep.subr.bf16.mxu0 %v1770
      %1962 = vmatpush1.bf16.msra.mxu0 %v1769
      %1963 = vmatprep.subr.bf16.mxu0 %v1766
      %1964 = vmatpush1.bf16.msra.mxu0 %v1765
      %1965 = vmatprep.subr.bf16.mxu0 %v1762
      %1966 = vmatpush1.bf16.msra.mxu0 %v1761
      %1967 = vmatprep.subr.bf16.mxu0 0
      %1968 = vmatpush2.bf16.msra.mxu0 0
      %1969 = vmatprep.subr.bf16.mxu0 0
      %1970 = vmatpush2.bf16.msra.mxu0 0
      %1971 = vmatprep.subr.bf16.mxu0 0
      %1972 = vmatpush2.bf16.msra.mxu0 0
      %1973 = vmatprep.subr.bf16.mxu0 0
      %1974 = vmatpush2.bf16.msra.mxu0 0
      %1975 = vmatprep.subr.bf16.mxu0 %v1806
      %1976 = vmatpush2.bf16.msra.mxu0 %v1805
      %1977 = vmatprep.subr.bf16.mxu0 %v1802
      %1978 = vmatpush2.bf16.msra.mxu0 %v1801
      %1979 = vmatprep.subr.bf16.mxu0 %v1798
      %1980 = vmatpush2.bf16.msra.mxu0 %v1797
      %1981 = vmatprep.subr.bf16.mxu0 %v1794
      %1982 = vmatpush2.bf16.msra.mxu0 %v1793
      %1983 = vmatprep.mubr.bf16.mxu0 %v1205
      %1984 = vmatmul.mubr.bf16.gmra.mxu0 %v1201
      %v1985 = vpop.f32.mrf.mxu0
      %v1986 = vadd.f32 0.0, %v1985
      %v1987 = vpop.f32.mrf.mxu0
      %v1988 = vadd.f32 0.0, %v1987
      %v1989 = vpop.f32.mrf.mxu0
      %v1990 = vadd.f32 0.0, %v1989
      %v1991 = vpop.f32.mrf.mxu0
      %v1992 = vadd.f32 0.0, %v1991
      %1993 = vdwg.mxu0
      %1994 = vmatprep.subr.bf16.mxu0 %v1792
      %1995 = vmatpush1.bf16.msra.mxu0 %v1791
      %1996 = vmatprep.subr.bf16.mxu0 %v1788
      %1997 = vmatpush1.bf16.msra.mxu0 %v1787
      %1998 = vmatprep.subr.bf16.mxu0 %v1784
      %1999 = vmatpush1.bf16.msra.mxu0 %v1783
      %2000 = vmatprep.subr.bf16.mxu0 %v1780
      %2001 = vmatpush1.bf16.msra.mxu0 %v1779
      %2002 = vmatprep.subr.bf16.mxu0 %v1776
      %2003 = vmatpush1.bf16.msra.mxu0 %v1775
      %2004 = vmatprep.subr.bf16.mxu0 %v1772
      %2005 = vmatpush1.bf16.msra.mxu0 %v1771
      %2006 = vmatprep.subr.bf16.mxu0 %v1768
      %2007 = vmatpush1.bf16.msra.mxu0 %v1767
      %2008 = vmatprep.subr.bf16.mxu0 %v1764
      %2009 = vmatpush1.bf16.msra.mxu0 %v1763
      %2010 = vmatprep.subr.bf16.mxu0 0
      %2011 = vmatpush2.bf16.msra.mxu0 0
      %2012 = vmatprep.subr.bf16.mxu0 0
      %2013 = vmatpush2.bf16.msra.mxu0 0
      %2014 = vmatprep.subr.bf16.mxu0 0
      %2015 = vmatpush2.bf16.msra.mxu0 0
      %2016 = vmatprep.subr.bf16.mxu0 0
      %2017 = vmatpush2.bf16.msra.mxu0 0
      %2018 = vmatprep.subr.bf16.mxu0 %v1808
      %2019 = vmatpush2.bf16.msra.mxu0 %v1807
      %2020 = vmatprep.subr.bf16.mxu0 %v1804
      %2021 = vmatpush2.bf16.msra.mxu0 %v1803
      %2022 = vmatprep.subr.bf16.mxu0 %v1800
      %2023 = vmatpush2.bf16.msra.mxu0 %v1799
      %2024 = vmatprep.subr.bf16.mxu0 %v1796
      %2025 = vmatpush2.bf16.msra.mxu0 %v1795
      %2026 = vmatprep.mubr.bf16.mxu0 %v1205
      %2027 = vmatmul.mubr.bf16.gmra.mxu0 %v1201
      %v2028 = vpop.f32.mrf.mxu0
      %v2029 = vadd.f32 0.0, %v2028
      %v2030 = vpop.f32.mrf.mxu0
      %v2031 = vadd.f32 0.0, %v2030
      %v2032 = vpop.f32.mrf.mxu0
      %v2033 = vadd.f32 0.0, %v2032
      %v2034 = vpop.f32.mrf.mxu0
      %v2035 = vadd.f32 0.0, %v2034
      %2036 = vdwg.mxu0
      %v2037 = vadd.f32 %v1144, %v1986
      %v2038 = vadd.f32 %v1146, %v1988
      %v2039 = vadd.f32 %v1187, %v2029
      %v2040 = vadd.f32 %v1189, %v2031
      %v2041 = vadd.f32 %v1148, %v1990
      %v2042 = vadd.f32 %v1150, %v1992
      %v2043 = vadd.f32 %v1191, %v2033
      %v2044 = vadd.f32 %v1193, %v2035
      %2045 = vmatprep.subr.bf16.mxu0 %v1790
      %2046 = vmatpush1.bf16.msra.mxu0 %v1789
      %2047 = vmatprep.subr.bf16.mxu0 %v1786
      %2048 = vmatpush1.bf16.msra.mxu0 %v1785
      %2049 = vmatprep.subr.bf16.mxu0 %v1782
      %2050 = vmatpush1.bf16.msra.mxu0 %v1781
      %2051 = vmatprep.subr.bf16.mxu0 %v1778
      %2052 = vmatpush1.bf16.msra.mxu0 %v1777
      %2053 = vmatprep.subr.bf16.mxu0 %v1774
      %2054 = vmatpush1.bf16.msra.mxu0 %v1773
      %2055 = vmatprep.subr.bf16.mxu0 %v1770
      %2056 = vmatpush1.bf16.msra.mxu0 %v1769
      %2057 = vmatprep.subr.bf16.mxu0 %v1766
      %2058 = vmatpush1.bf16.msra.mxu0 %v1765
      %2059 = vmatprep.subr.bf16.mxu0 %v1762
      %2060 = vmatpush1.bf16.msra.mxu0 %v1761
      %2061 = vmatprep.subr.bf16.mxu0 0
      %2062 = vmatpush2.bf16.msra.mxu0 0
      %2063 = vmatprep.subr.bf16.mxu0 0
      %2064 = vmatpush2.bf16.msra.mxu0 0
      %2065 = vmatprep.subr.bf16.mxu0 0
      %2066 = vmatpush2.bf16.msra.mxu0 0
      %2067 = vmatprep.subr.bf16.mxu0 0
      %2068 = vmatpush2.bf16.msra.mxu0 0
      %2069 = vmatprep.subr.bf16.mxu0 %v1806
      %2070 = vmatpush2.bf16.msra.mxu0 %v1805
      %2071 = vmatprep.subr.bf16.mxu0 %v1802
      %2072 = vmatpush2.bf16.msra.mxu0 %v1801
      %2073 = vmatprep.subr.bf16.mxu0 %v1798
      %2074 = vmatpush2.bf16.msra.mxu0 %v1797
      %2075 = vmatprep.subr.bf16.mxu0 %v1794
      %2076 = vmatpush2.bf16.msra.mxu0 %v1793
      %2077 = vmatprep.mubr.bf16.mxu0 %v1394
      %2078 = vmatmul.mubr.bf16.gmra.mxu0 %v1385
      %v2079 = vpop.f32.mrf.mxu0
      %v2080 = vadd.f32 0.0, %v2079
      %v2081 = vpop.f32.mrf.mxu0
      %v2082 = vadd.f32 0.0, %v2081
      %v2083 = vpop.f32.mrf.mxu0
      %v2084 = vadd.f32 0.0, %v2083
      %v2085 = vpop.f32.mrf.mxu0
      %v2086 = vadd.f32 0.0, %v2085
      %2087 = vdwg.mxu0
      %2088 = vmatprep.subr.bf16.mxu0 %v1792
      %2089 = vmatpush1.bf16.msra.mxu0 %v1791
      %2090 = vmatprep.subr.bf16.mxu0 %v1788
      %2091 = vmatpush1.bf16.msra.mxu0 %v1787
      %2092 = vmatprep.subr.bf16.mxu0 %v1784
      %2093 = vmatpush1.bf16.msra.mxu0 %v1783
      %2094 = vmatprep.subr.bf16.mxu0 %v1780
      %2095 = vmatpush1.bf16.msra.mxu0 %v1779
      %2096 = vmatprep.subr.bf16.mxu0 %v1776
      %2097 = vmatpush1.bf16.msra.mxu0 %v1775
      %2098 = vmatprep.subr.bf16.mxu0 %v1772
      %2099 = vmatpush1.bf16.msra.mxu0 %v1771
      %2100 = vmatprep.subr.bf16.mxu0 %v1768
      %2101 = vmatpush1.bf16.msra.mxu0 %v1767
      %2102 = vmatprep.subr.bf16.mxu0 %v1764
      %2103 = vmatpush1.bf16.msra.mxu0 %v1763
      %2104 = vmatprep.subr.bf16.mxu0 0
      %2105 = vmatpush2.bf16.msra.mxu0 0
      %2106 = vmatprep.subr.bf16.mxu0 0
      %2107 = vmatpush2.bf16.msra.mxu0 0
      %2108 = vmatprep.subr.bf16.mxu0 0
      %2109 = vmatpush2.bf16.msra.mxu0 0
      %2110 = vmatprep.subr.bf16.mxu0 0
      %2111 = vmatpush2.bf16.msra.mxu0 0
      %2112 = vmatprep.subr.bf16.mxu0 %v1808
      %2113 = vmatpush2.bf16.msra.mxu0 %v1807
      %2114 = vmatprep.subr.bf16.mxu0 %v1804
      %2115 = vmatpush2.bf16.msra.mxu0 %v1803
      %2116 = vmatprep.subr.bf16.mxu0 %v1800
      %2117 = vmatpush2.bf16.msra.mxu0 %v1799
      %2118 = vmatprep.subr.bf16.mxu0 %v1796
      %2119 = vmatpush2.bf16.msra.mxu0 %v1795
      %2120 = vmatprep.mubr.bf16.mxu0 %v1394
      %2121 = vmatmul.mubr.bf16.gmra.mxu0 %v1385
      %v2122 = vpop.f32.mrf.mxu0
      %v2123 = vadd.f32 0.0, %v2122
      %v2124 = vpop.f32.mrf.mxu0
      %v2125 = vadd.f32 0.0, %v2124
      %v2126 = vpop.f32.mrf.mxu0
      %v2127 = vadd.f32 0.0, %v2126
      %v2128 = vpop.f32.mrf.mxu0
      %v2129 = vadd.f32 0.0, %v2128
      %2130 = vdwg.mxu0
      %v2131 = vadd.f32 %v1328, %v2080
      %v2132 = vadd.f32 %v1330, %v2082
      %v2133 = vadd.f32 %v1371, %v2123
      %v2134 = vadd.f32 %v1373, %v2125
      %v2135 = vadd.f32 %v1332, %v2084
      %v2136 = vadd.f32 %v1334, %v2086
      %v2137 = vadd.f32 %v1375, %v2127
      %v2138 = vadd.f32 %v1377, %v2129
      %v2140 = vshrl.u32 %v340, 16
      %v2142 = vshll.u32 %v340, 16
      %v2144 = vrot.slane %v2142, 1
      %v2145 = vor.u32 %v2140, %v2144
      %v2146 = vshrl.u32 %v341, 16
      %v2148 = vshll.u32 %v341, 16
      %v2150 = vrot.slane %v2148, 1
      %v2151 = vor.u32 %v2146, %v2150
      %v2154 = vsel %vm583, %v2151, 0
      %2156 = vmatprep.subr.bf16.mxu0 %v1790
      %2157 = vmatpush1.bf16.msra.mxu0 %v1789
      %2158 = vmatprep.subr.bf16.mxu0 %v1786
      %2159 = vmatpush1.bf16.msra.mxu0 %v1785
      %2160 = vmatprep.subr.bf16.mxu0 %v1782
      %2161 = vmatpush1.bf16.msra.mxu0 %v1781
      %2162 = vmatprep.subr.bf16.mxu0 %v1778
      %2163 = vmatpush1.bf16.msra.mxu0 %v1777
      %2164 = vmatprep.subr.bf16.mxu0 %v1774
      %2165 = vmatpush1.bf16.msra.mxu0 %v1773
      %2166 = vmatprep.subr.bf16.mxu0 %v1770
      %2167 = vmatpush1.bf16.msra.mxu0 %v1769
      %2168 = vmatprep.subr.bf16.mxu0 %v1766
      %2169 = vmatpush1.bf16.msra.mxu0 %v1765
      %2170 = vmatprep.subr.bf16.mxu0 %v1762
      %2171 = vmatpush1.bf16.msra.mxu0 %v1761
      %2172 = vmatprep.subr.bf16.mxu0 0
      %2173 = vmatpush2.bf16.msra.mxu0 0
      %2174 = vmatprep.subr.bf16.mxu0 0
      %2175 = vmatpush2.bf16.msra.mxu0 0
      %2176 = vmatprep.subr.bf16.mxu0 0
      %2177 = vmatpush2.bf16.msra.mxu0 0
      %2178 = vmatprep.subr.bf16.mxu0 0
      %2179 = vmatpush2.bf16.msra.mxu0 0
      %2180 = vmatprep.subr.bf16.mxu0 %v1806
      %2181 = vmatpush2.bf16.msra.mxu0 %v1805
      %2182 = vmatprep.subr.bf16.mxu0 %v1802
      %2183 = vmatpush2.bf16.msra.mxu0 %v1801
      %2184 = vmatprep.subr.bf16.mxu0 %v1798
      %2185 = vmatpush2.bf16.msra.mxu0 %v1797
      %2186 = vmatprep.subr.bf16.mxu0 %v1794
      %2187 = vmatpush2.bf16.msra.mxu0 %v1793
      %2188 = vmatprep.mubr.bf16.mxu0 %v2154
      %2189 = vmatmul.mubr.bf16.gmra.mxu0 %v2145
      %v2190 = vpop.f32.mrf.mxu0
      %v2191 = vadd.f32 0.0, %v2190
      %v2192 = vpop.f32.mrf.mxu0
      %v2193 = vadd.f32 0.0, %v2192
      %v2194 = vpop.f32.mrf.mxu0
      %v2195 = vadd.f32 0.0, %v2194
      %v2196 = vpop.f32.mrf.mxu0
      %v2197 = vadd.f32 0.0, %v2196
      %2198 = vdwg.mxu0
      %2199 = vmatprep.subr.bf16.mxu0 %v1792
      %2200 = vmatpush1.bf16.msra.mxu0 %v1791
      %2201 = vmatprep.subr.bf16.mxu0 %v1788
      %2202 = vmatpush1.bf16.msra.mxu0 %v1787
      %2203 = vmatprep.subr.bf16.mxu0 %v1784
      %2204 = vmatpush1.bf16.msra.mxu0 %v1783
      %2205 = vmatprep.subr.bf16.mxu0 %v1780
      %2206 = vmatpush1.bf16.msra.mxu0 %v1779
      %2207 = vmatprep.subr.bf16.mxu0 %v1776
      %2208 = vmatpush1.bf16.msra.mxu0 %v1775
      %2209 = vmatprep.subr.bf16.mxu0 %v1772
      %2210 = vmatpush1.bf16.msra.mxu0 %v1771
      %2211 = vmatprep.subr.bf16.mxu0 %v1768
      %2212 = vmatpush1.bf16.msra.mxu0 %v1767
      %2213 = vmatprep.subr.bf16.mxu0 %v1764
      %2214 = vmatpush1.bf16.msra.mxu0 %v1763
      %2215 = vmatprep.subr.bf16.mxu0 0
      %2216 = vmatpush2.bf16.msra.mxu0 0
      %2217 = vmatprep.subr.bf16.mxu0 0
      %2218 = vmatpush2.bf16.msra.mxu0 0
      %2219 = vmatprep.subr.bf16.mxu0 0
      %2220 = vmatpush2.bf16.msra.mxu0 0
      %2221 = vmatprep.subr.bf16.mxu0 0
      %2222 = vmatpush2.bf16.msra.mxu0 0
      %2223 = vmatprep.subr.bf16.mxu0 %v1808
      %2224 = vmatpush2.bf16.msra.mxu0 %v1807
      %2225 = vmatprep.subr.bf16.mxu0 %v1804
      %2226 = vmatpush2.bf16.msra.mxu0 %v1803
      %2227 = vmatprep.subr.bf16.mxu0 %v1800
      %2228 = vmatpush2.bf16.msra.mxu0 %v1799
      %2229 = vmatprep.subr.bf16.mxu0 %v1796
      %2230 = vmatpush2.bf16.msra.mxu0 %v1795
      %2231 = vmatprep.mubr.bf16.mxu0 %v2154
      %2232 = vmatmul.mubr.bf16.gmra.mxu0 %v2145
      %v2233 = vpop.f32.mrf.mxu0
      %v2234 = vadd.f32 0.0, %v2233
      %v2235 = vpop.f32.mrf.mxu0
      %v2236 = vadd.f32 0.0, %v2235
      %v2237 = vpop.f32.mrf.mxu0
      %v2238 = vadd.f32 0.0, %v2237
      %v2239 = vpop.f32.mrf.mxu0
      %v2240 = vadd.f32 0.0, %v2239
      %2241 = vdwg.mxu0
      %v2242 = vadd.f32 %v1517, %v2191
      %v2243 = vadd.f32 %v1519, %v2193
      %v2244 = vadd.f32 %v1560, %v2234
      %v2245 = vadd.f32 %v1562, %v2236
      %v2246 = vadd.f32 %v1521, %v2195
      %v2247 = vadd.f32 %v1523, %v2197
      %v2248 = vadd.f32 %v1564, %v2238
      %v2249 = vadd.f32 %v1566, %v2240
      %s2250 = scalar_lea.vmem %s1, 1152
      %v2251 = vld [vmem:[%s2250] sm:$0xff]
      %v2252 = vld [vmem:[%s2250 + $0x8] sm:$0xff]
      %v2253 = vld [vmem:[%s2250 + $0x10] sm:$0xff]
      %v2254 = vld [vmem:[%s2250 + $0x18] sm:$0xff]
      %v2255 = vld [vmem:[%s2250 + $0x20] sm:$0xff]
      %v2256 = vld [vmem:[%s2250 + $0x28] sm:$0xff]
      %v2257 = vld [vmem:[%s2250 + $0x30] sm:$0xff]
      %v2258 = vld [vmem:[%s2250 + $0x38] sm:$0xff]
      %v2259 = vld [vmem:[%s2250 + $0x40] sm:$0xff]
      %v2260 = vld [vmem:[%s2250 + $0x48] sm:$0xff]
      %v2261 = vld [vmem:[%s2250 + $0x50] sm:$0xff]
      %v2262 = vld [vmem:[%s2250 + $0x58] sm:$0xff]
      %v2263 = vld [vmem:[%s2250 + $0x60] sm:$0xff]
      %v2264 = vld [vmem:[%s2250 + $0x68] sm:$0xff]
      %v2265 = vld [vmem:[%s2250 + $0x70] sm:$0xff]
      %v2266 = vld [vmem:[%s2250 + $0x78] sm:$0xff]
      %v2267 = vld [vmem:[%s2250 + $0x80] sm:$0xff]
      %v2268 = vld [vmem:[%s2250 + $0x88] sm:$0xff]
      %v2269 = vld [vmem:[%s2250 + $0x90] sm:$0xff]
      %v2270 = vld [vmem:[%s2250 + $0x98] sm:$0xff]
      %v2271 = vld [vmem:[%s2250 + $0xa0] sm:$0xff]
      %v2272 = vld [vmem:[%s2250 + $0xa8] sm:$0xff]
      %v2273 = vld [vmem:[%s2250 + $0xb0] sm:$0xff]
      %v2274 = vld [vmem:[%s2250 + $0xb8] sm:$0xff]
      %v2275 = vld [vmem:[%s2250 + $0xc0] sm:$0xff]
      %v2276 = vld [vmem:[%s2250 + $0xc8] sm:$0xff]
      %v2277 = vld [vmem:[%s2250 + $0xd0] sm:$0xff]
      %v2278 = vld [vmem:[%s2250 + $0xd8] sm:$0xff]
      %v2279 = vld [vmem:[%s2250 + $0xe0] sm:$0xff]
      %v2280 = vld [vmem:[%s2250 + $0xe8] sm:$0xff]
      %v2281 = vld [vmem:[%s2250 + $0xf0] sm:$0xff]
      %v2282 = vld [vmem:[%s2250 + $0xf8] sm:$0xff]
      %v2283 = vld [vmem:[%s2250 + $0x100] sm:$0xff]
      %v2284 = vld [vmem:[%s2250 + $0x108] sm:$0xff]
      %v2285 = vld [vmem:[%s2250 + $0x110] sm:$0xff]
      %v2286 = vld [vmem:[%s2250 + $0x118] sm:$0xff]
      %v2287 = vld [vmem:[%s2250 + $0x120] sm:$0xff]
      %v2288 = vld [vmem:[%s2250 + $0x128] sm:$0xff]
      %v2289 = vld [vmem:[%s2250 + $0x130] sm:$0xff]
      %v2290 = vld [vmem:[%s2250 + $0x138] sm:$0xff]
      %v2291 = vld [vmem:[%s2250 + $0x140] sm:$0xff]
      %v2292 = vld [vmem:[%s2250 + $0x148] sm:$0xff]
      %v2293 = vld [vmem:[%s2250 + $0x150] sm:$0xff]
      %v2294 = vld [vmem:[%s2250 + $0x158] sm:$0xff]
      %v2295 = vld [vmem:[%s2250 + $0x160] sm:$0xff]
      %v2296 = vld [vmem:[%s2250 + $0x168] sm:$0xff]
      %v2297 = vld [vmem:[%s2250 + $0x170] sm:$0xff]
      %v2298 = vld [vmem:[%s2250 + $0x178] sm:$0xff]
      %v2347 = vunpack.c.l.b16 %v2251
      %v2348 = vunpack.c.h.b16 %v2251
      %v2349 = vunpack.c.l.b16 %v2252
      %v2350 = vunpack.c.h.b16 %v2252
      %v2351 = vunpack.c.l.b16 %v2253
      %v2352 = vunpack.c.h.b16 %v2253
      %v2353 = vunpack.c.l.b16 %v2254
      %v2354 = vunpack.c.h.b16 %v2254
      %v2355 = vunpack.c.l.b16 %v2255
      %v2356 = vunpack.c.h.b16 %v2255
      %v2357 = vunpack.c.l.b16 %v2256
      %v2358 = vunpack.c.h.b16 %v2256
      %v2359 = vunpack.c.l.b16 %v2257
      %v2360 = vunpack.c.h.b16 %v2257
      %v2361 = vunpack.c.l.b16 %v2258
      %v2362 = vunpack.c.h.b16 %v2258
      %v2363 = vunpack.c.l.b16 %v2259
      %v2364 = vunpack.c.h.b16 %v2259
      %v2365 = vunpack.c.l.b16 %v2260
      %v2366 = vunpack.c.h.b16 %v2260
      %v2367 = vunpack.c.l.b16 %v2261
      %v2368 = vunpack.c.h.b16 %v2261
      %v2369 = vunpack.c.l.b16 %v2262
      %v2370 = vunpack.c.h.b16 %v2262
      %v2371 = vunpack.c.l.b16 %v2263
      %v2372 = vunpack.c.h.b16 %v2263
      %v2373 = vunpack.c.l.b16 %v2264
      %v2374 = vunpack.c.h.b16 %v2264
      %v2375 = vunpack.c.l.b16 %v2265
      %v2376 = vunpack.c.h.b16 %v2265
      %v2377 = vunpack.c.l.b16 %v2266
      %v2378 = vunpack.c.h.b16 %v2266
      %v2379 = vunpack.c.l.b16 %v2267
      %v2380 = vunpack.c.h.b16 %v2267
      %v2381 = vunpack.c.l.b16 %v2268
      %v2382 = vunpack.c.h.b16 %v2268
      %v2383 = vunpack.c.l.b16 %v2269
      %v2384 = vunpack.c.h.b16 %v2269
      %v2385 = vunpack.c.l.b16 %v2270
      %v2386 = vunpack.c.h.b16 %v2270
      %v2387 = vunpack.c.l.b16 %v2271
      %v2388 = vunpack.c.h.b16 %v2271
      %v2389 = vunpack.c.l.b16 %v2272
      %v2390 = vunpack.c.h.b16 %v2272
      %v2391 = vunpack.c.l.b16 %v2273
      %v2392 = vunpack.c.h.b16 %v2273
      %v2393 = vunpack.c.l.b16 %v2274
      %v2394 = vunpack.c.h.b16 %v2274
      %v2395 = vunpack.c.l.b16 %v2275
      %v2396 = vunpack.c.h.b16 %v2275
      %v2397 = vunpack.c.l.b16 %v2276
      %v2398 = vunpack.c.h.b16 %v2276
      %v2399 = vunpack.c.l.b16 %v2277
      %v2400 = vunpack.c.h.b16 %v2277
      %v2401 = vunpack.c.l.b16 %v2278
      %v2402 = vunpack.c.h.b16 %v2278
      %v2403 = vunpack.c.l.b16 %v2279
      %v2404 = vunpack.c.h.b16 %v2279
      %v2405 = vunpack.c.l.b16 %v2280
      %v2406 = vunpack.c.h.b16 %v2280
      %v2407 = vunpack.c.l.b16 %v2281
      %v2408 = vunpack.c.h.b16 %v2281
      %v2409 = vunpack.c.l.b16 %v2282
      %v2410 = vunpack.c.h.b16 %v2282
      %v2411 = vunpack.c.l.b16 %v2283
      %v2412 = vunpack.c.h.b16 %v2283
      %v2413 = vunpack.c.l.b16 %v2284
      %v2414 = vunpack.c.h.b16 %v2284
      %v2415 = vunpack.c.l.b16 %v2285
      %v2416 = vunpack.c.h.b16 %v2285
      %v2417 = vunpack.c.l.b16 %v2286
      %v2418 = vunpack.c.h.b16 %v2286
      %v2419 = vunpack.c.l.b16 %v2287
      %v2420 = vunpack.c.h.b16 %v2287
      %v2421 = vunpack.c.l.b16 %v2288
      %v2422 = vunpack.c.h.b16 %v2288
      %v2423 = vunpack.c.l.b16 %v2289
      %v2424 = vunpack.c.h.b16 %v2289
      %v2425 = vunpack.c.l.b16 %v2290
      %v2426 = vunpack.c.h.b16 %v2290
      %v2427 = vunpack.c.l.b16 %v2291
      %v2428 = vunpack.c.h.b16 %v2291
      %v2429 = vunpack.c.l.b16 %v2292
      %v2430 = vunpack.c.h.b16 %v2292
      %v2431 = vunpack.c.l.b16 %v2293
      %v2432 = vunpack.c.h.b16 %v2293
      %v2433 = vunpack.c.l.b16 %v2294
      %v2434 = vunpack.c.h.b16 %v2294
      %v2435 = vunpack.c.l.b16 %v2295
      %v2436 = vunpack.c.h.b16 %v2295
      %v2437 = vunpack.c.l.b16 %v2296
      %v2438 = vunpack.c.h.b16 %v2296
      %v2439 = vunpack.c.l.b16 %v2297
      %v2440 = vunpack.c.h.b16 %v2297
      %v2441 = vunpack.c.l.b16 %v2298
      %v2442 = vunpack.c.h.b16 %v2298
      %v2443 = vpack.c.b16 %v2351, %v2347
      %v2444 = vpack.c.b16 %v2352, %v2348
      %v2445 = vpack.c.b16 %v2353, %v2349
      %v2446 = vpack.c.b16 %v2354, %v2350
      %v2447 = vpack.c.b16 %v2359, %v2355
      %v2448 = vpack.c.b16 %v2360, %v2356
      %v2449 = vpack.c.b16 %v2361, %v2357
      %v2450 = vpack.c.b16 %v2362, %v2358
      %v2451 = vpack.c.b16 %v2367, %v2363
      %v2452 = vpack.c.b16 %v2368, %v2364
      %v2453 = vpack.c.b16 %v2369, %v2365
      %v2454 = vpack.c.b16 %v2370, %v2366
      %v2455 = vpack.c.b16 %v2375, %v2371
      %v2456 = vpack.c.b16 %v2376, %v2372
      %v2457 = vpack.c.b16 %v2377, %v2373
      %v2458 = vpack.c.b16 %v2378, %v2374
      %v2459 = vpack.c.b16 %v2383, %v2379
      %v2460 = vpack.c.b16 %v2384, %v2380
      %v2461 = vpack.c.b16 %v2385, %v2381
      %v2462 = vpack.c.b16 %v2386, %v2382
      %v2463 = vpack.c.b16 %v2391, %v2387
      %v2464 = vpack.c.b16 %v2392, %v2388
      %v2465 = vpack.c.b16 %v2393, %v2389
      %v2466 = vpack.c.b16 %v2394, %v2390
      %v2467 = vpack.c.b16 %v2399, %v2395
      %v2468 = vpack.c.b16 %v2400, %v2396
      %v2469 = vpack.c.b16 %v2401, %v2397
      %v2470 = vpack.c.b16 %v2402, %v2398
      %v2471 = vpack.c.b16 %v2407, %v2403
      %v2472 = vpack.c.b16 %v2408, %v2404
      %v2473 = vpack.c.b16 %v2409, %v2405
      %v2474 = vpack.c.b16 %v2410, %v2406
      %v2475 = vpack.c.b16 %v2415, %v2411
      %v2476 = vpack.c.b16 %v2416, %v2412
      %v2477 = vpack.c.b16 %v2417, %v2413
      %v2478 = vpack.c.b16 %v2418, %v2414
      %v2479 = vpack.c.b16 %v2423, %v2419
      %v2480 = vpack.c.b16 %v2424, %v2420
      %v2481 = vpack.c.b16 %v2425, %v2421
      %v2482 = vpack.c.b16 %v2426, %v2422
      %v2483 = vpack.c.b16 %v2431, %v2427
      %v2484 = vpack.c.b16 %v2432, %v2428
      %v2485 = vpack.c.b16 %v2433, %v2429
      %v2486 = vpack.c.b16 %v2434, %v2430
      %v2487 = vpack.c.b16 %v2439, %v2435
      %v2488 = vpack.c.b16 %v2440, %v2436
      %v2489 = vpack.c.b16 %v2441, %v2437
      %v2490 = vpack.c.b16 %v2442, %v2438
      %2539 = vmatprep.subr.bf16.mxu0 %v2472
      %2540 = vmatpush1.bf16.msra.mxu0 %v2471
      %2541 = vmatprep.subr.bf16.mxu0 %v2468
      %2542 = vmatpush1.bf16.msra.mxu0 %v2467
      %2543 = vmatprep.subr.bf16.mxu0 %v2464
      %2544 = vmatpush1.bf16.msra.mxu0 %v2463
      %2545 = vmatprep.subr.bf16.mxu0 %v2460
      %2546 = vmatpush1.bf16.msra.mxu0 %v2459
      %2547 = vmatprep.subr.bf16.mxu0 %v2456
      %2548 = vmatpush1.bf16.msra.mxu0 %v2455
      %2549 = vmatprep.subr.bf16.mxu0 %v2452
      %2550 = vmatpush1.bf16.msra.mxu0 %v2451
      %2551 = vmatprep.subr.bf16.mxu0 %v2448
      %2552 = vmatpush1.bf16.msra.mxu0 %v2447
      %2553 = vmatprep.subr.bf16.mxu0 %v2444
      %2554 = vmatpush1.bf16.msra.mxu0 %v2443
      %2555 = vmatprep.subr.bf16.mxu0 0
      %2556 = vmatpush2.bf16.msra.mxu0 0
      %2557 = vmatprep.subr.bf16.mxu0 0
      %2558 = vmatpush2.bf16.msra.mxu0 0
      %2559 = vmatprep.subr.bf16.mxu0 0
      %2560 = vmatpush2.bf16.msra.mxu0 0
      %2561 = vmatprep.subr.bf16.mxu0 0
      %2562 = vmatpush2.bf16.msra.mxu0 0
      %2563 = vmatprep.subr.bf16.mxu0 %v2488
      %2564 = vmatpush2.bf16.msra.mxu0 %v2487
      %2565 = vmatprep.subr.bf16.mxu0 %v2484
      %2566 = vmatpush2.bf16.msra.mxu0 %v2483
      %2567 = vmatprep.subr.bf16.mxu0 %v2480
      %2568 = vmatpush2.bf16.msra.mxu0 %v2479
      %2569 = vmatprep.subr.bf16.mxu0 %v2476
      %2570 = vmatpush2.bf16.msra.mxu0 %v2475
      %2571 = vmatprep.mubr.bf16.mxu0 %v1205
      %2572 = vmatmul.mubr.bf16.gmra.mxu0 %v1201
      %v2573 = vpop.f32.mrf.mxu0
      %v2574 = vadd.f32 0.0, %v2573
      %v2575 = vpop.f32.mrf.mxu0
      %v2576 = vadd.f32 0.0, %v2575
      %v2577 = vpop.f32.mrf.mxu0
      %v2578 = vadd.f32 0.0, %v2577
      %v2579 = vpop.f32.mrf.mxu0
      %v2580 = vadd.f32 0.0, %v2579
      %2581 = vdwg.mxu0
      %2582 = vmatprep.subr.bf16.mxu0 %v2474
      %2583 = vmatpush1.bf16.msra.mxu0 %v2473
      %2584 = vmatprep.subr.bf16.mxu0 %v2470
      %2585 = vmatpush1.bf16.msra.mxu0 %v2469
      %2586 = vmatprep.subr.bf16.mxu0 %v2466
      %2587 = vmatpush1.bf16.msra.mxu0 %v2465
      %2588 = vmatprep.subr.bf16.mxu0 %v2462
      %2589 = vmatpush1.bf16.msra.mxu0 %v2461
      %2590 = vmatprep.subr.bf16.mxu0 %v2458
      %2591 = vmatpush1.bf16.msra.mxu0 %v2457
      %2592 = vmatprep.subr.bf16.mxu0 %v2454
      %2593 = vmatpush1.bf16.msra.mxu0 %v2453
      %2594 = vmatprep.subr.bf16.mxu0 %v2450
      %2595 = vmatpush1.bf16.msra.mxu0 %v2449
      %2596 = vmatprep.subr.bf16.mxu0 %v2446
      %2597 = vmatpush1.bf16.msra.mxu0 %v2445
      %2598 = vmatprep.subr.bf16.mxu0 0
      %2599 = vmatpush2.bf16.msra.mxu0 0
      %2600 = vmatprep.subr.bf16.mxu0 0
      %2601 = vmatpush2.bf16.msra.mxu0 0
      %2602 = vmatprep.subr.bf16.mxu0 0
      %2603 = vmatpush2.bf16.msra.mxu0 0
      %2604 = vmatprep.subr.bf16.mxu0 0
      %2605 = vmatpush2.bf16.msra.mxu0 0
      %2606 = vmatprep.subr.bf16.mxu0 %v2490
      %2607 = vmatpush2.bf16.msra.mxu0 %v2489
      %2608 = vmatprep.subr.bf16.mxu0 %v2486
      %2609 = vmatpush2.bf16.msra.mxu0 %v2485
      %2610 = vmatprep.subr.bf16.mxu0 %v2482
      %2611 = vmatpush2.bf16.msra.mxu0 %v2481
      %2612 = vmatprep.subr.bf16.mxu0 %v2478
      %2613 = vmatpush2.bf16.msra.mxu0 %v2477
      %2614 = vmatprep.mubr.bf16.mxu0 %v1205
      %2615 = vmatmul.mubr.bf16.gmra.mxu0 %v1201
      %v2616 = vpop.f32.mrf.mxu0
      %v2617 = vadd.f32 0.0, %v2616
      %v2618 = vpop.f32.mrf.mxu0
      %v2619 = vadd.f32 0.0, %v2618
      %v2620 = vpop.f32.mrf.mxu0
      %v2621 = vadd.f32 0.0, %v2620
      %v2622 = vpop.f32.mrf.mxu0
      %v2623 = vadd.f32 0.0, %v2622
      %2624 = vdwg.mxu0
      %v2625 = vadd.f32 %v1943, %v2574
      %v2626 = vadd.f32 %v1944, %v2576
      %v2627 = vadd.f32 %v1945, %v2617
      %v2628 = vadd.f32 %v1946, %v2619
      %v2629 = vadd.f32 %v1947, %v2578
      %v2630 = vadd.f32 %v1948, %v2580
      %v2631 = vadd.f32 %v1949, %v2621
      %v2632 = vadd.f32 %v1950, %v2623
      %2633 = vmatprep.subr.bf16.mxu0 %v2472
      %2634 = vmatpush1.bf16.msra.mxu0 %v2471
      %2635 = vmatprep.subr.bf16.mxu0 %v2468
      %2636 = vmatpush1.bf16.msra.mxu0 %v2467
      %2637 = vmatprep.subr.bf16.mxu0 %v2464
      %2638 = vmatpush1.bf16.msra.mxu0 %v2463
      %2639 = vmatprep.subr.bf16.mxu0 %v2460
      %2640 = vmatpush1.bf16.msra.mxu0 %v2459
      %2641 = vmatprep.subr.bf16.mxu0 %v2456
      %2642 = vmatpush1.bf16.msra.mxu0 %v2455
      %2643 = vmatprep.subr.bf16.mxu0 %v2452
      %2644 = vmatpush1.bf16.msra.mxu0 %v2451
      %2645 = vmatprep.subr.bf16.mxu0 %v2448
      %2646 = vmatpush1.bf16.msra.mxu0 %v2447
      %2647 = vmatprep.subr.bf16.mxu0 %v2444
      %2648 = vmatpush1.bf16.msra.mxu0 %v2443
      %2649 = vmatprep.subr.bf16.mxu0 0
      %2650 = vmatpush2.bf16.msra.mxu0 0
      %2651 = vmatprep.subr.bf16.mxu0 0
      %2652 = vmatpush2.bf16.msra.mxu0 0
      %2653 = vmatprep.subr.bf16.mxu0 0
      %2654 = vmatpush2.bf16.msra.mxu0 0
      %2655 = vmatprep.subr.bf16.mxu0 0
      %2656 = vmatpush2.bf16.msra.mxu0 0
      %2657 = vmatprep.subr.bf16.mxu0 %v2488
      %2658 = vmatpush2.bf16.msra.mxu0 %v2487
      %2659 = vmatprep.subr.bf16.mxu0 %v2484
      %2660 = vmatpush2.bf16.msra.mxu0 %v2483
      %2661 = vmatprep.subr.bf16.mxu0 %v2480
      %2662 = vmatpush2.bf16.msra.mxu0 %v2479
      %2663 = vmatprep.subr.bf16.mxu0 %v2476
      %2664 = vmatpush2.bf16.msra.mxu0 %v2475
      %2665 = vmatprep.mubr.bf16.mxu0 %v1394
      %2666 = vmatmul.mubr.bf16.gmra.mxu0 %v1385
      %v2667 = vpop.f32.mrf.mxu0
      %v2668 = vadd.f32 0.0, %v2667
      %v2669 = vpop.f32.mrf.mxu0
      %v2670 = vadd.f32 0.0, %v2669
      %v2671 = vpop.f32.mrf.mxu0
      %v2672 = vadd.f32 0.0, %v2671
      %v2673 = vpop.f32.mrf.mxu0
      %v2674 = vadd.f32 0.0, %v2673
      %2675 = vdwg.mxu0
      %2676 = vmatprep.subr.bf16.mxu0 %v2474
      %2677 = vmatpush1.bf16.msra.mxu0 %v2473
      %2678 = vmatprep.subr.bf16.mxu0 %v2470
      %2679 = vmatpush1.bf16.msra.mxu0 %v2469
      %2680 = vmatprep.subr.bf16.mxu0 %v2466
      %2681 = vmatpush1.bf16.msra.mxu0 %v2465
      %2682 = vmatprep.subr.bf16.mxu0 %v2462
      %2683 = vmatpush1.bf16.msra.mxu0 %v2461
      %2684 = vmatprep.subr.bf16.mxu0 %v2458
      %2685 = vmatpush1.bf16.msra.mxu0 %v2457
      %2686 = vmatprep.subr.bf16.mxu0 %v2454
      %2687 = vmatpush1.bf16.msra.mxu0 %v2453
      %2688 = vmatprep.subr.bf16.mxu0 %v2450
      %2689 = vmatpush1.bf16.msra.mxu0 %v2449
      %2690 = vmatprep.subr.bf16.mxu0 %v2446
      %2691 = vmatpush1.bf16.msra.mxu0 %v2445
      %2692 = vmatprep.subr.bf16.mxu0 0
      %2693 = vmatpush2.bf16.msra.mxu0 0
      %2694 = vmatprep.subr.bf16.mxu0 0
      %2695 = vmatpush2.bf16.msra.mxu0 0
      %2696 = vmatprep.subr.bf16.mxu0 0
      %2697 = vmatpush2.bf16.msra.mxu0 0
      %2698 = vmatprep.subr.bf16.mxu0 0
      %2699 = vmatpush2.bf16.msra.mxu0 0
      %2700 = vmatprep.subr.bf16.mxu0 %v2490
      %2701 = vmatpush2.bf16.msra.mxu0 %v2489
      %2702 = vmatprep.subr.bf16.mxu0 %v2486
      %2703 = vmatpush2.bf16.msra.mxu0 %v2485
      %2704 = vmatprep.subr.bf16.mxu0 %v2482
      %2705 = vmatpush2.bf16.msra.mxu0 %v2481
      %2706 = vmatprep.subr.bf16.mxu0 %v2478
      %2707 = vmatpush2.bf16.msra.mxu0 %v2477
      %2708 = vmatprep.mubr.bf16.mxu0 %v1394
      %2709 = vmatmul.mubr.bf16.gmra.mxu0 %v1385
      %v2710 = vpop.f32.mrf.mxu0
      %v2711 = vadd.f32 0.0, %v2710
      %v2712 = vpop.f32.mrf.mxu0
      %v2713 = vadd.f32 0.0, %v2712
      %v2714 = vpop.f32.mrf.mxu0
      %v2715 = vadd.f32 0.0, %v2714
      %v2716 = vpop.f32.mrf.mxu0
      %v2717 = vadd.f32 0.0, %v2716
      %2718 = vdwg.mxu0
      %v2719 = vadd.f32 %v2037, %v2668
      %v2720 = vadd.f32 %v2038, %v2670
      %v2721 = vadd.f32 %v2039, %v2711
      %v2722 = vadd.f32 %v2040, %v2713
      %v2723 = vadd.f32 %v2041, %v2672
      %v2724 = vadd.f32 %v2042, %v2674
      %v2725 = vadd.f32 %v2043, %v2715
      %v2726 = vadd.f32 %v2044, %v2717
      %2727 = vmatprep.subr.bf16.mxu0 %v2472
      %2728 = vmatpush1.bf16.msra.mxu0 %v2471
      %2729 = vmatprep.subr.bf16.mxu0 %v2468
      %2730 = vmatpush1.bf16.msra.mxu0 %v2467
      %2731 = vmatprep.subr.bf16.mxu0 %v2464
      %2732 = vmatpush1.bf16.msra.mxu0 %v2463
      %2733 = vmatprep.subr.bf16.mxu0 %v2460
      %2734 = vmatpush1.bf16.msra.mxu0 %v2459
      %2735 = vmatprep.subr.bf16.mxu0 %v2456
      %2736 = vmatpush1.bf16.msra.mxu0 %v2455
      %2737 = vmatprep.subr.bf16.mxu0 %v2452
      %2738 = vmatpush1.bf16.msra.mxu0 %v2451
      %2739 = vmatprep.subr.bf16.mxu0 %v2448
      %2740 = vmatpush1.bf16.msra.mxu0 %v2447
      %2741 = vmatprep.subr.bf16.mxu0 %v2444
      %2742 = vmatpush1.bf16.msra.mxu0 %v2443
      %2743 = vmatprep.subr.bf16.mxu0 0
      %2744 = vmatpush2.bf16.msra.mxu0 0
      %2745 = vmatprep.subr.bf16.mxu0 0
      %2746 = vmatpush2.bf16.msra.mxu0 0
      %2747 = vmatprep.subr.bf16.mxu0 0
      %2748 = vmatpush2.bf16.msra.mxu0 0
      %2749 = vmatprep.subr.bf16.mxu0 0
      %2750 = vmatpush2.bf16.msra.mxu0 0
      %2751 = vmatprep.subr.bf16.mxu0 %v2488
      %2752 = vmatpush2.bf16.msra.mxu0 %v2487
      %2753 = vmatprep.subr.bf16.mxu0 %v2484
      %2754 = vmatpush2.bf16.msra.mxu0 %v2483
      %2755 = vmatprep.subr.bf16.mxu0 %v2480
      %2756 = vmatpush2.bf16.msra.mxu0 %v2479
      %2757 = vmatprep.subr.bf16.mxu0 %v2476
      %2758 = vmatpush2.bf16.msra.mxu0 %v2475
      %2759 = vmatprep.mubr.bf16.mxu0 %v2154
      %2760 = vmatmul.mubr.bf16.gmra.mxu0 %v2145
      %v2761 = vpop.f32.mrf.mxu0
      %v2762 = vadd.f32 0.0, %v2761
      %v2763 = vpop.f32.mrf.mxu0
      %v2764 = vadd.f32 0.0, %v2763
      %v2765 = vpop.f32.mrf.mxu0
      %v2766 = vadd.f32 0.0, %v2765
      %v2767 = vpop.f32.mrf.mxu0
      %v2768 = vadd.f32 0.0, %v2767
      %2769 = vdwg.mxu0
      %2770 = vmatprep.subr.bf16.mxu0 %v2474
      %2771 = vmatpush1.bf16.msra.mxu0 %v2473
      %2772 = vmatprep.subr.bf16.mxu0 %v2470
      %2773 = vmatpush1.bf16.msra.mxu0 %v2469
      %2774 = vmatprep.subr.bf16.mxu0 %v2466
      %2775 = vmatpush1.bf16.msra.mxu0 %v2465
      %2776 = vmatprep.subr.bf16.mxu0 %v2462
      %2777 = vmatpush1.bf16.msra.mxu0 %v2461
      %2778 = vmatprep.subr.bf16.mxu0 %v2458
      %2779 = vmatpush1.bf16.msra.mxu0 %v2457
      %2780 = vmatprep.subr.bf16.mxu0 %v2454
      %2781 = vmatpush1.bf16.msra.mxu0 %v2453
      %2782 = vmatprep.subr.bf16.mxu0 %v2450
      %2783 = vmatpush1.bf16.msra.mxu0 %v2449
      %2784 = vmatprep.subr.bf16.mxu0 %v2446
      %2785 = vmatpush1.bf16.msra.mxu0 %v2445
      %2786 = vmatprep.subr.bf16.mxu0 0
      %2787 = vmatpush2.bf16.msra.mxu0 0
      %2788 = vmatprep.subr.bf16.mxu0 0
      %2789 = vmatpush2.bf16.msra.mxu0 0
      %2790 = vmatprep.subr.bf16.mxu0 0
      %2791 = vmatpush2.bf16.msra.mxu0 0
      %2792 = vmatprep.subr.bf16.mxu0 0
      %2793 = vmatpush2.bf16.msra.mxu0 0
      %2794 = vmatprep.subr.bf16.mxu0 %v2490
      %2795 = vmatpush2.bf16.msra.mxu0 %v2489
      %2796 = vmatprep.subr.bf16.mxu0 %v2486
      %2797 = vmatpush2.bf16.msra.mxu0 %v2485
      %2798 = vmatprep.subr.bf16.mxu0 %v2482
      %2799 = vmatpush2.bf16.msra.mxu0 %v2481
      %2800 = vmatprep.subr.bf16.mxu0 %v2478
      %2801 = vmatpush2.bf16.msra.mxu0 %v2477
      %2802 = vmatprep.mubr.bf16.mxu0 %v2154
      %2803 = vmatmul.mubr.bf16.gmra.mxu0 %v2145
      %v2804 = vpop.f32.mrf.mxu0
      %v2805 = vadd.f32 0.0, %v2804
      %v2806 = vpop.f32.mrf.mxu0
      %v2807 = vadd.f32 0.0, %v2806
      %v2808 = vpop.f32.mrf.mxu0
      %v2809 = vadd.f32 0.0, %v2808
      %v2810 = vpop.f32.mrf.mxu0
      %v2811 = vadd.f32 0.0, %v2810
      %2812 = vdwg.mxu0
      %v2813 = vadd.f32 %v2131, %v2762
      %v2814 = vadd.f32 %v2132, %v2764
      %v2815 = vadd.f32 %v2133, %v2805
      %v2816 = vadd.f32 %v2134, %v2807
      %v2817 = vadd.f32 %v2135, %v2766
      %v2818 = vadd.f32 %v2136, %v2768
      %v2819 = vadd.f32 %v2137, %v2809
      %v2820 = vadd.f32 %v2138, %v2811
      %v2822 = vshrl.u32 %v1017, 16
      %v2824 = vshll.u32 %v1017, 16
      %v2826 = vrot.slane %v2824, 1
      %v2827 = vor.u32 %v2822, %v2826
      %v2828 = vshrl.u32 %v1018, 16
      %v2830 = vshll.u32 %v1018, 16
      %v2832 = vrot.slane %v2830, 1
      %v2833 = vor.u32 %v2828, %v2832
      %v2836 = vsel %vm583, %v2833, 0
      %2838 = vmatprep.subr.bf16.mxu0 %v2472
      %2839 = vmatpush1.bf16.msra.mxu0 %v2471
      %2840 = vmatprep.subr.bf16.mxu0 %v2468
      %2841 = vmatpush1.bf16.msra.mxu0 %v2467
      %2842 = vmatprep.subr.bf16.mxu0 %v2464
      %2843 = vmatpush1.bf16.msra.mxu0 %v2463
      %2844 = vmatprep.subr.bf16.mxu0 %v2460
      %2845 = vmatpush1.bf16.msra.mxu0 %v2459
      %2846 = vmatprep.subr.bf16.mxu0 %v2456
      %2847 = vmatpush1.bf16.msra.mxu0 %v2455
      %2848 = vmatprep.subr.bf16.mxu0 %v2452
      %2849 = vmatpush1.bf16.msra.mxu0 %v2451
      %2850 = vmatprep.subr.bf16.mxu0 %v2448
      %2851 = vmatpush1.bf16.msra.mxu0 %v2447
      %2852 = vmatprep.subr.bf16.mxu0 %v2444
      %2853 = vmatpush1.bf16.msra.mxu0 %v2443
      %2854 = vmatprep.subr.bf16.mxu0 0
      %2855 = vmatpush2.bf16.msra.mxu0 0
      %2856 = vmatprep.subr.bf16.mxu0 0
      %2857 = vmatpush2.bf16.msra.mxu0 0
      %2858 = vmatprep.subr.bf16.mxu0 0
      %2859 = vmatpush2.bf16.msra.mxu0 0
      %2860 = vmatprep.subr.bf16.mxu0 0
      %2861 = vmatpush2.bf16.msra.mxu0 0
      %2862 = vmatprep.subr.bf16.mxu0 %v2488
      %2863 = vmatpush2.bf16.msra.mxu0 %v2487
      %2864 = vmatprep.subr.bf16.mxu0 %v2484
      %2865 = vmatpush2.bf16.msra.mxu0 %v2483
      %2866 = vmatprep.subr.bf16.mxu0 %v2480
      %2867 = vmatpush2.bf16.msra.mxu0 %v2479
      %2868 = vmatprep.subr.bf16.mxu0 %v2476
      %2869 = vmatpush2.bf16.msra.mxu0 %v2475
      %2870 = vmatprep.mubr.bf16.mxu0 %v2836
      %2871 = vmatmul.mubr.bf16.gmra.mxu0 %v2827
      %v2872 = vpop.f32.mrf.mxu0
      %v2873 = vadd.f32 0.0, %v2872
      %v2874 = vpop.f32.mrf.mxu0
      %v2875 = vadd.f32 0.0, %v2874
      %v2876 = vpop.f32.mrf.mxu0
      %v2877 = vadd.f32 0.0, %v2876
      %v2878 = vpop.f32.mrf.mxu0
      %v2879 = vadd.f32 0.0, %v2878
      %2880 = vdwg.mxu0
      %2881 = vmatprep.subr.bf16.mxu0 %v2474
      %2882 = vmatpush1.bf16.msra.mxu0 %v2473
      %2883 = vmatprep.subr.bf16.mxu0 %v2470
      %2884 = vmatpush1.bf16.msra.mxu0 %v2469
      %2885 = vmatprep.subr.bf16.mxu0 %v2466
      %2886 = vmatpush1.bf16.msra.mxu0 %v2465
      %2887 = vmatprep.subr.bf16.mxu0 %v2462
      %2888 = vmatpush1.bf16.msra.mxu0 %v2461
      %2889 = vmatprep.subr.bf16.mxu0 %v2458
      %2890 = vmatpush1.bf16.msra.mxu0 %v2457
      %2891 = vmatprep.subr.bf16.mxu0 %v2454
      %2892 = vmatpush1.bf16.msra.mxu0 %v2453
      %2893 = vmatprep.subr.bf16.mxu0 %v2450
      %2894 = vmatpush1.bf16.msra.mxu0 %v2449
      %2895 = vmatprep.subr.bf16.mxu0 %v2446
      %2896 = vmatpush1.bf16.msra.mxu0 %v2445
      %2897 = vmatprep.subr.bf16.mxu0 0
      %2898 = vmatpush2.bf16.msra.mxu0 0
      %2899 = vmatprep.subr.bf16.mxu0 0
      %2900 = vmatpush2.bf16.msra.mxu0 0
      %2901 = vmatprep.subr.bf16.mxu0 0
      %2902 = vmatpush2.bf16.msra.mxu0 0
      %2903 = vmatprep.subr.bf16.mxu0 0
      %2904 = vmatpush2.bf16.msra.mxu0 0
      %2905 = vmatprep.subr.bf16.mxu0 %v2490
      %2906 = vmatpush2.bf16.msra.mxu0 %v2489
      %2907 = vmatprep.subr.bf16.mxu0 %v2486
      %2908 = vmatpush2.bf16.msra.mxu0 %v2485
      %2909 = vmatprep.subr.bf16.mxu0 %v2482
      %2910 = vmatpush2.bf16.msra.mxu0 %v2481
      %2911 = vmatprep.subr.bf16.mxu0 %v2478
      %2912 = vmatpush2.bf16.msra.mxu0 %v2477
      %2913 = vmatprep.mubr.bf16.mxu0 %v2836
      %2914 = vmatmul.mubr.bf16.gmra.mxu0 %v2827
      %v2915 = vpop.f32.mrf.mxu0
      %v2916 = vadd.f32 0.0, %v2915
      %v2917 = vpop.f32.mrf.mxu0
      %v2918 = vadd.f32 0.0, %v2917
      %v2919 = vpop.f32.mrf.mxu0
      %v2920 = vadd.f32 0.0, %v2919
      %v2921 = vpop.f32.mrf.mxu0
      %v2922 = vadd.f32 0.0, %v2921
      %2923 = vdwg.mxu0
      %v2924 = vadd.f32 %v2242, %v2873
      %v2925 = vadd.f32 %v2243, %v2875
      %v2926 = vadd.f32 %v2244, %v2916
      %v2927 = vadd.f32 %v2245, %v2918
      %v2928 = vadd.f32 %v2246, %v2877
      %v2929 = vadd.f32 %v2247, %v2879
      %v2930 = vadd.f32 %v2248, %v2920
      %v2931 = vadd.f32 %v2249, %v2922
      %s2932 = scalar_lea.vmem %s1, 1536
      %v2933 = vld [vmem:[%s2932] sm:$0xff]
      %v2934 = vld [vmem:[%s2932 + $0x8] sm:$0xff]
      %v2935 = vld [vmem:[%s2932 + $0x10] sm:$0xff]
      %v2936 = vld [vmem:[%s2932 + $0x18] sm:$0xff]
      %v2937 = vld [vmem:[%s2932 + $0x20] sm:$0xff]
      %v2938 = vld [vmem:[%s2932 + $0x28] sm:$0xff]
      %v2939 = vld [vmem:[%s2932 + $0x30] sm:$0xff]
      %v2940 = vld [vmem:[%s2932 + $0x38] sm:$0xff]
      %v2941 = vld [vmem:[%s2932 + $0x40] sm:$0xff]
      %v2942 = vld [vmem:[%s2932 + $0x48] sm:$0xff]
      %v2943 = vld [vmem:[%s2932 + $0x50] sm:$0xff]
      %v2944 = vld [vmem:[%s2932 + $0x58] sm:$0xff]
      %v2945 = vld [vmem:[%s2932 + $0x60] sm:$0xff]
      %v2946 = vld [vmem:[%s2932 + $0x68] sm:$0xff]
      %v2947 = vld [vmem:[%s2932 + $0x70] sm:$0xff]
      %v2948 = vld [vmem:[%s2932 + $0x78] sm:$0xff]
      %v2949 = vld [vmem:[%s2932 + $0x80] sm:$0xff]
      %v2950 = vld [vmem:[%s2932 + $0x88] sm:$0xff]
      %v2951 = vld [vmem:[%s2932 + $0x90] sm:$0xff]
      %v2952 = vld [vmem:[%s2932 + $0x98] sm:$0xff]
      %v2953 = vld [vmem:[%s2932 + $0xa0] sm:$0xff]
      %v2954 = vld [vmem:[%s2932 + $0xa8] sm:$0xff]
      %v2955 = vld [vmem:[%s2932 + $0xb0] sm:$0xff]
      %v2956 = vld [vmem:[%s2932 + $0xb8] sm:$0xff]
      %v2957 = vld [vmem:[%s2932 + $0xc0] sm:$0xff]
      %v2958 = vld [vmem:[%s2932 + $0xc8] sm:$0xff]
      %v2959 = vld [vmem:[%s2932 + $0xd0] sm:$0xff]
      %v2960 = vld [vmem:[%s2932 + $0xd8] sm:$0xff]
      %v2961 = vld [vmem:[%s2932 + $0xe0] sm:$0xff]
      %v2962 = vld [vmem:[%s2932 + $0xe8] sm:$0xff]
      %v2963 = vld [vmem:[%s2932 + $0xf0] sm:$0xff]
      %v2964 = vld [vmem:[%s2932 + $0xf8] sm:$0xff]
      %v2965 = vld [vmem:[%s2932 + $0x100] sm:$0xff]
      %v2966 = vld [vmem:[%s2932 + $0x108] sm:$0xff]
      %v2967 = vld [vmem:[%s2932 + $0x110] sm:$0xff]
      %v2968 = vld [vmem:[%s2932 + $0x118] sm:$0xff]
      %v2969 = vld [vmem:[%s2932 + $0x120] sm:$0xff]
      %v2970 = vld [vmem:[%s2932 + $0x128] sm:$0xff]
      %v2971 = vld [vmem:[%s2932 + $0x130] sm:$0xff]
      %v2972 = vld [vmem:[%s2932 + $0x138] sm:$0xff]
      %v2973 = vld [vmem:[%s2932 + $0x140] sm:$0xff]
      %v2974 = vld [vmem:[%s2932 + $0x148] sm:$0xff]
      %v2975 = vld [vmem:[%s2932 + $0x150] sm:$0xff]
      %v2976 = vld [vmem:[%s2932 + $0x158] sm:$0xff]
      %v2977 = vld [vmem:[%s2932 + $0x160] sm:$0xff]
      %v2978 = vld [vmem:[%s2932 + $0x168] sm:$0xff]
      %v2979 = vld [vmem:[%s2932 + $0x170] sm:$0xff]
      %v2980 = vld [vmem:[%s2932 + $0x178] sm:$0xff]
      %v3029 = vunpack.c.l.b16 %v2933
      %v3030 = vunpack.c.h.b16 %v2933
      %v3031 = vunpack.c.l.b16 %v2934
      %v3032 = vunpack.c.h.b16 %v2934
      %v3033 = vunpack.c.l.b16 %v2935
      %v3034 = vunpack.c.h.b16 %v2935
      %v3035 = vunpack.c.l.b16 %v2936
      %v3036 = vunpack.c.h.b16 %v2936
      %v3037 = vunpack.c.l.b16 %v2937
      %v3038 = vunpack.c.h.b16 %v2937
      %v3039 = vunpack.c.l.b16 %v2938
      %v3040 = vunpack.c.h.b16 %v2938
      %v3041 = vunpack.c.l.b16 %v2939
      %v3042 = vunpack.c.h.b16 %v2939
      %v3043 = vunpack.c.l.b16 %v2940
      %v3044 = vunpack.c.h.b16 %v2940
      %v3045 = vunpack.c.l.b16 %v2941
      %v3046 = vunpack.c.h.b16 %v2941
      %v3047 = vunpack.c.l.b16 %v2942
      %v3048 = vunpack.c.h.b16 %v2942
      %v3049 = vunpack.c.l.b16 %v2943
      %v3050 = vunpack.c.h.b16 %v2943
      %v3051 = vunpack.c.l.b16 %v2944
      %v3052 = vunpack.c.h.b16 %v2944
      %v3053 = vunpack.c.l.b16 %v2945
      %v3054 = vunpack.c.h.b16 %v2945
      %v3055 = vunpack.c.l.b16 %v2946
      %v3056 = vunpack.c.h.b16 %v2946
      %v3057 = vunpack.c.l.b16 %v2947
      %v3058 = vunpack.c.h.b16 %v2947
      %v3059 = vunpack.c.l.b16 %v2948
      %v3060 = vunpack.c.h.b16 %v2948
      %v3061 = vunpack.c.l.b16 %v2949
      %v3062 = vunpack.c.h.b16 %v2949
      %v3063 = vunpack.c.l.b16 %v2950
      %v3064 = vunpack.c.h.b16 %v2950
      %v3065 = vunpack.c.l.b16 %v2951
      %v3066 = vunpack.c.h.b16 %v2951
      %v3067 = vunpack.c.l.b16 %v2952
      %v3068 = vunpack.c.h.b16 %v2952
      %v3069 = vunpack.c.l.b16 %v2953
      %v3070 = vunpack.c.h.b16 %v2953
      %v3071 = vunpack.c.l.b16 %v2954
      %v3072 = vunpack.c.h.b16 %v2954
      %v3073 = vunpack.c.l.b16 %v2955
      %v3074 = vunpack.c.h.b16 %v2955
      %v3075 = vunpack.c.l.b16 %v2956
      %v3076 = vunpack.c.h.b16 %v2956
      %v3077 = vunpack.c.l.b16 %v2957
      %v3078 = vunpack.c.h.b16 %v2957
      %v3079 = vunpack.c.l.b16 %v2958
      %v3080 = vunpack.c.h.b16 %v2958
      %v3081 = vunpack.c.l.b16 %v2959
      %v3082 = vunpack.c.h.b16 %v2959
      %v3083 = vunpack.c.l.b16 %v2960
      %v3084 = vunpack.c.h.b16 %v2960
      %v3085 = vunpack.c.l.b16 %v2961
      %v3086 = vunpack.c.h.b16 %v2961
      %v3087 = vunpack.c.l.b16 %v2962
      %v3088 = vunpack.c.h.b16 %v2962
      %v3089 = vunpack.c.l.b16 %v2963
      %v3090 = vunpack.c.h.b16 %v2963
      %v3091 = vunpack.c.l.b16 %v2964
      %v3092 = vunpack.c.h.b16 %v2964
      %v3093 = vunpack.c.l.b16 %v2965
      %v3094 = vunpack.c.h.b16 %v2965
      %v3095 = vunpack.c.l.b16 %v2966
      %v3096 = vunpack.c.h.b16 %v2966
      %v3097 = vunpack.c.l.b16 %v2967
      %v3098 = vunpack.c.h.b16 %v2967
      %v3099 = vunpack.c.l.b16 %v2968
      %v3100 = vunpack.c.h.b16 %v2968
      %v3101 = vunpack.c.l.b16 %v2969
      %v3102 = vunpack.c.h.b16 %v2969
      %v3103 = vunpack.c.l.b16 %v2970
      %v3104 = vunpack.c.h.b16 %v2970
      %v3105 = vunpack.c.l.b16 %v2971
      %v3106 = vunpack.c.h.b16 %v2971
      %v3107 = vunpack.c.l.b16 %v2972
      %v3108 = vunpack.c.h.b16 %v2972
      %v3109 = vunpack.c.l.b16 %v2973
      %v3110 = vunpack.c.h.b16 %v2973
      %v3111 = vunpack.c.l.b16 %v2974
      %v3112 = vunpack.c.h.b16 %v2974
      %v3113 = vunpack.c.l.b16 %v2975
      %v3114 = vunpack.c.h.b16 %v2975
      %v3115 = vunpack.c.l.b16 %v2976
      %v3116 = vunpack.c.h.b16 %v2976
      %v3117 = vunpack.c.l.b16 %v2977
      %v3118 = vunpack.c.h.b16 %v2977
      %v3119 = vunpack.c.l.b16 %v2978
      %v3120 = vunpack.c.h.b16 %v2978
      %v3121 = vunpack.c.l.b16 %v2979
      %v3122 = vunpack.c.h.b16 %v2979
      %v3123 = vunpack.c.l.b16 %v2980
      %v3124 = vunpack.c.h.b16 %v2980
      %v3125 = vpack.c.b16 %v3033, %v3029
      %v3126 = vpack.c.b16 %v3034, %v3030
      %v3127 = vpack.c.b16 %v3035, %v3031
      %v3128 = vpack.c.b16 %v3036, %v3032
      %v3129 = vpack.c.b16 %v3041, %v3037
      %v3130 = vpack.c.b16 %v3042, %v3038
      %v3131 = vpack.c.b16 %v3043, %v3039
      %v3132 = vpack.c.b16 %v3044, %v3040
      %v3133 = vpack.c.b16 %v3049, %v3045
      %v3134 = vpack.c.b16 %v3050, %v3046
      %v3135 = vpack.c.b16 %v3051, %v3047
      %v3136 = vpack.c.b16 %v3052, %v3048
      %v3137 = vpack.c.b16 %v3057, %v3053
      %v3138 = vpack.c.b16 %v3058, %v3054
      %v3139 = vpack.c.b16 %v3059, %v3055
      %v3140 = vpack.c.b16 %v3060, %v3056
      %v3141 = vpack.c.b16 %v3065, %v3061
      %v3142 = vpack.c.b16 %v3066, %v3062
      %v3143 = vpack.c.b16 %v3067, %v3063
      %v3144 = vpack.c.b16 %v3068, %v3064
      %v3145 = vpack.c.b16 %v3073, %v3069
      %v3146 = vpack.c.b16 %v3074, %v3070
      %v3147 = vpack.c.b16 %v3075, %v3071
      %v3148 = vpack.c.b16 %v3076, %v3072
      %v3149 = vpack.c.b16 %v3081, %v3077
      %v3150 = vpack.c.b16 %v3082, %v3078
      %v3151 = vpack.c.b16 %v3083, %v3079
      %v3152 = vpack.c.b16 %v3084, %v3080
      %v3153 = vpack.c.b16 %v3089, %v3085
      %v3154 = vpack.c.b16 %v3090, %v3086
      %v3155 = vpack.c.b16 %v3091, %v3087
      %v3156 = vpack.c.b16 %v3092, %v3088
      %v3157 = vpack.c.b16 %v3097, %v3093
      %v3158 = vpack.c.b16 %v3098, %v3094
      %v3159 = vpack.c.b16 %v3099, %v3095
      %v3160 = vpack.c.b16 %v3100, %v3096
      %v3161 = vpack.c.b16 %v3105, %v3101
      %v3162 = vpack.c.b16 %v3106, %v3102
      %v3163 = vpack.c.b16 %v3107, %v3103
      %v3164 = vpack.c.b16 %v3108, %v3104
      %v3165 = vpack.c.b16 %v3113, %v3109
      %v3166 = vpack.c.b16 %v3114, %v3110
      %v3167 = vpack.c.b16 %v3115, %v3111
      %v3168 = vpack.c.b16 %v3116, %v3112
      %v3169 = vpack.c.b16 %v3121, %v3117
      %v3170 = vpack.c.b16 %v3122, %v3118
      %v3171 = vpack.c.b16 %v3123, %v3119
      %v3172 = vpack.c.b16 %v3124, %v3120
      %3221 = vmatprep.subr.bf16.mxu0 %v3154
      %3222 = vmatpush1.bf16.msra.mxu0 %v3153
      %3223 = vmatprep.subr.bf16.mxu0 %v3150
      %3224 = vmatpush1.bf16.msra.mxu0 %v3149
      %3225 = vmatprep.subr.bf16.mxu0 %v3146
      %3226 = vmatpush1.bf16.msra.mxu0 %v3145
      %3227 = vmatprep.subr.bf16.mxu0 %v3142
      %3228 = vmatpush1.bf16.msra.mxu0 %v3141
      %3229 = vmatprep.subr.bf16.mxu0 %v3138
      %3230 = vmatpush1.bf16.msra.mxu0 %v3137
      %3231 = vmatprep.subr.bf16.mxu0 %v3134
      %3232 = vmatpush1.bf16.msra.mxu0 %v3133
      %3233 = vmatprep.subr.bf16.mxu0 %v3130
      %3234 = vmatpush1.bf16.msra.mxu0 %v3129
      %3235 = vmatprep.subr.bf16.mxu0 %v3126
      %3236 = vmatpush1.bf16.msra.mxu0 %v3125
      %3237 = vmatprep.subr.bf16.mxu0 0
      %3238 = vmatpush2.bf16.msra.mxu0 0
      %3239 = vmatprep.subr.bf16.mxu0 0
      %3240 = vmatpush2.bf16.msra.mxu0 0
      %3241 = vmatprep.subr.bf16.mxu0 0
      %3242 = vmatpush2.bf16.msra.mxu0 0
      %3243 = vmatprep.subr.bf16.mxu0 0
      %3244 = vmatpush2.bf16.msra.mxu0 0
      %3245 = vmatprep.subr.bf16.mxu0 %v3170
      %3246 = vmatpush2.bf16.msra.mxu0 %v3169
      %3247 = vmatprep.subr.bf16.mxu0 %v3166
      %3248 = vmatpush2.bf16.msra.mxu0 %v3165
      %3249 = vmatprep.subr.bf16.mxu0 %v3162
      %3250 = vmatpush2.bf16.msra.mxu0 %v3161
      %3251 = vmatprep.subr.bf16.mxu0 %v3158
      %3252 = vmatpush2.bf16.msra.mxu0 %v3157
      %3253 = vmatprep.mubr.bf16.mxu0 %v1394
      %3254 = vmatmul.mubr.bf16.gmra.mxu0 %v1385
      %v3255 = vpop.f32.mrf.mxu0
      %v3256 = vadd.f32 0.0, %v3255
      %v3257 = vpop.f32.mrf.mxu0
      %v3258 = vadd.f32 0.0, %v3257
      %v3259 = vpop.f32.mrf.mxu0
      %v3260 = vadd.f32 0.0, %v3259
      %v3261 = vpop.f32.mrf.mxu0
      %v3262 = vadd.f32 0.0, %v3261
      %3263 = vdwg.mxu0
      %3264 = vmatprep.subr.bf16.mxu0 %v3156
      %3265 = vmatpush1.bf16.msra.mxu0 %v3155
      %3266 = vmatprep.subr.bf16.mxu0 %v3152
      %3267 = vmatpush1.bf16.msra.mxu0 %v3151
      %3268 = vmatprep.subr.bf16.mxu0 %v3148
      %3269 = vmatpush1.bf16.msra.mxu0 %v3147
      %3270 = vmatprep.subr.bf16.mxu0 %v3144
      %3271 = vmatpush1.bf16.msra.mxu0 %v3143
      %3272 = vmatprep.subr.bf16.mxu0 %v3140
      %3273 = vmatpush1.bf16.msra.mxu0 %v3139
      %3274 = vmatprep.subr.bf16.mxu0 %v3136
      %3275 = vmatpush1.bf16.msra.mxu0 %v3135
      %3276 = vmatprep.subr.bf16.mxu0 %v3132
      %3277 = vmatpush1.bf16.msra.mxu0 %v3131
      %3278 = vmatprep.subr.bf16.mxu0 %v3128
      %3279 = vmatpush1.bf16.msra.mxu0 %v3127
      %3280 = vmatprep.subr.bf16.mxu0 0
      %3281 = vmatpush2.bf16.msra.mxu0 0
      %3282 = vmatprep.subr.bf16.mxu0 0
      %3283 = vmatpush2.bf16.msra.mxu0 0
      %3284 = vmatprep.subr.bf16.mxu0 0
      %3285 = vmatpush2.bf16.msra.mxu0 0
      %3286 = vmatprep.subr.bf16.mxu0 0
      %3287 = vmatpush2.bf16.msra.mxu0 0
      %3288 = vmatprep.subr.bf16.mxu0 %v3172
      %3289 = vmatpush2.bf16.msra.mxu0 %v3171
      %3290 = vmatprep.subr.bf16.mxu0 %v3168
      %3291 = vmatpush2.bf16.msra.mxu0 %v3167
      %3292 = vmatprep.subr.bf16.mxu0 %v3164
      %3293 = vmatpush2.bf16.msra.mxu0 %v3163
      %3294 = vmatprep.subr.bf16.mxu0 %v3160
      %3295 = vmatpush2.bf16.msra.mxu0 %v3159
      %3296 = vmatprep.mubr.bf16.mxu0 %v1394
      %3297 = vmatmul.mubr.bf16.gmra.mxu0 %v1385
      %v3298 = vpop.f32.mrf.mxu0
      %v3299 = vadd.f32 0.0, %v3298
      %v3300 = vpop.f32.mrf.mxu0
      %v3301 = vadd.f32 0.0, %v3300
      %v3302 = vpop.f32.mrf.mxu0
      %v3303 = vadd.f32 0.0, %v3302
      %v3304 = vpop.f32.mrf.mxu0
      %v3305 = vadd.f32 0.0, %v3304
      %3306 = vdwg.mxu0
      %v3307 = vadd.f32 %v2625, %v3256
      %v3308 = vadd.f32 %v2626, %v3258
      %v3309 = vadd.f32 %v2627, %v3299
      %v3310 = vadd.f32 %v2628, %v3301
      %v3311 = vadd.f32 %v2629, %v3260
      %v3312 = vadd.f32 %v2630, %v3262
      %v3313 = vadd.f32 %v2631, %v3303
      %v3314 = vadd.f32 %v2632, %v3305
      %3315 = vmatprep.subr.bf16.mxu0 %v3154
      %3316 = vmatpush1.bf16.msra.mxu0 %v3153
      %3317 = vmatprep.subr.bf16.mxu0 %v3150
      %3318 = vmatpush1.bf16.msra.mxu0 %v3149
      %3319 = vmatprep.subr.bf16.mxu0 %v3146
      %3320 = vmatpush1.bf16.msra.mxu0 %v3145
      %3321 = vmatprep.subr.bf16.mxu0 %v3142
      %3322 = vmatpush1.bf16.msra.mxu0 %v3141
      %3323 = vmatprep.subr.bf16.mxu0 %v3138
      %3324 = vmatpush1.bf16.msra.mxu0 %v3137
      %3325 = vmatprep.subr.bf16.mxu0 %v3134
      %3326 = vmatpush1.bf16.msra.mxu0 %v3133
      %3327 = vmatprep.subr.bf16.mxu0 %v3130
      %3328 = vmatpush1.bf16.msra.mxu0 %v3129
      %3329 = vmatprep.subr.bf16.mxu0 %v3126
      %3330 = vmatpush1.bf16.msra.mxu0 %v3125
      %3331 = vmatprep.subr.bf16.mxu0 0
      %3332 = vmatpush2.bf16.msra.mxu0 0
      %3333 = vmatprep.subr.bf16.mxu0 0
      %3334 = vmatpush2.bf16.msra.mxu0 0
      %3335 = vmatprep.subr.bf16.mxu0 0
      %3336 = vmatpush2.bf16.msra.mxu0 0
      %3337 = vmatprep.subr.bf16.mxu0 0
      %3338 = vmatpush2.bf16.msra.mxu0 0
      %3339 = vmatprep.subr.bf16.mxu0 %v3170
      %3340 = vmatpush2.bf16.msra.mxu0 %v3169
      %3341 = vmatprep.subr.bf16.mxu0 %v3166
      %3342 = vmatpush2.bf16.msra.mxu0 %v3165
      %3343 = vmatprep.subr.bf16.mxu0 %v3162
      %3344 = vmatpush2.bf16.msra.mxu0 %v3161
      %3345 = vmatprep.subr.bf16.mxu0 %v3158
      %3346 = vmatpush2.bf16.msra.mxu0 %v3157
      %3347 = vmatprep.mubr.bf16.mxu0 %v2154
      %3348 = vmatmul.mubr.bf16.gmra.mxu0 %v2145
      %v3349 = vpop.f32.mrf.mxu0
      %v3350 = vadd.f32 0.0, %v3349
      %v3351 = vpop.f32.mrf.mxu0
      %v3352 = vadd.f32 0.0, %v3351
      %v3353 = vpop.f32.mrf.mxu0
      %v3354 = vadd.f32 0.0, %v3353
      %v3355 = vpop.f32.mrf.mxu0
      %v3356 = vadd.f32 0.0, %v3355
      %3357 = vdwg.mxu0
      %3358 = vmatprep.subr.bf16.mxu0 %v3156
      %3359 = vmatpush1.bf16.msra.mxu0 %v3155
      %3360 = vmatprep.subr.bf16.mxu0 %v3152
      %3361 = vmatpush1.bf16.msra.mxu0 %v3151
      %3362 = vmatprep.subr.bf16.mxu0 %v3148
      %3363 = vmatpush1.bf16.msra.mxu0 %v3147
      %3364 = vmatprep.subr.bf16.mxu0 %v3144
      %3365 = vmatpush1.bf16.msra.mxu0 %v3143
      %3366 = vmatprep.subr.bf16.mxu0 %v3140
      %3367 = vmatpush1.bf16.msra.mxu0 %v3139
      %3368 = vmatprep.subr.bf16.mxu0 %v3136
      %3369 = vmatpush1.bf16.msra.mxu0 %v3135
      %3370 = vmatprep.subr.bf16.mxu0 %v3132
      %3371 = vmatpush1.bf16.msra.mxu0 %v3131
      %3372 = vmatprep.subr.bf16.mxu0 %v3128
      %3373 = vmatpush1.bf16.msra.mxu0 %v3127
      %3374 = vmatprep.subr.bf16.mxu0 0
      %3375 = vmatpush2.bf16.msra.mxu0 0
      %3376 = vmatprep.subr.bf16.mxu0 0
      %3377 = vmatpush2.bf16.msra.mxu0 0
      %3378 = vmatprep.subr.bf16.mxu0 0
      %3379 = vmatpush2.bf16.msra.mxu0 0
      %3380 = vmatprep.subr.bf16.mxu0 0
      %3381 = vmatpush2.bf16.msra.mxu0 0
      %3382 = vmatprep.subr.bf16.mxu0 %v3172
      %3383 = vmatpush2.bf16.msra.mxu0 %v3171
      %3384 = vmatprep.subr.bf16.mxu0 %v3168
      %3385 = vmatpush2.bf16.msra.mxu0 %v3167
      %3386 = vmatprep.subr.bf16.mxu0 %v3164
      %3387 = vmatpush2.bf16.msra.mxu0 %v3163
      %3388 = vmatprep.subr.bf16.mxu0 %v3160
      %3389 = vmatpush2.bf16.msra.mxu0 %v3159
      %3390 = vmatprep.mubr.bf16.mxu0 %v2154
      %3391 = vmatmul.mubr.bf16.gmra.mxu0 %v2145
      %v3392 = vpop.f32.mrf.mxu0
      %v3393 = vadd.f32 0.0, %v3392
      %v3394 = vpop.f32.mrf.mxu0
      %v3395 = vadd.f32 0.0, %v3394
      %v3396 = vpop.f32.mrf.mxu0
      %v3397 = vadd.f32 0.0, %v3396
      %v3398 = vpop.f32.mrf.mxu0
      %v3399 = vadd.f32 0.0, %v3398
      %3400 = vdwg.mxu0
      %v3401 = vadd.f32 %v2719, %v3350
      %v3402 = vadd.f32 %v2720, %v3352
      %v3403 = vadd.f32 %v2721, %v3393
      %v3404 = vadd.f32 %v2722, %v3395
      %v3405 = vadd.f32 %v2723, %v3354
      %v3406 = vadd.f32 %v2724, %v3356
      %v3407 = vadd.f32 %v2725, %v3397
      %v3408 = vadd.f32 %v2726, %v3399
      %3409 = vmatprep.subr.bf16.mxu0 %v3154
      %3410 = vmatpush1.bf16.msra.mxu0 %v3153
      %3411 = vmatprep.subr.bf16.mxu0 %v3150
      %3412 = vmatpush1.bf16.msra.mxu0 %v3149
      %3413 = vmatprep.subr.bf16.mxu0 %v3146
      %3414 = vmatpush1.bf16.msra.mxu0 %v3145
      %3415 = vmatprep.subr.bf16.mxu0 %v3142
      %3416 = vmatpush1.bf16.msra.mxu0 %v3141
      %3417 = vmatprep.subr.bf16.mxu0 %v3138
      %3418 = vmatpush1.bf16.msra.mxu0 %v3137
      %3419 = vmatprep.subr.bf16.mxu0 %v3134
      %3420 = vmatpush1.bf16.msra.mxu0 %v3133
      %3421 = vmatprep.subr.bf16.mxu0 %v3130
      %3422 = vmatpush1.bf16.msra.mxu0 %v3129
      %3423 = vmatprep.subr.bf16.mxu0 %v3126
      %3424 = vmatpush1.bf16.msra.mxu0 %v3125
      %3425 = vmatprep.subr.bf16.mxu0 0
      %3426 = vmatpush2.bf16.msra.mxu0 0
      %3427 = vmatprep.subr.bf16.mxu0 0
      %3428 = vmatpush2.bf16.msra.mxu0 0
      %3429 = vmatprep.subr.bf16.mxu0 0
      %3430 = vmatpush2.bf16.msra.mxu0 0
      %3431 = vmatprep.subr.bf16.mxu0 0
      %3432 = vmatpush2.bf16.msra.mxu0 0
      %3433 = vmatprep.subr.bf16.mxu0 %v3170
      %3434 = vmatpush2.bf16.msra.mxu0 %v3169
      %3435 = vmatprep.subr.bf16.mxu0 %v3166
      %3436 = vmatpush2.bf16.msra.mxu0 %v3165
      %3437 = vmatprep.subr.bf16.mxu0 %v3162
      %3438 = vmatpush2.bf16.msra.mxu0 %v3161
      %3439 = vmatprep.subr.bf16.mxu0 %v3158
      %3440 = vmatpush2.bf16.msra.mxu0 %v3157
      %3441 = vmatprep.mubr.bf16.mxu0 %v2836
      %3442 = vmatmul.mubr.bf16.gmra.mxu0 %v2827
      %v3443 = vpop.f32.mrf.mxu0
      %v3444 = vadd.f32 0.0, %v3443
      %v3445 = vpop.f32.mrf.mxu0
      %v3446 = vadd.f32 0.0, %v3445
      %v3447 = vpop.f32.mrf.mxu0
      %v3448 = vadd.f32 0.0, %v3447
      %v3449 = vpop.f32.mrf.mxu0
      %v3450 = vadd.f32 0.0, %v3449
      %3451 = vdwg.mxu0
      %3452 = vmatprep.subr.bf16.mxu0 %v3156
      %3453 = vmatpush1.bf16.msra.mxu0 %v3155
      %3454 = vmatprep.subr.bf16.mxu0 %v3152
      %3455 = vmatpush1.bf16.msra.mxu0 %v3151
      %3456 = vmatprep.subr.bf16.mxu0 %v3148
      %3457 = vmatpush1.bf16.msra.mxu0 %v3147
      %3458 = vmatprep.subr.bf16.mxu0 %v3144
      %3459 = vmatpush1.bf16.msra.mxu0 %v3143
      %3460 = vmatprep.subr.bf16.mxu0 %v3140
      %3461 = vmatpush1.bf16.msra.mxu0 %v3139
      %3462 = vmatprep.subr.bf16.mxu0 %v3136
      %3463 = vmatpush1.bf16.msra.mxu0 %v3135
      %3464 = vmatprep.subr.bf16.mxu0 %v3132
      %3465 = vmatpush1.bf16.msra.mxu0 %v3131
      %3466 = vmatprep.subr.bf16.mxu0 %v3128
      %3467 = vmatpush1.bf16.msra.mxu0 %v3127
      %3468 = vmatprep.subr.bf16.mxu0 0
      %3469 = vmatpush2.bf16.msra.mxu0 0
      %3470 = vmatprep.subr.bf16.mxu0 0
      %3471 = vmatpush2.bf16.msra.mxu0 0
      %3472 = vmatprep.subr.bf16.mxu0 0
      %3473 = vmatpush2.bf16.msra.mxu0 0
      %3474 = vmatprep.subr.bf16.mxu0 0
      %3475 = vmatpush2.bf16.msra.mxu0 0
      %3476 = vmatprep.subr.bf16.mxu0 %v3172
      %3477 = vmatpush2.bf16.msra.mxu0 %v3171
      %3478 = vmatprep.subr.bf16.mxu0 %v3168
      %3479 = vmatpush2.bf16.msra.mxu0 %v3167
      %3480 = vmatprep.subr.bf16.mxu0 %v3164
      %3481 = vmatpush2.bf16.msra.mxu0 %v3163
      %3482 = vmatprep.subr.bf16.mxu0 %v3160
      %3483 = vmatpush2.bf16.msra.mxu0 %v3159
      %3484 = vmatprep.mubr.bf16.mxu0 %v2836
      %3485 = vmatmul.mubr.bf16.gmra.mxu0 %v2827
      %v3486 = vpop.f32.mrf.mxu0
      %v3487 = vadd.f32 0.0, %v3486
      %v3488 = vpop.f32.mrf.mxu0
      %v3489 = vadd.f32 0.0, %v3488
      %v3490 = vpop.f32.mrf.mxu0
      %v3491 = vadd.f32 0.0, %v3490
      %v3492 = vpop.f32.mrf.mxu0
      %v3493 = vadd.f32 0.0, %v3492
      %3494 = vdwg.mxu0
      %v3495 = vadd.f32 %v2813, %v3444
      %v3496 = vadd.f32 %v2814, %v3446
      %v3497 = vadd.f32 %v2815, %v3487
      %v3498 = vadd.f32 %v2816, %v3489
      %v3499 = vadd.f32 %v2817, %v3448
      %v3500 = vadd.f32 %v2818, %v3450
      %v3501 = vadd.f32 %v2819, %v3491
      %v3502 = vadd.f32 %v2820, %v3493
      %v3504 = vshrl.u32 %v1201, 16
      %v3506 = vshll.u32 %v1201, 16
      %v3508 = vrot.slane %v3506, 1
      %v3509 = vor.u32 %v3504, %v3508
      %v3510 = vshrl.u32 %v1202, 16
      %v3512 = vshll.u32 %v1202, 16
      %v3514 = vrot.slane %v3512, 1
      %v3515 = vor.u32 %v3510, %v3514
      %v3518 = vsel %vm583, %v3515, 0
      %3520 = vmatprep.subr.bf16.mxu0 %v3154
      %3521 = vmatpush1.bf16.msra.mxu0 %v3153
      %3522 = vmatprep.subr.bf16.mxu0 %v3150
      %3523 = vmatpush1.bf16.msra.mxu0 %v3149
      %3524 = vmatprep.subr.bf16.mxu0 %v3146
      %3525 = vmatpush1.bf16.msra.mxu0 %v3145
      %3526 = vmatprep.subr.bf16.mxu0 %v3142
      %3527 = vmatpush1.bf16.msra.mxu0 %v3141
      %3528 = vmatprep.subr.bf16.mxu0 %v3138
      %3529 = vmatpush1.bf16.msra.mxu0 %v3137
      %3530 = vmatprep.subr.bf16.mxu0 %v3134
      %3531 = vmatpush1.bf16.msra.mxu0 %v3133
      %3532 = vmatprep.subr.bf16.mxu0 %v3130
      %3533 = vmatpush1.bf16.msra.mxu0 %v3129
      %3534 = vmatprep.subr.bf16.mxu0 %v3126
      %3535 = vmatpush1.bf16.msra.mxu0 %v3125
      %3536 = vmatprep.subr.bf16.mxu0 0
      %3537 = vmatpush2.bf16.msra.mxu0 0
      %3538 = vmatprep.subr.bf16.mxu0 0
      %3539 = vmatpush2.bf16.msra.mxu0 0
      %3540 = vmatprep.subr.bf16.mxu0 0
      %3541 = vmatpush2.bf16.msra.mxu0 0
      %3542 = vmatprep.subr.bf16.mxu0 0
      %3543 = vmatpush2.bf16.msra.mxu0 0
      %3544 = vmatprep.subr.bf16.mxu0 %v3170
      %3545 = vmatpush2.bf16.msra.mxu0 %v3169
      %3546 = vmatprep.subr.bf16.mxu0 %v3166
      %3547 = vmatpush2.bf16.msra.mxu0 %v3165
      %3548 = vmatprep.subr.bf16.mxu0 %v3162
      %3549 = vmatpush2.bf16.msra.mxu0 %v3161
      %3550 = vmatprep.subr.bf16.mxu0 %v3158
      %3551 = vmatpush2.bf16.msra.mxu0 %v3157
      %3552 = vmatprep.mubr.bf16.mxu0 %v3518
      %3553 = vmatmul.mubr.bf16.gmra.mxu0 %v3509
      %v3554 = vpop.f32.mrf.mxu0
      %v3555 = vadd.f32 0.0, %v3554
      %v3556 = vpop.f32.mrf.mxu0
      %v3557 = vadd.f32 0.0, %v3556
      %v3558 = vpop.f32.mrf.mxu0
      %v3559 = vadd.f32 0.0, %v3558
      %v3560 = vpop.f32.mrf.mxu0
      %v3561 = vadd.f32 0.0, %v3560
      %3562 = vdwg.mxu0
      %3563 = vmatprep.subr.bf16.mxu0 %v3156
      %3564 = vmatpush1.bf16.msra.mxu0 %v3155
      %3565 = vmatprep.subr.bf16.mxu0 %v3152
      %3566 = vmatpush1.bf16.msra.mxu0 %v3151
      %3567 = vmatprep.subr.bf16.mxu0 %v3148
      %3568 = vmatpush1.bf16.msra.mxu0 %v3147
      %3569 = vmatprep.subr.bf16.mxu0 %v3144
      %3570 = vmatpush1.bf16.msra.mxu0 %v3143
      %3571 = vmatprep.subr.bf16.mxu0 %v3140
      %3572 = vmatpush1.bf16.msra.mxu0 %v3139
      %3573 = vmatprep.subr.bf16.mxu0 %v3136
      %3574 = vmatpush1.bf16.msra.mxu0 %v3135
      %3575 = vmatprep.subr.bf16.mxu0 %v3132
      %3576 = vmatpush1.bf16.msra.mxu0 %v3131
      %3577 = vmatprep.subr.bf16.mxu0 %v3128
      %3578 = vmatpush1.bf16.msra.mxu0 %v3127
      %3579 = vmatprep.subr.bf16.mxu0 0
      %3580 = vmatpush2.bf16.msra.mxu0 0
      %3581 = vmatprep.subr.bf16.mxu0 0
      %3582 = vmatpush2.bf16.msra.mxu0 0
      %3583 = vmatprep.subr.bf16.mxu0 0
      %3584 = vmatpush2.bf16.msra.mxu0 0
      %3585 = vmatprep.subr.bf16.mxu0 0
      %3586 = vmatpush2.bf16.msra.mxu0 0
      %3587 = vmatprep.subr.bf16.mxu0 %v3172
      %3588 = vmatpush2.bf16.msra.mxu0 %v3171
      %3589 = vmatprep.subr.bf16.mxu0 %v3168
      %3590 = vmatpush2.bf16.msra.mxu0 %v3167
      %3591 = vmatprep.subr.bf16.mxu0 %v3164
      %3592 = vmatpush2.bf16.msra.mxu0 %v3163
      %3593 = vmatprep.subr.bf16.mxu0 %v3160
      %3594 = vmatpush2.bf16.msra.mxu0 %v3159
      %3595 = vmatprep.mubr.bf16.mxu0 %v3518
      %3596 = vmatmul.mubr.bf16.gmra.mxu0 %v3509
      %v3597 = vpop.f32.mrf.mxu0
      %v3598 = vadd.f32 0.0, %v3597
      %v3599 = vpop.f32.mrf.mxu0
      %v3600 = vadd.f32 0.0, %v3599
      %v3601 = vpop.f32.mrf.mxu0
      %v3602 = vadd.f32 0.0, %v3601
      %v3603 = vpop.f32.mrf.mxu0
      %v3604 = vadd.f32 0.0, %v3603
      %3605 = vdwg.mxu0
      %v3606 = vadd.f32 %v2924, %v3555
      %v3607 = vadd.f32 %v2925, %v3557
      %v3608 = vadd.f32 %v2926, %v3598
      %v3609 = vadd.f32 %v2927, %v3600
      %v3610 = vadd.f32 %v2928, %v3559
      %v3611 = vadd.f32 %v2929, %v3561
      %v3612 = vadd.f32 %v2930, %v3602
      %v3613 = vadd.f32 %v2931, %v3604
      %v3614 = vmax.f32 %v3307, %v3401
      %v3615 = vmax.f32 %v3308, %v3402
      %v3616 = vmax.f32 %v3309, %v3403
      %v3617 = vmax.f32 %v3310, %v3404
      %v3618 = vmax.f32 %v3311, %v3405
      %v3619 = vmax.f32 %v3312, %v3406
      %v3620 = vmax.f32 %v3313, %v3407
      %v3621 = vmax.f32 %v3314, %v3408
      %v3622 = vmax.f32 %v3614, %v3616
      %v3623 = vmax.f32 %v3615, %v3617
      %v3624 = vmax.f32 %v3618, %v3620
      %v3625 = vmax.f32 %v3619, %v3621
      %v3626 = vld [vmem:[%s2] sm:$0x3]
      %v3628 = vlaneseq
      %v3629 = vshrl.u32 %v3628, 7
      %v3630 = vsub.s32 0, %v3629
      %v3631 = vrot.slane %v3626, %v3630
      %v3632 = vlaneseq
      %v3633 = vshrl.u32 %v3632, 7
      %v3634 = vsub.s32 1, %v3633
      %v3635 = vrot.slane %v3626, %v3634
      %v3638 = vadd.f32 %v3622, %v3631
      %v3639 = vadd.f32 %v3623, %v3635
      %v3640 = vadd.f32 %v3624, %v3631
      %v3641 = vadd.f32 %v3625, %v3635
      %v3642 = vmax.f32 %v3638, 0.0
      %v3643 = vmax.f32 %v3639, 0.0
      %v3644 = vmax.f32 %v3640, 0.0
      %v3645 = vmax.f32 %v3641, 0.0
      %v3646 = vpack.c.bf16 %v3644, %v3642
      %v3647 = vpack.c.bf16 %v3645, %v3643
      %v3648 = vmax.f32 %v3495, %v3606
      %v3649 = vmax.f32 %v3496, %v3607
      %v3650 = vmax.f32 %v3497, %v3608
      %v3651 = vmax.f32 %v3498, %v3609
      %v3652 = vmax.f32 %v3499, %v3610
      %v3653 = vmax.f32 %v3500, %v3611
      %v3654 = vmax.f32 %v3501, %v3612
      %v3655 = vmax.f32 %v3502, %v3613
      %v3656 = vmax.f32 %v3648, %v3650
      %v3657 = vmax.f32 %v3649, %v3651
      %v3658 = vmax.f32 %v3652, %v3654
      %v3659 = vmax.f32 %v3653, %v3655
      %v3660 = vadd.f32 %v3656, %v3631
      %v3661 = vadd.f32 %v3657, %v3635
      %v3662 = vadd.f32 %v3658, %v3631
      %v3663 = vadd.f32 %v3659, %v3635
      %v3664 = vmax.f32 %v3660, 0.0
      %v3665 = vmax.f32 %v3661, 0.0
      %v3666 = vmax.f32 %v3662, 0.0
      %v3667 = vmax.f32 %v3663, 0.0
      %v3668 = vpack.c.bf16 %v3666, %v3664
      %v3669 = vpack.c.bf16 %v3667, %v3665
      %v3670 = vld [vmem:[%s3] sm:$0xff]
      %v3671 = vld [vmem:[%s3 + $0x8] sm:$0xff]
      %v3672 = vld [vmem:[%s3 + $0x10] sm:$0xff]
      %v3673 = vld [vmem:[%s3 + $0x18] sm:$0xff]
      %v3674 = vld [vmem:[%s3 + $0x20] sm:$0xff]
      %v3675 = vld [vmem:[%s3 + $0x28] sm:$0xff]
      %v3676 = vld [vmem:[%s3 + $0x30] sm:$0xff]
      %v3677 = vld [vmem:[%s3 + $0x38] sm:$0xff]
      %v3678 = vld [vmem:[%s3 + $0x40] sm:$0xff]
      %v3679 = vld [vmem:[%s3 + $0x48] sm:$0xff]
      %v3680 = vld [vmem:[%s3 + $0x50] sm:$0xff]
      %v3681 = vld [vmem:[%s3 + $0x58] sm:$0xff]
      %v3682 = vld [vmem:[%s3 + $0x60] sm:$0xff]
      %v3683 = vld [vmem:[%s3 + $0x68] sm:$0xff]
      %v3684 = vld [vmem:[%s3 + $0x70] sm:$0xff]
      %v3685 = vld [vmem:[%s3 + $0x78] sm:$0xff]
      %v3686 = vld [vmem:[%s3 + $0x80] sm:$0xff]
      %v3687 = vld [vmem:[%s3 + $0x88] sm:$0xff]
      %v3688 = vld [vmem:[%s3 + $0x90] sm:$0xff]
      %v3689 = vld [vmem:[%s3 + $0x98] sm:$0xff]
      %v3690 = vld [vmem:[%s3 + $0xa0] sm:$0xff]
      %v3691 = vld [vmem:[%s3 + $0xa8] sm:$0xff]
      %v3692 = vld [vmem:[%s3 + $0xb0] sm:$0xff]
      %v3693 = vld [vmem:[%s3 + $0xb8] sm:$0xff]
      %v3694 = vld [vmem:[%s3 + $0xc0] sm:$0xff]
      %v3695 = vld [vmem:[%s3 + $0xc8] sm:$0xff]
      %v3696 = vld [vmem:[%s3 + $0xd0] sm:$0xff]
      %v3697 = vld [vmem:[%s3 + $0xd8] sm:$0xff]
      %v3698 = vld [vmem:[%s3 + $0xe0] sm:$0xff]
      %v3699 = vld [vmem:[%s3 + $0xe8] sm:$0xff]
      %v3700 = vld [vmem:[%s3 + $0xf0] sm:$0xff]
      %v3701 = vld [vmem:[%s3 + $0xf8] sm:$0xff]
      %v3702 = vld [vmem:[%s3 + $0x100] sm:$0xff]
      %v3703 = vld [vmem:[%s3 + $0x108] sm:$0xff]
      %v3704 = vld [vmem:[%s3 + $0x110] sm:$0xff]
      %v3705 = vld [vmem:[%s3 + $0x118] sm:$0xff]
      %v3706 = vld [vmem:[%s3 + $0x120] sm:$0xff]
      %v3707 = vld [vmem:[%s3 + $0x128] sm:$0xff]
      %v3708 = vld [vmem:[%s3 + $0x130] sm:$0xff]
      %v3709 = vld [vmem:[%s3 + $0x138] sm:$0xff]
      %v3710 = vld [vmem:[%s3 + $0x140] sm:$0xff]
      %v3711 = vld [vmem:[%s3 + $0x148] sm:$0xff]
      %v3712 = vld [vmem:[%s3 + $0x150] sm:$0xff]
      %v3713 = vld [vmem:[%s3 + $0x158] sm:$0xff]
      %v3714 = vld [vmem:[%s3 + $0x160] sm:$0xff]
      %v3715 = vld [vmem:[%s3 + $0x168] sm:$0xff]
      %v3716 = vld [vmem:[%s3 + $0x170] sm:$0xff]
      %v3717 = vld [vmem:[%s3 + $0x178] sm:$0xff]
      %v3718 = vld [vmem:[%s3 + $0x180] sm:$0xff]
      %v3719 = vld [vmem:[%s3 + $0x188] sm:$0xff]
      %v3720 = vld [vmem:[%s3 + $0x190] sm:$0xff]
      %v3721 = vld [vmem:[%s3 + $0x198] sm:$0xff]
      %v3722 = vld [vmem:[%s3 + $0x1a0] sm:$0xff]
      %v3723 = vld [vmem:[%s3 + $0x1a8] sm:$0xff]
      %v3724 = vld [vmem:[%s3 + $0x1b0] sm:$0xff]
      %v3725 = vld [vmem:[%s3 + $0x1b8] sm:$0xff]
      %v3726 = vld [vmem:[%s3 + $0x1c0] sm:$0xff]
      %v3727 = vld [vmem:[%s3 + $0x1c8] sm:$0xff]
      %v3728 = vld [vmem:[%s3 + $0x1d0] sm:$0xff]
      %v3729 = vld [vmem:[%s3 + $0x1d8] sm:$0xff]
      %v3730 = vld [vmem:[%s3 + $0x1e0] sm:$0xff]
      %v3731 = vld [vmem:[%s3 + $0x1e8] sm:$0xff]
      %v3732 = vld [vmem:[%s3 + $0x1f0] sm:$0xff]
      %v3733 = vld [vmem:[%s3 + $0x1f8] sm:$0xff]
      %s3734 = scalar_lea.vmem %s3, 512
      %v3735 = vld [vmem:[%s3734] sm:$0xff]
      %v3736 = vld [vmem:[%s3734 + $0x8] sm:$0xff]
      %v3737 = vld [vmem:[%s3734 + $0x10] sm:$0xff]
      %v3738 = vld [vmem:[%s3734 + $0x18] sm:$0xff]
      %v3739 = vld [vmem:[%s3734 + $0x20] sm:$0xff]
      %v3740 = vld [vmem:[%s3734 + $0x28] sm:$0xff]
      %v3741 = vld [vmem:[%s3734 + $0x30] sm:$0xff]
      %v3742 = vld [vmem:[%s3734 + $0x38] sm:$0xff]
      %v3743 = vld [vmem:[%s3734 + $0x40] sm:$0xff]
      %v3744 = vld [vmem:[%s3734 + $0x48] sm:$0xff]
      %v3745 = vld [vmem:[%s3734 + $0x50] sm:$0xff]
      %v3746 = vld [vmem:[%s3734 + $0x58] sm:$0xff]
      %v3747 = vld [vmem:[%s3734 + $0x60] sm:$0xff]
      %v3748 = vld [vmem:[%s3734 + $0x68] sm:$0xff]
      %v3749 = vld [vmem:[%s3734 + $0x70] sm:$0xff]
      %v3750 = vld [vmem:[%s3734 + $0x78] sm:$0xff]
      %v3751 = vld [vmem:[%s3734 + $0x80] sm:$0xff]
      %v3752 = vld [vmem:[%s3734 + $0x88] sm:$0xff]
      %v3753 = vld [vmem:[%s3734 + $0x90] sm:$0xff]
      %v3754 = vld [vmem:[%s3734 + $0x98] sm:$0xff]
      %v3755 = vld [vmem:[%s3734 + $0xa0] sm:$0xff]
      %v3756 = vld [vmem:[%s3734 + $0xa8] sm:$0xff]
      %v3757 = vld [vmem:[%s3734 + $0xb0] sm:$0xff]
      %v3758 = vld [vmem:[%s3734 + $0xb8] sm:$0xff]
      %v3759 = vld [vmem:[%s3734 + $0xc0] sm:$0xff]
      %v3760 = vld [vmem:[%s3734 + $0xc8] sm:$0xff]
      %v3761 = vld [vmem:[%s3734 + $0xd0] sm:$0xff]
      %v3762 = vld [vmem:[%s3734 + $0xd8] sm:$0xff]
      %v3763 = vld [vmem:[%s3734 + $0xe0] sm:$0xff]
      %v3764 = vld [vmem:[%s3734 + $0xe8] sm:$0xff]
      %v3765 = vld [vmem:[%s3734 + $0xf0] sm:$0xff]
      %v3766 = vld [vmem:[%s3734 + $0xf8] sm:$0xff]
      %v3767 = vld [vmem:[%s3734 + $0x100] sm:$0xff]
      %v3768 = vld [vmem:[%s3734 + $0x108] sm:$0xff]
      %v3769 = vld [vmem:[%s3734 + $0x110] sm:$0xff]
      %v3770 = vld [vmem:[%s3734 + $0x118] sm:$0xff]
      %v3771 = vld [vmem:[%s3734 + $0x120] sm:$0xff]
      %v3772 = vld [vmem:[%s3734 + $0x128] sm:$0xff]
      %v3773 = vld [vmem:[%s3734 + $0x130] sm:$0xff]
      %v3774 = vld [vmem:[%s3734 + $0x138] sm:$0xff]
      %v3775 = vld [vmem:[%s3734 + $0x140] sm:$0xff]
      %v3776 = vld [vmem:[%s3734 + $0x148] sm:$0xff]
      %v3777 = vld [vmem:[%s3734 + $0x150] sm:$0xff]
      %v3778 = vld [vmem:[%s3734 + $0x158] sm:$0xff]
      %v3779 = vld [vmem:[%s3734 + $0x160] sm:$0xff]
      %v3780 = vld [vmem:[%s3734 + $0x168] sm:$0xff]
      %v3781 = vld [vmem:[%s3734 + $0x170] sm:$0xff]
      %v3782 = vld [vmem:[%s3734 + $0x178] sm:$0xff]
      %v3783 = vld [vmem:[%s3734 + $0x180] sm:$0xff]
      %v3784 = vld [vmem:[%s3734 + $0x188] sm:$0xff]
      %v3785 = vld [vmem:[%s3734 + $0x190] sm:$0xff]
      %v3786 = vld [vmem:[%s3734 + $0x198] sm:$0xff]
      %v3787 = vld [vmem:[%s3734 + $0x1a0] sm:$0xff]
      %v3788 = vld [vmem:[%s3734 + $0x1a8] sm:$0xff]
      %v3789 = vld [vmem:[%s3734 + $0x1b0] sm:$0xff]
      %v3790 = vld [vmem:[%s3734 + $0x1b8] sm:$0xff]
      %v3791 = vld [vmem:[%s3734 + $0x1c0] sm:$0xff]
      %v3792 = vld [vmem:[%s3734 + $0x1c8] sm:$0xff]
      %v3793 = vld [vmem:[%s3734 + $0x1d0] sm:$0xff]
      %v3794 = vld [vmem:[%s3734 + $0x1d8] sm:$0xff]
      %v3795 = vld [vmem:[%s3734 + $0x1e0] sm:$0xff]
      %v3796 = vld [vmem:[%s3734 + $0x1e8] sm:$0xff]
      %v3797 = vld [vmem:[%s3734 + $0x1f0] sm:$0xff]
      %v3798 = vld [vmem:[%s3734 + $0x1f8] sm:$0xff]
      %v3863 = vunpack.c.l.b16 %v3735
      %v3864 = vunpack.c.h.b16 %v3735
      %v3865 = vunpack.c.l.b16 %v3736
      %v3866 = vunpack.c.h.b16 %v3736
      %v3867 = vunpack.c.l.b16 %v3737
      %v3868 = vunpack.c.h.b16 %v3737
      %v3869 = vunpack.c.l.b16 %v3738
      %v3870 = vunpack.c.h.b16 %v3738
      %v3871 = vunpack.c.l.b16 %v3739
      %v3872 = vunpack.c.h.b16 %v3739
      %v3873 = vunpack.c.l.b16 %v3740
      %v3874 = vunpack.c.h.b16 %v3740
      %v3875 = vunpack.c.l.b16 %v3741
      %v3876 = vunpack.c.h.b16 %v3741
      %v3877 = vunpack.c.l.b16 %v3742
      %v3878 = vunpack.c.h.b16 %v3742
      %v3879 = vunpack.c.l.b16 %v3743
      %v3880 = vunpack.c.h.b16 %v3743
      %v3881 = vunpack.c.l.b16 %v3744
      %v3882 = vunpack.c.h.b16 %v3744
      %v3883 = vunpack.c.l.b16 %v3745
      %v3884 = vunpack.c.h.b16 %v3745
      %v3885 = vunpack.c.l.b16 %v3746
      %v3886 = vunpack.c.h.b16 %v3746
      %v3887 = vunpack.c.l.b16 %v3747
      %v3888 = vunpack.c.h.b16 %v3747
      %v3889 = vunpack.c.l.b16 %v3748
      %v3890 = vunpack.c.h.b16 %v3748
      %v3891 = vunpack.c.l.b16 %v3749
      %v3892 = vunpack.c.h.b16 %v3749
      %v3893 = vunpack.c.l.b16 %v3750
      %v3894 = vunpack.c.h.b16 %v3750
      %v3895 = vunpack.c.l.b16 %v3751
      %v3896 = vunpack.c.h.b16 %v3751
      %v3897 = vunpack.c.l.b16 %v3752
      %v3898 = vunpack.c.h.b16 %v3752
      %v3899 = vunpack.c.l.b16 %v3753
      %v3900 = vunpack.c.h.b16 %v3753
      %v3901 = vunpack.c.l.b16 %v3754
      %v3902 = vunpack.c.h.b16 %v3754
      %v3903 = vunpack.c.l.b16 %v3755
      %v3904 = vunpack.c.h.b16 %v3755
      %v3905 = vunpack.c.l.b16 %v3756
      %v3906 = vunpack.c.h.b16 %v3756
      %v3907 = vunpack.c.l.b16 %v3757
      %v3908 = vunpack.c.h.b16 %v3757
      %v3909 = vunpack.c.l.b16 %v3758
      %v3910 = vunpack.c.h.b16 %v3758
      %v3911 = vunpack.c.l.b16 %v3759
      %v3912 = vunpack.c.h.b16 %v3759
      %v3913 = vunpack.c.l.b16 %v3760
      %v3914 = vunpack.c.h.b16 %v3760
      %v3915 = vunpack.c.l.b16 %v3761
      %v3916 = vunpack.c.h.b16 %v3761
      %v3917 = vunpack.c.l.b16 %v3762
      %v3918 = vunpack.c.h.b16 %v3762
      %v3919 = vunpack.c.l.b16 %v3763
      %v3920 = vunpack.c.h.b16 %v3763
      %v3921 = vunpack.c.l.b16 %v3764
      %v3922 = vunpack.c.h.b16 %v3764
      %v3923 = vunpack.c.l.b16 %v3765
      %v3924 = vunpack.c.h.b16 %v3765
      %v3925 = vunpack.c.l.b16 %v3766
      %v3926 = vunpack.c.h.b16 %v3766
      %v3927 = vunpack.c.l.b16 %v3767
      %v3928 = vunpack.c.h.b16 %v3767
      %v3929 = vunpack.c.l.b16 %v3768
      %v3930 = vunpack.c.h.b16 %v3768
      %v3931 = vunpack.c.l.b16 %v3769
      %v3932 = vunpack.c.h.b16 %v3769
      %v3933 = vunpack.c.l.b16 %v3770
      %v3934 = vunpack.c.h.b16 %v3770
      %v3935 = vunpack.c.l.b16 %v3771
      %v3936 = vunpack.c.h.b16 %v3771
      %v3937 = vunpack.c.l.b16 %v3772
      %v3938 = vunpack.c.h.b16 %v3772
      %v3939 = vunpack.c.l.b16 %v3773
      %v3940 = vunpack.c.h.b16 %v3773
      %v3941 = vunpack.c.l.b16 %v3774
      %v3942 = vunpack.c.h.b16 %v3774
      %v3943 = vunpack.c.l.b16 %v3775
      %v3944 = vunpack.c.h.b16 %v3775
      %v3945 = vunpack.c.l.b16 %v3776
      %v3946 = vunpack.c.h.b16 %v3776
      %v3947 = vunpack.c.l.b16 %v3777
      %v3948 = vunpack.c.h.b16 %v3777
      %v3949 = vunpack.c.l.b16 %v3778
      %v3950 = vunpack.c.h.b16 %v3778
      %v3951 = vunpack.c.l.b16 %v3779
      %v3952 = vunpack.c.h.b16 %v3779
      %v3953 = vunpack.c.l.b16 %v3780
      %v3954 = vunpack.c.h.b16 %v3780
      %v3955 = vunpack.c.l.b16 %v3781
      %v3956 = vunpack.c.h.b16 %v3781
      %v3957 = vunpack.c.l.b16 %v3782
      %v3958 = vunpack.c.h.b16 %v3782
      %v3959 = vunpack.c.l.b16 %v3783
      %v3960 = vunpack.c.h.b16 %v3783
      %v3961 = vunpack.c.l.b16 %v3784
      %v3962 = vunpack.c.h.b16 %v3784
      %v3963 = vunpack.c.l.b16 %v3785
      %v3964 = vunpack.c.h.b16 %v3785
      %v3965 = vunpack.c.l.b16 %v3786
      %v3966 = vunpack.c.h.b16 %v3786
      %v3967 = vunpack.c.l.b16 %v3787
      %v3968 = vunpack.c.h.b16 %v3787
      %v3969 = vunpack.c.l.b16 %v3788
      %v3970 = vunpack.c.h.b16 %v3788
      %v3971 = vunpack.c.l.b16 %v3789
      %v3972 = vunpack.c.h.b16 %v3789
      %v3973 = vunpack.c.l.b16 %v3790
      %v3974 = vunpack.c.h.b16 %v3790
      %v3975 = vunpack.c.l.b16 %v3791
      %v3976 = vunpack.c.h.b16 %v3791
      %v3977 = vunpack.c.l.b16 %v3792
      %v3978 = vunpack.c.h.b16 %v3792
      %v3979 = vunpack.c.l.b16 %v3793
      %v3980 = vunpack.c.h.b16 %v3793
      %v3981 = vunpack.c.l.b16 %v3794
      %v3982 = vunpack.c.h.b16 %v3794
      %v3983 = vunpack.c.l.b16 %v3795
      %v3984 = vunpack.c.h.b16 %v3795
      %v3985 = vunpack.c.l.b16 %v3796
      %v3986 = vunpack.c.h.b16 %v3796
      %v3987 = vunpack.c.l.b16 %v3797
      %v3988 = vunpack.c.h.b16 %v3797
      %v3989 = vunpack.c.l.b16 %v3798
      %v3990 = vunpack.c.h.b16 %v3798
      %v3991 = vpack.c.b16 %v3867, %v3863
      %v3992 = vpack.c.b16 %v3868, %v3864
      %v3993 = vpack.c.b16 %v3869, %v3865
      %v3994 = vpack.c.b16 %v3870, %v3866
      %v3995 = vpack.c.b16 %v3875, %v3871
      %v3996 = vpack.c.b16 %v3876, %v3872
      %v3997 = vpack.c.b16 %v3877, %v3873
      %v3998 = vpack.c.b16 %v3878, %v3874
      %v3999 = vpack.c.b16 %v3883, %v3879
      %v4000 = vpack.c.b16 %v3884, %v3880
      %v4001 = vpack.c.b16 %v3885, %v3881
      %v4002 = vpack.c.b16 %v3886, %v3882
      %v4003 = vpack.c.b16 %v3891, %v3887
      %v4004 = vpack.c.b16 %v3892, %v3888
      %v4005 = vpack.c.b16 %v3893, %v3889
      %v4006 = vpack.c.b16 %v3894, %v3890
      %v4007 = vpack.c.b16 %v3899, %v3895
      %v4008 = vpack.c.b16 %v3900, %v3896
      %v4009 = vpack.c.b16 %v3901, %v3897
      %v4010 = vpack.c.b16 %v3902, %v3898
      %v4011 = vpack.c.b16 %v3907, %v3903
      %v4012 = vpack.c.b16 %v3908, %v3904
      %v4013 = vpack.c.b16 %v3909, %v3905
      %v4014 = vpack.c.b16 %v3910, %v3906
      %v4015 = vpack.c.b16 %v3915, %v3911
      %v4016 = vpack.c.b16 %v3916, %v3912
      %v4017 = vpack.c.b16 %v3917, %v3913
      %v4018 = vpack.c.b16 %v3918, %v3914
      %v4019 = vpack.c.b16 %v3923, %v3919
      %v4020 = vpack.c.b16 %v3924, %v3920
      %v4021 = vpack.c.b16 %v3925, %v3921
      %v4022 = vpack.c.b16 %v3926, %v3922
      %v4023 = vpack.c.b16 %v3931, %v3927
      %v4024 = vpack.c.b16 %v3932, %v3928
      %v4025 = vpack.c.b16 %v3933, %v3929
      %v4026 = vpack.c.b16 %v3934, %v3930
      %v4027 = vpack.c.b16 %v3939, %v3935
      %v4028 = vpack.c.b16 %v3940, %v3936
      %v4029 = vpack.c.b16 %v3941, %v3937
      %v4030 = vpack.c.b16 %v3942, %v3938
      %v4031 = vpack.c.b16 %v3947, %v3943
      %v4032 = vpack.c.b16 %v3948, %v3944
      %v4033 = vpack.c.b16 %v3949, %v3945
      %v4034 = vpack.c.b16 %v3950, %v3946
      %v4035 = vpack.c.b16 %v3955, %v3951
      %v4036 = vpack.c.b16 %v3956, %v3952
      %v4037 = vpack.c.b16 %v3957, %v3953
      %v4038 = vpack.c.b16 %v3958, %v3954
      %v4039 = vpack.c.b16 %v3963, %v3959
      %v4040 = vpack.c.b16 %v3964, %v3960
      %v4041 = vpack.c.b16 %v3965, %v3961
      %v4042 = vpack.c.b16 %v3966, %v3962
      %v4043 = vpack.c.b16 %v3971, %v3967
      %v4044 = vpack.c.b16 %v3972, %v3968
      %v4045 = vpack.c.b16 %v3973, %v3969
      %v4046 = vpack.c.b16 %v3974, %v3970
      %v4047 = vpack.c.b16 %v3979, %v3975
      %v4048 = vpack.c.b16 %v3980, %v3976
      %v4049 = vpack.c.b16 %v3981, %v3977
      %v4050 = vpack.c.b16 %v3982, %v3978
      %v4051 = vpack.c.b16 %v3987, %v3983
      %v4052 = vpack.c.b16 %v3988, %v3984
      %v4053 = vpack.c.b16 %v3989, %v3985
      %v4054 = vpack.c.b16 %v3990, %v3986
      %4119 = vmatprep.subr.bf16.mxu0 %v4020
      %4120 = vmatpush1.bf16.msra.mxu0 %v4019
      %4121 = vmatprep.subr.bf16.mxu0 %v4016
      %4122 = vmatpush1.bf16.msra.mxu0 %v4015
      %4123 = vmatprep.subr.bf16.mxu0 %v4012
      %4124 = vmatpush1.bf16.msra.mxu0 %v4011
      %4125 = vmatprep.subr.bf16.mxu0 %v4008
      %4126 = vmatpush1.bf16.msra.mxu0 %v4007
      %4127 = vmatprep.subr.bf16.mxu0 %v4004
      %4128 = vmatpush1.bf16.msra.mxu0 %v4003
      %4129 = vmatprep.subr.bf16.mxu0 %v4000
      %4130 = vmatpush1.bf16.msra.mxu0 %v3999
      %4131 = vmatprep.subr.bf16.mxu0 %v3996
      %4132 = vmatpush1.bf16.msra.mxu0 %v3995
      %4133 = vmatprep.subr.bf16.mxu0 %v3992
      %4134 = vmatpush1.bf16.msra.mxu0 %v3991
      %4135 = vmatprep.subr.bf16.mxu0 %v4052
      %4136 = vmatpush2.bf16.msra.mxu0 %v4051
      %4137 = vmatprep.subr.bf16.mxu0 %v4048
      %4138 = vmatpush2.bf16.msra.mxu0 %v4047
      %4139 = vmatprep.subr.bf16.mxu0 %v4044
      %4140 = vmatpush2.bf16.msra.mxu0 %v4043
      %4141 = vmatprep.subr.bf16.mxu0 %v4040
      %4142 = vmatpush2.bf16.msra.mxu0 %v4039
      %4143 = vmatprep.subr.bf16.mxu0 %v4036
      %4144 = vmatpush2.bf16.msra.mxu0 %v4035
      %4145 = vmatprep.subr.bf16.mxu0 %v4032
      %4146 = vmatpush2.bf16.msra.mxu0 %v4031
      %4147 = vmatprep.subr.bf16.mxu0 %v4028
      %4148 = vmatpush2.bf16.msra.mxu0 %v4027
      %4149 = vmatprep.subr.bf16.mxu0 %v4024
      %4150 = vmatpush2.bf16.msra.mxu0 %v4023
      %4151 = vmatprep.mubr.bf16.mxu0 %v3669
      %4152 = vmatmul.mubr.bf16.gmra.mxu0 %v3668
      %v4153 = vpop.f32.mrf.mxu0
      %v4154 = vadd.f32 0.0, %v4153
      %v4155 = vpop.f32.mrf.mxu0
      %v4156 = vadd.f32 0.0, %v4155
      %v4157 = vpop.f32.mrf.mxu0
      %v4158 = vadd.f32 0.0, %v4157
      %v4159 = vpop.f32.mrf.mxu0
      %v4160 = vadd.f32 0.0, %v4159
      %4161 = vdwg.mxu0
      %4162 = vmatprep.subr.bf16.mxu0 %v4022
      %4163 = vmatpush1.bf16.msra.mxu0 %v4021
      %4164 = vmatprep.subr.bf16.mxu0 %v4018
      %4165 = vmatpush1.bf16.msra.mxu0 %v4017
      %4166 = vmatprep.subr.bf16.mxu0 %v4014
      %4167 = vmatpush1.bf16.msra.mxu0 %v4013
      %4168 = vmatprep.subr.bf16.mxu0 %v4010
      %4169 = vmatpush1.bf16.msra.mxu0 %v4009
      %4170 = vmatprep.subr.bf16.mxu0 %v4006
      %4171 = vmatpush1.bf16.msra.mxu0 %v4005
      %4172 = vmatprep.subr.bf16.mxu0 %v4002
      %4173 = vmatpush1.bf16.msra.mxu0 %v4001
      %4174 = vmatprep.subr.bf16.mxu0 %v3998
      %4175 = vmatpush1.bf16.msra.mxu0 %v3997
      %4176 = vmatprep.subr.bf16.mxu0 %v3994
      %4177 = vmatpush1.bf16.msra.mxu0 %v3993
      %4178 = vmatprep.subr.bf16.mxu0 %v4054
      %4179 = vmatpush2.bf16.msra.mxu0 %v4053
      %4180 = vmatprep.subr.bf16.mxu0 %v4050
      %4181 = vmatpush2.bf16.msra.mxu0 %v4049
      %4182 = vmatprep.subr.bf16.mxu0 %v4046
      %4183 = vmatpush2.bf16.msra.mxu0 %v4045
      %4184 = vmatprep.subr.bf16.mxu0 %v4042
      %4185 = vmatpush2.bf16.msra.mxu0 %v4041
      %4186 = vmatprep.subr.bf16.mxu0 %v4038
      %4187 = vmatpush2.bf16.msra.mxu0 %v4037
      %4188 = vmatprep.subr.bf16.mxu0 %v4034
      %4189 = vmatpush2.bf16.msra.mxu0 %v4033
      %4190 = vmatprep.subr.bf16.mxu0 %v4030
      %4191 = vmatpush2.bf16.msra.mxu0 %v4029
      %4192 = vmatprep.subr.bf16.mxu0 %v4026
      %4193 = vmatpush2.bf16.msra.mxu0 %v4025
      %4194 = vmatprep.mubr.bf16.mxu0 %v3669
      %4195 = vmatmul.mubr.bf16.gmra.mxu0 %v3668
      %v4196 = vpop.f32.mrf.mxu0
      %v4197 = vadd.f32 0.0, %v4196
      %v4198 = vpop.f32.mrf.mxu0
      %v4199 = vadd.f32 0.0, %v4198
      %v4200 = vpop.f32.mrf.mxu0
      %v4201 = vadd.f32 0.0, %v4200
      %v4202 = vpop.f32.mrf.mxu0
      %v4203 = vadd.f32 0.0, %v4202
      %4204 = vdwg.mxu0
      %v4269 = vunpack.c.l.b16 %v3670
      %v4270 = vunpack.c.h.b16 %v3670
      %v4271 = vunpack.c.l.b16 %v3671
      %v4272 = vunpack.c.h.b16 %v3671
      %v4273 = vunpack.c.l.b16 %v3672
      %v4274 = vunpack.c.h.b16 %v3672
      %v4275 = vunpack.c.l.b16 %v3673
      %v4276 = vunpack.c.h.b16 %v3673
      %v4277 = vunpack.c.l.b16 %v3674
      %v4278 = vunpack.c.h.b16 %v3674
      %v4279 = vunpack.c.l.b16 %v3675
      %v4280 = vunpack.c.h.b16 %v3675
      %v4281 = vunpack.c.l.b16 %v3676
      %v4282 = vunpack.c.h.b16 %v3676
      %v4283 = vunpack.c.l.b16 %v3677
      %v4284 = vunpack.c.h.b16 %v3677
      %v4285 = vunpack.c.l.b16 %v3678
      %v4286 = vunpack.c.h.b16 %v3678
      %v4287 = vunpack.c.l.b16 %v3679
      %v4288 = vunpack.c.h.b16 %v3679
      %v4289 = vunpack.c.l.b16 %v3680
      %v4290 = vunpack.c.h.b16 %v3680
      %v4291 = vunpack.c.l.b16 %v3681
      %v4292 = vunpack.c.h.b16 %v3681
      %v4293 = vunpack.c.l.b16 %v3682
      %v4294 = vunpack.c.h.b16 %v3682
      %v4295 = vunpack.c.l.b16 %v3683
      %v4296 = vunpack.c.h.b16 %v3683
      %v4297 = vunpack.c.l.b16 %v3684
      %v4298 = vunpack.c.h.b16 %v3684
      %v4299 = vunpack.c.l.b16 %v3685
      %v4300 = vunpack.c.h.b16 %v3685
      %v4301 = vunpack.c.l.b16 %v3686
      %v4302 = vunpack.c.h.b16 %v3686
      %v4303 = vunpack.c.l.b16 %v3687
      %v4304 = vunpack.c.h.b16 %v3687
      %v4305 = vunpack.c.l.b16 %v3688
      %v4306 = vunpack.c.h.b16 %v3688
      %v4307 = vunpack.c.l.b16 %v3689
      %v4308 = vunpack.c.h.b16 %v3689
      %v4309 = vunpack.c.l.b16 %v3690
      %v4310 = vunpack.c.h.b16 %v3690
      %v4311 = vunpack.c.l.b16 %v3691
      %v4312 = vunpack.c.h.b16 %v3691
      %v4313 = vunpack.c.l.b16 %v3692
      %v4314 = vunpack.c.h.b16 %v3692
      %v4315 = vunpack.c.l.b16 %v3693
      %v4316 = vunpack.c.h.b16 %v3693
      %v4317 = vunpack.c.l.b16 %v3694
      %v4318 = vunpack.c.h.b16 %v3694
      %v4319 = vunpack.c.l.b16 %v3695
      %v4320 = vunpack.c.h.b16 %v3695
      %v4321 = vunpack.c.l.b16 %v3696
      %v4322 = vunpack.c.h.b16 %v3696
      %v4323 = vunpack.c.l.b16 %v3697
      %v4324 = vunpack.c.h.b16 %v3697
      %v4325 = vunpack.c.l.b16 %v3698
      %v4326 = vunpack.c.h.b16 %v3698
      %v4327 = vunpack.c.l.b16 %v3699
      %v4328 = vunpack.c.h.b16 %v3699
      %v4329 = vunpack.c.l.b16 %v3700
      %v4330 = vunpack.c.h.b16 %v3700
      %v4331 = vunpack.c.l.b16 %v3701
      %v4332 = vunpack.c.h.b16 %v3701
      %v4333 = vunpack.c.l.b16 %v3702
      %v4334 = vunpack.c.h.b16 %v3702
      %v4335 = vunpack.c.l.b16 %v3703
      %v4336 = vunpack.c.h.b16 %v3703
      %v4337 = vunpack.c.l.b16 %v3704
      %v4338 = vunpack.c.h.b16 %v3704
      %v4339 = vunpack.c.l.b16 %v3705
      %v4340 = vunpack.c.h.b16 %v3705
      %v4341 = vunpack.c.l.b16 %v3706
      %v4342 = vunpack.c.h.b16 %v3706
      %v4343 = vunpack.c.l.b16 %v3707
      %v4344 = vunpack.c.h.b16 %v3707
      %v4345 = vunpack.c.l.b16 %v3708
      %v4346 = vunpack.c.h.b16 %v3708
      %v4347 = vunpack.c.l.b16 %v3709
      %v4348 = vunpack.c.h.b16 %v3709
      %v4349 = vunpack.c.l.b16 %v3710
      %v4350 = vunpack.c.h.b16 %v3710
      %v4351 = vunpack.c.l.b16 %v3711
      %v4352 = vunpack.c.h.b16 %v3711
      %v4353 = vunpack.c.l.b16 %v3712
      %v4354 = vunpack.c.h.b16 %v3712
      %v4355 = vunpack.c.l.b16 %v3713
      %v4356 = vunpack.c.h.b16 %v3713
      %v4357 = vunpack.c.l.b16 %v3714
      %v4358 = vunpack.c.h.b16 %v3714
      %v4359 = vunpack.c.l.b16 %v3715
      %v4360 = vunpack.c.h.b16 %v3715
      %v4361 = vunpack.c.l.b16 %v3716
      %v4362 = vunpack.c.h.b16 %v3716
      %v4363 = vunpack.c.l.b16 %v3717
      %v4364 = vunpack.c.h.b16 %v3717
      %v4365 = vunpack.c.l.b16 %v3718
      %v4366 = vunpack.c.h.b16 %v3718
      %v4367 = vunpack.c.l.b16 %v3719
      %v4368 = vunpack.c.h.b16 %v3719
      %v4369 = vunpack.c.l.b16 %v3720
      %v4370 = vunpack.c.h.b16 %v3720
      %v4371 = vunpack.c.l.b16 %v3721
      %v4372 = vunpack.c.h.b16 %v3721
      %v4373 = vunpack.c.l.b16 %v3722
      %v4374 = vunpack.c.h.b16 %v3722
      %v4375 = vunpack.c.l.b16 %v3723
      %v4376 = vunpack.c.h.b16 %v3723
      %v4377 = vunpack.c.l.b16 %v3724
      %v4378 = vunpack.c.h.b16 %v3724
      %v4379 = vunpack.c.l.b16 %v3725
      %v4380 = vunpack.c.h.b16 %v3725
      %v4381 = vunpack.c.l.b16 %v3726
      %v4382 = vunpack.c.h.b16 %v3726
      %v4383 = vunpack.c.l.b16 %v3727
      %v4384 = vunpack.c.h.b16 %v3727
      %v4385 = vunpack.c.l.b16 %v3728
      %v4386 = vunpack.c.h.b16 %v3728
      %v4387 = vunpack.c.l.b16 %v3729
      %v4388 = vunpack.c.h.b16 %v3729
      %v4389 = vunpack.c.l.b16 %v3730
      %v4390 = vunpack.c.h.b16 %v3730
      %v4391 = vunpack.c.l.b16 %v3731
      %v4392 = vunpack.c.h.b16 %v3731
      %v4393 = vunpack.c.l.b16 %v3732
      %v4394 = vunpack.c.h.b16 %v3732
      %v4395 = vunpack.c.l.b16 %v3733
      %v4396 = vunpack.c.h.b16 %v3733
      %v4397 = vpack.c.b16 %v4273, %v4269
      %v4398 = vpack.c.b16 %v4274, %v4270
      %v4399 = vpack.c.b16 %v4275, %v4271
      %v4400 = vpack.c.b16 %v4276, %v4272
      %v4401 = vpack.c.b16 %v4281, %v4277
      %v4402 = vpack.c.b16 %v4282, %v4278
      %v4403 = vpack.c.b16 %v4283, %v4279
      %v4404 = vpack.c.b16 %v4284, %v4280
      %v4405 = vpack.c.b16 %v4289, %v4285
      %v4406 = vpack.c.b16 %v4290, %v4286
      %v4407 = vpack.c.b16 %v4291, %v4287
      %v4408 = vpack.c.b16 %v4292, %v4288
      %v4409 = vpack.c.b16 %v4297, %v4293
      %v4410 = vpack.c.b16 %v4298, %v4294
      %v4411 = vpack.c.b16 %v4299, %v4295
      %v4412 = vpack.c.b16 %v4300, %v4296
      %v4413 = vpack.c.b16 %v4305, %v4301
      %v4414 = vpack.c.b16 %v4306, %v4302
      %v4415 = vpack.c.b16 %v4307, %v4303
      %v4416 = vpack.c.b16 %v4308, %v4304
      %v4417 = vpack.c.b16 %v4313, %v4309
      %v4418 = vpack.c.b16 %v4314, %v4310
      %v4419 = vpack.c.b16 %v4315, %v4311
      %v4420 = vpack.c.b16 %v4316, %v4312
      %v4421 = vpack.c.b16 %v4321, %v4317
      %v4422 = vpack.c.b16 %v4322, %v4318
      %v4423 = vpack.c.b16 %v4323, %v4319
      %v4424 = vpack.c.b16 %v4324, %v4320
      %v4425 = vpack.c.b16 %v4329, %v4325
      %v4426 = vpack.c.b16 %v4330, %v4326
      %v4427 = vpack.c.b16 %v4331, %v4327
      %v4428 = vpack.c.b16 %v4332, %v4328
      %v4429 = vpack.c.b16 %v4337, %v4333
      %v4430 = vpack.c.b16 %v4338, %v4334
      %v4431 = vpack.c.b16 %v4339, %v4335
      %v4432 = vpack.c.b16 %v4340, %v4336
      %v4433 = vpack.c.b16 %v4345, %v4341
      %v4434 = vpack.c.b16 %v4346, %v4342
      %v4435 = vpack.c.b16 %v4347, %v4343
      %v4436 = vpack.c.b16 %v4348, %v4344
      %v4437 = vpack.c.b16 %v4353, %v4349
      %v4438 = vpack.c.b16 %v4354, %v4350
      %v4439 = vpack.c.b16 %v4355, %v4351
      %v4440 = vpack.c.b16 %v4356, %v4352
      %v4441 = vpack.c.b16 %v4361, %v4357
      %v4442 = vpack.c.b16 %v4362, %v4358
      %v4443 = vpack.c.b16 %v4363, %v4359
      %v4444 = vpack.c.b16 %v4364, %v4360
      %v4445 = vpack.c.b16 %v4369, %v4365
      %v4446 = vpack.c.b16 %v4370, %v4366
      %v4447 = vpack.c.b16 %v4371, %v4367
      %v4448 = vpack.c.b16 %v4372, %v4368
      %v4449 = vpack.c.b16 %v4377, %v4373
      %v4450 = vpack.c.b16 %v4378, %v4374
      %v4451 = vpack.c.b16 %v4379, %v4375
      %v4452 = vpack.c.b16 %v4380, %v4376
      %v4453 = vpack.c.b16 %v4385, %v4381
      %v4454 = vpack.c.b16 %v4386, %v4382
      %v4455 = vpack.c.b16 %v4387, %v4383
      %v4456 = vpack.c.b16 %v4388, %v4384
      %v4457 = vpack.c.b16 %v4393, %v4389
      %v4458 = vpack.c.b16 %v4394, %v4390
      %v4459 = vpack.c.b16 %v4395, %v4391
      %v4460 = vpack.c.b16 %v4396, %v4392
      %4525 = vmatprep.subr.bf16.mxu0 %v4426
      %4526 = vmatpush1.bf16.msra.mxu0 %v4425
      %4527 = vmatprep.subr.bf16.mxu0 %v4422
      %4528 = vmatpush1.bf16.msra.mxu0 %v4421
      %4529 = vmatprep.subr.bf16.mxu0 %v4418
      %4530 = vmatpush1.bf16.msra.mxu0 %v4417
      %4531 = vmatprep.subr.bf16.mxu0 %v4414
      %4532 = vmatpush1.bf16.msra.mxu0 %v4413
      %4533 = vmatprep.subr.bf16.mxu0 %v4410
      %4534 = vmatpush1.bf16.msra.mxu0 %v4409
      %4535 = vmatprep.subr.bf16.mxu0 %v4406
      %4536 = vmatpush1.bf16.msra.mxu0 %v4405
      %4537 = vmatprep.subr.bf16.mxu0 %v4402
      %4538 = vmatpush1.bf16.msra.mxu0 %v4401
      %4539 = vmatprep.subr.bf16.mxu0 %v4398
      %4540 = vmatpush1.bf16.msra.mxu0 %v4397
      %4541 = vmatprep.subr.bf16.mxu0 %v4458
      %4542 = vmatpush2.bf16.msra.mxu0 %v4457
      %4543 = vmatprep.subr.bf16.mxu0 %v4454
      %4544 = vmatpush2.bf16.msra.mxu0 %v4453
      %4545 = vmatprep.subr.bf16.mxu0 %v4450
      %4546 = vmatpush2.bf16.msra.mxu0 %v4449
      %4547 = vmatprep.subr.bf16.mxu0 %v4446
      %4548 = vmatpush2.bf16.msra.mxu0 %v4445
      %4549 = vmatprep.subr.bf16.mxu0 %v4442
      %4550 = vmatpush2.bf16.msra.mxu0 %v4441
      %4551 = vmatprep.subr.bf16.mxu0 %v4438
      %4552 = vmatpush2.bf16.msra.mxu0 %v4437
      %4553 = vmatprep.subr.bf16.mxu0 %v4434
      %4554 = vmatpush2.bf16.msra.mxu0 %v4433
      %4555 = vmatprep.subr.bf16.mxu0 %v4430
      %4556 = vmatpush2.bf16.msra.mxu0 %v4429
      %4557 = vmatprep.mubr.bf16.mxu0 %v3647
      %4558 = vmatmul.mubr.bf16.gmra.mxu0 %v3646
      %v4559 = vpop.f32.mrf.mxu0
      %v4560 = vadd.f32 %v4154, %v4559
      %v4561 = vpop.f32.mrf.mxu0
      %v4562 = vadd.f32 %v4156, %v4561
      %v4563 = vpop.f32.mrf.mxu0
      %v4564 = vadd.f32 %v4158, %v4563
      %v4565 = vpop.f32.mrf.mxu0
      %v4566 = vadd.f32 %v4160, %v4565
      %4567 = vdwg.mxu0
      %4568 = vmatprep.subr.bf16.mxu0 %v4428
      %4569 = vmatpush1.bf16.msra.mxu0 %v4427
      %4570 = vmatprep.subr.bf16.mxu0 %v4424
      %4571 = vmatpush1.bf16.msra.mxu0 %v4423
      %4572 = vmatprep.subr.bf16.mxu0 %v4420
      %4573 = vmatpush1.bf16.msra.mxu0 %v4419
      %4574 = vmatprep.subr.bf16.mxu0 %v4416
      %4575 = vmatpush1.bf16.msra.mxu0 %v4415
      %4576 = vmatprep.subr.bf16.mxu0 %v4412
      %4577 = vmatpush1.bf16.msra.mxu0 %v4411
      %4578 = vmatprep.subr.bf16.mxu0 %v4408
      %4579 = vmatpush1.bf16.msra.mxu0 %v4407
      %4580 = vmatprep.subr.bf16.mxu0 %v4404
      %4581 = vmatpush1.bf16.msra.mxu0 %v4403
      %4582 = vmatprep.subr.bf16.mxu0 %v4400
      %4583 = vmatpush1.bf16.msra.mxu0 %v4399
      %4584 = vmatprep.subr.bf16.mxu0 %v4460
      %4585 = vmatpush2.bf16.msra.mxu0 %v4459
      %4586 = vmatprep.subr.bf16.mxu0 %v4456
      %4587 = vmatpush2.bf16.msra.mxu0 %v4455
      %4588 = vmatprep.subr.bf16.mxu0 %v4452
      %4589 = vmatpush2.bf16.msra.mxu0 %v4451
      %4590 = vmatprep.subr.bf16.mxu0 %v4448
      %4591 = vmatpush2.bf16.msra.mxu0 %v4447
      %4592 = vmatprep.subr.bf16.mxu0 %v4444
      %4593 = vmatpush2.bf16.msra.mxu0 %v4443
      %4594 = vmatprep.subr.bf16.mxu0 %v4440
      %4595 = vmatpush2.bf16.msra.mxu0 %v4439
      %4596 = vmatprep.subr.bf16.mxu0 %v4436
      %4597 = vmatpush2.bf16.msra.mxu0 %v4435
      %4598 = vmatprep.subr.bf16.mxu0 %v4432
      %4599 = vmatpush2.bf16.msra.mxu0 %v4431
      %4600 = vmatprep.mubr.bf16.mxu0 %v3647
      %4601 = vmatmul.mubr.bf16.gmra.mxu0 %v3646
      %v4602 = vpop.f32.mrf.mxu0
      %v4603 = vadd.f32 %v4197, %v4602
      %v4604 = vpop.f32.mrf.mxu0
      %v4605 = vadd.f32 %v4199, %v4604
      %v4606 = vpop.f32.mrf.mxu0
      %v4607 = vadd.f32 %v4201, %v4606
      %v4608 = vpop.f32.mrf.mxu0
      %v4609 = vadd.f32 %v4203, %v4608
      %4610 = vdwg.mxu0
      %v4612 = vshrl.u32 %v3646, 16
      %v4614 = vshll.u32 %v3646, 16
      %v4616 = vrot.slane %v4614, 1
      %v4617 = vor.u32 %v4612, %v4616
      %v4619 = vshrl.u32 %v3647, 16
      %v4621 = vshll.u32 %v3647, 16
      %v4623 = vrot.slane %v4621, 1
      %v4624 = vor.u32 %v4619, %v4623
      %4627 = vmatprep.subr.bf16.mxu0 %v4020
      %4628 = vmatpush1.bf16.msra.mxu0 %v4019
      %4629 = vmatprep.subr.bf16.mxu0 %v4016
      %4630 = vmatpush1.bf16.msra.mxu0 %v4015
      %4631 = vmatprep.subr.bf16.mxu0 %v4012
      %4632 = vmatpush1.bf16.msra.mxu0 %v4011
      %4633 = vmatprep.subr.bf16.mxu0 %v4008
      %4634 = vmatpush1.bf16.msra.mxu0 %v4007
      %4635 = vmatprep.subr.bf16.mxu0 %v4004
      %4636 = vmatpush1.bf16.msra.mxu0 %v4003
      %4637 = vmatprep.subr.bf16.mxu0 %v4000
      %4638 = vmatpush1.bf16.msra.mxu0 %v3999
      %4639 = vmatprep.subr.bf16.mxu0 %v3996
      %4640 = vmatpush1.bf16.msra.mxu0 %v3995
      %4641 = vmatprep.subr.bf16.mxu0 %v3992
      %4642 = vmatpush1.bf16.msra.mxu0 %v3991
      %4643 = vmatprep.subr.bf16.mxu0 %v4052
      %4644 = vmatpush2.bf16.msra.mxu0 %v4051
      %4645 = vmatprep.subr.bf16.mxu0 %v4048
      %4646 = vmatpush2.bf16.msra.mxu0 %v4047
      %4647 = vmatprep.subr.bf16.mxu0 %v4044
      %4648 = vmatpush2.bf16.msra.mxu0 %v4043
      %4649 = vmatprep.subr.bf16.mxu0 %v4040
      %4650 = vmatpush2.bf16.msra.mxu0 %v4039
      %4651 = vmatprep.subr.bf16.mxu0 %v4036
      %4652 = vmatpush2.bf16.msra.mxu0 %v4035
      %4653 = vmatprep.subr.bf16.mxu0 %v4032
      %4654 = vmatpush2.bf16.msra.mxu0 %v4031
      %4655 = vmatprep.subr.bf16.mxu0 %v4028
      %4656 = vmatpush2.bf16.msra.mxu0 %v4027
      %4657 = vmatprep.subr.bf16.mxu0 %v4024
      %4658 = vmatpush2.bf16.msra.mxu0 %v4023
      %4659 = vmatprep.mubr.bf16.mxu0 %v4624
      %4660 = vmatmul.mubr.bf16.gmra.mxu0 %v4617
      %v4661 = vpop.f32.mrf.mxu0
      %v4662 = vadd.f32 0.0, %v4661
      %v4663 = vpop.f32.mrf.mxu0
      %v4664 = vadd.f32 0.0, %v4663
      %v4665 = vpop.f32.mrf.mxu0
      %v4666 = vadd.f32 0.0, %v4665
      %v4667 = vpop.f32.mrf.mxu0
      %v4668 = vadd.f32 0.0, %v4667
      %4669 = vdwg.mxu0
      %4670 = vmatprep.subr.bf16.mxu0 %v4022
      %4671 = vmatpush1.bf16.msra.mxu0 %v4021
      %4672 = vmatprep.subr.bf16.mxu0 %v4018
      %4673 = vmatpush1.bf16.msra.mxu0 %v4017
      %4674 = vmatprep.subr.bf16.mxu0 %v4014
      %4675 = vmatpush1.bf16.msra.mxu0 %v4013
      %4676 = vmatprep.subr.bf16.mxu0 %v4010
      %4677 = vmatpush1.bf16.msra.mxu0 %v4009
      %4678 = vmatprep.subr.bf16.mxu0 %v4006
      %4679 = vmatpush1.bf16.msra.mxu0 %v4005
      %4680 = vmatprep.subr.bf16.mxu0 %v4002
      %4681 = vmatpush1.bf16.msra.mxu0 %v4001
      %4682 = vmatprep.subr.bf16.mxu0 %v3998
      %4683 = vmatpush1.bf16.msra.mxu0 %v3997
      %4684 = vmatprep.subr.bf16.mxu0 %v3994
      %4685 = vmatpush1.bf16.msra.mxu0 %v3993
      %4686 = vmatprep.subr.bf16.mxu0 %v4054
      %4687 = vmatpush2.bf16.msra.mxu0 %v4053
      %4688 = vmatprep.subr.bf16.mxu0 %v4050
      %4689 = vmatpush2.bf16.msra.mxu0 %v4049
      %4690 = vmatprep.subr.bf16.mxu0 %v4046
      %4691 = vmatpush2.bf16.msra.mxu0 %v4045
      %4692 = vmatprep.subr.bf16.mxu0 %v4042
      %4693 = vmatpush2.bf16.msra.mxu0 %v4041
      %4694 = vmatprep.subr.bf16.mxu0 %v4038
      %4695 = vmatpush2.bf16.msra.mxu0 %v4037
      %4696 = vmatprep.subr.bf16.mxu0 %v4034
      %4697 = vmatpush2.bf16.msra.mxu0 %v4033
      %4698 = vmatprep.subr.bf16.mxu0 %v4030
      %4699 = vmatpush2.bf16.msra.mxu0 %v4029
      %4700 = vmatprep.subr.bf16.mxu0 %v4026
      %4701 = vmatpush2.bf16.msra.mxu0 %v4025
      %4702 = vmatprep.mubr.bf16.mxu0 %v4624
      %4703 = vmatmul.mubr.bf16.gmra.mxu0 %v4617
      %v4704 = vpop.f32.mrf.mxu0
      %v4705 = vadd.f32 0.0, %v4704
      %v4706 = vpop.f32.mrf.mxu0
      %v4707 = vadd.f32 0.0, %v4706
      %v4708 = vpop.f32.mrf.mxu0
      %v4709 = vadd.f32 0.0, %v4708
      %v4710 = vpop.f32.mrf.mxu0
      %v4711 = vadd.f32 0.0, %v4710
      %4712 = vdwg.mxu0
      %4713 = vmatprep.subr.bf16.mxu0 %v4426
      %4714 = vmatpush1.bf16.msra.mxu0 %v4425
      %4715 = vmatprep.subr.bf16.mxu0 %v4422
      %4716 = vmatpush1.bf16.msra.mxu0 %v4421
      %4717 = vmatprep.subr.bf16.mxu0 %v4418
      %4718 = vmatpush1.bf16.msra.mxu0 %v4417
      %4719 = vmatprep.subr.bf16.mxu0 %v4414
      %4720 = vmatpush1.bf16.msra.mxu0 %v4413
      %4721 = vmatprep.subr.bf16.mxu0 %v4410
      %4722 = vmatpush1.bf16.msra.mxu0 %v4409
      %4723 = vmatprep.subr.bf16.mxu0 %v4406
      %4724 = vmatpush1.bf16.msra.mxu0 %v4405
      %4725 = vmatprep.subr.bf16.mxu0 %v4402
      %4726 = vmatpush1.bf16.msra.mxu0 %v4401
      %4727 = vmatprep.subr.bf16.mxu0 %v4398
      %4728 = vmatpush1.bf16.msra.mxu0 %v4397
      %4729 = vmatprep.subr.bf16.mxu0 %v4458
      %4730 = vmatpush2.bf16.msra.mxu0 %v4457
      %4731 = vmatprep.subr.bf16.mxu0 %v4454
      %4732 = vmatpush2.bf16.msra.mxu0 %v4453
      %4733 = vmatprep.subr.bf16.mxu0 %v4450
      %4734 = vmatpush2.bf16.msra.mxu0 %v4449
      %4735 = vmatprep.subr.bf16.mxu0 %v4446
      %4736 = vmatpush2.bf16.msra.mxu0 %v4445
      %4737 = vmatprep.subr.bf16.mxu0 %v4442
      %4738 = vmatpush2.bf16.msra.mxu0 %v4441
      %4739 = vmatprep.subr.bf16.mxu0 %v4438
      %4740 = vmatpush2.bf16.msra.mxu0 %v4437
      %4741 = vmatprep.subr.bf16.mxu0 %v4434
      %4742 = vmatpush2.bf16.msra.mxu0 %v4433
      %4743 = vmatprep.subr.bf16.mxu0 %v4430
      %4744 = vmatpush2.bf16.msra.mxu0 %v4429
      %4745 = vmatprep.mubr.bf16.mxu0 %v3669
      %4746 = vmatmul.mubr.bf16.gmra.mxu0 %v3668
      %v4747 = vpop.f32.mrf.mxu0
      %v4748 = vadd.f32 %v4662, %v4747
      %v4749 = vpop.f32.mrf.mxu0
      %v4750 = vadd.f32 %v4664, %v4749
      %v4751 = vpop.f32.mrf.mxu0
      %v4752 = vadd.f32 %v4666, %v4751
      %v4753 = vpop.f32.mrf.mxu0
      %v4754 = vadd.f32 %v4668, %v4753
      %4755 = vdwg.mxu0
      %4756 = vmatprep.subr.bf16.mxu0 %v4428
      %4757 = vmatpush1.bf16.msra.mxu0 %v4427
      %4758 = vmatprep.subr.bf16.mxu0 %v4424
      %4759 = vmatpush1.bf16.msra.mxu0 %v4423
      %4760 = vmatprep.subr.bf16.mxu0 %v4420
      %4761 = vmatpush1.bf16.msra.mxu0 %v4419
      %4762 = vmatprep.subr.bf16.mxu0 %v4416
      %4763 = vmatpush1.bf16.msra.mxu0 %v4415
      %4764 = vmatprep.subr.bf16.mxu0 %v4412
      %4765 = vmatpush1.bf16.msra.mxu0 %v4411
      %4766 = vmatprep.subr.bf16.mxu0 %v4408
      %4767 = vmatpush1.bf16.msra.mxu0 %v4407
      %4768 = vmatprep.subr.bf16.mxu0 %v4404
      %4769 = vmatpush1.bf16.msra.mxu0 %v4403
      %4770 = vmatprep.subr.bf16.mxu0 %v4400
      %4771 = vmatpush1.bf16.msra.mxu0 %v4399
      %4772 = vmatprep.subr.bf16.mxu0 %v4460
      %4773 = vmatpush2.bf16.msra.mxu0 %v4459
      %4774 = vmatprep.subr.bf16.mxu0 %v4456
      %4775 = vmatpush2.bf16.msra.mxu0 %v4455
      %4776 = vmatprep.subr.bf16.mxu0 %v4452
      %4777 = vmatpush2.bf16.msra.mxu0 %v4451
      %4778 = vmatprep.subr.bf16.mxu0 %v4448
      %4779 = vmatpush2.bf16.msra.mxu0 %v4447
      %4780 = vmatprep.subr.bf16.mxu0 %v4444
      %4781 = vmatpush2.bf16.msra.mxu0 %v4443
      %4782 = vmatprep.subr.bf16.mxu0 %v4440
      %4783 = vmatpush2.bf16.msra.mxu0 %v4439
      %4784 = vmatprep.subr.bf16.mxu0 %v4436
      %4785 = vmatpush2.bf16.msra.mxu0 %v4435
      %4786 = vmatprep.subr.bf16.mxu0 %v4432
      %4787 = vmatpush2.bf16.msra.mxu0 %v4431
      %4788 = vmatprep.mubr.bf16.mxu0 %v3669
      %4789 = vmatmul.mubr.bf16.gmra.mxu0 %v3668
      %v4790 = vpop.f32.mrf.mxu0
      %v4791 = vadd.f32 %v4705, %v4790
      %v4792 = vpop.f32.mrf.mxu0
      %v4793 = vadd.f32 %v4707, %v4792
      %v4794 = vpop.f32.mrf.mxu0
      %v4795 = vadd.f32 %v4709, %v4794
      %v4796 = vpop.f32.mrf.mxu0
      %v4797 = vadd.f32 %v4711, %v4796
      %4798 = vdwg.mxu0
      %s4799 = scalar_lea.vmem %s3, 1024
      %v4800 = vld [vmem:[%s4799] sm:$0xff]
      %v4801 = vld [vmem:[%s4799 + $0x8] sm:$0xff]
      %v4802 = vld [vmem:[%s4799 + $0x10] sm:$0xff]
      %v4803 = vld [vmem:[%s4799 + $0x18] sm:$0xff]
      %v4804 = vld [vmem:[%s4799 + $0x20] sm:$0xff]
      %v4805 = vld [vmem:[%s4799 + $0x28] sm:$0xff]
      %v4806 = vld [vmem:[%s4799 + $0x30] sm:$0xff]
      %v4807 = vld [vmem:[%s4799 + $0x38] sm:$0xff]
      %v4808 = vld [vmem:[%s4799 + $0x40] sm:$0xff]
      %v4809 = vld [vmem:[%s4799 + $0x48] sm:$0xff]
      %v4810 = vld [vmem:[%s4799 + $0x50] sm:$0xff]
      %v4811 = vld [vmem:[%s4799 + $0x58] sm:$0xff]
      %v4812 = vld [vmem:[%s4799 + $0x60] sm:$0xff]
      %v4813 = vld [vmem:[%s4799 + $0x68] sm:$0xff]
      %v4814 = vld [vmem:[%s4799 + $0x70] sm:$0xff]
      %v4815 = vld [vmem:[%s4799 + $0x78] sm:$0xff]
      %v4816 = vld [vmem:[%s4799 + $0x80] sm:$0xff]
      %v4817 = vld [vmem:[%s4799 + $0x88] sm:$0xff]
      %v4818 = vld [vmem:[%s4799 + $0x90] sm:$0xff]
      %v4819 = vld [vmem:[%s4799 + $0x98] sm:$0xff]
      %v4820 = vld [vmem:[%s4799 + $0xa0] sm:$0xff]
      %v4821 = vld [vmem:[%s4799 + $0xa8] sm:$0xff]
      %v4822 = vld [vmem:[%s4799 + $0xb0] sm:$0xff]
      %v4823 = vld [vmem:[%s4799 + $0xb8] sm:$0xff]
      %v4824 = vld [vmem:[%s4799 + $0xc0] sm:$0xff]
      %v4825 = vld [vmem:[%s4799 + $0xc8] sm:$0xff]
      %v4826 = vld [vmem:[%s4799 + $0xd0] sm:$0xff]
      %v4827 = vld [vmem:[%s4799 + $0xd8] sm:$0xff]
      %v4828 = vld [vmem:[%s4799 + $0xe0] sm:$0xff]
      %v4829 = vld [vmem:[%s4799 + $0xe8] sm:$0xff]
      %v4830 = vld [vmem:[%s4799 + $0xf0] sm:$0xff]
      %v4831 = vld [vmem:[%s4799 + $0xf8] sm:$0xff]
      %v4832 = vld [vmem:[%s4799 + $0x100] sm:$0xff]
      %v4833 = vld [vmem:[%s4799 + $0x108] sm:$0xff]
      %v4834 = vld [vmem:[%s4799 + $0x110] sm:$0xff]
      %v4835 = vld [vmem:[%s4799 + $0x118] sm:$0xff]
      %v4836 = vld [vmem:[%s4799 + $0x120] sm:$0xff]
      %v4837 = vld [vmem:[%s4799 + $0x128] sm:$0xff]
      %v4838 = vld [vmem:[%s4799 + $0x130] sm:$0xff]
      %v4839 = vld [vmem:[%s4799 + $0x138] sm:$0xff]
      %v4840 = vld [vmem:[%s4799 + $0x140] sm:$0xff]
      %v4841 = vld [vmem:[%s4799 + $0x148] sm:$0xff]
      %v4842 = vld [vmem:[%s4799 + $0x150] sm:$0xff]
      %v4843 = vld [vmem:[%s4799 + $0x158] sm:$0xff]
      %v4844 = vld [vmem:[%s4799 + $0x160] sm:$0xff]
      %v4845 = vld [vmem:[%s4799 + $0x168] sm:$0xff]
      %v4846 = vld [vmem:[%s4799 + $0x170] sm:$0xff]
      %v4847 = vld [vmem:[%s4799 + $0x178] sm:$0xff]
      %v4848 = vld [vmem:[%s4799 + $0x180] sm:$0xff]
      %v4849 = vld [vmem:[%s4799 + $0x188] sm:$0xff]
      %v4850 = vld [vmem:[%s4799 + $0x190] sm:$0xff]
      %v4851 = vld [vmem:[%s4799 + $0x198] sm:$0xff]
      %v4852 = vld [vmem:[%s4799 + $0x1a0] sm:$0xff]
      %v4853 = vld [vmem:[%s4799 + $0x1a8] sm:$0xff]
      %v4854 = vld [vmem:[%s4799 + $0x1b0] sm:$0xff]
      %v4855 = vld [vmem:[%s4799 + $0x1b8] sm:$0xff]
      %v4856 = vld [vmem:[%s4799 + $0x1c0] sm:$0xff]
      %v4857 = vld [vmem:[%s4799 + $0x1c8] sm:$0xff]
      %v4858 = vld [vmem:[%s4799 + $0x1d0] sm:$0xff]
      %v4859 = vld [vmem:[%s4799 + $0x1d8] sm:$0xff]
      %v4860 = vld [vmem:[%s4799 + $0x1e0] sm:$0xff]
      %v4861 = vld [vmem:[%s4799 + $0x1e8] sm:$0xff]
      %v4862 = vld [vmem:[%s4799 + $0x1f0] sm:$0xff]
      %v4863 = vld [vmem:[%s4799 + $0x1f8] sm:$0xff]
      %v4928 = vunpack.c.l.b16 %v4800
      %v4929 = vunpack.c.h.b16 %v4800
      %v4930 = vunpack.c.l.b16 %v4801
      %v4931 = vunpack.c.h.b16 %v4801
      %v4932 = vunpack.c.l.b16 %v4802
      %v4933 = vunpack.c.h.b16 %v4802
      %v4934 = vunpack.c.l.b16 %v4803
      %v4935 = vunpack.c.h.b16 %v4803
      %v4936 = vunpack.c.l.b16 %v4804
      %v4937 = vunpack.c.h.b16 %v4804
      %v4938 = vunpack.c.l.b16 %v4805
      %v4939 = vunpack.c.h.b16 %v4805
      %v4940 = vunpack.c.l.b16 %v4806
      %v4941 = vunpack.c.h.b16 %v4806
      %v4942 = vunpack.c.l.b16 %v4807
      %v4943 = vunpack.c.h.b16 %v4807
      %v4944 = vunpack.c.l.b16 %v4808
      %v4945 = vunpack.c.h.b16 %v4808
      %v4946 = vunpack.c.l.b16 %v4809
      %v4947 = vunpack.c.h.b16 %v4809
      %v4948 = vunpack.c.l.b16 %v4810
      %v4949 = vunpack.c.h.b16 %v4810
      %v4950 = vunpack.c.l.b16 %v4811
      %v4951 = vunpack.c.h.b16 %v4811
      %v4952 = vunpack.c.l.b16 %v4812
      %v4953 = vunpack.c.h.b16 %v4812
      %v4954 = vunpack.c.l.b16 %v4813
      %v4955 = vunpack.c.h.b16 %v4813
      %v4956 = vunpack.c.l.b16 %v4814
      %v4957 = vunpack.c.h.b16 %v4814
      %v4958 = vunpack.c.l.b16 %v4815
      %v4959 = vunpack.c.h.b16 %v4815
      %v4960 = vunpack.c.l.b16 %v4816
      %v4961 = vunpack.c.h.b16 %v4816
      %v4962 = vunpack.c.l.b16 %v4817
      %v4963 = vunpack.c.h.b16 %v4817
      %v4964 = vunpack.c.l.b16 %v4818
      %v4965 = vunpack.c.h.b16 %v4818
      %v4966 = vunpack.c.l.b16 %v4819
      %v4967 = vunpack.c.h.b16 %v4819
      %v4968 = vunpack.c.l.b16 %v4820
      %v4969 = vunpack.c.h.b16 %v4820
      %v4970 = vunpack.c.l.b16 %v4821
      %v4971 = vunpack.c.h.b16 %v4821
      %v4972 = vunpack.c.l.b16 %v4822
      %v4973 = vunpack.c.h.b16 %v4822
      %v4974 = vunpack.c.l.b16 %v4823
      %v4975 = vunpack.c.h.b16 %v4823
      %v4976 = vunpack.c.l.b16 %v4824
      %v4977 = vunpack.c.h.b16 %v4824
      %v4978 = vunpack.c.l.b16 %v4825
      %v4979 = vunpack.c.h.b16 %v4825
      %v4980 = vunpack.c.l.b16 %v4826
      %v4981 = vunpack.c.h.b16 %v4826
      %v4982 = vunpack.c.l.b16 %v4827
      %v4983 = vunpack.c.h.b16 %v4827
      %v4984 = vunpack.c.l.b16 %v4828
      %v4985 = vunpack.c.h.b16 %v4828
      %v4986 = vunpack.c.l.b16 %v4829
      %v4987 = vunpack.c.h.b16 %v4829
      %v4988 = vunpack.c.l.b16 %v4830
      %v4989 = vunpack.c.h.b16 %v4830
      %v4990 = vunpack.c.l.b16 %v4831
      %v4991 = vunpack.c.h.b16 %v4831
      %v4992 = vunpack.c.l.b16 %v4832
      %v4993 = vunpack.c.h.b16 %v4832
      %v4994 = vunpack.c.l.b16 %v4833
      %v4995 = vunpack.c.h.b16 %v4833
      %v4996 = vunpack.c.l.b16 %v4834
      %v4997 = vunpack.c.h.b16 %v4834
      %v4998 = vunpack.c.l.b16 %v4835
      %v4999 = vunpack.c.h.b16 %v4835
      %v5000 = vunpack.c.l.b16 %v4836
      %v5001 = vunpack.c.h.b16 %v4836
      %v5002 = vunpack.c.l.b16 %v4837
      %v5003 = vunpack.c.h.b16 %v4837
      %v5004 = vunpack.c.l.b16 %v4838
      %v5005 = vunpack.c.h.b16 %v4838
      %v5006 = vunpack.c.l.b16 %v4839
      %v5007 = vunpack.c.h.b16 %v4839
      %v5008 = vunpack.c.l.b16 %v4840
      %v5009 = vunpack.c.h.b16 %v4840
      %v5010 = vunpack.c.l.b16 %v4841
      %v5011 = vunpack.c.h.b16 %v4841
      %v5012 = vunpack.c.l.b16 %v4842
      %v5013 = vunpack.c.h.b16 %v4842
      %v5014 = vunpack.c.l.b16 %v4843
      %v5015 = vunpack.c.h.b16 %v4843
      %v5016 = vunpack.c.l.b16 %v4844
      %v5017 = vunpack.c.h.b16 %v4844
      %v5018 = vunpack.c.l.b16 %v4845
      %v5019 = vunpack.c.h.b16 %v4845
      %v5020 = vunpack.c.l.b16 %v4846
      %v5021 = vunpack.c.h.b16 %v4846
      %v5022 = vunpack.c.l.b16 %v4847
      %v5023 = vunpack.c.h.b16 %v4847
      %v5024 = vunpack.c.l.b16 %v4848
      %v5025 = vunpack.c.h.b16 %v4848
      %v5026 = vunpack.c.l.b16 %v4849
      %v5027 = vunpack.c.h.b16 %v4849
      %v5028 = vunpack.c.l.b16 %v4850
      %v5029 = vunpack.c.h.b16 %v4850
      %v5030 = vunpack.c.l.b16 %v4851
      %v5031 = vunpack.c.h.b16 %v4851
      %v5032 = vunpack.c.l.b16 %v4852
      %v5033 = vunpack.c.h.b16 %v4852
      %v5034 = vunpack.c.l.b16 %v4853
      %v5035 = vunpack.c.h.b16 %v4853
      %v5036 = vunpack.c.l.b16 %v4854
      %v5037 = vunpack.c.h.b16 %v4854
      %v5038 = vunpack.c.l.b16 %v4855
      %v5039 = vunpack.c.h.b16 %v4855
      %v5040 = vunpack.c.l.b16 %v4856
      %v5041 = vunpack.c.h.b16 %v4856
      %v5042 = vunpack.c.l.b16 %v4857
      %v5043 = vunpack.c.h.b16 %v4857
      %v5044 = vunpack.c.l.b16 %v4858
      %v5045 = vunpack.c.h.b16 %v4858
      %v5046 = vunpack.c.l.b16 %v4859
      %v5047 = vunpack.c.h.b16 %v4859
      %v5048 = vunpack.c.l.b16 %v4860
      %v5049 = vunpack.c.h.b16 %v4860
      %v5050 = vunpack.c.l.b16 %v4861
      %v5051 = vunpack.c.h.b16 %v4861
      %v5052 = vunpack.c.l.b16 %v4862
      %v5053 = vunpack.c.h.b16 %v4862
      %v5054 = vunpack.c.l.b16 %v4863
      %v5055 = vunpack.c.h.b16 %v4863
      %v5056 = vpack.c.b16 %v4932, %v4928
      %v5057 = vpack.c.b16 %v4933, %v4929
      %v5058 = vpack.c.b16 %v4934, %v4930
      %v5059 = vpack.c.b16 %v4935, %v4931
      %v5060 = vpack.c.b16 %v4940, %v4936
      %v5061 = vpack.c.b16 %v4941, %v4937
      %v5062 = vpack.c.b16 %v4942, %v4938
      %v5063 = vpack.c.b16 %v4943, %v4939
      %v5064 = vpack.c.b16 %v4948, %v4944
      %v5065 = vpack.c.b16 %v4949, %v4945
      %v5066 = vpack.c.b16 %v4950, %v4946
      %v5067 = vpack.c.b16 %v4951, %v4947
      %v5068 = vpack.c.b16 %v4956, %v4952
      %v5069 = vpack.c.b16 %v4957, %v4953
      %v5070 = vpack.c.b16 %v4958, %v4954
      %v5071 = vpack.c.b16 %v4959, %v4955
      %v5072 = vpack.c.b16 %v4964, %v4960
      %v5073 = vpack.c.b16 %v4965, %v4961
      %v5074 = vpack.c.b16 %v4966, %v4962
      %v5075 = vpack.c.b16 %v4967, %v4963
      %v5076 = vpack.c.b16 %v4972, %v4968
      %v5077 = vpack.c.b16 %v4973, %v4969
      %v5078 = vpack.c.b16 %v4974, %v4970
      %v5079 = vpack.c.b16 %v4975, %v4971
      %v5080 = vpack.c.b16 %v4980, %v4976
      %v5081 = vpack.c.b16 %v4981, %v4977
      %v5082 = vpack.c.b16 %v4982, %v4978
      %v5083 = vpack.c.b16 %v4983, %v4979
      %v5084 = vpack.c.b16 %v4988, %v4984
      %v5085 = vpack.c.b16 %v4989, %v4985
      %v5086 = vpack.c.b16 %v4990, %v4986
      %v5087 = vpack.c.b16 %v4991, %v4987
      %v5088 = vpack.c.b16 %v4996, %v4992
      %v5089 = vpack.c.b16 %v4997, %v4993
      %v5090 = vpack.c.b16 %v4998, %v4994
      %v5091 = vpack.c.b16 %v4999, %v4995
      %v5092 = vpack.c.b16 %v5004, %v5000
      %v5093 = vpack.c.b16 %v5005, %v5001
      %v5094 = vpack.c.b16 %v5006, %v5002
      %v5095 = vpack.c.b16 %v5007, %v5003
      %v5096 = vpack.c.b16 %v5012, %v5008
      %v5097 = vpack.c.b16 %v5013, %v5009
      %v5098 = vpack.c.b16 %v5014, %v5010
      %v5099 = vpack.c.b16 %v5015, %v5011
      %v5100 = vpack.c.b16 %v5020, %v5016
      %v5101 = vpack.c.b16 %v5021, %v5017
      %v5102 = vpack.c.b16 %v5022, %v5018
      %v5103 = vpack.c.b16 %v5023, %v5019
      %v5104 = vpack.c.b16 %v5028, %v5024
      %v5105 = vpack.c.b16 %v5029, %v5025
      %v5106 = vpack.c.b16 %v5030, %v5026
      %v5107 = vpack.c.b16 %v5031, %v5027
      %v5108 = vpack.c.b16 %v5036, %v5032
      %v5109 = vpack.c.b16 %v5037, %v5033
      %v5110 = vpack.c.b16 %v5038, %v5034
      %v5111 = vpack.c.b16 %v5039, %v5035
      %v5112 = vpack.c.b16 %v5044, %v5040
      %v5113 = vpack.c.b16 %v5045, %v5041
      %v5114 = vpack.c.b16 %v5046, %v5042
      %v5115 = vpack.c.b16 %v5047, %v5043
      %v5116 = vpack.c.b16 %v5052, %v5048
      %v5117 = vpack.c.b16 %v5053, %v5049
      %v5118 = vpack.c.b16 %v5054, %v5050
      %v5119 = vpack.c.b16 %v5055, %v5051
      %5184 = vmatprep.subr.bf16.mxu0 %v5085
      %5185 = vmatpush1.bf16.msra.mxu0 %v5084
      %5186 = vmatprep.subr.bf16.mxu0 %v5081
      %5187 = vmatpush1.bf16.msra.mxu0 %v5080
      %5188 = vmatprep.subr.bf16.mxu0 %v5077
      %5189 = vmatpush1.bf16.msra.mxu0 %v5076
      %5190 = vmatprep.subr.bf16.mxu0 %v5073
      %5191 = vmatpush1.bf16.msra.mxu0 %v5072
      %5192 = vmatprep.subr.bf16.mxu0 %v5069
      %5193 = vmatpush1.bf16.msra.mxu0 %v5068
      %5194 = vmatprep.subr.bf16.mxu0 %v5065
      %5195 = vmatpush1.bf16.msra.mxu0 %v5064
      %5196 = vmatprep.subr.bf16.mxu0 %v5061
      %5197 = vmatpush1.bf16.msra.mxu0 %v5060
      %5198 = vmatprep.subr.bf16.mxu0 %v5057
      %5199 = vmatpush1.bf16.msra.mxu0 %v5056
      %5200 = vmatprep.subr.bf16.mxu0 %v5117
      %5201 = vmatpush2.bf16.msra.mxu0 %v5116
      %5202 = vmatprep.subr.bf16.mxu0 %v5113
      %5203 = vmatpush2.bf16.msra.mxu0 %v5112
      %5204 = vmatprep.subr.bf16.mxu0 %v5109
      %5205 = vmatpush2.bf16.msra.mxu0 %v5108
      %5206 = vmatprep.subr.bf16.mxu0 %v5105
      %5207 = vmatpush2.bf16.msra.mxu0 %v5104
      %5208 = vmatprep.subr.bf16.mxu0 %v5101
      %5209 = vmatpush2.bf16.msra.mxu0 %v5100
      %5210 = vmatprep.subr.bf16.mxu0 %v5097
      %5211 = vmatpush2.bf16.msra.mxu0 %v5096
      %5212 = vmatprep.subr.bf16.mxu0 %v5093
      %5213 = vmatpush2.bf16.msra.mxu0 %v5092
      %5214 = vmatprep.subr.bf16.mxu0 %v5089
      %5215 = vmatpush2.bf16.msra.mxu0 %v5088
      %5216 = vmatprep.mubr.bf16.mxu0 %v4624
      %5217 = vmatmul.mubr.bf16.gmra.mxu0 %v4617
      %v5218 = vpop.f32.mrf.mxu0
      %v5219 = vadd.f32 0.0, %v5218
      %v5220 = vpop.f32.mrf.mxu0
      %v5221 = vadd.f32 0.0, %v5220
      %v5222 = vpop.f32.mrf.mxu0
      %v5223 = vadd.f32 0.0, %v5222
      %v5224 = vpop.f32.mrf.mxu0
      %v5225 = vadd.f32 0.0, %v5224
      %5226 = vdwg.mxu0
      %5227 = vmatprep.subr.bf16.mxu0 %v5087
      %5228 = vmatpush1.bf16.msra.mxu0 %v5086
      %5229 = vmatprep.subr.bf16.mxu0 %v5083
      %5230 = vmatpush1.bf16.msra.mxu0 %v5082
      %5231 = vmatprep.subr.bf16.mxu0 %v5079
      %5232 = vmatpush1.bf16.msra.mxu0 %v5078
      %5233 = vmatprep.subr.bf16.mxu0 %v5075
      %5234 = vmatpush1.bf16.msra.mxu0 %v5074
      %5235 = vmatprep.subr.bf16.mxu0 %v5071
      %5236 = vmatpush1.bf16.msra.mxu0 %v5070
      %5237 = vmatprep.subr.bf16.mxu0 %v5067
      %5238 = vmatpush1.bf16.msra.mxu0 %v5066
      %5239 = vmatprep.subr.bf16.mxu0 %v5063
      %5240 = vmatpush1.bf16.msra.mxu0 %v5062
      %5241 = vmatprep.subr.bf16.mxu0 %v5059
      %5242 = vmatpush1.bf16.msra.mxu0 %v5058
      %5243 = vmatprep.subr.bf16.mxu0 %v5119
      %5244 = vmatpush2.bf16.msra.mxu0 %v5118
      %5245 = vmatprep.subr.bf16.mxu0 %v5115
      %5246 = vmatpush2.bf16.msra.mxu0 %v5114
      %5247 = vmatprep.subr.bf16.mxu0 %v5111
      %5248 = vmatpush2.bf16.msra.mxu0 %v5110
      %5249 = vmatprep.subr.bf16.mxu0 %v5107
      %5250 = vmatpush2.bf16.msra.mxu0 %v5106
      %5251 = vmatprep.subr.bf16.mxu0 %v5103
      %5252 = vmatpush2.bf16.msra.mxu0 %v5102
      %5253 = vmatprep.subr.bf16.mxu0 %v5099
      %5254 = vmatpush2.bf16.msra.mxu0 %v5098
      %5255 = vmatprep.subr.bf16.mxu0 %v5095
      %5256 = vmatpush2.bf16.msra.mxu0 %v5094
      %5257 = vmatprep.subr.bf16.mxu0 %v5091
      %5258 = vmatpush2.bf16.msra.mxu0 %v5090
      %5259 = vmatprep.mubr.bf16.mxu0 %v4624
      %5260 = vmatmul.mubr.bf16.gmra.mxu0 %v4617
      %v5261 = vpop.f32.mrf.mxu0
      %v5262 = vadd.f32 0.0, %v5261
      %v5263 = vpop.f32.mrf.mxu0
      %v5264 = vadd.f32 0.0, %v5263
      %v5265 = vpop.f32.mrf.mxu0
      %v5266 = vadd.f32 0.0, %v5265
      %v5267 = vpop.f32.mrf.mxu0
      %v5268 = vadd.f32 0.0, %v5267
      %5269 = vdwg.mxu0
      %v5270 = vadd.f32 %v4560, %v5219
      %v5271 = vadd.f32 %v4562, %v5221
      %v5272 = vadd.f32 %v4603, %v5262
      %v5273 = vadd.f32 %v4605, %v5264
      %v5274 = vadd.f32 %v4564, %v5223
      %v5275 = vadd.f32 %v4566, %v5225
      %v5276 = vadd.f32 %v4607, %v5266
      %v5277 = vadd.f32 %v4609, %v5268
      %v5279 = vshrl.u32 %v3668, 16
      %v5281 = vshll.u32 %v3668, 16
      %v5283 = vrot.slane %v5281, 1
      %v5284 = vor.u32 %v5279, %v5283
      %v5286 = vshrl.u32 %v3669, 16
      %v5288 = vshll.u32 %v3669, 16
      %v5290 = vrot.slane %v5288, 1
      %v5291 = vor.u32 %v5286, %v5290
      %5294 = vmatprep.subr.bf16.mxu0 %v5085
      %5295 = vmatpush1.bf16.msra.mxu0 %v5084
      %5296 = vmatprep.subr.bf16.mxu0 %v5081
      %5297 = vmatpush1.bf16.msra.mxu0 %v5080
      %5298 = vmatprep.subr.bf16.mxu0 %v5077
      %5299 = vmatpush1.bf16.msra.mxu0 %v5076
      %5300 = vmatprep.subr.bf16.mxu0 %v5073
      %5301 = vmatpush1.bf16.msra.mxu0 %v5072
      %5302 = vmatprep.subr.bf16.mxu0 %v5069
      %5303 = vmatpush1.bf16.msra.mxu0 %v5068
      %5304 = vmatprep.subr.bf16.mxu0 %v5065
      %5305 = vmatpush1.bf16.msra.mxu0 %v5064
      %5306 = vmatprep.subr.bf16.mxu0 %v5061
      %5307 = vmatpush1.bf16.msra.mxu0 %v5060
      %5308 = vmatprep.subr.bf16.mxu0 %v5057
      %5309 = vmatpush1.bf16.msra.mxu0 %v5056
      %5310 = vmatprep.subr.bf16.mxu0 %v5117
      %5311 = vmatpush2.bf16.msra.mxu0 %v5116
      %5312 = vmatprep.subr.bf16.mxu0 %v5113
      %5313 = vmatpush2.bf16.msra.mxu0 %v5112
      %5314 = vmatprep.subr.bf16.mxu0 %v5109
      %5315 = vmatpush2.bf16.msra.mxu0 %v5108
      %5316 = vmatprep.subr.bf16.mxu0 %v5105
      %5317 = vmatpush2.bf16.msra.mxu0 %v5104
      %5318 = vmatprep.subr.bf16.mxu0 %v5101
      %5319 = vmatpush2.bf16.msra.mxu0 %v5100
      %5320 = vmatprep.subr.bf16.mxu0 %v5097
      %5321 = vmatpush2.bf16.msra.mxu0 %v5096
      %5322 = vmatprep.subr.bf16.mxu0 %v5093
      %5323 = vmatpush2.bf16.msra.mxu0 %v5092
      %5324 = vmatprep.subr.bf16.mxu0 %v5089
      %5325 = vmatpush2.bf16.msra.mxu0 %v5088
      %5326 = vmatprep.mubr.bf16.mxu0 %v5291
      %5327 = vmatmul.mubr.bf16.gmra.mxu0 %v5284
      %v5328 = vpop.f32.mrf.mxu0
      %v5329 = vadd.f32 0.0, %v5328
      %v5330 = vpop.f32.mrf.mxu0
      %v5331 = vadd.f32 0.0, %v5330
      %v5332 = vpop.f32.mrf.mxu0
      %v5333 = vadd.f32 0.0, %v5332
      %v5334 = vpop.f32.mrf.mxu0
      %v5335 = vadd.f32 0.0, %v5334
      %5336 = vdwg.mxu0
      %5337 = vmatprep.subr.bf16.mxu0 %v5087
      %5338 = vmatpush1.bf16.msra.mxu0 %v5086
      %5339 = vmatprep.subr.bf16.mxu0 %v5083
      %5340 = vmatpush1.bf16.msra.mxu0 %v5082
      %5341 = vmatprep.subr.bf16.mxu0 %v5079
      %5342 = vmatpush1.bf16.msra.mxu0 %v5078
      %5343 = vmatprep.subr.bf16.mxu0 %v5075
      %5344 = vmatpush1.bf16.msra.mxu0 %v5074
      %5345 = vmatprep.subr.bf16.mxu0 %v5071
      %5346 = vmatpush1.bf16.msra.mxu0 %v5070
      %5347 = vmatprep.subr.bf16.mxu0 %v5067
      %5348 = vmatpush1.bf16.msra.mxu0 %v5066
      %5349 = vmatprep.subr.bf16.mxu0 %v5063
      %5350 = vmatpush1.bf16.msra.mxu0 %v5062
      %5351 = vmatprep.subr.bf16.mxu0 %v5059
      %5352 = vmatpush1.bf16.msra.mxu0 %v5058
      %5353 = vmatprep.subr.bf16.mxu0 %v5119
      %5354 = vmatpush2.bf16.msra.mxu0 %v5118
      %5355 = vmatprep.subr.bf16.mxu0 %v5115
      %5356 = vmatpush2.bf16.msra.mxu0 %v5114
      %5357 = vmatprep.subr.bf16.mxu0 %v5111
      %5358 = vmatpush2.bf16.msra.mxu0 %v5110
      %5359 = vmatprep.subr.bf16.mxu0 %v5107
      %5360 = vmatpush2.bf16.msra.mxu0 %v5106
      %5361 = vmatprep.subr.bf16.mxu0 %v5103
      %5362 = vmatpush2.bf16.msra.mxu0 %v5102
      %5363 = vmatprep.subr.bf16.mxu0 %v5099
      %5364 = vmatpush2.bf16.msra.mxu0 %v5098
      %5365 = vmatprep.subr.bf16.mxu0 %v5095
      %5366 = vmatpush2.bf16.msra.mxu0 %v5094
      %5367 = vmatprep.subr.bf16.mxu0 %v5091
      %5368 = vmatpush2.bf16.msra.mxu0 %v5090
      %5369 = vmatprep.mubr.bf16.mxu0 %v5291
      %5370 = vmatmul.mubr.bf16.gmra.mxu0 %v5284
      %v5371 = vpop.f32.mrf.mxu0
      %v5372 = vadd.f32 0.0, %v5371
      %v5373 = vpop.f32.mrf.mxu0
      %v5374 = vadd.f32 0.0, %v5373
      %v5375 = vpop.f32.mrf.mxu0
      %v5376 = vadd.f32 0.0, %v5375
      %v5377 = vpop.f32.mrf.mxu0
      %v5378 = vadd.f32 0.0, %v5377
      %5379 = vdwg.mxu0
      %v5380 = vadd.f32 %v4748, %v5329
      %v5381 = vadd.f32 %v4750, %v5331
      %v5382 = vadd.f32 %v4791, %v5372
      %v5383 = vadd.f32 %v4793, %v5374
      %v5384 = vadd.f32 %v4752, %v5333
      %v5385 = vadd.f32 %v4754, %v5335
      %v5386 = vadd.f32 %v4795, %v5376
      %v5387 = vadd.f32 %v4797, %v5378
      %s5388 = scalar_lea.vmem %s3, 1536
      %v5389 = vld [vmem:[%s5388] sm:$0xff]
      %v5390 = vld [vmem:[%s5388 + $0x8] sm:$0xff]
      %v5391 = vld [vmem:[%s5388 + $0x10] sm:$0xff]
      %v5392 = vld [vmem:[%s5388 + $0x18] sm:$0xff]
      %v5393 = vld [vmem:[%s5388 + $0x20] sm:$0xff]
      %v5394 = vld [vmem:[%s5388 + $0x28] sm:$0xff]
      %v5395 = vld [vmem:[%s5388 + $0x30] sm:$0xff]
      %v5396 = vld [vmem:[%s5388 + $0x38] sm:$0xff]
      %v5397 = vld [vmem:[%s5388 + $0x40] sm:$0xff]
      %v5398 = vld [vmem:[%s5388 + $0x48] sm:$0xff]
      %v5399 = vld [vmem:[%s5388 + $0x50] sm:$0xff]
      %v5400 = vld [vmem:[%s5388 + $0x58] sm:$0xff]
      %v5401 = vld [vmem:[%s5388 + $0x60] sm:$0xff]
      %v5402 = vld [vmem:[%s5388 + $0x68] sm:$0xff]
      %v5403 = vld [vmem:[%s5388 + $0x70] sm:$0xff]
      %v5404 = vld [vmem:[%s5388 + $0x78] sm:$0xff]
      %v5405 = vld [vmem:[%s5388 + $0x80] sm:$0xff]
      %v5406 = vld [vmem:[%s5388 + $0x88] sm:$0xff]
      %v5407 = vld [vmem:[%s5388 + $0x90] sm:$0xff]
      %v5408 = vld [vmem:[%s5388 + $0x98] sm:$0xff]
      %v5409 = vld [vmem:[%s5388 + $0xa0] sm:$0xff]
      %v5410 = vld [vmem:[%s5388 + $0xa8] sm:$0xff]
      %v5411 = vld [vmem:[%s5388 + $0xb0] sm:$0xff]
      %v5412 = vld [vmem:[%s5388 + $0xb8] sm:$0xff]
      %v5413 = vld [vmem:[%s5388 + $0xc0] sm:$0xff]
      %v5414 = vld [vmem:[%s5388 + $0xc8] sm:$0xff]
      %v5415 = vld [vmem:[%s5388 + $0xd0] sm:$0xff]
      %v5416 = vld [vmem:[%s5388 + $0xd8] sm:$0xff]
      %v5417 = vld [vmem:[%s5388 + $0xe0] sm:$0xff]
      %v5418 = vld [vmem:[%s5388 + $0xe8] sm:$0xff]
      %v5419 = vld [vmem:[%s5388 + $0xf0] sm:$0xff]
      %v5420 = vld [vmem:[%s5388 + $0xf8] sm:$0xff]
      %v5421 = vld [vmem:[%s5388 + $0x100] sm:$0xff]
      %v5422 = vld [vmem:[%s5388 + $0x108] sm:$0xff]
      %v5423 = vld [vmem:[%s5388 + $0x110] sm:$0xff]
      %v5424 = vld [vmem:[%s5388 + $0x118] sm:$0xff]
      %v5425 = vld [vmem:[%s5388 + $0x120] sm:$0xff]
      %v5426 = vld [vmem:[%s5388 + $0x128] sm:$0xff]
      %v5427 = vld [vmem:[%s5388 + $0x130] sm:$0xff]
      %v5428 = vld [vmem:[%s5388 + $0x138] sm:$0xff]
      %v5429 = vld [vmem:[%s5388 + $0x140] sm:$0xff]
      %v5430 = vld [vmem:[%s5388 + $0x148] sm:$0xff]
      %v5431 = vld [vmem:[%s5388 + $0x150] sm:$0xff]
      %v5432 = vld [vmem:[%s5388 + $0x158] sm:$0xff]
      %v5433 = vld [vmem:[%s5388 + $0x160] sm:$0xff]
      %v5434 = vld [vmem:[%s5388 + $0x168] sm:$0xff]
      %v5435 = vld [vmem:[%s5388 + $0x170] sm:$0xff]
      %v5436 = vld [vmem:[%s5388 + $0x178] sm:$0xff]
      %v5437 = vld [vmem:[%s5388 + $0x180] sm:$0xff]
      %v5438 = vld [vmem:[%s5388 + $0x188] sm:$0xff]
      %v5439 = vld [vmem:[%s5388 + $0x190] sm:$0xff]
      %v5440 = vld [vmem:[%s5388 + $0x198] sm:$0xff]
      %v5441 = vld [vmem:[%s5388 + $0x1a0] sm:$0xff]
      %v5442 = vld [vmem:[%s5388 + $0x1a8] sm:$0xff]
      %v5443 = vld [vmem:[%s5388 + $0x1b0] sm:$0xff]
      %v5444 = vld [vmem:[%s5388 + $0x1b8] sm:$0xff]
      %v5445 = vld [vmem:[%s5388 + $0x1c0] sm:$0xff]
      %v5446 = vld [vmem:[%s5388 + $0x1c8] sm:$0xff]
      %v5447 = vld [vmem:[%s5388 + $0x1d0] sm:$0xff]
      %v5448 = vld [vmem:[%s5388 + $0x1d8] sm:$0xff]
      %v5449 = vld [vmem:[%s5388 + $0x1e0] sm:$0xff]
      %v5450 = vld [vmem:[%s5388 + $0x1e8] sm:$0xff]
      %v5451 = vld [vmem:[%s5388 + $0x1f0] sm:$0xff]
      %v5452 = vld [vmem:[%s5388 + $0x1f8] sm:$0xff]
      %v5517 = vunpack.c.l.b16 %v5389
      %v5518 = vunpack.c.h.b16 %v5389
      %v5519 = vunpack.c.l.b16 %v5390
      %v5520 = vunpack.c.h.b16 %v5390
      %v5521 = vunpack.c.l.b16 %v5391
      %v5522 = vunpack.c.h.b16 %v5391
      %v5523 = vunpack.c.l.b16 %v5392
      %v5524 = vunpack.c.h.b16 %v5392
      %v5525 = vunpack.c.l.b16 %v5393
      %v5526 = vunpack.c.h.b16 %v5393
      %v5527 = vunpack.c.l.b16 %v5394
      %v5528 = vunpack.c.h.b16 %v5394
      %v5529 = vunpack.c.l.b16 %v5395
      %v5530 = vunpack.c.h.b16 %v5395
      %v5531 = vunpack.c.l.b16 %v5396
      %v5532 = vunpack.c.h.b16 %v5396
      %v5533 = vunpack.c.l.b16 %v5397
      %v5534 = vunpack.c.h.b16 %v5397
      %v5535 = vunpack.c.l.b16 %v5398
      %v5536 = vunpack.c.h.b16 %v5398
      %v5537 = vunpack.c.l.b16 %v5399
      %v5538 = vunpack.c.h.b16 %v5399
      %v5539 = vunpack.c.l.b16 %v5400
      %v5540 = vunpack.c.h.b16 %v5400
      %v5541 = vunpack.c.l.b16 %v5401
      %v5542 = vunpack.c.h.b16 %v5401
      %v5543 = vunpack.c.l.b16 %v5402
      %v5544 = vunpack.c.h.b16 %v5402
      %v5545 = vunpack.c.l.b16 %v5403
      %v5546 = vunpack.c.h.b16 %v5403
      %v5547 = vunpack.c.l.b16 %v5404
      %v5548 = vunpack.c.h.b16 %v5404
      %v5549 = vunpack.c.l.b16 %v5405
      %v5550 = vunpack.c.h.b16 %v5405
      %v5551 = vunpack.c.l.b16 %v5406
      %v5552 = vunpack.c.h.b16 %v5406
      %v5553 = vunpack.c.l.b16 %v5407
      %v5554 = vunpack.c.h.b16 %v5407
      %v5555 = vunpack.c.l.b16 %v5408
      %v5556 = vunpack.c.h.b16 %v5408
      %v5557 = vunpack.c.l.b16 %v5409
      %v5558 = vunpack.c.h.b16 %v5409
      %v5559 = vunpack.c.l.b16 %v5410
      %v5560 = vunpack.c.h.b16 %v5410
      %v5561 = vunpack.c.l.b16 %v5411
      %v5562 = vunpack.c.h.b16 %v5411
      %v5563 = vunpack.c.l.b16 %v5412
      %v5564 = vunpack.c.h.b16 %v5412
      %v5565 = vunpack.c.l.b16 %v5413
      %v5566 = vunpack.c.h.b16 %v5413
      %v5567 = vunpack.c.l.b16 %v5414
      %v5568 = vunpack.c.h.b16 %v5414
      %v5569 = vunpack.c.l.b16 %v5415
      %v5570 = vunpack.c.h.b16 %v5415
      %v5571 = vunpack.c.l.b16 %v5416
      %v5572 = vunpack.c.h.b16 %v5416
      %v5573 = vunpack.c.l.b16 %v5417
      %v5574 = vunpack.c.h.b16 %v5417
      %v5575 = vunpack.c.l.b16 %v5418
      %v5576 = vunpack.c.h.b16 %v5418
      %v5577 = vunpack.c.l.b16 %v5419
      %v5578 = vunpack.c.h.b16 %v5419
      %v5579 = vunpack.c.l.b16 %v5420
      %v5580 = vunpack.c.h.b16 %v5420
      %v5581 = vunpack.c.l.b16 %v5421
      %v5582 = vunpack.c.h.b16 %v5421
      %v5583 = vunpack.c.l.b16 %v5422
      %v5584 = vunpack.c.h.b16 %v5422
      %v5585 = vunpack.c.l.b16 %v5423
      %v5586 = vunpack.c.h.b16 %v5423
      %v5587 = vunpack.c.l.b16 %v5424
      %v5588 = vunpack.c.h.b16 %v5424
      %v5589 = vunpack.c.l.b16 %v5425
      %v5590 = vunpack.c.h.b16 %v5425
      %v5591 = vunpack.c.l.b16 %v5426
      %v5592 = vunpack.c.h.b16 %v5426
      %v5593 = vunpack.c.l.b16 %v5427
      %v5594 = vunpack.c.h.b16 %v5427
      %v5595 = vunpack.c.l.b16 %v5428
      %v5596 = vunpack.c.h.b16 %v5428
      %v5597 = vunpack.c.l.b16 %v5429
      %v5598 = vunpack.c.h.b16 %v5429
      %v5599 = vunpack.c.l.b16 %v5430
      %v5600 = vunpack.c.h.b16 %v5430
      %v5601 = vunpack.c.l.b16 %v5431
      %v5602 = vunpack.c.h.b16 %v5431
      %v5603 = vunpack.c.l.b16 %v5432
      %v5604 = vunpack.c.h.b16 %v5432
      %v5605 = vunpack.c.l.b16 %v5433
      %v5606 = vunpack.c.h.b16 %v5433
      %v5607 = vunpack.c.l.b16 %v5434
      %v5608 = vunpack.c.h.b16 %v5434
      %v5609 = vunpack.c.l.b16 %v5435
      %v5610 = vunpack.c.h.b16 %v5435
      %v5611 = vunpack.c.l.b16 %v5436
      %v5612 = vunpack.c.h.b16 %v5436
      %v5613 = vunpack.c.l.b16 %v5437
      %v5614 = vunpack.c.h.b16 %v5437
      %v5615 = vunpack.c.l.b16 %v5438
      %v5616 = vunpack.c.h.b16 %v5438
      %v5617 = vunpack.c.l.b16 %v5439
      %v5618 = vunpack.c.h.b16 %v5439
      %v5619 = vunpack.c.l.b16 %v5440
      %v5620 = vunpack.c.h.b16 %v5440
      %v5621 = vunpack.c.l.b16 %v5441
      %v5622 = vunpack.c.h.b16 %v5441
      %v5623 = vunpack.c.l.b16 %v5442
      %v5624 = vunpack.c.h.b16 %v5442
      %v5625 = vunpack.c.l.b16 %v5443
      %v5626 = vunpack.c.h.b16 %v5443
      %v5627 = vunpack.c.l.b16 %v5444
      %v5628 = vunpack.c.h.b16 %v5444
      %v5629 = vunpack.c.l.b16 %v5445
      %v5630 = vunpack.c.h.b16 %v5445
      %v5631 = vunpack.c.l.b16 %v5446
      %v5632 = vunpack.c.h.b16 %v5446
      %v5633 = vunpack.c.l.b16 %v5447
      %v5634 = vunpack.c.h.b16 %v5447
      %v5635 = vunpack.c.l.b16 %v5448
      %v5636 = vunpack.c.h.b16 %v5448
      %v5637 = vunpack.c.l.b16 %v5449
      %v5638 = vunpack.c.h.b16 %v5449
      %v5639 = vunpack.c.l.b16 %v5450
      %v5640 = vunpack.c.h.b16 %v5450
      %v5641 = vunpack.c.l.b16 %v5451
      %v5642 = vunpack.c.h.b16 %v5451
      %v5643 = vunpack.c.l.b16 %v5452
      %v5644 = vunpack.c.h.b16 %v5452
      %v5645 = vpack.c.b16 %v5521, %v5517
      %v5646 = vpack.c.b16 %v5522, %v5518
      %v5647 = vpack.c.b16 %v5523, %v5519
      %v5648 = vpack.c.b16 %v5524, %v5520
      %v5649 = vpack.c.b16 %v5529, %v5525
      %v5650 = vpack.c.b16 %v5530, %v5526
      %v5651 = vpack.c.b16 %v5531, %v5527
      %v5652 = vpack.c.b16 %v5532, %v5528
      %v5653 = vpack.c.b16 %v5537, %v5533
      %v5654 = vpack.c.b16 %v5538, %v5534
      %v5655 = vpack.c.b16 %v5539, %v5535
      %v5656 = vpack.c.b16 %v5540, %v5536
      %v5657 = vpack.c.b16 %v5545, %v5541
      %v5658 = vpack.c.b16 %v5546, %v5542
      %v5659 = vpack.c.b16 %v5547, %v5543
      %v5660 = vpack.c.b16 %v5548, %v5544
      %v5661 = vpack.c.b16 %v5553, %v5549
      %v5662 = vpack.c.b16 %v5554, %v5550
      %v5663 = vpack.c.b16 %v5555, %v5551
      %v5664 = vpack.c.b16 %v5556, %v5552
      %v5665 = vpack.c.b16 %v5561, %v5557
      %v5666 = vpack.c.b16 %v5562, %v5558
      %v5667 = vpack.c.b16 %v5563, %v5559
      %v5668 = vpack.c.b16 %v5564, %v5560
      %v5669 = vpack.c.b16 %v5569, %v5565
      %v5670 = vpack.c.b16 %v5570, %v5566
      %v5671 = vpack.c.b16 %v5571, %v5567
      %v5672 = vpack.c.b16 %v5572, %v5568
      %v5673 = vpack.c.b16 %v5577, %v5573
      %v5674 = vpack.c.b16 %v5578, %v5574
      %v5675 = vpack.c.b16 %v5579, %v5575
      %v5676 = vpack.c.b16 %v5580, %v5576
      %v5677 = vpack.c.b16 %v5585, %v5581
      %v5678 = vpack.c.b16 %v5586, %v5582
      %v5679 = vpack.c.b16 %v5587, %v5583
      %v5680 = vpack.c.b16 %v5588, %v5584
      %v5681 = vpack.c.b16 %v5593, %v5589
      %v5682 = vpack.c.b16 %v5594, %v5590
      %v5683 = vpack.c.b16 %v5595, %v5591
      %v5684 = vpack.c.b16 %v5596, %v5592
      %v5685 = vpack.c.b16 %v5601, %v5597
      %v5686 = vpack.c.b16 %v5602, %v5598
      %v5687 = vpack.c.b16 %v5603, %v5599
      %v5688 = vpack.c.b16 %v5604, %v5600
      %v5689 = vpack.c.b16 %v5609, %v5605
      %v5690 = vpack.c.b16 %v5610, %v5606
      %v5691 = vpack.c.b16 %v5611, %v5607
      %v5692 = vpack.c.b16 %v5612, %v5608
      %v5693 = vpack.c.b16 %v5617, %v5613
      %v5694 = vpack.c.b16 %v5618, %v5614
      %v5695 = vpack.c.b16 %v5619, %v5615
      %v5696 = vpack.c.b16 %v5620, %v5616
      %v5697 = vpack.c.b16 %v5625, %v5621
      %v5698 = vpack.c.b16 %v5626, %v5622
      %v5699 = vpack.c.b16 %v5627, %v5623
      %v5700 = vpack.c.b16 %v5628, %v5624
      %v5701 = vpack.c.b16 %v5633, %v5629
      %v5702 = vpack.c.b16 %v5634, %v5630
      %v5703 = vpack.c.b16 %v5635, %v5631
      %v5704 = vpack.c.b16 %v5636, %v5632
      %v5705 = vpack.c.b16 %v5641, %v5637
      %v5706 = vpack.c.b16 %v5642, %v5638
      %v5707 = vpack.c.b16 %v5643, %v5639
      %v5708 = vpack.c.b16 %v5644, %v5640
      %5773 = vmatprep.subr.bf16.mxu0 %v5674
      %5774 = vmatpush1.bf16.msra.mxu0 %v5673
      %5775 = vmatprep.subr.bf16.mxu0 %v5670
      %5776 = vmatpush1.bf16.msra.mxu0 %v5669
      %5777 = vmatprep.subr.bf16.mxu0 %v5666
      %5778 = vmatpush1.bf16.msra.mxu0 %v5665
      %5779 = vmatprep.subr.bf16.mxu0 %v5662
      %5780 = vmatpush1.bf16.msra.mxu0 %v5661
      %5781 = vmatprep.subr.bf16.mxu0 %v5658
      %5782 = vmatpush1.bf16.msra.mxu0 %v5657
      %5783 = vmatprep.subr.bf16.mxu0 %v5654
      %5784 = vmatpush1.bf16.msra.mxu0 %v5653
      %5785 = vmatprep.subr.bf16.mxu0 %v5650
      %5786 = vmatpush1.bf16.msra.mxu0 %v5649
      %5787 = vmatprep.subr.bf16.mxu0 %v5646
      %5788 = vmatpush1.bf16.msra.mxu0 %v5645
      %5789 = vmatprep.subr.bf16.mxu0 %v5706
      %5790 = vmatpush2.bf16.msra.mxu0 %v5705
      %5791 = vmatprep.subr.bf16.mxu0 %v5702
      %5792 = vmatpush2.bf16.msra.mxu0 %v5701
      %5793 = vmatprep.subr.bf16.mxu0 %v5698
      %5794 = vmatpush2.bf16.msra.mxu0 %v5697
      %5795 = vmatprep.subr.bf16.mxu0 %v5694
      %5796 = vmatpush2.bf16.msra.mxu0 %v5693
      %5797 = vmatprep.subr.bf16.mxu0 %v5690
      %5798 = vmatpush2.bf16.msra.mxu0 %v5689
      %5799 = vmatprep.subr.bf16.mxu0 %v5686
      %5800 = vmatpush2.bf16.msra.mxu0 %v5685
      %5801 = vmatprep.subr.bf16.mxu0 %v5682
      %5802 = vmatpush2.bf16.msra.mxu0 %v5681
      %5803 = vmatprep.subr.bf16.mxu0 %v5678
      %5804 = vmatpush2.bf16.msra.mxu0 %v5677
      %5805 = vmatprep.mubr.bf16.mxu0 %v5291
      %5806 = vmatmul.mubr.bf16.gmra.mxu0 %v5284
      %v5807 = vpop.f32.mrf.mxu0
      %v5808 = vadd.f32 0.0, %v5807
      %v5809 = vpop.f32.mrf.mxu0
      %v5810 = vadd.f32 0.0, %v5809
      %v5811 = vpop.f32.mrf.mxu0
      %v5812 = vadd.f32 0.0, %v5811
      %v5813 = vpop.f32.mrf.mxu0
      %v5814 = vadd.f32 0.0, %v5813
      %5815 = vdwg.mxu0
      %5816 = vmatprep.subr.bf16.mxu0 %v5676
      %5817 = vmatpush1.bf16.msra.mxu0 %v5675
      %5818 = vmatprep.subr.bf16.mxu0 %v5672
      %5819 = vmatpush1.bf16.msra.mxu0 %v5671
      %5820 = vmatprep.subr.bf16.mxu0 %v5668
      %5821 = vmatpush1.bf16.msra.mxu0 %v5667
      %5822 = vmatprep.subr.bf16.mxu0 %v5664
      %5823 = vmatpush1.bf16.msra.mxu0 %v5663
      %5824 = vmatprep.subr.bf16.mxu0 %v5660
      %5825 = vmatpush1.bf16.msra.mxu0 %v5659
      %5826 = vmatprep.subr.bf16.mxu0 %v5656
      %5827 = vmatpush1.bf16.msra.mxu0 %v5655
      %5828 = vmatprep.subr.bf16.mxu0 %v5652
      %5829 = vmatpush1.bf16.msra.mxu0 %v5651
      %5830 = vmatprep.subr.bf16.mxu0 %v5648
      %5831 = vmatpush1.bf16.msra.mxu0 %v5647
      %5832 = vmatprep.subr.bf16.mxu0 %v5708
      %5833 = vmatpush2.bf16.msra.mxu0 %v5707
      %5834 = vmatprep.subr.bf16.mxu0 %v5704
      %5835 = vmatpush2.bf16.msra.mxu0 %v5703
      %5836 = vmatprep.subr.bf16.mxu0 %v5700
      %5837 = vmatpush2.bf16.msra.mxu0 %v5699
      %5838 = vmatprep.subr.bf16.mxu0 %v5696
      %5839 = vmatpush2.bf16.msra.mxu0 %v5695
      %5840 = vmatprep.subr.bf16.mxu0 %v5692
      %5841 = vmatpush2.bf16.msra.mxu0 %v5691
      %5842 = vmatprep.subr.bf16.mxu0 %v5688
      %5843 = vmatpush2.bf16.msra.mxu0 %v5687
      %5844 = vmatprep.subr.bf16.mxu0 %v5684
      %5845 = vmatpush2.bf16.msra.mxu0 %v5683
      %5846 = vmatprep.subr.bf16.mxu0 %v5680
      %5847 = vmatpush2.bf16.msra.mxu0 %v5679
      %5848 = vmatprep.mubr.bf16.mxu0 %v5291
      %5849 = vmatmul.mubr.bf16.gmra.mxu0 %v5284
      %v5850 = vpop.f32.mrf.mxu0
      %v5851 = vadd.f32 0.0, %v5850
      %v5852 = vpop.f32.mrf.mxu0
      %v5853 = vadd.f32 0.0, %v5852
      %v5854 = vpop.f32.mrf.mxu0
      %v5855 = vadd.f32 0.0, %v5854
      %v5856 = vpop.f32.mrf.mxu0
      %v5857 = vadd.f32 0.0, %v5856
      %5858 = vdwg.mxu0
      %v5859 = vadd.f32 %v5270, %v5808
      %v5860 = vadd.f32 %v5271, %v5810
      %v5861 = vadd.f32 %v5272, %v5851
      %v5862 = vadd.f32 %v5273, %v5853
      %v5863 = vadd.f32 %v5274, %v5812
      %v5864 = vadd.f32 %v5275, %v5814
      %v5865 = vadd.f32 %v5276, %v5855
      %v5866 = vadd.f32 %v5277, %v5857
      %v5869 = vrot.slane %v3646, 1
      %v5870 = vrot.slane %v3647, 1
      %5873 = vmatprep.subr.bf16.mxu0 %v5674
      %5874 = vmatpush1.bf16.msra.mxu0 %v5673
      %5875 = vmatprep.subr.bf16.mxu0 %v5670
      %5876 = vmatpush1.bf16.msra.mxu0 %v5669
      %5877 = vmatprep.subr.bf16.mxu0 %v5666
      %5878 = vmatpush1.bf16.msra.mxu0 %v5665
      %5879 = vmatprep.subr.bf16.mxu0 %v5662
      %5880 = vmatpush1.bf16.msra.mxu0 %v5661
      %5881 = vmatprep.subr.bf16.mxu0 %v5658
      %5882 = vmatpush1.bf16.msra.mxu0 %v5657
      %5883 = vmatprep.subr.bf16.mxu0 %v5654
      %5884 = vmatpush1.bf16.msra.mxu0 %v5653
      %5885 = vmatprep.subr.bf16.mxu0 %v5650
      %5886 = vmatpush1.bf16.msra.mxu0 %v5649
      %5887 = vmatprep.subr.bf16.mxu0 %v5646
      %5888 = vmatpush1.bf16.msra.mxu0 %v5645
      %5889 = vmatprep.subr.bf16.mxu0 %v5706
      %5890 = vmatpush2.bf16.msra.mxu0 %v5705
      %5891 = vmatprep.subr.bf16.mxu0 %v5702
      %5892 = vmatpush2.bf16.msra.mxu0 %v5701
      %5893 = vmatprep.subr.bf16.mxu0 %v5698
      %5894 = vmatpush2.bf16.msra.mxu0 %v5697
      %5895 = vmatprep.subr.bf16.mxu0 %v5694
      %5896 = vmatpush2.bf16.msra.mxu0 %v5693
      %5897 = vmatprep.subr.bf16.mxu0 %v5690
      %5898 = vmatpush2.bf16.msra.mxu0 %v5689
      %5899 = vmatprep.subr.bf16.mxu0 %v5686
      %5900 = vmatpush2.bf16.msra.mxu0 %v5685
      %5901 = vmatprep.subr.bf16.mxu0 %v5682
      %5902 = vmatpush2.bf16.msra.mxu0 %v5681
      %5903 = vmatprep.subr.bf16.mxu0 %v5678
      %5904 = vmatpush2.bf16.msra.mxu0 %v5677
      %5905 = vmatprep.mubr.bf16.mxu0 %v5870
      %5906 = vmatmul.mubr.bf16.gmra.mxu0 %v5869
      %v5907 = vpop.f32.mrf.mxu0
      %v5908 = vadd.f32 0.0, %v5907
      %v5909 = vpop.f32.mrf.mxu0
      %v5910 = vadd.f32 0.0, %v5909
      %v5911 = vpop.f32.mrf.mxu0
      %v5912 = vadd.f32 0.0, %v5911
      %v5913 = vpop.f32.mrf.mxu0
      %v5914 = vadd.f32 0.0, %v5913
      %5915 = vdwg.mxu0
      %5916 = vmatprep.subr.bf16.mxu0 %v5676
      %5917 = vmatpush1.bf16.msra.mxu0 %v5675
      %5918 = vmatprep.subr.bf16.mxu0 %v5672
      %5919 = vmatpush1.bf16.msra.mxu0 %v5671
      %5920 = vmatprep.subr.bf16.mxu0 %v5668
      %5921 = vmatpush1.bf16.msra.mxu0 %v5667
      %5922 = vmatprep.subr.bf16.mxu0 %v5664
      %5923 = vmatpush1.bf16.msra.mxu0 %v5663
      %5924 = vmatprep.subr.bf16.mxu0 %v5660
      %5925 = vmatpush1.bf16.msra.mxu0 %v5659
      %5926 = vmatprep.subr.bf16.mxu0 %v5656
      %5927 = vmatpush1.bf16.msra.mxu0 %v5655
      %5928 = vmatprep.subr.bf16.mxu0 %v5652
      %5929 = vmatpush1.bf16.msra.mxu0 %v5651
      %5930 = vmatprep.subr.bf16.mxu0 %v5648
      %5931 = vmatpush1.bf16.msra.mxu0 %v5647
      %5932 = vmatprep.subr.bf16.mxu0 %v5708
      %5933 = vmatpush2.bf16.msra.mxu0 %v5707
      %5934 = vmatprep.subr.bf16.mxu0 %v5704
      %5935 = vmatpush2.bf16.msra.mxu0 %v5703
      %5936 = vmatprep.subr.bf16.mxu0 %v5700
      %5937 = vmatpush2.bf16.msra.mxu0 %v5699
      %5938 = vmatprep.subr.bf16.mxu0 %v5696
      %5939 = vmatpush2.bf16.msra.mxu0 %v5695
      %5940 = vmatprep.subr.bf16.mxu0 %v5692
      %5941 = vmatpush2.bf16.msra.mxu0 %v5691
      %5942 = vmatprep.subr.bf16.mxu0 %v5688
      %5943 = vmatpush2.bf16.msra.mxu0 %v5687
      %5944 = vmatprep.subr.bf16.mxu0 %v5684
      %5945 = vmatpush2.bf16.msra.mxu0 %v5683
      %5946 = vmatprep.subr.bf16.mxu0 %v5680
      %5947 = vmatpush2.bf16.msra.mxu0 %v5679
      %5948 = vmatprep.mubr.bf16.mxu0 %v5870
      %5949 = vmatmul.mubr.bf16.gmra.mxu0 %v5869
      %v5950 = vpop.f32.mrf.mxu0
      %v5951 = vadd.f32 0.0, %v5950
      %v5952 = vpop.f32.mrf.mxu0
      %v5953 = vadd.f32 0.0, %v5952
      %v5954 = vpop.f32.mrf.mxu0
      %v5955 = vadd.f32 0.0, %v5954
      %v5956 = vpop.f32.mrf.mxu0
      %v5957 = vadd.f32 0.0, %v5956
      %5958 = vdwg.mxu0
      %v5959 = vadd.f32 %v5380, %v5908
      %v5960 = vadd.f32 %v5381, %v5910
      %v5961 = vadd.f32 %v5382, %v5951
      %v5962 = vadd.f32 %v5383, %v5953
      %v5963 = vadd.f32 %v5384, %v5912
      %v5964 = vadd.f32 %v5385, %v5914
      %v5965 = vadd.f32 %v5386, %v5955
      %v5966 = vadd.f32 %v5387, %v5957
      %s5967 = scalar_lea.vmem %s3, 2048
      %v5968 = vld [vmem:[%s5967] sm:$0xff]
      %v5969 = vld [vmem:[%s5967 + $0x8] sm:$0xff]
      %v5970 = vld [vmem:[%s5967 + $0x10] sm:$0xff]
      %v5971 = vld [vmem:[%s5967 + $0x18] sm:$0xff]
      %v5972 = vld [vmem:[%s5967 + $0x20] sm:$0xff]
      %v5973 = vld [vmem:[%s5967 + $0x28] sm:$0xff]
      %v5974 = vld [vmem:[%s5967 + $0x30] sm:$0xff]
      %v5975 = vld [vmem:[%s5967 + $0x38] sm:$0xff]
      %v5976 = vld [vmem:[%s5967 + $0x40] sm:$0xff]
      %v5977 = vld [vmem:[%s5967 + $0x48] sm:$0xff]
      %v5978 = vld [vmem:[%s5967 + $0x50] sm:$0xff]
      %v5979 = vld [vmem:[%s5967 + $0x58] sm:$0xff]
      %v5980 = vld [vmem:[%s5967 + $0x60] sm:$0xff]
      %v5981 = vld [vmem:[%s5967 + $0x68] sm:$0xff]
      %v5982 = vld [vmem:[%s5967 + $0x70] sm:$0xff]
      %v5983 = vld [vmem:[%s5967 + $0x78] sm:$0xff]
      %v5984 = vld [vmem:[%s5967 + $0x80] sm:$0xff]
      %v5985 = vld [vmem:[%s5967 + $0x88] sm:$0xff]
      %v5986 = vld [vmem:[%s5967 + $0x90] sm:$0xff]
      %v5987 = vld [vmem:[%s5967 + $0x98] sm:$0xff]
      %v5988 = vld [vmem:[%s5967 + $0xa0] sm:$0xff]
      %v5989 = vld [vmem:[%s5967 + $0xa8] sm:$0xff]
      %v5990 = vld [vmem:[%s5967 + $0xb0] sm:$0xff]
      %v5991 = vld [vmem:[%s5967 + $0xb8] sm:$0xff]
      %v5992 = vld [vmem:[%s5967 + $0xc0] sm:$0xff]
      %v5993 = vld [vmem:[%s5967 + $0xc8] sm:$0xff]
      %v5994 = vld [vmem:[%s5967 + $0xd0] sm:$0xff]
      %v5995 = vld [vmem:[%s5967 + $0xd8] sm:$0xff]
      %v5996 = vld [vmem:[%s5967 + $0xe0] sm:$0xff]
      %v5997 = vld [vmem:[%s5967 + $0xe8] sm:$0xff]
      %v5998 = vld [vmem:[%s5967 + $0xf0] sm:$0xff]
      %v5999 = vld [vmem:[%s5967 + $0xf8] sm:$0xff]
      %v6000 = vld [vmem:[%s5967 + $0x100] sm:$0xff]
      %v6001 = vld [vmem:[%s5967 + $0x108] sm:$0xff]
      %v6002 = vld [vmem:[%s5967 + $0x110] sm:$0xff]
      %v6003 = vld [vmem:[%s5967 + $0x118] sm:$0xff]
      %v6004 = vld [vmem:[%s5967 + $0x120] sm:$0xff]
      %v6005 = vld [vmem:[%s5967 + $0x128] sm:$0xff]
      %v6006 = vld [vmem:[%s5967 + $0x130] sm:$0xff]
      %v6007 = vld [vmem:[%s5967 + $0x138] sm:$0xff]
      %v6008 = vld [vmem:[%s5967 + $0x140] sm:$0xff]
      %v6009 = vld [vmem:[%s5967 + $0x148] sm:$0xff]
      %v6010 = vld [vmem:[%s5967 + $0x150] sm:$0xff]
      %v6011 = vld [vmem:[%s5967 + $0x158] sm:$0xff]
      %v6012 = vld [vmem:[%s5967 + $0x160] sm:$0xff]
      %v6013 = vld [vmem:[%s5967 + $0x168] sm:$0xff]
      %v6014 = vld [vmem:[%s5967 + $0x170] sm:$0xff]
      %v6015 = vld [vmem:[%s5967 + $0x178] sm:$0xff]
      %v6016 = vld [vmem:[%s5967 + $0x180] sm:$0xff]
      %v6017 = vld [vmem:[%s5967 + $0x188] sm:$0xff]
      %v6018 = vld [vmem:[%s5967 + $0x190] sm:$0xff]
      %v6019 = vld [vmem:[%s5967 + $0x198] sm:$0xff]
      %v6020 = vld [vmem:[%s5967 + $0x1a0] sm:$0xff]
      %v6021 = vld [vmem:[%s5967 + $0x1a8] sm:$0xff]
      %v6022 = vld [vmem:[%s5967 + $0x1b0] sm:$0xff]
      %v6023 = vld [vmem:[%s5967 + $0x1b8] sm:$0xff]
      %v6024 = vld [vmem:[%s5967 + $0x1c0] sm:$0xff]
      %v6025 = vld [vmem:[%s5967 + $0x1c8] sm:$0xff]
      %v6026 = vld [vmem:[%s5967 + $0x1d0] sm:$0xff]
      %v6027 = vld [vmem:[%s5967 + $0x1d8] sm:$0xff]
      %v6028 = vld [vmem:[%s5967 + $0x1e0] sm:$0xff]
      %v6029 = vld [vmem:[%s5967 + $0x1e8] sm:$0xff]
      %v6030 = vld [vmem:[%s5967 + $0x1f0] sm:$0xff]
      %v6031 = vld [vmem:[%s5967 + $0x1f8] sm:$0xff]
      %v6096 = vunpack.c.l.b16 %v5968
      %v6097 = vunpack.c.h.b16 %v5968
      %v6098 = vunpack.c.l.b16 %v5969
      %v6099 = vunpack.c.h.b16 %v5969
      %v6100 = vunpack.c.l.b16 %v5970
      %v6101 = vunpack.c.h.b16 %v5970
      %v6102 = vunpack.c.l.b16 %v5971
      %v6103 = vunpack.c.h.b16 %v5971
      %v6104 = vunpack.c.l.b16 %v5972
      %v6105 = vunpack.c.h.b16 %v5972
      %v6106 = vunpack.c.l.b16 %v5973
      %v6107 = vunpack.c.h.b16 %v5973
      %v6108 = vunpack.c.l.b16 %v5974
      %v6109 = vunpack.c.h.b16 %v5974
      %v6110 = vunpack.c.l.b16 %v5975
      %v6111 = vunpack.c.h.b16 %v5975
      %v6112 = vunpack.c.l.b16 %v5976
      %v6113 = vunpack.c.h.b16 %v5976
      %v6114 = vunpack.c.l.b16 %v5977
      %v6115 = vunpack.c.h.b16 %v5977
      %v6116 = vunpack.c.l.b16 %v5978
      %v6117 = vunpack.c.h.b16 %v5978
      %v6118 = vunpack.c.l.b16 %v5979
      %v6119 = vunpack.c.h.b16 %v5979
      %v6120 = vunpack.c.l.b16 %v5980
      %v6121 = vunpack.c.h.b16 %v5980
      %v6122 = vunpack.c.l.b16 %v5981
      %v6123 = vunpack.c.h.b16 %v5981
      %v6124 = vunpack.c.l.b16 %v5982
      %v6125 = vunpack.c.h.b16 %v5982
      %v6126 = vunpack.c.l.b16 %v5983
      %v6127 = vunpack.c.h.b16 %v5983
      %v6128 = vunpack.c.l.b16 %v5984
      %v6129 = vunpack.c.h.b16 %v5984
      %v6130 = vunpack.c.l.b16 %v5985
      %v6131 = vunpack.c.h.b16 %v5985
      %v6132 = vunpack.c.l.b16 %v5986
      %v6133 = vunpack.c.h.b16 %v5986
      %v6134 = vunpack.c.l.b16 %v5987
      %v6135 = vunpack.c.h.b16 %v5987
      %v6136 = vunpack.c.l.b16 %v5988
      %v6137 = vunpack.c.h.b16 %v5988
      %v6138 = vunpack.c.l.b16 %v5989
      %v6139 = vunpack.c.h.b16 %v5989
      %v6140 = vunpack.c.l.b16 %v5990
      %v6141 = vunpack.c.h.b16 %v5990
      %v6142 = vunpack.c.l.b16 %v5991
      %v6143 = vunpack.c.h.b16 %v5991
      %v6144 = vunpack.c.l.b16 %v5992
      %v6145 = vunpack.c.h.b16 %v5992
      %v6146 = vunpack.c.l.b16 %v5993
      %v6147 = vunpack.c.h.b16 %v5993
      %v6148 = vunpack.c.l.b16 %v5994
      %v6149 = vunpack.c.h.b16 %v5994
      %v6150 = vunpack.c.l.b16 %v5995
      %v6151 = vunpack.c.h.b16 %v5995
      %v6152 = vunpack.c.l.b16 %v5996
      %v6153 = vunpack.c.h.b16 %v5996
      %v6154 = vunpack.c.l.b16 %v5997
      %v6155 = vunpack.c.h.b16 %v5997
      %v6156 = vunpack.c.l.b16 %v5998
      %v6157 = vunpack.c.h.b16 %v5998
      %v6158 = vunpack.c.l.b16 %v5999
      %v6159 = vunpack.c.h.b16 %v5999
      %v6160 = vunpack.c.l.b16 %v6000
      %v6161 = vunpack.c.h.b16 %v6000
      %v6162 = vunpack.c.l.b16 %v6001
      %v6163 = vunpack.c.h.b16 %v6001
      %v6164 = vunpack.c.l.b16 %v6002
      %v6165 = vunpack.c.h.b16 %v6002
      %v6166 = vunpack.c.l.b16 %v6003
      %v6167 = vunpack.c.h.b16 %v6003
      %v6168 = vunpack.c.l.b16 %v6004
      %v6169 = vunpack.c.h.b16 %v6004
      %v6170 = vunpack.c.l.b16 %v6005
      %v6171 = vunpack.c.h.b16 %v6005
      %v6172 = vunpack.c.l.b16 %v6006
      %v6173 = vunpack.c.h.b16 %v6006
      %v6174 = vunpack.c.l.b16 %v6007
      %v6175 = vunpack.c.h.b16 %v6007
      %v6176 = vunpack.c.l.b16 %v6008
      %v6177 = vunpack.c.h.b16 %v6008
      %v6178 = vunpack.c.l.b16 %v6009
      %v6179 = vunpack.c.h.b16 %v6009
      %v6180 = vunpack.c.l.b16 %v6010
      %v6181 = vunpack.c.h.b16 %v6010
      %v6182 = vunpack.c.l.b16 %v6011
      %v6183 = vunpack.c.h.b16 %v6011
      %v6184 = vunpack.c.l.b16 %v6012
      %v6185 = vunpack.c.h.b16 %v6012
      %v6186 = vunpack.c.l.b16 %v6013
      %v6187 = vunpack.c.h.b16 %v6013
      %v6188 = vunpack.c.l.b16 %v6014
      %v6189 = vunpack.c.h.b16 %v6014
      %v6190 = vunpack.c.l.b16 %v6015
      %v6191 = vunpack.c.h.b16 %v6015
      %v6192 = vunpack.c.l.b16 %v6016
      %v6193 = vunpack.c.h.b16 %v6016
      %v6194 = vunpack.c.l.b16 %v6017
      %v6195 = vunpack.c.h.b16 %v6017
      %v6196 = vunpack.c.l.b16 %v6018
      %v6197 = vunpack.c.h.b16 %v6018
      %v6198 = vunpack.c.l.b16 %v6019
      %v6199 = vunpack.c.h.b16 %v6019
      %v6200 = vunpack.c.l.b16 %v6020
      %v6201 = vunpack.c.h.b16 %v6020
      %v6202 = vunpack.c.l.b16 %v6021
      %v6203 = vunpack.c.h.b16 %v6021
      %v6204 = vunpack.c.l.b16 %v6022
      %v6205 = vunpack.c.h.b16 %v6022
      %v6206 = vunpack.c.l.b16 %v6023
      %v6207 = vunpack.c.h.b16 %v6023
      %v6208 = vunpack.c.l.b16 %v6024
      %v6209 = vunpack.c.h.b16 %v6024
      %v6210 = vunpack.c.l.b16 %v6025
      %v6211 = vunpack.c.h.b16 %v6025
      %v6212 = vunpack.c.l.b16 %v6026
      %v6213 = vunpack.c.h.b16 %v6026
      %v6214 = vunpack.c.l.b16 %v6027
      %v6215 = vunpack.c.h.b16 %v6027
      %v6216 = vunpack.c.l.b16 %v6028
      %v6217 = vunpack.c.h.b16 %v6028
      %v6218 = vunpack.c.l.b16 %v6029
      %v6219 = vunpack.c.h.b16 %v6029
      %v6220 = vunpack.c.l.b16 %v6030
      %v6221 = vunpack.c.h.b16 %v6030
      %v6222 = vunpack.c.l.b16 %v6031
      %v6223 = vunpack.c.h.b16 %v6031
      %v6224 = vpack.c.b16 %v6100, %v6096
      %v6225 = vpack.c.b16 %v6101, %v6097
      %v6226 = vpack.c.b16 %v6102, %v6098
      %v6227 = vpack.c.b16 %v6103, %v6099
      %v6228 = vpack.c.b16 %v6108, %v6104
      %v6229 = vpack.c.b16 %v6109, %v6105
      %v6230 = vpack.c.b16 %v6110, %v6106
      %v6231 = vpack.c.b16 %v6111, %v6107
      %v6232 = vpack.c.b16 %v6116, %v6112
      %v6233 = vpack.c.b16 %v6117, %v6113
      %v6234 = vpack.c.b16 %v6118, %v6114
      %v6235 = vpack.c.b16 %v6119, %v6115
      %v6236 = vpack.c.b16 %v6124, %v6120
      %v6237 = vpack.c.b16 %v6125, %v6121
      %v6238 = vpack.c.b16 %v6126, %v6122
      %v6239 = vpack.c.b16 %v6127, %v6123
      %v6240 = vpack.c.b16 %v6132, %v6128
      %v6241 = vpack.c.b16 %v6133, %v6129
      %v6242 = vpack.c.b16 %v6134, %v6130
      %v6243 = vpack.c.b16 %v6135, %v6131
      %v6244 = vpack.c.b16 %v6140, %v6136
      %v6245 = vpack.c.b16 %v6141, %v6137
      %v6246 = vpack.c.b16 %v6142, %v6138
      %v6247 = vpack.c.b16 %v6143, %v6139
      %v6248 = vpack.c.b16 %v6148, %v6144
      %v6249 = vpack.c.b16 %v6149, %v6145
      %v6250 = vpack.c.b16 %v6150, %v6146
      %v6251 = vpack.c.b16 %v6151, %v6147
      %v6252 = vpack.c.b16 %v6156, %v6152
      %v6253 = vpack.c.b16 %v6157, %v6153
      %v6254 = vpack.c.b16 %v6158, %v6154
      %v6255 = vpack.c.b16 %v6159, %v6155
      %v6256 = vpack.c.b16 %v6164, %v6160
      %v6257 = vpack.c.b16 %v6165, %v6161
      %v6258 = vpack.c.b16 %v6166, %v6162
      %v6259 = vpack.c.b16 %v6167, %v6163
      %v6260 = vpack.c.b16 %v6172, %v6168
      %v6261 = vpack.c.b16 %v6173, %v6169
      %v6262 = vpack.c.b16 %v6174, %v6170
      %v6263 = vpack.c.b16 %v6175, %v6171
      %v6264 = vpack.c.b16 %v6180, %v6176
      %v6265 = vpack.c.b16 %v6181, %v6177
      %v6266 = vpack.c.b16 %v6182, %v6178
      %v6267 = vpack.c.b16 %v6183, %v6179
      %v6268 = vpack.c.b16 %v6188, %v6184
      %v6269 = vpack.c.b16 %v6189, %v6185
      %v6270 = vpack.c.b16 %v6190, %v6186
      %v6271 = vpack.c.b16 %v6191, %v6187
      %v6272 = vpack.c.b16 %v6196, %v6192
      %v6273 = vpack.c.b16 %v6197, %v6193
      %v6274 = vpack.c.b16 %v6198, %v6194
      %v6275 = vpack.c.b16 %v6199, %v6195
      %v6276 = vpack.c.b16 %v6204, %v6200
      %v6277 = vpack.c.b16 %v6205, %v6201
      %v6278 = vpack.c.b16 %v6206, %v6202
      %v6279 = vpack.c.b16 %v6207, %v6203
      %v6280 = vpack.c.b16 %v6212, %v6208
      %v6281 = vpack.c.b16 %v6213, %v6209
      %v6282 = vpack.c.b16 %v6214, %v6210
      %v6283 = vpack.c.b16 %v6215, %v6211
      %v6284 = vpack.c.b16 %v6220, %v6216
      %v6285 = vpack.c.b16 %v6221, %v6217
      %v6286 = vpack.c.b16 %v6222, %v6218
      %v6287 = vpack.c.b16 %v6223, %v6219
      %6352 = vmatprep.subr.bf16.mxu0 %v6253
      %6353 = vmatpush1.bf16.msra.mxu0 %v6252
      %6354 = vmatprep.subr.bf16.mxu0 %v6249
      %6355 = vmatpush1.bf16.msra.mxu0 %v6248
      %6356 = vmatprep.subr.bf16.mxu0 %v6245
      %6357 = vmatpush1.bf16.msra.mxu0 %v6244
      %6358 = vmatprep.subr.bf16.mxu0 %v6241
      %6359 = vmatpush1.bf16.msra.mxu0 %v6240
      %6360 = vmatprep.subr.bf16.mxu0 %v6237
      %6361 = vmatpush1.bf16.msra.mxu0 %v6236
      %6362 = vmatprep.subr.bf16.mxu0 %v6233
      %6363 = vmatpush1.bf16.msra.mxu0 %v6232
      %6364 = vmatprep.subr.bf16.mxu0 %v6229
      %6365 = vmatpush1.bf16.msra.mxu0 %v6228
      %6366 = vmatprep.subr.bf16.mxu0 %v6225
      %6367 = vmatpush1.bf16.msra.mxu0 %v6224
      %6368 = vmatprep.subr.bf16.mxu0 %v6285
      %6369 = vmatpush2.bf16.msra.mxu0 %v6284
      %6370 = vmatprep.subr.bf16.mxu0 %v6281
      %6371 = vmatpush2.bf16.msra.mxu0 %v6280
      %6372 = vmatprep.subr.bf16.mxu0 %v6277
      %6373 = vmatpush2.bf16.msra.mxu0 %v6276
      %6374 = vmatprep.subr.bf16.mxu0 %v6273
      %6375 = vmatpush2.bf16.msra.mxu0 %v6272
      %6376 = vmatprep.subr.bf16.mxu0 %v6269
      %6377 = vmatpush2.bf16.msra.mxu0 %v6268
      %6378 = vmatprep.subr.bf16.mxu0 %v6265
      %6379 = vmatpush2.bf16.msra.mxu0 %v6264
      %6380 = vmatprep.subr.bf16.mxu0 %v6261
      %6381 = vmatpush2.bf16.msra.mxu0 %v6260
      %6382 = vmatprep.subr.bf16.mxu0 %v6257
      %6383 = vmatpush2.bf16.msra.mxu0 %v6256
      %6384 = vmatprep.mubr.bf16.mxu0 %v5870
      %6385 = vmatmul.mubr.bf16.gmra.mxu0 %v5869
      %v6386 = vpop.f32.mrf.mxu0
      %v6387 = vadd.f32 0.0, %v6386
      %v6388 = vpop.f32.mrf.mxu0
      %v6389 = vadd.f32 0.0, %v6388
      %v6390 = vpop.f32.mrf.mxu0
      %v6391 = vadd.f32 0.0, %v6390
      %v6392 = vpop.f32.mrf.mxu0
      %v6393 = vadd.f32 0.0, %v6392
      %6394 = vdwg.mxu0
      %6395 = vmatprep.subr.bf16.mxu0 %v6255
      %6396 = vmatpush1.bf16.msra.mxu0 %v6254
      %6397 = vmatprep.subr.bf16.mxu0 %v6251
      %6398 = vmatpush1.bf16.msra.mxu0 %v6250
      %6399 = vmatprep.subr.bf16.mxu0 %v6247
      %6400 = vmatpush1.bf16.msra.mxu0 %v6246
      %6401 = vmatprep.subr.bf16.mxu0 %v6243
      %6402 = vmatpush1.bf16.msra.mxu0 %v6242
      %6403 = vmatprep.subr.bf16.mxu0 %v6239
      %6404 = vmatpush1.bf16.msra.mxu0 %v6238
      %6405 = vmatprep.subr.bf16.mxu0 %v6235
      %6406 = vmatpush1.bf16.msra.mxu0 %v6234
      %6407 = vmatprep.subr.bf16.mxu0 %v6231
      %6408 = vmatpush1.bf16.msra.mxu0 %v6230
      %6409 = vmatprep.subr.bf16.mxu0 %v6227
      %6410 = vmatpush1.bf16.msra.mxu0 %v6226
      %6411 = vmatprep.subr.bf16.mxu0 %v6287
      %6412 = vmatpush2.bf16.msra.mxu0 %v6286
      %6413 = vmatprep.subr.bf16.mxu0 %v6283
      %6414 = vmatpush2.bf16.msra.mxu0 %v6282
      %6415 = vmatprep.subr.bf16.mxu0 %v6279
      %6416 = vmatpush2.bf16.msra.mxu0 %v6278
      %6417 = vmatprep.subr.bf16.mxu0 %v6275
      %6418 = vmatpush2.bf16.msra.mxu0 %v6274
      %6419 = vmatprep.subr.bf16.mxu0 %v6271
      %6420 = vmatpush2.bf16.msra.mxu0 %v6270
      %6421 = vmatprep.subr.bf16.mxu0 %v6267
      %6422 = vmatpush2.bf16.msra.mxu0 %v6266
      %6423 = vmatprep.subr.bf16.mxu0 %v6263
      %6424 = vmatpush2.bf16.msra.mxu0 %v6262
      %6425 = vmatprep.subr.bf16.mxu0 %v6259
      %6426 = vmatpush2.bf16.msra.mxu0 %v6258
      %6427 = vmatprep.mubr.bf16.mxu0 %v5870
      %6428 = vmatmul.mubr.bf16.gmra.mxu0 %v5869
      %v6429 = vpop.f32.mrf.mxu0
      %v6430 = vadd.f32 0.0, %v6429
      %v6431 = vpop.f32.mrf.mxu0
      %v6432 = vadd.f32 0.0, %v6431
      %v6433 = vpop.f32.mrf.mxu0
      %v6434 = vadd.f32 0.0, %v6433
      %v6435 = vpop.f32.mrf.mxu0
      %v6436 = vadd.f32 0.0, %v6435
      %6437 = vdwg.mxu0
      %v6438 = vadd.f32 %v5859, %v6387
      %v6439 = vadd.f32 %v5860, %v6389
      %v6440 = vadd.f32 %v5861, %v6430
      %v6441 = vadd.f32 %v5862, %v6432
      %v6442 = vadd.f32 %v5863, %v6391
      %v6443 = vadd.f32 %v5864, %v6393
      %v6444 = vadd.f32 %v5865, %v6434
      %v6445 = vadd.f32 %v5866, %v6436
      %v6448 = vrot.slane %v3668, 1
      %v6449 = vrot.slane %v3669, 1
      %6452 = vmatprep.subr.bf16.mxu0 %v6253
      %6453 = vmatpush1.bf16.msra.mxu0 %v6252
      %6454 = vmatprep.subr.bf16.mxu0 %v6249
      %6455 = vmatpush1.bf16.msra.mxu0 %v6248
      %6456 = vmatprep.subr.bf16.mxu0 %v6245
      %6457 = vmatpush1.bf16.msra.mxu0 %v6244
      %6458 = vmatprep.subr.bf16.mxu0 %v6241
      %6459 = vmatpush1.bf16.msra.mxu0 %v6240
      %6460 = vmatprep.subr.bf16.mxu0 %v6237
      %6461 = vmatpush1.bf16.msra.mxu0 %v6236
      %6462 = vmatprep.subr.bf16.mxu0 %v6233
      %6463 = vmatpush1.bf16.msra.mxu0 %v6232
      %6464 = vmatprep.subr.bf16.mxu0 %v6229
      %6465 = vmatpush1.bf16.msra.mxu0 %v6228
      %6466 = vmatprep.subr.bf16.mxu0 %v6225
      %6467 = vmatpush1.bf16.msra.mxu0 %v6224
      %6468 = vmatprep.subr.bf16.mxu0 %v6285
      %6469 = vmatpush2.bf16.msra.mxu0 %v6284
      %6470 = vmatprep.subr.bf16.mxu0 %v6281
      %6471 = vmatpush2.bf16.msra.mxu0 %v6280
      %6472 = vmatprep.subr.bf16.mxu0 %v6277
      %6473 = vmatpush2.bf16.msra.mxu0 %v6276
      %6474 = vmatprep.subr.bf16.mxu0 %v6273
      %6475 = vmatpush2.bf16.msra.mxu0 %v6272
      %6476 = vmatprep.subr.bf16.mxu0 %v6269
      %6477 = vmatpush2.bf16.msra.mxu0 %v6268
      %6478 = vmatprep.subr.bf16.mxu0 %v6265
      %6479 = vmatpush2.bf16.msra.mxu0 %v6264
      %6480 = vmatprep.subr.bf16.mxu0 %v6261
      %6481 = vmatpush2.bf16.msra.mxu0 %v6260
      %6482 = vmatprep.subr.bf16.mxu0 %v6257
      %6483 = vmatpush2.bf16.msra.mxu0 %v6256
      %6484 = vmatprep.mubr.bf16.mxu0 %v6449
      %6485 = vmatmul.mubr.bf16.gmra.mxu0 %v6448
      %v6486 = vpop.f32.mrf.mxu0
      %v6487 = vadd.f32 0.0, %v6486
      %v6488 = vpop.f32.mrf.mxu0
      %v6489 = vadd.f32 0.0, %v6488
      %v6490 = vpop.f32.mrf.mxu0
      %v6491 = vadd.f32 0.0, %v6490
      %v6492 = vpop.f32.mrf.mxu0
      %v6493 = vadd.f32 0.0, %v6492
      %6494 = vdwg.mxu0
      %6495 = vmatprep.subr.bf16.mxu0 %v6255
      %6496 = vmatpush1.bf16.msra.mxu0 %v6254
      %6497 = vmatprep.subr.bf16.mxu0 %v6251
      %6498 = vmatpush1.bf16.msra.mxu0 %v6250
      %6499 = vmatprep.subr.bf16.mxu0 %v6247
      %6500 = vmatpush1.bf16.msra.mxu0 %v6246
      %6501 = vmatprep.subr.bf16.mxu0 %v6243
      %6502 = vmatpush1.bf16.msra.mxu0 %v6242
      %6503 = vmatprep.subr.bf16.mxu0 %v6239
      %6504 = vmatpush1.bf16.msra.mxu0 %v6238
      %6505 = vmatprep.subr.bf16.mxu0 %v6235
      %6506 = vmatpush1.bf16.msra.mxu0 %v6234
      %6507 = vmatprep.subr.bf16.mxu0 %v6231
      %6508 = vmatpush1.bf16.msra.mxu0 %v6230
      %6509 = vmatprep.subr.bf16.mxu0 %v6227
      %6510 = vmatpush1.bf16.msra.mxu0 %v6226
      %6511 = vmatprep.subr.bf16.mxu0 %v6287
      %6512 = vmatpush2.bf16.msra.mxu0 %v6286
      %6513 = vmatprep.subr.bf16.mxu0 %v6283
      %6514 = vmatpush2.bf16.msra.mxu0 %v6282
      %6515 = vmatprep.subr.bf16.mxu0 %v6279
      %6516 = vmatpush2.bf16.msra.mxu0 %v6278
      %6517 = vmatprep.subr.bf16.mxu0 %v6275
      %6518 = vmatpush2.bf16.msra.mxu0 %v6274
      %6519 = vmatprep.subr.bf16.mxu0 %v6271
      %6520 = vmatpush2.bf16.msra.mxu0 %v6270
      %6521 = vmatprep.subr.bf16.mxu0 %v6267
      %6522 = vmatpush2.bf16.msra.mxu0 %v6266
      %6523 = vmatprep.subr.bf16.mxu0 %v6263
      %6524 = vmatpush2.bf16.msra.mxu0 %v6262
      %6525 = vmatprep.subr.bf16.mxu0 %v6259
      %6526 = vmatpush2.bf16.msra.mxu0 %v6258
      %6527 = vmatprep.mubr.bf16.mxu0 %v6449
      %6528 = vmatmul.mubr.bf16.gmra.mxu0 %v6448
      %v6529 = vpop.f32.mrf.mxu0
      %v6530 = vadd.f32 0.0, %v6529
      %v6531 = vpop.f32.mrf.mxu0
      %v6532 = vadd.f32 0.0, %v6531
      %v6533 = vpop.f32.mrf.mxu0
      %v6534 = vadd.f32 0.0, %v6533
      %v6535 = vpop.f32.mrf.mxu0
      %v6536 = vadd.f32 0.0, %v6535
      %6537 = vdwg.mxu0
      %v6538 = vadd.f32 %v5959, %v6487
      %v6539 = vadd.f32 %v5960, %v6489
      %v6540 = vadd.f32 %v5961, %v6530
      %v6541 = vadd.f32 %v5962, %v6532
      %v6542 = vadd.f32 %v5963, %v6491
      %v6543 = vadd.f32 %v5964, %v6493
      %v6544 = vadd.f32 %v5965, %v6534
      %v6545 = vadd.f32 %v5966, %v6536
      %v6546 = vmax.f32 %v6438, %v6538
      %v6547 = vmax.f32 %v6439, %v6539
      %v6548 = vmax.f32 %v6440, %v6540
      %v6549 = vmax.f32 %v6441, %v6541
      %v6550 = vmax.f32 %v6442, %v6542
      %v6551 = vmax.f32 %v6443, %v6543
      %v6552 = vmax.f32 %v6444, %v6544
      %v6553 = vmax.f32 %v6445, %v6545
      %v6554 = vmax.f32 %v6546, %v6548
      %v6555 = vmax.f32 %v6547, %v6549
      %v6556 = vmax.f32 %v6550, %v6552
      %v6557 = vmax.f32 %v6551, %v6553
      %v6558 = vld [vmem:[%s4] sm:$0x3]
      %v6560 = vlaneseq
      %v6561 = vshrl.u32 %v6560, 7
      %v6562 = vsub.s32 0, %v6561
      %v6563 = vrot.slane %v6558, %v6562
      %v6564 = vlaneseq
      %v6565 = vshrl.u32 %v6564, 7
      %v6566 = vsub.s32 1, %v6565
      %v6567 = vrot.slane %v6558, %v6566
      %v6570 = vadd.f32 %v6554, %v6563
      %v6571 = vadd.f32 %v6555, %v6567
      %v6572 = vadd.f32 %v6556, %v6563
      %v6573 = vadd.f32 %v6557, %v6567
      %v6574 = vmax.f32 %v6570, 0.0
      %v6575 = vmax.f32 %v6571, 0.0
      %v6576 = vmax.f32 %v6572, 0.0
      %v6577 = vmax.f32 %v6573, 0.0
      %v6578 = vpack.c.bf16 %v6576, %v6574
      %v6579 = vpack.c.bf16 %v6577, %v6575
      %v6582 = vunpack.c.l.b16 %v6578
      %v6583 = vunpack.c.l.b16 %v6579
      %v6584 = vunpack.c.h.b16 %v6578
      %v6585 = vunpack.c.h.b16 %v6579
      %v6586 = vpack.c.b16 %v6583, %v6582
      %v6587 = vpack.c.b16 %v6585, %v6584
      %6590 = vst [vmem:[%s224] sm:$0xff] %v6586
      %vm6591 = vcmask 1042432
      %vm6592 = vsmask.f32 2304
      %vm6593 = vmand %vm6591, %vm6592
      %vm6594 = vcmask 1046532
      %vm6595 = vsmask.f32 6400
      %vm6596 = vmand %vm6594, %vm6595
      %vm6597 = vmor %vm6596, %vm6593
      %v6598 = vld [vmem:[%s224 + $0x8] sm:$0x77]
      %v6599 = vsel %vm6597, %v6587, %v6598
      %6600 = vst [vmem:[%s224 + $0x8] sm:$0x77] %v6599
      %p6601 = scmp.lt.s32.totalorder %s16, 1
      %s6602 = scalar_select %p6601, %s16, 1
      %s6603 = smul.addr %s6602, 4
      %s6604 = smul.addr %s6603, 4
      %s6605 = scalar_lea.vmem %s5, %s6604
      // Predicated region
      $region41: #{cnn_forward.2} parent=39 // pred_check
        %p6606 = pneg %p144
      $region42: #{cnn_forward.2} parent=39 // pred_check_branch
        %6608 = sbr.rel (%p6606) target = $region44
      $region43: #{cnn_forward.2} parent=39 // pred_region
        _
      $region44: #{cnn_forward.2} parent=39 // pred_fallthru
        _
    $region40: #{cnn_forward.2} parent=5 // pred_fallthru
      _
    %p6609 = scmp.le.s32.totalorder 2, %s11
    // Predicated region
    $region45: #{cnn_forward.2} parent=5 // pred_check
      %p6610 = pneg %p6609
    $region46: #{cnn_forward.2} parent=5 // pred_check_branch
      %6612 = sbr.rel (%p6610) target = $region48
    $region47: #{cnn_forward.2} parent=5 // pred_region
      %s6613 = ssub.s32 %s11, 2
      // Predicated region
      $region49: #{cnn_forward.2} parent=47 // pred_check
        %p6614 = pneg %p150
      $region50: #{cnn_forward.2} parent=47 // pred_check_branch
        %6616 = sbr.rel (%p6614) target = $region52
      $region51: #{cnn_forward.2} parent=47 // pred_region
        %p6617 = scmp.lt.s32.totalorder %s17, 1
        %s6618 = scalar_select %p6617, %s17, 1
        %s6619 = smul.addr %s6618, 4
        %s6620 = smul.addr %s6619, 4
        %s6621 = scalar_lea.vmem %s5, %s6620
      $region52: #{cnn_forward.2} parent=47 // pred_fallthru
        _
    $region48: #{cnn_forward.2} parent=5 // pred_fallthru
      _
  $region6: #{cnn_forward.2} parent=0 // loop_footer
    %s15 = sadd.s32 1, %s11
  $region7: #{cnn_forward.2} parent=0 // loop_footer_branch
    %10 = sbr.rel target = $region3
  $region8: #{cnn_forward.2} parent=0 // loop_exit
    _

</llo_original>
